<compile_context>
chip_gen: v5e
topology: v5e:2x2
jax: 0.10.0
libtpu: 0.0.40
codegen_flags: <defaults>
</compile_context>

<pallas_src>
import functools

import jax
import jax.numpy as jnp
import numpy as np
from jax import lax
from jax.experimental import pallas as pl
from jax.experimental.pallas import tpu as pltpu


def _window_attn_kernel(x_ref, wqkv_ref, bqkv_ref, rpb_ref, wp_ref, bp_ref, o_ref,
                        *, bt, n, num_heads, head_dim, mm_dtype):
    """One grid step = `bt` windows flattened to an M = bt*n matmul row dimension."""
    C = num_heads * head_dim
    M = bt * n

    x = x_ref[...]                                                     # (M, C) mm_dtype

    # Fused QKV projection: ONE (M, C) @ (C, 3C) MXU matmul, f32 accumulate.  The qk scale
    # is folded into the Q columns of wqkv / bqkv by the wrapper.
    qkv = jnp.dot(x, wqkv_ref[...],
                  preferred_element_type=jnp.float32) + bqkv_ref[0]    # (M, 3C) f32
    q = qkv[:, 0 * C:1 * C]
    k = qkv[:, 1 * C:2 * C]
    v = qkv[:, 2 * C:3 * C]

    # Per-head attention folded straight into the output projection:
    #   out = concat_h(attn_h) @ Wp + bp = sum_h attn_h @ Wp[h*hd:(h+1)*hd, :] + bp
    # -> no (M, C) head-output scratch slab, no masked lane-sparse stores.
    # TODO(synk): for real Swin head counts (>= 8), fold heads into the dot_general batch
    #             dims (one relayout) instead of unrolling this Python loop.
    acc = jnp.zeros((M, C), jnp.float32)
    for h in range(num_heads):                                         # static, small unroll
        lo = h * head_dim
        qh = q[:, lo:lo + head_dim].reshape(bt, n, head_dim).astype(mm_dtype)
        kh = k[:, lo:lo + head_dim].reshape(bt, n, head_dim).astype(mm_dtype)
        vh = v[:, lo:lo + head_dim].reshape(bt, n, head_dim).astype(mm_dtype)

        # Window-batched QK^T (batch = bt windows of this tile).
        s = lax.dot_general(qh, kh, (((2,), (2,)), ((0,), (0,))),
                            preferred_element_type=jnp.float32)        # (bt, n, n)
        s = s + rpb_ref[h]                                             # (n, n), bcast over bt

        # Numerically stable softmax in f32; exact divide (rows are tiny, EUP approx not
        # worth the parity loss here).
        m = jnp.max(s, axis=-1, keepdims=True)
        e = jnp.exp(s - m)
        p = e / jnp.sum(e, axis=-1, keepdims=True)

        oh = lax.dot_general(p.astype(mm_dtype), vh,
                             (((2,), (1,)), ((0,), (0,))),
                             preferred_element_type=jnp.float32)       # (bt, n, hd)

        # Fold this head's slice of the output projection into the f32 accumulator.
        acc = acc + jnp.dot(oh.reshape(M, head_dim).astype(mm_dtype),
                            wp_ref[lo:lo + head_dim, :],
                            preferred_element_type=jnp.float32)        # (M, C)

    # Lane-dense-as-possible store: the block spans the full channel dim, so the HBM
    # writeback region for this step is one contiguous slab.
    o_ref[...] = (acc + bp_ref[0]).astype(o_ref.dtype)


def _pick_window_tile(B_, N, target_m=512):
    """Largest divisor of B_ with bt*N <= target_m, preferring grid extent >= 4.

    Grid extent >= 4 keeps >= 2 steps per TensorCore on v7x (cross-step DMA/compute
    overlap).  v6e/v5e are single-core: there only M matters (push target_m toward 1024 on
    v6e; M ~ 128-256 is already enough for v5e's 128-deep MXUs).
    """
    divisors = [d for d in range(1, B_ + 1) if B_ % d == 0]
    ok = [d for d in divisors if d * N <= max(target_m, N)]
    for min_steps in (4, 2, 1):
        pool = [d for d in ok if B_ // d >= min_steps]
        if pool:
            return max(pool)
    return max(ok)


def _relative_position_bias(rpb_table, window_size, num_heads):
    """(num_heads, N, N) bias from the learned table (host-side glue, mirrors PyTorch)."""
    Wh, Ww = window_size
    N = Wh * Ww
    coords = np.stack(np.meshgrid(np.arange(Wh), np.arange(Ww), indexing="ij"))
    cf = coords.reshape(2, -1)
    rel = (cf[:, :, None] - cf[:, None, :]).transpose(1, 2, 0)
    rel[:, :, 0] += Wh - 1
    rel[:, :, 1] += Ww - 1
    rel[:, :, 0] *= 2 * Ww - 1
    idx = rel.sum(-1)                                                  # (N, N)
    rpb = jnp.asarray(rpb_table, jnp.float32)[idx.reshape(-1)]
    return rpb.reshape(N, N, num_heads).transpose(2, 0, 1)             # (H, N, N)


def window_attention(x, params, window_size, num_heads, *,
                     block_windows=None, target_m=512, mm_dtype=jnp.bfloat16):
    """x: (B_, N, C) float32; params in PyTorch layouts (see __main__).

    mm_dtype: MXU-operand dtype.  Default bf16 on all TPU generations (accumulation and all
    softmax math stay f32); use jnp.float32 only if bit-level parity with an f32 model
    matters more than ~2-3x matmul throughput.
    """
    # TODO(synk): shifted-window `mask` argument not supported (mask=None branch only).
    B_, N, C = x.shape
    head_dim = C // num_heads
    scale = head_dim ** (-0.5)

    rpb = _relative_position_bias(params["rpb_table"], window_size, num_heads)

    # Pad N to a multiple of 8 (real Swin N=49 -> 56): keeps M = bt*Np sublane-aligned and
    # in-kernel reshapes copy-free.  Padded keys get a -1e9 bias (~0 softmax weight); padded
    # query rows are sliced away below.
    n_pad = (-N) % 8
    Np = N + n_pad
    if n_pad:
        x = jnp.pad(x, ((0, 0), (0, n_pad), (0, 0)))
        rpb = jnp.pad(rpb, ((0, 0), (0, n_pad), (0, n_pad)))
        rpb = rpb.at[:, :, N:].set(-1e9)

    # Fused, pre-transposed QKV weight (C, 3C); fold the qk scale into the Q block so the
    # kernel never multiplies q by scale.  MXU operands -> mm_dtype; biases / bias table f32.
    wqkv = jnp.asarray(params["qkv_w"], jnp.float32).T                 # (C, 3C)
    bqkv = jnp.asarray(params["qkv_b"], jnp.float32).reshape(1, 3 * C)
    col_scale = jnp.concatenate([jnp.full((C,), scale, jnp.float32),
                                 jnp.ones((2 * C,), jnp.float32)])
    wqkv = (wqkv * col_scale[None, :]).astype(mm_dtype)
    bqkv = bqkv * col_scale[None, :]
    wp = jnp.asarray(params["proj_w"], jnp.float32).T.astype(mm_dtype)  # (C, C)
    bp = jnp.asarray(params["proj_b"], jnp.float32).reshape(1, C)

    bt = block_windows if block_windows is not None else _pick_window_tile(B_, Np, target_m)
    assert B_ % bt == 0, "block_windows must divide B_"
    M = bt * Np
    x2 = x.reshape(B_ * Np, C).astype(mm_dtype)                        # windows -> M rows

    kernel = functools.partial(_window_attn_kernel, bt=bt, n=Np,
                               num_heads=num_heads, head_dim=head_dim,
                               mm_dtype=mm_dtype)

    def bcast_spec(shape, single_buffer):
        # Grid-invariant operand: its block index never changes, so single-buffering halves
        # its VMEM footprint (matters at real Swin C=768 on v7x's 64 MiB VMEM).
        idx_map = lambda b, _nd=len(shape): (0,) * _nd
        if single_buffer:
            return pl.BlockSpec(shape, idx_map, pipeline_mode=pl.Buffered(1))
        return pl.BlockSpec(shape, idx_map)

    def run(single_buffer_weights):
        return pl.pallas_call(
            kernel,
            out_shape=jax.ShapeDtypeStruct((B_ * Np, C), x.dtype),
            grid_spec=pltpu.PrefetchScalarGridSpec(
                num_scalar_prefetch=0,
                grid=(B_ // bt,),
                in_specs=[
                    pl.BlockSpec((M, C), lambda b: (b, 0)),          # x tile (double-buffered)
                    bcast_spec((C, 3 * C), single_buffer_weights),   # fused qkv weight
                    bcast_spec((1, 3 * C), single_buffer_weights),   # fused qkv bias
                    bcast_spec((num_heads, Np, Np), single_buffer_weights),  # rel-pos bias
                    bcast_spec((C, C), single_buffer_weights),       # proj weight
                    bcast_spec((1, C), single_buffer_weights),       # proj bias
                ],
                out_specs=pl.BlockSpec((M, C), lambda b: (b, 0)),
            ),
            compiler_params=pltpu.CompilerParams(
                dimension_semantics=("parallel",),
                vmem_limit_bytes=32 * 1024 * 1024,
            ),
        )(x2, wqkv, bqkv, rpb, wp, bp)

    try:
        out2 = run(True)
    except Exception:
        # TODO(synk): some jax versions reject pipeline_mode=pl.Buffered(1); fall back to
        # default double-buffered specs (identical semantics, slightly more VMEM).
        out2 = run(False)

    out = out2.reshape(B_, Np, C)
    return out[:, :N, :] if n_pad else out


def reference(x, params, window_size, num_heads):
    """Plain-JAX reference mirroring the PyTorch forward (mask=None), f32, HIGHEST precision."""
    B_, N, C = x.shape
    head_dim = C // num_heads
    scale = head_dim ** (-0.5)
    hi = jax.lax.Precision.HIGHEST
    qkv = jnp.einsum("bnc,dc->bnd", x, jnp.asarray(params["qkv_w"], jnp.float32),
                     precision=hi) + jnp.asarray(params["qkv_b"], jnp.float32)
    qkv = qkv.reshape(B_, N, 3, num_heads, head_dim).transpose(2, 0, 3, 1, 4)
    q, k, v = qkv[0], qkv[1], qkv[2]
    q = q * scale
    attn = jnp.einsum("bhnd,bhmd->bhnm", q, k, precision=hi)
    rpb = _relative_position_bias(params["rpb_table"], window_size, num_heads)
    attn = attn + rpb[None]
    attn = jax.nn.softmax(attn, axis=-1)
    out = jnp.einsum("bhnm,bhmd->bhnd", attn, v, precision=hi)
    out = out.transpose(0, 2, 1, 3).reshape(B_, N, C)
    return jnp.einsum("bnc,dc->bnd", out, jnp.asarray(params["proj_w"], jnp.float32),
                      precision=hi) + jnp.asarray(params["proj_b"], jnp.float32)


if __name__ == "__main__":
    # Small shapes consistent with the module: dim=32, 4x4 windows (N=16), 2 heads,
    # B_ = num_windows*batch = 64 (e.g. batch 4 over a 32x32 feature map).
    # -> tile picker: bt=16 windows/step, M=256 rows, grid=4 (>= 2 steps per v7x core).
    dim = 32
    window_size = (4, 4)
    num_heads = 2
    N = window_size[0] * window_size[1]
    B_ = 64

    key = jax.random.PRNGKey(0)
    k_x, k_rpb, k_qkvw, k_qkvb, k_pw, k_pb = jax.random.split(key, 6)

    x = jax.random.normal(k_x, (B_, N, dim), jnp.float32)
    params = {
        # Synthetic deterministic init (std bumped vs. trunc_normal(0.02) so the bias term's
        # contribution is well above the test tolerance).
        "rpb_table": 0.5 * jax.random.normal(
            k_rpb, ((2 * window_size[0] - 1) * (2 * window_size[1] - 1), num_heads),
            jnp.float32),
        "qkv_w": 0.2 * jax.random.normal(k_qkvw, (3 * dim, dim), jnp.float32),
        "qkv_b": 0.1 * jax.random.normal(k_qkvb, (3 * dim,), jnp.float32),
        "proj_w": 0.2 * jax.random.normal(k_pw, (dim, dim), jnp.float32),
        "proj_b": 0.1 * jax.random.normal(k_pb, (dim,), jnp.float32),
    }

    # 1) Default path (bf16 MXU operands).  Compared against the reference evaluated on the
    #    SAME bf16-truncated x / weights: this isolates kernel-structure errors from the
    #    expected operand-truncation error.  The remaining diffs come only from the
    #    in-kernel bf16 casts of the softmax probabilities / per-head outputs (~1e-2 worst
    #    case at these magnitudes), so 3e-2 still catches any structural bug (missing bias,
    #    scale, head slicing, window batching), which shows up at O(0.1-1).
    out_bf16 = jax.block_until_ready(window_attention(x, params, window_size, num_heads))
    trunc = lambda a: jnp.asarray(a, jnp.float32).astype(jnp.bfloat16).astype(jnp.float32)
    params_t = dict(params, qkv_w=trunc(params["qkv_w"]), proj_w=trunc(params["proj_w"]))
    ref_t = reference(trunc(x), params_t, window_size, num_heads)
    np.testing.assert_allclose(np.asarray(out_bf16), np.asarray(ref_t), rtol=3e-2, atol=3e-2)

    # 2) f32 MXU operands: tight structural check against the plain f32 reference (only
    #    matmul-pass / accumulation-order differences remain; no approx reciprocal anymore).
    out_f32 = jax.block_until_ready(
        window_attention(x, params, window_size, num_heads, mm_dtype=jnp.float32))
    ref = reference(x, params, window_size, num_heads)
    np.testing.assert_allclose(np.asarray(out_f32), np.asarray(ref), rtol=2e-2, atol=2e-2)

    print("KERNEL_OK")
</pallas_src>

<mosaic_0001>
module attributes {stable_mosaic.version = 11 : i64} {
  func.func @_window_attn_kernel(%arg0: i32, %arg1: memref<256x32xbf16, #tpu.memory_space<vmem>>, %arg2: memref<32x96xbf16, #tpu.memory_space<vmem>>, %arg3: memref<1x96xf32, #tpu.memory_space<vmem>>, %arg4: memref<2x16x16xf32, #tpu.memory_space<vmem>>, %arg5: memref<32x32xbf16, #tpu.memory_space<vmem>>, %arg6: memref<1x32xf32, #tpu.memory_space<vmem>>, %arg7: memref<256x32xf32, #tpu.memory_space<vmem>>) attributes {dimension_semantics = [#tpu.dimension_semantics<parallel>], iteration_bounds = array<i64: 4>, scalar_prefetch = 0 : i64, scratch_operands = 0 : i64, tpu.core_type = #tpu.core_type<tc>, window_params = [{transform_indices = @transform_0, window_bounds = array<i64: 256, 32>}, {pipeline_mode = #tpu.pipeline_mode<synchronous>, transform_indices = @transform_1, window_bounds = array<i64: 32, 96>}, {pipeline_mode = #tpu.pipeline_mode<synchronous>, transform_indices = @transform_2, window_bounds = array<i64: 1, 96>}, {pipeline_mode = #tpu.pipeline_mode<synchronous>, transform_indices = @transform_3, window_bounds = array<i64: 2, 16, 16>}, {pipeline_mode = #tpu.pipeline_mode<synchronous>, transform_indices = @transform_4, window_bounds = array<i64: 32, 32>}, {pipeline_mode = #tpu.pipeline_mode<synchronous>, transform_indices = @transform_5, window_bounds = array<i64: 1, 32>}, {transform_indices = @transform_6, window_bounds = array<i64: 256, 32>}]} {
    %c0 = arith.constant 0 : index
    %c0_0 = arith.constant 0 : index
    %0 = vector.load %arg1[%c0, %c0_0] : memref<256x32xbf16, #tpu.memory_space<vmem>>, vector<256x32xbf16>
    %c0_1 = arith.constant 0 : index
    %c0_2 = arith.constant 0 : index
    %1 = vector.load %arg2[%c0_1, %c0_2] : memref<32x96xbf16, #tpu.memory_space<vmem>>, vector<32x96xbf16>
    %cst = arith.constant dense<0.000000e+00> : vector<256x96xf32>
    %2 = tpu.matmul %0, %1, %cst {dimension_numbers = #tpu.dot_dimension_numbers<[1], [0], [0], [1], [0, 0, 1, 1], [], []>} : vector<256x32xbf16>, vector<32x96xbf16>, vector<256x96xf32> -> vector<256x96xf32>
    %c0_3 = arith.constant 0 : index
    %c0_4 = arith.constant 0 : index
    %3 = vector.load %arg3[%c0_3, %c0_4] : memref<1x96xf32, #tpu.memory_space<vmem>>, vector<1x96xf32>
    %4 = vector.shape_cast %3 : vector<1x96xf32> to vector<96xf32>
    %5 = vector.shape_cast %4 : vector<96xf32> to vector<1x96xf32>
    %6 = vector.broadcast %5 : vector<1x96xf32> to vector<256x96xf32>
    %7 = arith.addf %2, %6 : vector<256x96xf32>
    %8 = vector.extract_strided_slice %7 {offsets = [0, 0], sizes = [256, 32], strides = [1, 1]} : vector<256x96xf32> to vector<256x32xf32>
    %9 = vector.extract_strided_slice %7 {offsets = [0, 32], sizes = [256, 32], strides = [1, 1]} : vector<256x96xf32> to vector<256x32xf32>
    %10 = vector.extract_strided_slice %7 {offsets = [0, 64], sizes = [256, 32], strides = [1, 1]} : vector<256x96xf32> to vector<256x32xf32>
    %cst_5 = arith.constant 0.000000e+00 : f32
    %11 = vector.broadcast %cst_5 : f32 to vector<256x32xf32>
    %12 = vector.extract_strided_slice %8 {offsets = [0, 0], sizes = [256, 16], strides = [1, 1]} : vector<256x32xf32> to vector<256x16xf32>
    %13 = vector.shape_cast %12 : vector<256x16xf32> to vector<16x16x16xf32>
    %14 = arith.truncf %13 : vector<16x16x16xf32> to vector<16x16x16xbf16>
    %15 = vector.extract_strided_slice %9 {offsets = [0, 0], sizes = [256, 16], strides = [1, 1]} : vector<256x32xf32> to vector<256x16xf32>
    %16 = vector.shape_cast %15 : vector<256x16xf32> to vector<16x16x16xf32>
    %17 = arith.truncf %16 : vector<16x16x16xf32> to vector<16x16x16xbf16>
    %18 = vector.extract_strided_slice %10 {offsets = [0, 0], sizes = [256, 16], strides = [1, 1]} : vector<256x32xf32> to vector<256x16xf32>
    %19 = vector.shape_cast %18 : vector<256x16xf32> to vector<16x16x16xf32>
    %20 = arith.truncf %19 : vector<16x16x16xf32> to vector<16x16x16xbf16>
    %cst_6 = arith.constant dense<0.000000e+00> : vector<16x16x16xf32>
    %21 = tpu.matmul %14, %17, %cst_6 {dimension_numbers = #tpu.dot_dimension_numbers<[2], [2], [1], [1], [0, 0, 0, 1, 1, 1], [0], [0]>} : vector<16x16x16xbf16>, vector<16x16x16xbf16>, vector<16x16x16xf32> -> vector<16x16x16xf32>
    %c0_7 = arith.constant 0 : index
    %c0_8 = arith.constant 0 : index
    %c0_9 = arith.constant 0 : index
    %22 = vector.load %arg4[%c0_7, %c0_8, %c0_9] : memref<2x16x16xf32, #tpu.memory_space<vmem>>, vector<1x16x16xf32>
    %23 = vector.shape_cast %22 : vector<1x16x16xf32> to vector<16x16xf32>
    %24 = vector.shape_cast %23 : vector<16x16xf32> to vector<1x16x16xf32>
    %25 = vector.broadcast %24 : vector<1x16x16xf32> to vector<16x16x16xf32>
    %26 = arith.addf %21, %25 : vector<16x16x16xf32>
    %cst_10 = arith.constant dense<0xFF800000> : vector<16x16xf32>
    %27 = vector.multi_reduction <maximumf>, %26, %cst_10 [2] : vector<16x16x16xf32> to vector<16x16xf32>
    %28 = vector.shape_cast %27 : vector<16x16xf32> to vector<16x16x1xf32>
    %29 = vector.broadcast %28 : vector<16x16x1xf32> to vector<16x16x16xf32>
    %30 = arith.subf %26, %29 : vector<16x16x16xf32>
    %31 = math.exp %30 : vector<16x16x16xf32>
    %cst_11 = arith.constant dense<0.000000e+00> : vector<16x16xf32>
    %32 = vector.multi_reduction <add>, %31, %cst_11 [2] : vector<16x16x16xf32> to vector<16x16xf32>
    %33 = vector.shape_cast %32 : vector<16x16xf32> to vector<16x16x1xf32>
    %34 = vector.broadcast %33 : vector<16x16x1xf32> to vector<16x16x16xf32>
    %35 = arith.divf %31, %34 : vector<16x16x16xf32>
    %36 = arith.truncf %35 : vector<16x16x16xf32> to vector<16x16x16xbf16>
    %cst_12 = arith.constant dense<0.000000e+00> : vector<16x16x16xf32>
    %37 = tpu.matmul %36, %20, %cst_12 {dimension_numbers = #tpu.dot_dimension_numbers<[2], [1], [1], [2], [0, 0, 0, 1, 1, 2], [0], [0]>} : vector<16x16x16xbf16>, vector<16x16x16xbf16>, vector<16x16x16xf32> -> vector<16x16x16xf32>
    %38 = vector.shape_cast %37 : vector<16x16x16xf32> to vector<256x16xf32>
    %39 = arith.truncf %38 : vector<256x16xf32> to vector<256x16xbf16>
    %c0_13 = arith.constant 0 : index
    %c0_14 = arith.constant 0 : index
    %40 = vector.load %arg5[%c0_13, %c0_14] : memref<32x32xbf16, #tpu.memory_space<vmem>>, vector<16x32xbf16>
    %cst_15 = arith.constant dense<0.000000e+00> : vector<256x32xf32>
    %41 = tpu.matmul %39, %40, %cst_15 {dimension_numbers = #tpu.dot_dimension_numbers<[1], [0], [0], [1], [0, 0, 1, 1], [], []>} : vector<256x16xbf16>, vector<16x32xbf16>, vector<256x32xf32> -> vector<256x32xf32>
    %42 = arith.addf %11, %41 : vector<256x32xf32>
    %43 = vector.extract_strided_slice %8 {offsets = [0, 16], sizes = [256, 16], strides = [1, 1]} : vector<256x32xf32> to vector<256x16xf32>
    %44 = vector.shape_cast %43 : vector<256x16xf32> to vector<16x16x16xf32>
    %45 = arith.truncf %44 : vector<16x16x16xf32> to vector<16x16x16xbf16>
    %46 = vector.extract_strided_slice %9 {offsets = [0, 16], sizes = [256, 16], strides = [1, 1]} : vector<256x32xf32> to vector<256x16xf32>
    %47 = vector.shape_cast %46 : vector<256x16xf32> to vector<16x16x16xf32>
    %48 = arith.truncf %47 : vector<16x16x16xf32> to vector<16x16x16xbf16>
    %49 = vector.extract_strided_slice %10 {offsets = [0, 16], sizes = [256, 16], strides = [1, 1]} : vector<256x32xf32> to vector<256x16xf32>
    %50 = vector.shape_cast %49 : vector<256x16xf32> to vector<16x16x16xf32>
    %51 = arith.truncf %50 : vector<16x16x16xf32> to vector<16x16x16xbf16>
    %cst_16 = arith.constant dense<0.000000e+00> : vector<16x16x16xf32>
    %52 = tpu.matmul %45, %48, %cst_16 {dimension_numbers = #tpu.dot_dimension_numbers<[2], [2], [1], [1], [0, 0, 0, 1, 1, 1], [0], [0]>} : vector<16x16x16xbf16>, vector<16x16x16xbf16>, vector<16x16x16xf32> -> vector<16x16x16xf32>
    %c1 = arith.constant 1 : index
    %c0_17 = arith.constant 0 : index
    %c0_18 = arith.constant 0 : index
    %53 = vector.load %arg4[%c1, %c0_17, %c0_18] : memref<2x16x16xf32, #tpu.memory_space<vmem>>, vector<1x16x16xf32>
    %54 = vector.shape_cast %53 : vector<1x16x16xf32> to vector<16x16xf32>
    %55 = vector.shape_cast %54 : vector<16x16xf32> to vector<1x16x16xf32>
    %56 = vector.broadcast %55 : vector<1x16x16xf32> to vector<16x16x16xf32>
    %57 = arith.addf %52, %56 : vector<16x16x16xf32>
    %cst_19 = arith.constant dense<0xFF800000> : vector<16x16xf32>
    %58 = vector.multi_reduction <maximumf>, %57, %cst_19 [2] : vector<16x16x16xf32> to vector<16x16xf32>
    %59 = vector.shape_cast %58 : vector<16x16xf32> to vector<16x16x1xf32>
    %60 = vector.broadcast %59 : vector<16x16x1xf32> to vector<16x16x16xf32>
    %61 = arith.subf %57, %60 : vector<16x16x16xf32>
    %62 = math.exp %61 : vector<16x16x16xf32>
    %cst_20 = arith.constant dense<0.000000e+00> : vector<16x16xf32>
    %63 = vector.multi_reduction <add>, %62, %cst_20 [2] : vector<16x16x16xf32> to vector<16x16xf32>
    %64 = vector.shape_cast %63 : vector<16x16xf32> to vector<16x16x1xf32>
    %65 = vector.broadcast %64 : vector<16x16x1xf32> to vector<16x16x16xf32>
    %66 = arith.divf %62, %65 : vector<16x16x16xf32>
    %67 = arith.truncf %66 : vector<16x16x16xf32> to vector<16x16x16xbf16>
    %cst_21 = arith.constant dense<0.000000e+00> : vector<16x16x16xf32>
    %68 = tpu.matmul %67, %51, %cst_21 {dimension_numbers = #tpu.dot_dimension_numbers<[2], [1], [1], [2], [0, 0, 0, 1, 1, 2], [0], [0]>} : vector<16x16x16xbf16>, vector<16x16x16xbf16>, vector<16x16x16xf32> -> vector<16x16x16xf32>
    %69 = vector.shape_cast %68 : vector<16x16x16xf32> to vector<256x16xf32>
    %70 = arith.truncf %69 : vector<256x16xf32> to vector<256x16xbf16>
    %c16 = arith.constant 16 : index
    %c0_22 = arith.constant 0 : index
    %71 = vector.load %arg5[%c16, %c0_22] : memref<32x32xbf16, #tpu.memory_space<vmem>>, vector<16x32xbf16>
    %cst_23 = arith.constant dense<0.000000e+00> : vector<256x32xf32>
    %72 = tpu.matmul %70, %71, %cst_23 {dimension_numbers = #tpu.dot_dimension_numbers<[1], [0], [0], [1], [0, 0, 1, 1], [], []>} : vector<256x16xbf16>, vector<16x32xbf16>, vector<256x32xf32> -> vector<256x32xf32>
    %73 = arith.addf %42, %72 : vector<256x32xf32>
    %c0_24 = arith.constant 0 : index
    %c0_25 = arith.constant 0 : index
    %74 = vector.load %arg6[%c0_24, %c0_25] : memref<1x32xf32, #tpu.memory_space<vmem>>, vector<1x32xf32>
    %75 = vector.shape_cast %74 : vector<1x32xf32> to vector<32xf32>
    %76 = vector.shape_cast %75 : vector<32xf32> to vector<1x32xf32>
    %77 = vector.broadcast %76 : vector<1x32xf32> to vector<256x32xf32>
    %78 = arith.addf %73, %77 : vector<256x32xf32>
    %c0_26 = arith.constant 0 : index
    %c0_27 = arith.constant 0 : index
    %79 = vector.load %arg7[%c0_26, %c0_27] : memref<256x32xf32, #tpu.memory_space<vmem>>, vector<256x32xf32>
    tpu.vector_store %arg7[%c0_26, %c0_27], %78 {strides = array<i32>} : memref<256x32xf32, #tpu.memory_space<vmem>>, vector<256x32xf32>,
    return
  }
  func.func @transform_0(%arg0: i32) -> (i32, i32) {
    %c0_i32 = arith.constant 0 : i32
    %c0_i32_0 = arith.constant 0 : i32
    return %arg0, %c0_i32 : i32, i32
  }
  func.func @transform_1(%arg0: i32) -> (i32, i32) {
    %c0_i32 = arith.constant 0 : i32
    %c0_i32_0 = arith.constant 0 : i32
    %c0_i32_1 = arith.constant 0 : i32
    return %c0_i32, %c0_i32_0 : i32, i32
  }
  func.func @transform_2(%arg0: i32) -> (i32, i32) {
    %c0_i32 = arith.constant 0 : i32
    %c0_i32_0 = arith.constant 0 : i32
    %c0_i32_1 = arith.constant 0 : i32
    return %c0_i32, %c0_i32_0 : i32, i32
  }
  func.func @transform_3(%arg0: i32) -> (i32, i32, i32) {
    %c0_i32 = arith.constant 0 : i32
    %c0_i32_0 = arith.constant 0 : i32
    %c0_i32_1 = arith.constant 0 : i32
    %c0_i32_2 = arith.constant 0 : i32
    return %c0_i32, %c0_i32_0, %c0_i32_1 : i32, i32, i32
  }
  func.func @transform_4(%arg0: i32) -> (i32, i32) {
    %c0_i32 = arith.constant 0 : i32
    %c0_i32_0 = arith.constant 0 : i32
    %c0_i32_1 = arith.constant 0 : i32
    return %c0_i32, %c0_i32_0 : i32, i32
  }
  func.func @transform_5(%arg0: i32) -> (i32, i32) {
    %c0_i32 = arith.constant 0 : i32
    %c0_i32_0 = arith.constant 0 : i32
    %c0_i32_1 = arith.constant 0 : i32
    return %c0_i32, %c0_i32_0 : i32, i32
  }
  func.func @transform_6(%arg0: i32) -> (i32, i32) {
    %c0_i32 = arith.constant 0 : i32
    %c0_i32_0 = arith.constant 0 : i32
    return %arg0, %c0_i32 : i32, i32
  }
}

module attributes {stable_mosaic.version = 11 : i64} {
  func.func @_window_attn_kernel(%arg0: i32, %arg1: memref<256x32xbf16, #tpu.memory_space<vmem>>, %arg2: memref<32x96xbf16, #tpu.memory_space<vmem>>, %arg3: memref<1x96xf32, #tpu.memory_space<vmem>>, %arg4: memref<2x16x16xf32, #tpu.memory_space<vmem>>, %arg5: memref<32x32xbf16, #tpu.memory_space<vmem>>, %arg6: memref<1x32xf32, #tpu.memory_space<vmem>>, %arg7: memref<256x32xf32, #tpu.memory_space<vmem>>) attributes {dimension_semantics = [#tpu.dimension_semantics<parallel>], iteration_bounds = array<i64: 4>, scalar_prefetch = 0 : i64, scratch_operands = 0 : i64, tpu.core_type = #tpu.core_type<tc>, window_params = [{transform_indices = @transform_0, window_bounds = array<i64: 256, 32>}, {pipeline_mode = #tpu.pipeline_mode<synchronous>, transform_indices = @transform_1, window_bounds = array<i64: 32, 96>}, {pipeline_mode = #tpu.pipeline_mode<synchronous>, transform_indices = @transform_2, window_bounds = array<i64: 1, 96>}, {pipeline_mode = #tpu.pipeline_mode<synchronous>, transform_indices = @transform_3, window_bounds = array<i64: 2, 16, 16>}, {pipeline_mode = #tpu.pipeline_mode<synchronous>, transform_indices = @transform_4, window_bounds = array<i64: 32, 32>}, {pipeline_mode = #tpu.pipeline_mode<synchronous>, transform_indices = @transform_5, window_bounds = array<i64: 1, 32>}, {transform_indices = @transform_6, window_bounds = array<i64: 256, 32>}]} {
    %c0 = arith.constant 0 : index
    %c0_0 = arith.constant 0 : index
    %0 = vector.load %arg1[%c0, %c0_0] : memref<256x32xbf16, #tpu.memory_space<vmem>>, vector<256x32xbf16>
    %c0_1 = arith.constant 0 : index
    %c0_2 = arith.constant 0 : index
    %1 = vector.load %arg2[%c0_1, %c0_2] : memref<32x96xbf16, #tpu.memory_space<vmem>>, vector<32x96xbf16>
    %cst = arith.constant dense<0.000000e+00> : vector<256x96xf32>
    %2 = tpu.matmul %0, %1, %cst {dimension_numbers = #tpu.dot_dimension_numbers<[1], [0], [0], [1], [0, 0, 1, 1], [], []>} : vector<256x32xbf16>, vector<32x96xbf16>, vector<256x96xf32> -> vector<256x96xf32>
    %c0_3 = arith.constant 0 : index
    %c0_4 = arith.constant 0 : index
    %3 = vector.load %arg3[%c0_3, %c0_4] : memref<1x96xf32, #tpu.memory_space<vmem>>, vector<1x96xf32>
    %4 = vector.shape_cast %3 : vector<1x96xf32> to vector<96xf32>
    %5 = vector.shape_cast %4 : vector<96xf32> to vector<1x96xf32>
    %6 = vector.broadcast %5 : vector<1x96xf32> to vector<256x96xf32>
    %7 = arith.addf %2, %6 : vector<256x96xf32>
    %8 = vector.extract_strided_slice %7 {offsets = [0, 0], sizes = [256, 32], strides = [1, 1]} : vector<256x96xf32> to vector<256x32xf32>
    %9 = vector.extract_strided_slice %7 {offsets = [0, 32], sizes = [256, 32], strides = [1, 1]} : vector<256x96xf32> to vector<256x32xf32>
    %10 = vector.extract_strided_slice %7 {offsets = [0, 64], sizes = [256, 32], strides = [1, 1]} : vector<256x96xf32> to vector<256x32xf32>
    %cst_5 = arith.constant 0.000000e+00 : f32
    %11 = vector.broadcast %cst_5 : f32 to vector<256x32xf32>
    %12 = vector.extract_strided_slice %8 {offsets = [0, 0], sizes = [256, 16], strides = [1, 1]} : vector<256x32xf32> to vector<256x16xf32>
    %13 = vector.shape_cast %12 : vector<256x16xf32> to vector<16x16x16xf32>
    %14 = arith.truncf %13 : vector<16x16x16xf32> to vector<16x16x16xbf16>
    %15 = vector.extract_strided_slice %9 {offsets = [0, 0], sizes = [256, 16], strides = [1, 1]} : vector<256x32xf32> to vector<256x16xf32>
    %16 = vector.shape_cast %15 : vector<256x16xf32> to vector<16x16x16xf32>
    %17 = arith.truncf %16 : vector<16x16x16xf32> to vector<16x16x16xbf16>
    %18 = vector.extract_strided_slice %10 {offsets = [0, 0], sizes = [256, 16], strides = [1, 1]} : vector<256x32xf32> to vector<256x16xf32>
    %19 = vector.shape_cast %18 : vector<256x16xf32> to vector<16x16x16xf32>
    %20 = arith.truncf %19 : vector<16x16x16xf32> to vector<16x16x16xbf16>
    %cst_6 = arith.constant dense<0.000000e+00> : vector<16x16x16xf32>
    %21 = tpu.matmul %14, %17, %cst_6 {dimension_numbers = #tpu.dot_dimension_numbers<[2], [2], [1], [1], [0, 0, 0, 1, 1, 1], [0], [0]>} : vector<16x16x16xbf16>, vector<16x16x16xbf16>, vector<16x16x16xf32> -> vector<16x16x16xf32>
    %c0_7 = arith.constant 0 : index
    %c0_8 = arith.constant 0 : index
    %c0_9 = arith.constant 0 : index
    %22 = vector.load %arg4[%c0_7, %c0_8, %c0_9] : memref<2x16x16xf32, #tpu.memory_space<vmem>>, vector<1x16x16xf32>
    %23 = vector.shape_cast %22 : vector<1x16x16xf32> to vector<16x16xf32>
    %24 = vector.shape_cast %23 : vector<16x16xf32> to vector<1x16x16xf32>
    %25 = vector.broadcast %24 : vector<1x16x16xf32> to vector<16x16x16xf32>
    %26 = arith.addf %21, %25 : vector<16x16x16xf32>
    %cst_10 = arith.constant dense<0xFF800000> : vector<16x16xf32>
    %27 = vector.multi_reduction <maximumf>, %26, %cst_10 [2] : vector<16x16x16xf32> to vector<16x16xf32>
    %28 = vector.shape_cast %27 : vector<16x16xf32> to vector<16x16x1xf32>
    %29 = vector.broadcast %28 : vector<16x16x1xf32> to vector<16x16x16xf32>
    %30 = arith.subf %26, %29 : vector<16x16x16xf32>
    %31 = math.exp %30 : vector<16x16x16xf32>
    %cst_11 = arith.constant dense<0.000000e+00> : vector<16x16xf32>
    %32 = vector.multi_reduction <add>, %31, %cst_11 [2] : vector<16x16x16xf32> to vector<16x16xf32>
    %33 = vector.shape_cast %32 : vector<16x16xf32> to vector<16x16x1xf32>
    %34 = vector.broadcast %33 : vector<16x16x1xf32> to vector<16x16x16xf32>
    %35 = arith.divf %31, %34 : vector<16x16x16xf32>
    %36 = arith.truncf %35 : vector<16x16x16xf32> to vector<16x16x16xbf16>
    %cst_12 = arith.constant dense<0.000000e+00> : vector<16x16x16xf32>
    %37 = tpu.matmul %36, %20, %cst_12 {dimension_numbers = #tpu.dot_dimension_numbers<[2], [1], [1], [2], [0, 0, 0, 1, 1, 2], [0], [0]>} : vector<16x16x16xbf16>, vector<16x16x16xbf16>, vector<16x16x16xf32> -> vector<16x16x16xf32>
    %38 = vector.shape_cast %37 : vector<16x16x16xf32> to vector<256x16xf32>
    %39 = arith.truncf %38 : vector<256x16xf32> to vector<256x16xbf16>
    %c0_13 = arith.constant 0 : index
    %c0_14 = arith.constant 0 : index
    %40 = vector.load %arg5[%c0_13, %c0_14] : memref<32x32xbf16, #tpu.memory_space<vmem>>, vector<16x32xbf16>
    %cst_15 = arith.constant dense<0.000000e+00> : vector<256x32xf32>
    %41 = tpu.matmul %39, %40, %cst_15 {dimension_numbers = #tpu.dot_dimension_numbers<[1], [0], [0], [1], [0, 0, 1, 1], [], []>} : vector<256x16xbf16>, vector<16x32xbf16>, vector<256x32xf32> -> vector<256x32xf32>
    %42 = arith.addf %11, %41 : vector<256x32xf32>
    %43 = vector.extract_strided_slice %8 {offsets = [0, 16], sizes = [256, 16], strides = [1, 1]} : vector<256x32xf32> to vector<256x16xf32>
    %44 = vector.shape_cast %43 : vector<256x16xf32> to vector<16x16x16xf32>
    %45 = arith.truncf %44 : vector<16x16x16xf32> to vector<16x16x16xbf16>
    %46 = vector.extract_strided_slice %9 {offsets = [0, 16], sizes = [256, 16], strides = [1, 1]} : vector<256x32xf32> to vector<256x16xf32>
    %47 = vector.shape_cast %46 : vector<256x16xf32> to vector<16x16x16xf32>
    %48 = arith.truncf %47 : vector<16x16x16xf32> to vector<16x16x16xbf16>
    %49 = vector.extract_strided_slice %10 {offsets = [0, 16], sizes = [256, 16], strides = [1, 1]} : vector<256x32xf32> to vector<256x16xf32>
    %50 = vector.shape_cast %49 : vector<256x16xf32> to vector<16x16x16xf32>
    %51 = arith.truncf %50 : vector<16x16x16xf32> to vector<16x16x16xbf16>
    %cst_16 = arith.constant dense<0.000000e+00> : vector<16x16x16xf32>
    %52 = tpu.matmul %45, %48, %cst_16 {dimension_numbers = #tpu.dot_dimension_numbers<[2], [2], [1], [1], [0, 0, 0, 1, 1, 1], [0], [0]>} : vector<16x16x16xbf16>, vector<16x16x16xbf16>, vector<16x16x16xf32> -> vector<16x16x16xf32>
    %c1 = arith.constant 1 : index
    %c0_17 = arith.constant 0 : index
    %c0_18 = arith.constant 0 : index
    %53 = vector.load %arg4[%c1, %c0_17, %c0_18] : memref<2x16x16xf32, #tpu.memory_space<vmem>>, vector<1x16x16xf32>
    %54 = vector.shape_cast %53 : vector<1x16x16xf32> to vector<16x16xf32>
    %55 = vector.shape_cast %54 : vector<16x16xf32> to vector<1x16x16xf32>
    %56 = vector.broadcast %55 : vector<1x16x16xf32> to vector<16x16x16xf32>
    %57 = arith.addf %52, %56 : vector<16x16x16xf32>
    %cst_19 = arith.constant dense<0xFF800000> : vector<16x16xf32>
    %58 = vector.multi_reduction <maximumf>, %57, %cst_19 [2] : vector<16x16x16xf32> to vector<16x16xf32>
    %59 = vector.shape_cast %58 : vector<16x16xf32> to vector<16x16x1xf32>
    %60 = vector.broadcast %59 : vector<16x16x1xf32> to vector<16x16x16xf32>
    %61 = arith.subf %57, %60 : vector<16x16x16xf32>
    %62 = math.exp %61 : vector<16x16x16xf32>
    %cst_20 = arith.constant dense<0.000000e+00> : vector<16x16xf32>
    %63 = vector.multi_reduction <add>, %62, %cst_20 [2] : vector<16x16x16xf32> to vector<16x16xf32>
    %64 = vector.shape_cast %63 : vector<16x16xf32> to vector<16x16x1xf32>
    %65 = vector.broadcast %64 : vector<16x16x1xf32> to vector<16x16x16xf32>
    %66 = arith.divf %62, %65 : vector<16x16x16xf32>
    %67 = arith.truncf %66 : vector<16x16x16xf32> to vector<16x16x16xbf16>
    %cst_21 = arith.constant dense<0.000000e+00> : vector<16x16x16xf32>
    %68 = tpu.matmul %67, %51, %cst_21 {dimension_numbers = #tpu.dot_dimension_numbers<[2], [1], [1], [2], [0, 0, 0, 1, 1, 2], [0], [0]>} : vector<16x16x16xbf16>, vector<16x16x16xbf16>, vector<16x16x16xf32> -> vector<16x16x16xf32>
    %69 = vector.shape_cast %68 : vector<16x16x16xf32> to vector<256x16xf32>
    %70 = arith.truncf %69 : vector<256x16xf32> to vector<256x16xbf16>
    %c16 = arith.constant 16 : index
    %c0_22 = arith.constant 0 : index
    %71 = vector.load %arg5[%c16, %c0_22] : memref<32x32xbf16, #tpu.memory_space<vmem>>, vector<16x32xbf16>
    %cst_23 = arith.constant dense<0.000000e+00> : vector<256x32xf32>
    %72 = tpu.matmul %70, %71, %cst_23 {dimension_numbers = #tpu.dot_dimension_numbers<[1], [0], [0], [1], [0, 0, 1, 1], [], []>} : vector<256x16xbf16>, vector<16x32xbf16>, vector<256x32xf32> -> vector<256x32xf32>
    %73 = arith.addf %42, %72 : vector<256x32xf32>
    %c0_24 = arith.constant 0 : index
    %c0_25 = arith.constant 0 : index
    %74 = vector.load %arg6[%c0_24, %c0_25] : memref<1x32xf32, #tpu.memory_space<vmem>>, vector<1x32xf32>
    %75 = vector.shape_cast %74 : vector<1x32xf32> to vector<32xf32>
    %76 = vector.shape_cast %75 : vector<32xf32> to vector<1x32xf32>
    %77 = vector.broadcast %76 : vector<1x32xf32> to vector<256x32xf32>
    %78 = arith.addf %73, %77 : vector<256x32xf32>
    %c0_26 = arith.constant 0 : index
    %c0_27 = arith.constant 0 : index
    %79 = vector.load %arg7[%c0_26, %c0_27] : memref<256x32xf32, #tpu.memory_space<vmem>>, vector<256x32xf32>
    tpu.vector_store %arg7[%c0_26, %c0_27], %78 {strides = array<i32>} : memref<256x32xf32, #tpu.memory_space<vmem>>, vector<256x32xf32>,
    return
  }
  func.func @transform_0(%arg0: i32) -> (i32, i32) {
    %c0_i32 = arith.constant 0 : i32
    %c0_i32_0 = arith.constant 0 : i32
    return %arg0, %c0_i32 : i32, i32
  }
  func.func @transform_1(%arg0: i32) -> (i32, i32) {
    %c0_i32 = arith.constant 0 : i32
    %c0_i32_0 = arith.constant 0 : i32
    %c0_i32_1 = arith.constant 0 : i32
    return %c0_i32, %c0_i32_0 : i32, i32
  }
  func.func @transform_2(%arg0: i32) -> (i32, i32) {
    %c0_i32 = arith.constant 0 : i32
    %c0_i32_0 = arith.constant 0 : i32
    %c0_i32_1 = arith.constant 0 : i32
    return %c0_i32, %c0_i32_0 : i32, i32
  }
  func.func @transform_3(%arg0: i32) -> (i32, i32, i32) {
    %c0_i32 = arith.constant 0 : i32
    %c0_i32_0 = arith.constant 0 : i32
    %c0_i32_1 = arith.constant 0 : i32
    %c0_i32_2 = arith.constant 0 : i32
    return %c0_i32, %c0_i32_0, %c0_i32_1 : i32, i32, i32
  }
  func.func @transform_4(%arg0: i32) -> (i32, i32) {
    %c0_i32 = arith.constant 0 : i32
    %c0_i32_0 = arith.constant 0 : i32
    %c0_i32_1 = arith.constant 0 : i32
    return %c0_i32, %c0_i32_0 : i32, i32
  }
  func.func @transform_5(%arg0: i32) -> (i32, i32) {
    %c0_i32 = arith.constant 0 : i32
    %c0_i32_0 = arith.constant 0 : i32
    %c0_i32_1 = arith.constant 0 : i32
    return %c0_i32, %c0_i32_0 : i32, i32
  }
  func.func @transform_6(%arg0: i32) -> (i32, i32) {
    %c0_i32 = arith.constant 0 : i32
    %c0_i32_0 = arith.constant 0 : i32
    return %arg0, %c0_i32 : i32, i32
  }
}

</mosaic_0001>

<llo_original>
// kernel: tpu_custom_call.1
$region0: #{tpu_custom_call.1}
  #allocation0 [shape = 'u32[]', space=smem, size = 0x4, offset = 0x4, fixed_abs, tag = 'smem constant byte address 0x4 - core index']
  #allocation1 [shape = 'u32[72,128]{1,0:T(1,128)}', space=vmem, size = 0x9000, scoped, tag = 'internal scratch']
  %s0 = inlined_call_operand.vmem [shape: bf16[1024,32], index: 0, kind: input, shape index: {}]
  %s1 = inlined_call_operand.vmem [shape: bf16[32,96], index: 1, kind: input, shape index: {}]
  %s2 = inlined_call_operand.vmem [shape: f32[1,96], index: 2, kind: input, shape index: {}]
  %s3 = inlined_call_operand.vmem [shape: f32[2,16,16], index: 3, kind: input, shape index: {}]
  %s4 = inlined_call_operand.vmem [shape: bf16[32,32], index: 4, kind: input, shape index: {}]
  %s5 = inlined_call_operand.vmem [shape: f32[1,32], index: 5, kind: input, shape index: {}]
  %s6 = inlined_call_operand.vmem [shape: f32[1024,32], index: 6, kind: output, shape index: {}]
  %s7 = sld [smem:[#allocation0]]
  $region57: #{tpu_custom_call.1} parent=0
    _
  %s9 = ssub.s32 1, %s7
  %s10 = scalar_select 0, %s9, %s7
  loop: start=0, step=1, limit=6
  $region2: #{tpu_custom_call.1} parent=0 // loop_pre_header
    _
  $region3: #{tpu_custom_call.1} parent=0 // loop_header
    %s12 = sphi 0, %s16
    %p13 = scmp.ge.s32.totalorder %s12, 6
    %s22 = sphi 0, %s24
    %s25 = sphi 0, %s22
    %s26 = sphi 0, %s25
    %s42 = sphi 0, %s26
    %s46 = sphi 0, %s46
    %s48 = sphi 0, %s46
    %s49 = sphi 0, %s48
    %s63 = sphi 0, %s49
    %s67 = sphi 0, %s67
    %s69 = sphi 0, %s67
    %s70 = sphi 0, %s69
    %s84 = sphi 0, %s70
    %s88 = sphi 0, %s88
    %s90 = sphi 0, %s88
    %s91 = sphi 0, %s90
    %s105 = sphi 0, %s91
    %s109 = sphi 0, %s109
    %s111 = sphi 0, %s109
    %s112 = sphi 0, %s111
    %s126 = sphi 0, %s112
    %s130 = sphi 0, %s130
    %s132 = sphi 0, %s130
    %s133 = sphi 0, %s132
    %s147 = sphi 0, %s133
    %s153 = sphi 0, %s155
    %s156 = sphi 0, %s153
    %s157 = sphi 0, %s156
    %s173 = sphi 0, %s157
  $region4: #{tpu_custom_call.1} parent=0 // loop_header_branch
    %15 = sbr.rel (%p13) target = $region8
  $region5: #{tpu_custom_call.1} parent=0 // loop_body
    %s17 = ssub.s32 %s12, 1
    %s18 = ssub.s32 %s12, 2
    %s19 = sadd.s32 %s12, 1
    %s20 = ssub.s32 %s12, %s19
    %p21 = scmp.eq.s32.totalorder %s20, 0
    %s23 = sadd.s32 %s22, 1
    %s24 = scalar_select %p21, %s22, %s23
    %p27 = pneg %p21
    %p28 = scmp.eq.s32.totalorder %s12, 3
    %p29 = por %p27, %p28
    %p30 = scmp.ne.s32.totalorder %s22, %s25
    %p31 = scmp.eq.s32.totalorder %s12, 0
    %p32 = por %p30, %p31
    %p33 = scmp.ne.s32.totalorder %s22, %s25
    %p34 = scmp.eq.s32.totalorder %s17, 3
    %p35 = por %p33, %p34
    %p36 = scmp.ne.s32.totalorder %s25, %s26
    %p37 = scmp.eq.s32.totalorder %s17, 0
    %p38 = por %p36, %p37
    %p39 = scmp.ne.s32.totalorder %s25, %s26
    %p40 = scmp.eq.s32.totalorder %s18, 3
    %p41 = por %p39, %p40
    %p43 = scmp.ne.s32.totalorder %s26, %s42
    %p44 = scmp.eq.s32.totalorder %s18, 0
    %p45 = por %p43, %p44
    %s47 = sadd.s32 %s46, 1
    %p50 = scmp.eq.s32.totalorder %s12, 3
    %p51 = scmp.ne.s32.totalorder %s46, %s48
    %p52 = scmp.eq.s32.totalorder %s12, 0
    %p53 = por %p51, %p52
    %p54 = scmp.ne.s32.totalorder %s46, %s48
    %p55 = scmp.eq.s32.totalorder %s17, 3
    %p56 = por %p54, %p55
    %p57 = scmp.ne.s32.totalorder %s48, %s49
    %p58 = scmp.eq.s32.totalorder %s17, 0
    %p59 = por %p57, %p58
    %p60 = scmp.ne.s32.totalorder %s48, %s49
    %p61 = scmp.eq.s32.totalorder %s18, 3
    %p62 = por %p60, %p61
    %p64 = scmp.ne.s32.totalorder %s49, %s63
    %p65 = scmp.eq.s32.totalorder %s18, 0
    %p66 = por %p64, %p65
    %s68 = sadd.s32 %s67, 1
    %p71 = scmp.eq.s32.totalorder %s12, 3
    %p72 = scmp.ne.s32.totalorder %s67, %s69
    %p73 = scmp.eq.s32.totalorder %s12, 0
    %p74 = por %p72, %p73
    %p75 = scmp.ne.s32.totalorder %s67, %s69
    %p76 = scmp.eq.s32.totalorder %s17, 3
    %p77 = por %p75, %p76
    %p78 = scmp.ne.s32.totalorder %s69, %s70
    %p79 = scmp.eq.s32.totalorder %s17, 0
    %p80 = por %p78, %p79
    %p81 = scmp.ne.s32.totalorder %s69, %s70
    %p82 = scmp.eq.s32.totalorder %s18, 3
    %p83 = por %p81, %p82
    %p85 = scmp.ne.s32.totalorder %s70, %s84
    %p86 = scmp.eq.s32.totalorder %s18, 0
    %p87 = por %p85, %p86
    %s89 = sadd.s32 %s88, 1
    %p92 = scmp.eq.s32.totalorder %s12, 3
    %p93 = scmp.ne.s32.totalorder %s88, %s90
    %p94 = scmp.eq.s32.totalorder %s12, 0
    %p95 = por %p93, %p94
    %p96 = scmp.ne.s32.totalorder %s88, %s90
    %p97 = scmp.eq.s32.totalorder %s17, 3
    %p98 = por %p96, %p97
    %p99 = scmp.ne.s32.totalorder %s90, %s91
    %p100 = scmp.eq.s32.totalorder %s17, 0
    %p101 = por %p99, %p100
    %p102 = scmp.ne.s32.totalorder %s90, %s91
    %p103 = scmp.eq.s32.totalorder %s18, 3
    %p104 = por %p102, %p103
    %p106 = scmp.ne.s32.totalorder %s91, %s105
    %p107 = scmp.eq.s32.totalorder %s18, 0
    %p108 = por %p106, %p107
    %s110 = sadd.s32 %s109, 1
    %p113 = scmp.eq.s32.totalorder %s12, 3
    %p114 = scmp.ne.s32.totalorder %s109, %s111
    %p115 = scmp.eq.s32.totalorder %s12, 0
    %p116 = por %p114, %p115
    %p117 = scmp.ne.s32.totalorder %s109, %s111
    %p118 = scmp.eq.s32.totalorder %s17, 3
    %p119 = por %p117, %p118
    %p120 = scmp.ne.s32.totalorder %s111, %s112
    %p121 = scmp.eq.s32.totalorder %s17, 0
    %p122 = por %p120, %p121
    %p123 = scmp.ne.s32.totalorder %s111, %s112
    %p124 = scmp.eq.s32.totalorder %s18, 3
    %p125 = por %p123, %p124
    %p127 = scmp.ne.s32.totalorder %s112, %s126
    %p128 = scmp.eq.s32.totalorder %s18, 0
    %p129 = por %p127, %p128
    %s131 = sadd.s32 %s130, 1
    %p134 = scmp.eq.s32.totalorder %s12, 3
    %p135 = scmp.ne.s32.totalorder %s130, %s132
    %p136 = scmp.eq.s32.totalorder %s12, 0
    %p137 = por %p135, %p136
    %p138 = scmp.ne.s32.totalorder %s130, %s132
    %p139 = scmp.eq.s32.totalorder %s17, 3
    %p140 = por %p138, %p139
    %p141 = scmp.ne.s32.totalorder %s132, %s133
    %p142 = scmp.eq.s32.totalorder %s17, 0
    %p143 = por %p141, %p142
    %p144 = scmp.ne.s32.totalorder %s132, %s133
    %p145 = scmp.eq.s32.totalorder %s18, 3
    %p146 = por %p144, %p145
    %p148 = scmp.ne.s32.totalorder %s133, %s147
    %p149 = scmp.eq.s32.totalorder %s18, 0
    %p150 = por %p148, %p149
    %s151 = ssub.s32 %s12, %s19
    %p152 = scmp.eq.s32.totalorder %s151, 0
    %s154 = sadd.s32 %s153, 1
    %s155 = scalar_select %p152, %s153, %s154
    %p158 = pneg %p152
    %p159 = scmp.eq.s32.totalorder %s12, 3
    %p160 = por %p158, %p159
    %p161 = scmp.ne.s32.totalorder %s153, %s156
    %p162 = scmp.eq.s32.totalorder %s12, 0
    %p163 = por %p161, %p162
    %p164 = scmp.ne.s32.totalorder %s153, %s156
    %p165 = scmp.eq.s32.totalorder %s17, 3
    %p166 = por %p164, %p165
    %p167 = scmp.ne.s32.totalorder %s156, %s157
    %p168 = scmp.eq.s32.totalorder %s17, 0
    %p169 = por %p167, %p168
    %p170 = scmp.ne.s32.totalorder %s156, %s157
    %p171 = scmp.eq.s32.totalorder %s18, 3
    %p172 = por %p170, %p171
    %p174 = scmp.ne.s32.totalorder %s157, %s173
    %p175 = scmp.eq.s32.totalorder %s18, 0
    %p176 = por %p174, %p175
    %p177 = scmp.le.s32.totalorder 1, %s12
    %p178 = scmp.lt.s32.totalorder %s12, 5
    %p179 = pnand %p177, %p178
    %p180 = pneg %p179
    // Predicated region
    $region9: #{tpu_custom_call.1} parent=5 // pred_check
      _
    $region10: #{tpu_custom_call.1} parent=5 // pred_check_branch
      %182 = sbr.rel (%p179) target = $region12
    $region11: #{tpu_custom_call.1} parent=5 // pred_region
      %s183 = ssub.s32 %s12, 1
      // Predicated region
      $region13: #{tpu_custom_call.1} parent=11 // pred_check
        %p184 = pneg %p59
      $region14: #{tpu_custom_call.1} parent=11 // pred_check_branch
        %186 = sbr.rel (%p184) target = $region16
      $region15: #{tpu_custom_call.1} parent=11 // pred_region
        _
      $region16: #{tpu_custom_call.1} parent=11 // pred_fallthru
        _
      // Predicated region
      $region17: #{tpu_custom_call.1} parent=11 // pred_check
        %p187 = pneg %p80
      $region18: #{tpu_custom_call.1} parent=11 // pred_check_branch
        %189 = sbr.rel (%p187) target = $region20
      $region19: #{tpu_custom_call.1} parent=11 // pred_region
        _
      $region20: #{tpu_custom_call.1} parent=11 // pred_fallthru
        _
      // Predicated region
      $region21: #{tpu_custom_call.1} parent=11 // pred_check
        %p190 = pneg %p101
      $region22: #{tpu_custom_call.1} parent=11 // pred_check_branch
        %192 = sbr.rel (%p190) target = $region24
      $region23: #{tpu_custom_call.1} parent=11 // pred_region
        _
      $region24: #{tpu_custom_call.1} parent=11 // pred_fallthru
        _
      // Predicated region
      $region25: #{tpu_custom_call.1} parent=11 // pred_check
        %p193 = pneg %p122
      $region26: #{tpu_custom_call.1} parent=11 // pred_check_branch
        %195 = sbr.rel (%p193) target = $region28
      $region27: #{tpu_custom_call.1} parent=11 // pred_region
        _
      $region28: #{tpu_custom_call.1} parent=11 // pred_fallthru
        _
      // Predicated region
      $region29: #{tpu_custom_call.1} parent=11 // pred_check
        %p196 = pneg %p143
      $region30: #{tpu_custom_call.1} parent=11 // pred_check_branch
        %198 = sbr.rel (%p196) target = $region32
      $region31: #{tpu_custom_call.1} parent=11 // pred_region
        _
      $region32: #{tpu_custom_call.1} parent=11 // pred_fallthru
        _
    $region12: #{tpu_custom_call.1} parent=5 // pred_fallthru
      _
    %p199 = scmp.lt.s32.totalorder %s12, 4
    // Predicated region
    $region33: #{tpu_custom_call.1} parent=5 // pred_check
      %p200 = pneg %p199
    $region34: #{tpu_custom_call.1} parent=5 // pred_check_branch
      %202 = sbr.rel (%p200) target = $region36
    $region35: #{tpu_custom_call.1} parent=5 // pred_region
      // Predicated region
      $region37: #{tpu_custom_call.1} parent=35 // pred_check
        %p203 = pneg %p32
      $region38: #{tpu_custom_call.1} parent=35 // pred_check_branch
        %205 = sbr.rel (%p203) target = $region40
      $region39: #{tpu_custom_call.1} parent=35 // pred_region
        %s206 = smul.u32 32, %s12
        %p207 = scmp.lt.s32.totalorder %s206, 127
        %s208 = scalar_select %p207, %s206, 127
        %s209 = smul.addr %s208, 4
        %s210 = scalar_lea.vmem %s0, %s209
        %s211 = smul.u32 32, %s12
      $region40: #{tpu_custom_call.1} parent=35 // pred_fallthru
        _
    $region36: #{tpu_custom_call.1} parent=5 // pred_fallthru
      _
    %p212 = scmp.le.s32.totalorder 1, %s12
    %p213 = scmp.lt.s32.totalorder %s12, 5
    %p214 = pnand %p212, %p213
    %p215 = pneg %p214
    // Predicated region
    $region41: #{tpu_custom_call.1} parent=5 // pred_check
      _
    $region42: #{tpu_custom_call.1} parent=5 // pred_check_branch
      %217 = sbr.rel (%p214) target = $region44
    $region43: #{tpu_custom_call.1} parent=5 // pred_region
      %s218 = ssub.s32 %s12, 1
      %s219 = smul.u32 32, %s17
      %p220 = scmp.lt.s32.totalorder %s219, 127
      %s221 = scalar_select %p220, %s219, 127
      %s222 = smul.addr %s221, 4
      %s223 = scalar_lea.vmem %s0, %s222
      %p224 = pneg %p38
      %p225 = pneg %p35
      %p226 = pneg %p59
      %p227 = pneg %p56
      %p228 = pneg %p80
      %p229 = pneg %p77
      %p230 = pneg %p101
      %p231 = pneg %p98
      %p232 = pneg %p122
      %p233 = pneg %p119
      %p234 = pneg %p143
      %p235 = pneg %p140
      %p236 = pneg %p169
      %p237 = pneg %p166
      %s238 = smul.u32 32, %s17
      %p239 = scmp.lt.s32.totalorder %s238, 127
      %s240 = scalar_select %p239, %s238, 127
      %s241 = smul.addr %s240, 8
      %s242 = scalar_lea.vmem %s6, %s241
      %s243 = smul.u32 32, %s17
      %p244 = scmp.lt.s32.totalorder %s243, 127
      %s245 = scalar_select %p244, %s243, 127
      %s246 = smul.addr %s245, 4
      %s247 = scalar_lea.vmem %s0, %s246
      %s248 = smul.u32 32, %s17
      %s249 = smul.u32 32, %s17
      %p250 = scmp.lt.s32.totalorder %s249, 127
      %s251 = scalar_select %p250, %s249, 127
      %s252 = smul.addr %s251, 8
      %s253 = scalar_lea.vmem %s6, %s252
      %s254 = smul.u32 32, %s17
      %v256 = vld [vmem:[%s247] sm:$0xf]
      %v257 = vld [vmem:[%s247 + $0x4] sm:$0xf]
      %v258 = vld [vmem:[%s247 + $0x8] sm:$0xf]
      %v259 = vld [vmem:[%s247 + $0xc] sm:$0xf]
      %v260 = vld [vmem:[%s247 + $0x10] sm:$0xf]
      %v261 = vld [vmem:[%s247 + $0x14] sm:$0xf]
      %v262 = vld [vmem:[%s247 + $0x18] sm:$0xf]
      %v263 = vld [vmem:[%s247 + $0x1c] sm:$0xf]
      %v264 = vld [vmem:[%s247 + $0x20] sm:$0xf]
      %v265 = vld [vmem:[%s247 + $0x24] sm:$0xf]
      %v266 = vld [vmem:[%s247 + $0x28] sm:$0xf]
      %v267 = vld [vmem:[%s247 + $0x2c] sm:$0xf]
      %v268 = vld [vmem:[%s247 + $0x30] sm:$0xf]
      %v269 = vld [vmem:[%s247 + $0x34] sm:$0xf]
      %v270 = vld [vmem:[%s247 + $0x38] sm:$0xf]
      %v271 = vld [vmem:[%s247 + $0x3c] sm:$0xf]
      %v272 = vld [vmem:[%s247 + $0x40] sm:$0xf]
      %v273 = vld [vmem:[%s247 + $0x44] sm:$0xf]
      %v274 = vld [vmem:[%s247 + $0x48] sm:$0xf]
      %v275 = vld [vmem:[%s247 + $0x4c] sm:$0xf]
      %v276 = vld [vmem:[%s247 + $0x50] sm:$0xf]
      %v277 = vld [vmem:[%s247 + $0x54] sm:$0xf]
      %v278 = vld [vmem:[%s247 + $0x58] sm:$0xf]
      %v279 = vld [vmem:[%s247 + $0x5c] sm:$0xf]
      %v280 = vld [vmem:[%s247 + $0x60] sm:$0xf]
      %v281 = vld [vmem:[%s247 + $0x64] sm:$0xf]
      %v282 = vld [vmem:[%s247 + $0x68] sm:$0xf]
      %v283 = vld [vmem:[%s247 + $0x6c] sm:$0xf]
      %v284 = vld [vmem:[%s247 + $0x70] sm:$0xf]
      %v285 = vld [vmem:[%s247 + $0x74] sm:$0xf]
      %v286 = vld [vmem:[%s247 + $0x78] sm:$0xf]
      %v287 = vld [vmem:[%s247 + $0x7c] sm:$0xf]
      %v288 = vld [vmem:[%s1] sm:$0xf]
      %v289 = vld [vmem:[%s1 + $0x4] sm:$0xf]
      %v290 = vld [vmem:[%s1 + $0x8] sm:$0xf]
      %v291 = vld [vmem:[%s1 + $0xc] sm:$0xf]
      %v292 = vld [vmem:[%s2] sm:$0x1]
      %v294 = vperm.slane %v292, 0
      %v328 = vunpack.c.l.b16 %v256
      %v329 = vunpack.c.l.b16 %v257
      %v330 = vunpack.c.l.b16 %v258
      %v331 = vunpack.c.l.b16 %v259
      %v332 = vunpack.c.l.b16 %v260
      %v333 = vunpack.c.l.b16 %v261
      %v334 = vunpack.c.l.b16 %v262
      %v335 = vunpack.c.l.b16 %v263
      %v336 = vunpack.c.l.b16 %v264
      %v337 = vunpack.c.l.b16 %v265
      %v338 = vunpack.c.l.b16 %v266
      %v339 = vunpack.c.l.b16 %v267
      %v340 = vunpack.c.l.b16 %v268
      %v341 = vunpack.c.l.b16 %v269
      %v342 = vunpack.c.l.b16 %v270
      %v343 = vunpack.c.l.b16 %v271
      %v344 = vunpack.c.l.b16 %v272
      %v345 = vunpack.c.l.b16 %v273
      %v346 = vunpack.c.l.b16 %v274
      %v347 = vunpack.c.l.b16 %v275
      %v348 = vunpack.c.l.b16 %v276
      %v349 = vunpack.c.l.b16 %v277
      %v350 = vunpack.c.l.b16 %v278
      %v351 = vunpack.c.l.b16 %v279
      %v352 = vunpack.c.l.b16 %v280
      %v353 = vunpack.c.l.b16 %v281
      %v354 = vunpack.c.l.b16 %v282
      %v355 = vunpack.c.l.b16 %v283
      %v356 = vunpack.c.l.b16 %v284
      %v357 = vunpack.c.l.b16 %v285
      %v358 = vunpack.c.l.b16 %v286
      %v359 = vunpack.c.l.b16 %v287
      %v360 = vpack.c.b16 %v329, %v328
      %v361 = vpack.c.b16 %v331, %v330
      %v362 = vpack.c.b16 %v333, %v332
      %v363 = vpack.c.b16 %v335, %v334
      %v364 = vpack.c.b16 %v337, %v336
      %v365 = vpack.c.b16 %v339, %v338
      %v366 = vpack.c.b16 %v341, %v340
      %v367 = vpack.c.b16 %v343, %v342
      %v368 = vpack.c.b16 %v345, %v344
      %v369 = vpack.c.b16 %v347, %v346
      %v370 = vpack.c.b16 %v349, %v348
      %v371 = vpack.c.b16 %v351, %v350
      %v372 = vpack.c.b16 %v353, %v352
      %v373 = vpack.c.b16 %v355, %v354
      %v374 = vpack.c.b16 %v357, %v356
      %v375 = vpack.c.b16 %v359, %v358
      %v380 = vunpack.c.l.b16 %v288
      %v381 = vunpack.c.l.b16 %v289
      %v382 = vunpack.c.l.b16 %v290
      %v383 = vunpack.c.l.b16 %v291
      %v384 = vpack.c.b16 %v381, %v380
      %v385 = vpack.c.b16 %v383, %v382
      %vm388 = vcmask 261120
      %v390 = vsel %vm388, %v360, 0
      %v393 = vsel %vm388, %v361, 0
      %v396 = vsel %vm388, %v362, 0
      %v399 = vsel %vm388, %v363, 0
      %v402 = vsel %vm388, %v364, 0
      %v405 = vsel %vm388, %v365, 0
      %v408 = vsel %vm388, %v366, 0
      %v411 = vsel %vm388, %v367, 0
      %v414 = vsel %vm388, %v368, 0
      %v417 = vsel %vm388, %v369, 0
      %v420 = vsel %vm388, %v370, 0
      %v423 = vsel %vm388, %v371, 0
      %v426 = vsel %vm388, %v372, 0
      %v429 = vsel %vm388, %v373, 0
      %v432 = vsel %vm388, %v374, 0
      %v435 = vsel %vm388, %v375, 0
      %437 = vmatpush.bf16.msra.mxu0 0
      %438 = vmatpush.bf16.msra.mxu0 0
      %439 = vmatpush.bf16.msra.mxu0 0
      %440 = vmatpush.bf16.msra.mxu0 0
      %441 = vmatpush.bf16.msra.mxu0 0
      %442 = vmatpush.bf16.msra.mxu0 0
      %443 = vmatpush.bf16.msra.mxu0 %v385
      %444 = vmatpush.bf16.msra.mxu0 %v384
      %445 = vmatmul.bf16.gmra.mxu0 %v390
      %v446 = vpop.f32.mrf.mxu0
      %v447 = vadd.f32 %v294, %v446
      %v448 = vpop.f32.mrf.mxu0
      %v449 = vadd.f32 %v294, %v448
      %450 = vmatmul.bf16.gmra.mxu0 %v393
      %v451 = vpop.f32.mrf.mxu0
      %v452 = vadd.f32 %v294, %v451
      %v453 = vpop.f32.mrf.mxu0
      %v454 = vadd.f32 %v294, %v453
      %455 = vmatmul.bf16.gmra.mxu0 %v396
      %v456 = vpop.f32.mrf.mxu0
      %v457 = vadd.f32 %v294, %v456
      %v458 = vpop.f32.mrf.mxu0
      %v459 = vadd.f32 %v294, %v458
      %460 = vmatmul.bf16.gmra.mxu0 %v399
      %v461 = vpop.f32.mrf.mxu0
      %v462 = vadd.f32 %v294, %v461
      %v463 = vpop.f32.mrf.mxu0
      %v464 = vadd.f32 %v294, %v463
      %465 = vmatmul.bf16.gmra.mxu0 %v402
      %v466 = vpop.f32.mrf.mxu0
      %v467 = vadd.f32 %v294, %v466
      %v468 = vpop.f32.mrf.mxu0
      %v469 = vadd.f32 %v294, %v468
      %470 = vmatmul.bf16.gmra.mxu0 %v405
      %v471 = vpop.f32.mrf.mxu0
      %v472 = vadd.f32 %v294, %v471
      %v473 = vpop.f32.mrf.mxu0
      %v474 = vadd.f32 %v294, %v473
      %475 = vmatmul.bf16.gmra.mxu0 %v408
      %v476 = vpop.f32.mrf.mxu0
      %v477 = vadd.f32 %v294, %v476
      %v478 = vpop.f32.mrf.mxu0
      %v479 = vadd.f32 %v294, %v478
      %480 = vmatmul.bf16.gmra.mxu0 %v411
      %v481 = vpop.f32.mrf.mxu0
      %v482 = vadd.f32 %v294, %v481
      %v483 = vpop.f32.mrf.mxu0
      %v484 = vadd.f32 %v294, %v483
      %485 = vmatmul.bf16.gmra.mxu0 %v414
      %v486 = vpop.f32.mrf.mxu0
      %v487 = vadd.f32 %v294, %v486
      %v488 = vpop.f32.mrf.mxu0
      %v489 = vadd.f32 %v294, %v488
      %490 = vmatmul.bf16.gmra.mxu0 %v417
      %v491 = vpop.f32.mrf.mxu0
      %v492 = vadd.f32 %v294, %v491
      %v493 = vpop.f32.mrf.mxu0
      %v494 = vadd.f32 %v294, %v493
      %495 = vmatmul.bf16.gmra.mxu0 %v420
      %v496 = vpop.f32.mrf.mxu0
      %v497 = vadd.f32 %v294, %v496
      %v498 = vpop.f32.mrf.mxu0
      %v499 = vadd.f32 %v294, %v498
      %500 = vmatmul.bf16.gmra.mxu0 %v423
      %v501 = vpop.f32.mrf.mxu0
      %v502 = vadd.f32 %v294, %v501
      %v503 = vpop.f32.mrf.mxu0
      %v504 = vadd.f32 %v294, %v503
      %505 = vmatmul.bf16.gmra.mxu0 %v426
      %v506 = vpop.f32.mrf.mxu0
      %v507 = vadd.f32 %v294, %v506
      %v508 = vpop.f32.mrf.mxu0
      %v509 = vadd.f32 %v294, %v508
      %510 = vmatmul.bf16.gmra.mxu0 %v429
      %v511 = vpop.f32.mrf.mxu0
      %v512 = vadd.f32 %v294, %v511
      %v513 = vpop.f32.mrf.mxu0
      %v514 = vadd.f32 %v294, %v513
      %515 = vmatmul.bf16.gmra.mxu0 %v432
      %v516 = vpop.f32.mrf.mxu0
      %v517 = vadd.f32 %v294, %v516
      %v518 = vpop.f32.mrf.mxu0
      %v519 = vadd.f32 %v294, %v518
      %520 = vmatmul.bf16.gmra.mxu0 %v435
      %v521 = vpop.f32.mrf.mxu0
      %v522 = vadd.f32 %v294, %v521
      %v523 = vpop.f32.mrf.mxu0
      %v524 = vadd.f32 %v294, %v523
      %525 = vdwg.mxu0
      %v526 = vpack.c.bf16 %v447, %v447
      %v527 = vpack.c.bf16 %v449, %v449
      %v528 = vpack.c.bf16 %v452, %v452
      %v529 = vpack.c.bf16 %v454, %v454
      %v530 = vpack.c.bf16 %v457, %v457
      %v531 = vpack.c.bf16 %v459, %v459
      %v532 = vpack.c.bf16 %v462, %v462
      %v533 = vpack.c.bf16 %v464, %v464
      %v534 = vpack.c.bf16 %v467, %v467
      %v535 = vpack.c.bf16 %v469, %v469
      %v536 = vpack.c.bf16 %v472, %v472
      %v537 = vpack.c.bf16 %v474, %v474
      %v538 = vpack.c.bf16 %v477, %v477
      %v539 = vpack.c.bf16 %v479, %v479
      %v540 = vpack.c.bf16 %v482, %v482
      %v541 = vpack.c.bf16 %v484, %v484
      %v542 = vpack.c.bf16 %v487, %v487
      %v543 = vpack.c.bf16 %v489, %v489
      %v544 = vpack.c.bf16 %v492, %v492
      %v545 = vpack.c.bf16 %v494, %v494
      %v546 = vpack.c.bf16 %v497, %v497
      %v547 = vpack.c.bf16 %v499, %v499
      %v548 = vpack.c.bf16 %v502, %v502
      %v549 = vpack.c.bf16 %v504, %v504
      %v550 = vpack.c.bf16 %v507, %v507
      %v551 = vpack.c.bf16 %v509, %v509
      %v552 = vpack.c.bf16 %v512, %v512
      %v553 = vpack.c.bf16 %v514, %v514
      %v554 = vpack.c.bf16 %v517, %v517
      %v555 = vpack.c.bf16 %v519, %v519
      %v556 = vpack.c.bf16 %v522, %v522
      %v557 = vpack.c.bf16 %v524, %v524
      %v558 = vld [vmem:[%s3] sm:$0xff]
      %v559 = vld [vmem:[%s3 + $0x8] sm:$0xff]
      %v562 = vunpack.c.l.b16 %v526
      %v563 = vunpack.c.l.b16 %v527
      %v564 = vpack.c.b16 %v563, %v562
      %565 = vrot.lane.b32.xlu0 %v564, 96
      %v566 = vpop.permute.xlu0 %565
      %vm567 = vcmask 130048
      %v569 = vsel %vm567, %v564, 0
      %v572 = vsel %vm567, %v566, 0
      %574 = vmatpush.bf16.xpose.msra.mxu0 0
      %575 = vmatpush.bf16.xpose.msra.mxu0 0
      %576 = vmatpush.bf16.xpose.msra.mxu0 0
      %577 = vmatpush.bf16.xpose.msra.mxu0 0
      %578 = vmatpush.bf16.xpose.msra.mxu0 0
      %579 = vmatpush.bf16.xpose.msra.mxu0 0
      %580 = vmatpush.bf16.xpose.msra.mxu0 0
      %581 = vmatpush.bf16.xpose.msra.mxu0 %v572
      %582 = vmatmul.bf16.gmra.mxu0 %v569
      %v583 = vpop.f32.mrf.mxu0
      %v584 = vadd.f32 %v558, %v583
      %v585 = vpop.f32.mrf.mxu0
      %v586 = vadd.f32 %v559, %v585
      %587 = vdwg.mxu0
      %v590 = vunpack.c.l.b16 %v528
      %v591 = vunpack.c.l.b16 %v529
      %v592 = vpack.c.b16 %v591, %v590
      %593 = vrot.lane.b32.xlu0 %v592, 96
      %v594 = vpop.permute.xlu0 %593
      %v596 = vsel %vm567, %v592, 0
      %v599 = vsel %vm567, %v594, 0
      %601 = vmatpush.bf16.xpose.msra.mxu0 0
      %602 = vmatpush.bf16.xpose.msra.mxu0 0
      %603 = vmatpush.bf16.xpose.msra.mxu0 0
      %604 = vmatpush.bf16.xpose.msra.mxu0 0
      %605 = vmatpush.bf16.xpose.msra.mxu0 0
      %606 = vmatpush.bf16.xpose.msra.mxu0 0
      %607 = vmatpush.bf16.xpose.msra.mxu0 0
      %608 = vmatpush.bf16.xpose.msra.mxu0 %v599
      %609 = vmatmul.bf16.gmra.mxu0 %v596
      %v610 = vpop.f32.mrf.mxu0
      %v611 = vadd.f32 %v558, %v610
      %v612 = vpop.f32.mrf.mxu0
      %v613 = vadd.f32 %v559, %v612
      %614 = vdwg.mxu0
      %v617 = vunpack.c.l.b16 %v530
      %v618 = vunpack.c.l.b16 %v531
      %v619 = vpack.c.b16 %v618, %v617
      %620 = vrot.lane.b32.xlu0 %v619, 96
      %v621 = vpop.permute.xlu0 %620
      %v623 = vsel %vm567, %v619, 0
      %v626 = vsel %vm567, %v621, 0
      %628 = vmatpush.bf16.xpose.msra.mxu0 0
      %629 = vmatpush.bf16.xpose.msra.mxu0 0
      %630 = vmatpush.bf16.xpose.msra.mxu0 0
      %631 = vmatpush.bf16.xpose.msra.mxu0 0
      %632 = vmatpush.bf16.xpose.msra.mxu0 0
      %633 = vmatpush.bf16.xpose.msra.mxu0 0
      %634 = vmatpush.bf16.xpose.msra.mxu0 0
      %635 = vmatpush.bf16.xpose.msra.mxu0 %v626
      %636 = vmatmul.bf16.gmra.mxu0 %v623
      %v637 = vpop.f32.mrf.mxu0
      %v638 = vadd.f32 %v558, %v637
      %v639 = vpop.f32.mrf.mxu0
      %v640 = vadd.f32 %v559, %v639
      %641 = vdwg.mxu0
      %v644 = vunpack.c.l.b16 %v532
      %v645 = vunpack.c.l.b16 %v533
      %v646 = vpack.c.b16 %v645, %v644
      %647 = vrot.lane.b32.xlu0 %v646, 96
      %v648 = vpop.permute.xlu0 %647
      %v650 = vsel %vm567, %v646, 0
      %v653 = vsel %vm567, %v648, 0
      %655 = vmatpush.bf16.xpose.msra.mxu0 0
      %656 = vmatpush.bf16.xpose.msra.mxu0 0
      %657 = vmatpush.bf16.xpose.msra.mxu0 0
      %658 = vmatpush.bf16.xpose.msra.mxu0 0
      %659 = vmatpush.bf16.xpose.msra.mxu0 0
      %660 = vmatpush.bf16.xpose.msra.mxu0 0
      %661 = vmatpush.bf16.xpose.msra.mxu0 0
      %662 = vmatpush.bf16.xpose.msra.mxu0 %v653
      %663 = vmatmul.bf16.gmra.mxu0 %v650
      %v664 = vpop.f32.mrf.mxu0
      %v665 = vadd.f32 %v558, %v664
      %v666 = vpop.f32.mrf.mxu0
      %v667 = vadd.f32 %v559, %v666
      %668 = vdwg.mxu0
      %v671 = vunpack.c.l.b16 %v534
      %v672 = vunpack.c.l.b16 %v535
      %v673 = vpack.c.b16 %v672, %v671
      %674 = vrot.lane.b32.xlu0 %v673, 96
      %v675 = vpop.permute.xlu0 %674
      %v677 = vsel %vm567, %v673, 0
      %v680 = vsel %vm567, %v675, 0
      %682 = vmatpush.bf16.xpose.msra.mxu0 0
      %683 = vmatpush.bf16.xpose.msra.mxu0 0
      %684 = vmatpush.bf16.xpose.msra.mxu0 0
      %685 = vmatpush.bf16.xpose.msra.mxu0 0
      %686 = vmatpush.bf16.xpose.msra.mxu0 0
      %687 = vmatpush.bf16.xpose.msra.mxu0 0
      %688 = vmatpush.bf16.xpose.msra.mxu0 0
      %689 = vmatpush.bf16.xpose.msra.mxu0 %v680
      %690 = vmatmul.bf16.gmra.mxu0 %v677
      %v691 = vpop.f32.mrf.mxu0
      %v692 = vadd.f32 %v558, %v691
      %v693 = vpop.f32.mrf.mxu0
      %v694 = vadd.f32 %v559, %v693
      %695 = vdwg.mxu0
      %v698 = vunpack.c.l.b16 %v536
      %v699 = vunpack.c.l.b16 %v537
      %v700 = vpack.c.b16 %v699, %v698
      %701 = vrot.lane.b32.xlu0 %v700, 96
      %v702 = vpop.permute.xlu0 %701
      %v704 = vsel %vm567, %v700, 0
      %v707 = vsel %vm567, %v702, 0
      %709 = vmatpush.bf16.xpose.msra.mxu0 0
      %710 = vmatpush.bf16.xpose.msra.mxu0 0
      %711 = vmatpush.bf16.xpose.msra.mxu0 0
      %712 = vmatpush.bf16.xpose.msra.mxu0 0
      %713 = vmatpush.bf16.xpose.msra.mxu0 0
      %714 = vmatpush.bf16.xpose.msra.mxu0 0
      %715 = vmatpush.bf16.xpose.msra.mxu0 0
      %716 = vmatpush.bf16.xpose.msra.mxu0 %v707
      %717 = vmatmul.bf16.gmra.mxu0 %v704
      %v718 = vpop.f32.mrf.mxu0
      %v719 = vadd.f32 %v558, %v718
      %v720 = vpop.f32.mrf.mxu0
      %v721 = vadd.f32 %v559, %v720
      %722 = vdwg.mxu0
      %v725 = vunpack.c.l.b16 %v538
      %v726 = vunpack.c.l.b16 %v539
      %v727 = vpack.c.b16 %v726, %v725
      %728 = vrot.lane.b32.xlu0 %v727, 96
      %v729 = vpop.permute.xlu0 %728
      %v731 = vsel %vm567, %v727, 0
      %v734 = vsel %vm567, %v729, 0
      %736 = vmatpush.bf16.xpose.msra.mxu0 0
      %737 = vmatpush.bf16.xpose.msra.mxu0 0
      %738 = vmatpush.bf16.xpose.msra.mxu0 0
      %739 = vmatpush.bf16.xpose.msra.mxu0 0
      %740 = vmatpush.bf16.xpose.msra.mxu0 0
      %741 = vmatpush.bf16.xpose.msra.mxu0 0
      %742 = vmatpush.bf16.xpose.msra.mxu0 0
      %743 = vmatpush.bf16.xpose.msra.mxu0 %v734
      %744 = vmatmul.bf16.gmra.mxu0 %v731
      %v745 = vpop.f32.mrf.mxu0
      %v746 = vadd.f32 %v558, %v745
      %v747 = vpop.f32.mrf.mxu0
      %v748 = vadd.f32 %v559, %v747
      %749 = vdwg.mxu0
      %v752 = vunpack.c.l.b16 %v540
      %v753 = vunpack.c.l.b16 %v541
      %v754 = vpack.c.b16 %v753, %v752
      %755 = vrot.lane.b32.xlu0 %v754, 96
      %v756 = vpop.permute.xlu0 %755
      %v758 = vsel %vm567, %v754, 0
      %v761 = vsel %vm567, %v756, 0
      %763 = vmatpush.bf16.xpose.msra.mxu0 0
      %764 = vmatpush.bf16.xpose.msra.mxu0 0
      %765 = vmatpush.bf16.xpose.msra.mxu0 0
      %766 = vmatpush.bf16.xpose.msra.mxu0 0
      %767 = vmatpush.bf16.xpose.msra.mxu0 0
      %768 = vmatpush.bf16.xpose.msra.mxu0 0
      %769 = vmatpush.bf16.xpose.msra.mxu0 0
      %770 = vmatpush.bf16.xpose.msra.mxu0 %v761
      %771 = vmatmul.bf16.gmra.mxu0 %v758
      %v772 = vpop.f32.mrf.mxu0
      %v773 = vadd.f32 %v558, %v772
      %v774 = vpop.f32.mrf.mxu0
      %v775 = vadd.f32 %v559, %v774
      %776 = vdwg.mxu0
      %v779 = vunpack.c.l.b16 %v542
      %v780 = vunpack.c.l.b16 %v543
      %v781 = vpack.c.b16 %v780, %v779
      %782 = vrot.lane.b32.xlu0 %v781, 96
      %v783 = vpop.permute.xlu0 %782
      %v785 = vsel %vm567, %v781, 0
      %v788 = vsel %vm567, %v783, 0
      %790 = vmatpush.bf16.xpose.msra.mxu0 0
      %791 = vmatpush.bf16.xpose.msra.mxu0 0
      %792 = vmatpush.bf16.xpose.msra.mxu0 0
      %793 = vmatpush.bf16.xpose.msra.mxu0 0
      %794 = vmatpush.bf16.xpose.msra.mxu0 0
      %795 = vmatpush.bf16.xpose.msra.mxu0 0
      %796 = vmatpush.bf16.xpose.msra.mxu0 0
      %797 = vmatpush.bf16.xpose.msra.mxu0 %v788
      %798 = vmatmul.bf16.gmra.mxu0 %v785
      %v799 = vpop.f32.mrf.mxu0
      %v800 = vadd.f32 %v558, %v799
      %v801 = vpop.f32.mrf.mxu0
      %v802 = vadd.f32 %v559, %v801
      %803 = vdwg.mxu0
      %v806 = vunpack.c.l.b16 %v544
      %v807 = vunpack.c.l.b16 %v545
      %v808 = vpack.c.b16 %v807, %v806
      %809 = vrot.lane.b32.xlu0 %v808, 96
      %v810 = vpop.permute.xlu0 %809
      %v812 = vsel %vm567, %v808, 0
      %v815 = vsel %vm567, %v810, 0
      %817 = vmatpush.bf16.xpose.msra.mxu0 0
      %818 = vmatpush.bf16.xpose.msra.mxu0 0
      %819 = vmatpush.bf16.xpose.msra.mxu0 0
      %820 = vmatpush.bf16.xpose.msra.mxu0 0
      %821 = vmatpush.bf16.xpose.msra.mxu0 0
      %822 = vmatpush.bf16.xpose.msra.mxu0 0
      %823 = vmatpush.bf16.xpose.msra.mxu0 0
      %824 = vmatpush.bf16.xpose.msra.mxu0 %v815
      %825 = vmatmul.bf16.gmra.mxu0 %v812
      %v826 = vpop.f32.mrf.mxu0
      %v827 = vadd.f32 %v558, %v826
      %v828 = vpop.f32.mrf.mxu0
      %v829 = vadd.f32 %v559, %v828
      %830 = vdwg.mxu0
      %v833 = vunpack.c.l.b16 %v546
      %v834 = vunpack.c.l.b16 %v547
      %v835 = vpack.c.b16 %v834, %v833
      %836 = vrot.lane.b32.xlu0 %v835, 96
      %v837 = vpop.permute.xlu0 %836
      %v839 = vsel %vm567, %v835, 0
      %v842 = vsel %vm567, %v837, 0
      %844 = vmatpush.bf16.xpose.msra.mxu0 0
      %845 = vmatpush.bf16.xpose.msra.mxu0 0
      %846 = vmatpush.bf16.xpose.msra.mxu0 0
      %847 = vmatpush.bf16.xpose.msra.mxu0 0
      %848 = vmatpush.bf16.xpose.msra.mxu0 0
      %849 = vmatpush.bf16.xpose.msra.mxu0 0
      %850 = vmatpush.bf16.xpose.msra.mxu0 0
      %851 = vmatpush.bf16.xpose.msra.mxu0 %v842
      %852 = vmatmul.bf16.gmra.mxu0 %v839
      %v853 = vpop.f32.mrf.mxu0
      %v854 = vadd.f32 %v558, %v853
      %v855 = vpop.f32.mrf.mxu0
      %v856 = vadd.f32 %v559, %v855
      %857 = vdwg.mxu0
      %v860 = vunpack.c.l.b16 %v548
      %v861 = vunpack.c.l.b16 %v549
      %v862 = vpack.c.b16 %v861, %v860
      %863 = vrot.lane.b32.xlu0 %v862, 96
      %v864 = vpop.permute.xlu0 %863
      %v866 = vsel %vm567, %v862, 0
      %v869 = vsel %vm567, %v864, 0
      %871 = vmatpush.bf16.xpose.msra.mxu0 0
      %872 = vmatpush.bf16.xpose.msra.mxu0 0
      %873 = vmatpush.bf16.xpose.msra.mxu0 0
      %874 = vmatpush.bf16.xpose.msra.mxu0 0
      %875 = vmatpush.bf16.xpose.msra.mxu0 0
      %876 = vmatpush.bf16.xpose.msra.mxu0 0
      %877 = vmatpush.bf16.xpose.msra.mxu0 0
      %878 = vmatpush.bf16.xpose.msra.mxu0 %v869
      %879 = vmatmul.bf16.gmra.mxu0 %v866
      %v880 = vpop.f32.mrf.mxu0
      %v881 = vadd.f32 %v558, %v880
      %v882 = vpop.f32.mrf.mxu0
      %v883 = vadd.f32 %v559, %v882
      %884 = vdwg.mxu0
      %v887 = vunpack.c.l.b16 %v550
      %v888 = vunpack.c.l.b16 %v551
      %v889 = vpack.c.b16 %v888, %v887
      %890 = vrot.lane.b32.xlu0 %v889, 96
      %v891 = vpop.permute.xlu0 %890
      %v893 = vsel %vm567, %v889, 0
      %v896 = vsel %vm567, %v891, 0
      %898 = vmatpush.bf16.xpose.msra.mxu0 0
      %899 = vmatpush.bf16.xpose.msra.mxu0 0
      %900 = vmatpush.bf16.xpose.msra.mxu0 0
      %901 = vmatpush.bf16.xpose.msra.mxu0 0
      %902 = vmatpush.bf16.xpose.msra.mxu0 0
      %903 = vmatpush.bf16.xpose.msra.mxu0 0
      %904 = vmatpush.bf16.xpose.msra.mxu0 0
      %905 = vmatpush.bf16.xpose.msra.mxu0 %v896
      %906 = vmatmul.bf16.gmra.mxu0 %v893
      %v907 = vpop.f32.mrf.mxu0
      %v908 = vadd.f32 %v558, %v907
      %v909 = vpop.f32.mrf.mxu0
      %v910 = vadd.f32 %v559, %v909
      %911 = vdwg.mxu0
      %v914 = vunpack.c.l.b16 %v552
      %v915 = vunpack.c.l.b16 %v553
      %v916 = vpack.c.b16 %v915, %v914
      %917 = vrot.lane.b32.xlu0 %v916, 96
      %v918 = vpop.permute.xlu0 %917
      %v920 = vsel %vm567, %v916, 0
      %v923 = vsel %vm567, %v918, 0
      %925 = vmatpush.bf16.xpose.msra.mxu0 0
      %926 = vmatpush.bf16.xpose.msra.mxu0 0
      %927 = vmatpush.bf16.xpose.msra.mxu0 0
      %928 = vmatpush.bf16.xpose.msra.mxu0 0
      %929 = vmatpush.bf16.xpose.msra.mxu0 0
      %930 = vmatpush.bf16.xpose.msra.mxu0 0
      %931 = vmatpush.bf16.xpose.msra.mxu0 0
      %932 = vmatpush.bf16.xpose.msra.mxu0 %v923
      %933 = vmatmul.bf16.gmra.mxu0 %v920
      %v934 = vpop.f32.mrf.mxu0
      %v935 = vadd.f32 %v558, %v934
      %v936 = vpop.f32.mrf.mxu0
      %v937 = vadd.f32 %v559, %v936
      %938 = vdwg.mxu0
      %v941 = vunpack.c.l.b16 %v554
      %v942 = vunpack.c.l.b16 %v555
      %v943 = vpack.c.b16 %v942, %v941
      %944 = vrot.lane.b32.xlu0 %v943, 96
      %v945 = vpop.permute.xlu0 %944
      %v947 = vsel %vm567, %v943, 0
      %v950 = vsel %vm567, %v945, 0
      %952 = vmatpush.bf16.xpose.msra.mxu0 0
      %953 = vmatpush.bf16.xpose.msra.mxu0 0
      %954 = vmatpush.bf16.xpose.msra.mxu0 0
      %955 = vmatpush.bf16.xpose.msra.mxu0 0
      %956 = vmatpush.bf16.xpose.msra.mxu0 0
      %957 = vmatpush.bf16.xpose.msra.mxu0 0
      %958 = vmatpush.bf16.xpose.msra.mxu0 0
      %959 = vmatpush.bf16.xpose.msra.mxu0 %v950
      %960 = vmatmul.bf16.gmra.mxu0 %v947
      %v961 = vpop.f32.mrf.mxu0
      %v962 = vadd.f32 %v558, %v961
      %v963 = vpop.f32.mrf.mxu0
      %v964 = vadd.f32 %v559, %v963
      %965 = vdwg.mxu0
      %v968 = vunpack.c.l.b16 %v556
      %v969 = vunpack.c.l.b16 %v557
      %v970 = vpack.c.b16 %v969, %v968
      %971 = vrot.lane.b32.xlu0 %v970, 96
      %v972 = vpop.permute.xlu0 %971
      %v974 = vsel %vm567, %v970, 0
      %v977 = vsel %vm567, %v972, 0
      %979 = vmatpush.bf16.xpose.msra.mxu0 0
      %980 = vmatpush.bf16.xpose.msra.mxu0 0
      %981 = vmatpush.bf16.xpose.msra.mxu0 0
      %982 = vmatpush.bf16.xpose.msra.mxu0 0
      %983 = vmatpush.bf16.xpose.msra.mxu0 0
      %984 = vmatpush.bf16.xpose.msra.mxu0 0
      %985 = vmatpush.bf16.xpose.msra.mxu0 0
      %986 = vmatpush.bf16.xpose.msra.mxu0 %v977
      %987 = vmatmul.bf16.gmra.mxu0 %v974
      %v988 = vpop.f32.mrf.mxu0
      %v989 = vadd.f32 %v558, %v988
      %v990 = vpop.f32.mrf.mxu0
      %v991 = vadd.f32 %v559, %v990
      %992 = vdwg.mxu0
      %v993 = vsel %vm567, %v584, -inf
      %994 = vmax.xlane.f32.xlu0 %v993
      %v995 = vpop.xlane.xlu0 %994
      %v996 = vsel %vm567, %v586, -inf
      %997 = vmax.xlane.f32.xlu0 %v996
      %v998 = vpop.xlane.xlu0 %997
      %v999 = vsel %vm567, %v611, -inf
      %1000 = vmax.xlane.f32.xlu0 %v999
      %v1001 = vpop.xlane.xlu0 %1000
      %v1002 = vsel %vm567, %v613, -inf
      %1003 = vmax.xlane.f32.xlu0 %v1002
      %v1004 = vpop.xlane.xlu0 %1003
      %v1005 = vsel %vm567, %v638, -inf
      %1006 = vmax.xlane.f32.xlu0 %v1005
      %v1007 = vpop.xlane.xlu0 %1006
      %v1008 = vsel %vm567, %v640, -inf
      %1009 = vmax.xlane.f32.xlu0 %v1008
      %v1010 = vpop.xlane.xlu0 %1009
      %v1011 = vsel %vm567, %v665, -inf
      %1012 = vmax.xlane.f32.xlu0 %v1011
      %v1013 = vpop.xlane.xlu0 %1012
      %v1014 = vsel %vm567, %v667, -inf
      %1015 = vmax.xlane.f32.xlu0 %v1014
      %v1016 = vpop.xlane.xlu0 %1015
      %v1017 = vsel %vm567, %v692, -inf
      %1018 = vmax.xlane.f32.xlu0 %v1017
      %v1019 = vpop.xlane.xlu0 %1018
      %v1020 = vsel %vm567, %v694, -inf
      %1021 = vmax.xlane.f32.xlu0 %v1020
      %v1022 = vpop.xlane.xlu0 %1021
      %v1023 = vsel %vm567, %v719, -inf
      %1024 = vmax.xlane.f32.xlu0 %v1023
      %v1025 = vpop.xlane.xlu0 %1024
      %v1026 = vsel %vm567, %v721, -inf
      %1027 = vmax.xlane.f32.xlu0 %v1026
      %v1028 = vpop.xlane.xlu0 %1027
      %v1029 = vsel %vm567, %v746, -inf
      %1030 = vmax.xlane.f32.xlu0 %v1029
      %v1031 = vpop.xlane.xlu0 %1030
      %v1032 = vsel %vm567, %v748, -inf
      %1033 = vmax.xlane.f32.xlu0 %v1032
      %v1034 = vpop.xlane.xlu0 %1033
      %v1035 = vsel %vm567, %v773, -inf
      %1036 = vmax.xlane.f32.xlu0 %v1035
      %v1037 = vpop.xlane.xlu0 %1036
      %v1038 = vsel %vm567, %v775, -inf
      %1039 = vmax.xlane.f32.xlu0 %v1038
      %v1040 = vpop.xlane.xlu0 %1039
      %v1041 = vsel %vm567, %v800, -inf
      %1042 = vmax.xlane.f32.xlu0 %v1041
      %v1043 = vpop.xlane.xlu0 %1042
      %v1044 = vsel %vm567, %v802, -inf
      %1045 = vmax.xlane.f32.xlu0 %v1044
      %v1046 = vpop.xlane.xlu0 %1045
      %v1047 = vsel %vm567, %v827, -inf
      %1048 = vmax.xlane.f32.xlu0 %v1047
      %v1049 = vpop.xlane.xlu0 %1048
      %v1050 = vsel %vm567, %v829, -inf
      %1051 = vmax.xlane.f32.xlu0 %v1050
      %v1052 = vpop.xlane.xlu0 %1051
      %v1053 = vsel %vm567, %v854, -inf
      %1054 = vmax.xlane.f32.xlu0 %v1053
      %v1055 = vpop.xlane.xlu0 %1054
      %v1056 = vsel %vm567, %v856, -inf
      %1057 = vmax.xlane.f32.xlu0 %v1056
      %v1058 = vpop.xlane.xlu0 %1057
      %v1059 = vsel %vm567, %v881, -inf
      %1060 = vmax.xlane.f32.xlu0 %v1059
      %v1061 = vpop.xlane.xlu0 %1060
      %v1062 = vsel %vm567, %v883, -inf
      %1063 = vmax.xlane.f32.xlu0 %v1062
      %v1064 = vpop.xlane.xlu0 %1063
      %v1065 = vsel %vm567, %v908, -inf
      %1066 = vmax.xlane.f32.xlu0 %v1065
      %v1067 = vpop.xlane.xlu0 %1066
      %v1068 = vsel %vm567, %v910, -inf
      %1069 = vmax.xlane.f32.xlu0 %v1068
      %v1070 = vpop.xlane.xlu0 %1069
      %v1071 = vsel %vm567, %v935, -inf
      %1072 = vmax.xlane.f32.xlu0 %v1071
      %v1073 = vpop.xlane.xlu0 %1072
      %v1074 = vsel %vm567, %v937, -inf
      %1075 = vmax.xlane.f32.xlu0 %v1074
      %v1076 = vpop.xlane.xlu0 %1075
      %v1077 = vsel %vm567, %v962, -inf
      %1078 = vmax.xlane.f32.xlu0 %v1077
      %v1079 = vpop.xlane.xlu0 %1078
      %v1080 = vsel %vm567, %v964, -inf
      %1081 = vmax.xlane.f32.xlu0 %v1080
      %v1082 = vpop.xlane.xlu0 %1081
      %v1083 = vsel %vm567, %v989, -inf
      %1084 = vmax.xlane.f32.xlu0 %v1083
      %v1085 = vpop.xlane.xlu0 %1084
      %v1086 = vsel %vm567, %v991, -inf
      %1087 = vmax.xlane.f32.xlu0 %v1086
      %v1088 = vpop.xlane.xlu0 %1087
      %v1089 = vsub.f32 %v584, %v995
      %v1090 = vsub.f32 %v586, %v998
      %v1091 = vsub.f32 %v611, %v1001
      %v1092 = vsub.f32 %v613, %v1004
      %v1093 = vsub.f32 %v638, %v1007
      %v1094 = vsub.f32 %v640, %v1010
      %v1095 = vsub.f32 %v665, %v1013
      %v1096 = vsub.f32 %v667, %v1016
      %v1097 = vsub.f32 %v692, %v1019
      %v1098 = vsub.f32 %v694, %v1022
      %v1099 = vsub.f32 %v719, %v1025
      %v1100 = vsub.f32 %v721, %v1028
      %v1101 = vsub.f32 %v746, %v1031
      %v1102 = vsub.f32 %v748, %v1034
      %v1103 = vsub.f32 %v773, %v1037
      %v1104 = vsub.f32 %v775, %v1040
      %v1105 = vsub.f32 %v800, %v1043
      %v1106 = vsub.f32 %v802, %v1046
      %v1107 = vsub.f32 %v827, %v1049
      %v1108 = vsub.f32 %v829, %v1052
      %v1109 = vsub.f32 %v854, %v1055
      %v1110 = vsub.f32 %v856, %v1058
      %v1111 = vsub.f32 %v881, %v1061
      %v1112 = vsub.f32 %v883, %v1064
      %v1113 = vsub.f32 %v908, %v1067
      %v1114 = vsub.f32 %v910, %v1070
      %v1115 = vsub.f32 %v935, %v1073
      %v1116 = vsub.f32 %v937, %v1076
      %v1117 = vsub.f32 %v962, %v1079
      %v1118 = vsub.f32 %v964, %v1082
      %v1119 = vsub.f32 %v989, %v1085
      %v1120 = vsub.f32 %v991, %v1088
      %v1121 = vmul.f32 %v1089, 1.442695
      %v1122 = vpow.pop %v1121
      %v1123 = vmul.f32 %v1090, 1.442695
      %v1124 = vpow.pop %v1123
      %v1125 = vmul.f32 %v1091, 1.442695
      %v1126 = vpow.pop %v1125
      %v1127 = vmul.f32 %v1092, 1.442695
      %v1128 = vpow.pop %v1127
      %v1129 = vmul.f32 %v1093, 1.442695
      %v1130 = vpow.pop %v1129
      %v1131 = vmul.f32 %v1094, 1.442695
      %v1132 = vpow.pop %v1131
      %v1133 = vmul.f32 %v1095, 1.442695
      %v1134 = vpow.pop %v1133
      %v1135 = vmul.f32 %v1096, 1.442695
      %v1136 = vpow.pop %v1135
      %v1137 = vmul.f32 %v1097, 1.442695
      %v1138 = vpow.pop %v1137
      %v1139 = vmul.f32 %v1098, 1.442695
      %v1140 = vpow.pop %v1139
      %v1141 = vmul.f32 %v1099, 1.442695
      %v1142 = vpow.pop %v1141
      %v1143 = vmul.f32 %v1100, 1.442695
      %v1144 = vpow.pop %v1143
      %v1145 = vmul.f32 %v1101, 1.442695
      %v1146 = vpow.pop %v1145
      %v1147 = vmul.f32 %v1102, 1.442695
      %v1148 = vpow.pop %v1147
      %v1149 = vmul.f32 %v1103, 1.442695
      %v1150 = vpow.pop %v1149
      %v1151 = vmul.f32 %v1104, 1.442695
      %v1152 = vpow.pop %v1151
      %v1153 = vmul.f32 %v1105, 1.442695
      %v1154 = vpow.pop %v1153
      %v1155 = vmul.f32 %v1106, 1.442695
      %v1156 = vpow.pop %v1155
      %v1157 = vmul.f32 %v1107, 1.442695
      %v1158 = vpow.pop %v1157
      %v1159 = vmul.f32 %v1108, 1.442695
      %v1160 = vpow.pop %v1159
      %v1161 = vmul.f32 %v1109, 1.442695
      %v1162 = vpow.pop %v1161
      %v1163 = vmul.f32 %v1110, 1.442695
      %v1164 = vpow.pop %v1163
      %v1165 = vmul.f32 %v1111, 1.442695
      %v1166 = vpow.pop %v1165
      %v1167 = vmul.f32 %v1112, 1.442695
      %v1168 = vpow.pop %v1167
      %v1169 = vmul.f32 %v1113, 1.442695
      %v1170 = vpow.pop %v1169
      %v1171 = vmul.f32 %v1114, 1.442695
      %v1172 = vpow.pop %v1171
      %v1173 = vmul.f32 %v1115, 1.442695
      %v1174 = vpow.pop %v1173
      %v1175 = vmul.f32 %v1116, 1.442695
      %v1176 = vpow.pop %v1175
      %v1177 = vmul.f32 %v1117, 1.442695
      %v1178 = vpow.pop %v1177
      %v1179 = vmul.f32 %v1118, 1.442695
      %v1180 = vpow.pop %v1179
      %v1181 = vmul.f32 %v1119, 1.442695
      %v1182 = vpow.pop %v1181
      %v1183 = vmul.f32 %v1120, 1.442695
      %v1184 = vpow.pop %v1183
      %v1185 = vsel %vm567, %v1122, 0.0
      %1186 = vadd.xlane.f32.xlu0 %v1185
      %v1187 = vpop.xlane.xlu0 %1186
      %v1188 = vsel %vm567, %v1124, 0.0
      %1189 = vadd.xlane.f32.xlu0 %v1188
      %v1190 = vpop.xlane.xlu0 %1189
      %v1191 = vsel %vm567, %v1126, 0.0
      %1192 = vadd.xlane.f32.xlu0 %v1191
      %v1193 = vpop.xlane.xlu0 %1192
      %v1194 = vsel %vm567, %v1128, 0.0
      %1195 = vadd.xlane.f32.xlu0 %v1194
      %v1196 = vpop.xlane.xlu0 %1195
      %v1197 = vsel %vm567, %v1130, 0.0
      %1198 = vadd.xlane.f32.xlu0 %v1197
      %v1199 = vpop.xlane.xlu0 %1198
      %v1200 = vsel %vm567, %v1132, 0.0
      %1201 = vadd.xlane.f32.xlu0 %v1200
      %v1202 = vpop.xlane.xlu0 %1201
      %v1203 = vsel %vm567, %v1134, 0.0
      %1204 = vadd.xlane.f32.xlu0 %v1203
      %v1205 = vpop.xlane.xlu0 %1204
      %v1206 = vsel %vm567, %v1136, 0.0
      %1207 = vadd.xlane.f32.xlu0 %v1206
      %v1208 = vpop.xlane.xlu0 %1207
      %v1209 = vsel %vm567, %v1138, 0.0
      %1210 = vadd.xlane.f32.xlu0 %v1209
      %v1211 = vpop.xlane.xlu0 %1210
      %v1212 = vsel %vm567, %v1140, 0.0
      %1213 = vadd.xlane.f32.xlu0 %v1212
      %v1214 = vpop.xlane.xlu0 %1213
      %v1215 = vsel %vm567, %v1142, 0.0
      %1216 = vadd.xlane.f32.xlu0 %v1215
      %v1217 = vpop.xlane.xlu0 %1216
      %v1218 = vsel %vm567, %v1144, 0.0
      %1219 = vadd.xlane.f32.xlu0 %v1218
      %v1220 = vpop.xlane.xlu0 %1219
      %v1221 = vsel %vm567, %v1146, 0.0
      %1222 = vadd.xlane.f32.xlu0 %v1221
      %v1223 = vpop.xlane.xlu0 %1222
      %v1224 = vsel %vm567, %v1148, 0.0
      %1225 = vadd.xlane.f32.xlu0 %v1224
      %v1226 = vpop.xlane.xlu0 %1225
      %v1227 = vsel %vm567, %v1150, 0.0
      %1228 = vadd.xlane.f32.xlu0 %v1227
      %v1229 = vpop.xlane.xlu0 %1228
      %v1230 = vsel %vm567, %v1152, 0.0
      %1231 = vadd.xlane.f32.xlu0 %v1230
      %v1232 = vpop.xlane.xlu0 %1231
      %v1233 = vsel %vm567, %v1154, 0.0
      %1234 = vadd.xlane.f32.xlu0 %v1233
      %v1235 = vpop.xlane.xlu0 %1234
      %v1236 = vsel %vm567, %v1156, 0.0
      %1237 = vadd.xlane.f32.xlu0 %v1236
      %v1238 = vpop.xlane.xlu0 %1237
      %v1239 = vsel %vm567, %v1158, 0.0
      %1240 = vadd.xlane.f32.xlu0 %v1239
      %v1241 = vpop.xlane.xlu0 %1240
      %v1242 = vsel %vm567, %v1160, 0.0
      %1243 = vadd.xlane.f32.xlu0 %v1242
      %v1244 = vpop.xlane.xlu0 %1243
      %v1245 = vsel %vm567, %v1162, 0.0
      %1246 = vadd.xlane.f32.xlu0 %v1245
      %v1247 = vpop.xlane.xlu0 %1246
      %v1248 = vsel %vm567, %v1164, 0.0
      %1249 = vadd.xlane.f32.xlu0 %v1248
      %v1250 = vpop.xlane.xlu0 %1249
      %v1251 = vsel %vm567, %v1166, 0.0
      %1252 = vadd.xlane.f32.xlu0 %v1251
      %v1253 = vpop.xlane.xlu0 %1252
      %v1254 = vsel %vm567, %v1168, 0.0
      %1255 = vadd.xlane.f32.xlu0 %v1254
      %v1256 = vpop.xlane.xlu0 %1255
      %v1257 = vsel %vm567, %v1170, 0.0
      %1258 = vadd.xlane.f32.xlu0 %v1257
      %v1259 = vpop.xlane.xlu0 %1258
      %v1260 = vsel %vm567, %v1172, 0.0
      %1261 = vadd.xlane.f32.xlu0 %v1260
      %v1262 = vpop.xlane.xlu0 %1261
      %v1263 = vsel %vm567, %v1174, 0.0
      %1264 = vadd.xlane.f32.xlu0 %v1263
      %v1265 = vpop.xlane.xlu0 %1264
      %v1266 = vsel %vm567, %v1176, 0.0
      %1267 = vadd.xlane.f32.xlu0 %v1266
      %v1268 = vpop.xlane.xlu0 %1267
      %v1269 = vsel %vm567, %v1178, 0.0
      %1270 = vadd.xlane.f32.xlu0 %v1269
      %v1271 = vpop.xlane.xlu0 %1270
      %v1272 = vsel %vm567, %v1180, 0.0
      %1273 = vadd.xlane.f32.xlu0 %v1272
      %v1274 = vpop.xlane.xlu0 %1273
      %v1275 = vsel %vm567, %v1182, 0.0
      %1276 = vadd.xlane.f32.xlu0 %v1275
      %v1277 = vpop.xlane.xlu0 %1276
      %v1278 = vsel %vm567, %v1184, 0.0
      %1279 = vadd.xlane.f32.xlu0 %v1278
      %v1280 = vpop.xlane.xlu0 %1279
      %v1281 = vrcp.pop %v1187
      %v1282 = vmul.f32 %v1187, %v1281
      %v1283 = vsub.f32 1.0, %v1282
      %v1284 = vmul.f32 %v1281, %v1283
      %v1285 = vadd.f32 %v1281, %v1284
      %vm1286 = vweird.f32 %v1187
      %vm1287 = vweird.f32 %v1281
      %vm1288 = vmor %vm1286, %vm1287
      %v1289 = vsel %vm1288, %v1281, %v1285
      %v1290 = vand.u32 2147483647, %v1187
      %vm1291 = vcmp.eq.f32.partialorder %v1290, 8.507059e+37
      %v1292 = vand.u32 %v1187, 2147483648
      %v1293 = vor.u32 1.1754944e-38, %v1292
      %v1294 = vsel %vm1291, %v1293, %v1289
      %v1295 = vmul.f32 %v1122, %v1294
      %v1296 = vrcp.pop %v1190
      %v1297 = vmul.f32 %v1190, %v1296
      %v1298 = vsub.f32 1.0, %v1297
      %v1299 = vmul.f32 %v1296, %v1298
      %v1300 = vadd.f32 %v1296, %v1299
      %vm1301 = vweird.f32 %v1190
      %vm1302 = vweird.f32 %v1296
      %vm1303 = vmor %vm1301, %vm1302
      %v1304 = vsel %vm1303, %v1296, %v1300
      %v1305 = vand.u32 2147483647, %v1190
      %vm1306 = vcmp.eq.f32.partialorder %v1305, 8.507059e+37
      %v1307 = vand.u32 %v1190, 2147483648
      %v1308 = vor.u32 1.1754944e-38, %v1307
      %v1309 = vsel %vm1306, %v1308, %v1304
      %v1310 = vmul.f32 %v1124, %v1309
      %v1311 = vrcp.pop %v1193
      %v1312 = vmul.f32 %v1193, %v1311
      %v1313 = vsub.f32 1.0, %v1312
      %v1314 = vmul.f32 %v1311, %v1313
      %v1315 = vadd.f32 %v1311, %v1314
      %vm1316 = vweird.f32 %v1193
      %vm1317 = vweird.f32 %v1311
      %vm1318 = vmor %vm1316, %vm1317
      %v1319 = vsel %vm1318, %v1311, %v1315
      %v1320 = vand.u32 2147483647, %v1193
      %vm1321 = vcmp.eq.f32.partialorder %v1320, 8.507059e+37
      %v1322 = vand.u32 %v1193, 2147483648
      %v1323 = vor.u32 1.1754944e-38, %v1322
      %v1324 = vsel %vm1321, %v1323, %v1319
      %v1325 = vmul.f32 %v1126, %v1324
      %v1326 = vrcp.pop %v1196
      %v1327 = vmul.f32 %v1196, %v1326
      %v1328 = vsub.f32 1.0, %v1327
      %v1329 = vmul.f32 %v1326, %v1328
      %v1330 = vadd.f32 %v1326, %v1329
      %vm1331 = vweird.f32 %v1196
      %vm1332 = vweird.f32 %v1326
      %vm1333 = vmor %vm1331, %vm1332
      %v1334 = vsel %vm1333, %v1326, %v1330
      %v1335 = vand.u32 2147483647, %v1196
      %vm1336 = vcmp.eq.f32.partialorder %v1335, 8.507059e+37
      %v1337 = vand.u32 %v1196, 2147483648
      %v1338 = vor.u32 1.1754944e-38, %v1337
      %v1339 = vsel %vm1336, %v1338, %v1334
      %v1340 = vmul.f32 %v1128, %v1339
      %v1341 = vrcp.pop %v1199
      %v1342 = vmul.f32 %v1199, %v1341
      %v1343 = vsub.f32 1.0, %v1342
      %v1344 = vmul.f32 %v1341, %v1343
      %v1345 = vadd.f32 %v1341, %v1344
      %vm1346 = vweird.f32 %v1199
      %vm1347 = vweird.f32 %v1341
      %vm1348 = vmor %vm1346, %vm1347
      %v1349 = vsel %vm1348, %v1341, %v1345
      %v1350 = vand.u32 2147483647, %v1199
      %vm1351 = vcmp.eq.f32.partialorder %v1350, 8.507059e+37
      %v1352 = vand.u32 %v1199, 2147483648
      %v1353 = vor.u32 1.1754944e-38, %v1352
      %v1354 = vsel %vm1351, %v1353, %v1349
      %v1355 = vmul.f32 %v1130, %v1354
      %v1356 = vrcp.pop %v1202
      %v1357 = vmul.f32 %v1202, %v1356
      %v1358 = vsub.f32 1.0, %v1357
      %v1359 = vmul.f32 %v1356, %v1358
      %v1360 = vadd.f32 %v1356, %v1359
      %vm1361 = vweird.f32 %v1202
      %vm1362 = vweird.f32 %v1356
      %vm1363 = vmor %vm1361, %vm1362
      %v1364 = vsel %vm1363, %v1356, %v1360
      %v1365 = vand.u32 2147483647, %v1202
      %vm1366 = vcmp.eq.f32.partialorder %v1365, 8.507059e+37
      %v1367 = vand.u32 %v1202, 2147483648
      %v1368 = vor.u32 1.1754944e-38, %v1367
      %v1369 = vsel %vm1366, %v1368, %v1364
      %v1370 = vmul.f32 %v1132, %v1369
      %v1371 = vrcp.pop %v1205
      %v1372 = vmul.f32 %v1205, %v1371
      %v1373 = vsub.f32 1.0, %v1372
      %v1374 = vmul.f32 %v1371, %v1373
      %v1375 = vadd.f32 %v1371, %v1374
      %vm1376 = vweird.f32 %v1205
      %vm1377 = vweird.f32 %v1371
      %vm1378 = vmor %vm1376, %vm1377
      %v1379 = vsel %vm1378, %v1371, %v1375
      %v1380 = vand.u32 2147483647, %v1205
      %vm1381 = vcmp.eq.f32.partialorder %v1380, 8.507059e+37
      %v1382 = vand.u32 %v1205, 2147483648
      %v1383 = vor.u32 1.1754944e-38, %v1382
      %v1384 = vsel %vm1381, %v1383, %v1379
      %v1385 = vmul.f32 %v1134, %v1384
      %v1386 = vrcp.pop %v1208
      %v1387 = vmul.f32 %v1208, %v1386
      %v1388 = vsub.f32 1.0, %v1387
      %v1389 = vmul.f32 %v1386, %v1388
      %v1390 = vadd.f32 %v1386, %v1389
      %vm1391 = vweird.f32 %v1208
      %vm1392 = vweird.f32 %v1386
      %vm1393 = vmor %vm1391, %vm1392
      %v1394 = vsel %vm1393, %v1386, %v1390
      %v1395 = vand.u32 2147483647, %v1208
      %vm1396 = vcmp.eq.f32.partialorder %v1395, 8.507059e+37
      %v1397 = vand.u32 %v1208, 2147483648
      %v1398 = vor.u32 1.1754944e-38, %v1397
      %v1399 = vsel %vm1396, %v1398, %v1394
      %v1400 = vmul.f32 %v1136, %v1399
      %v1401 = vrcp.pop %v1211
      %v1402 = vmul.f32 %v1211, %v1401
      %v1403 = vsub.f32 1.0, %v1402
      %v1404 = vmul.f32 %v1401, %v1403
      %v1405 = vadd.f32 %v1401, %v1404
      %vm1406 = vweird.f32 %v1211
      %vm1407 = vweird.f32 %v1401
      %vm1408 = vmor %vm1406, %vm1407
      %v1409 = vsel %vm1408, %v1401, %v1405
      %v1410 = vand.u32 2147483647, %v1211
      %vm1411 = vcmp.eq.f32.partialorder %v1410, 8.507059e+37
      %v1412 = vand.u32 %v1211, 2147483648
      %v1413 = vor.u32 1.1754944e-38, %v1412
      %v1414 = vsel %vm1411, %v1413, %v1409
      %v1415 = vmul.f32 %v1138, %v1414
      %v1416 = vrcp.pop %v1214
      %v1417 = vmul.f32 %v1214, %v1416
      %v1418 = vsub.f32 1.0, %v1417
      %v1419 = vmul.f32 %v1416, %v1418
      %v1420 = vadd.f32 %v1416, %v1419
      %vm1421 = vweird.f32 %v1214
      %vm1422 = vweird.f32 %v1416
      %vm1423 = vmor %vm1421, %vm1422
      %v1424 = vsel %vm1423, %v1416, %v1420
      %v1425 = vand.u32 2147483647, %v1214
      %vm1426 = vcmp.eq.f32.partialorder %v1425, 8.507059e+37
      %v1427 = vand.u32 %v1214, 2147483648
      %v1428 = vor.u32 1.1754944e-38, %v1427
      %v1429 = vsel %vm1426, %v1428, %v1424
      %v1430 = vmul.f32 %v1140, %v1429
      %v1431 = vrcp.pop %v1217
      %v1432 = vmul.f32 %v1217, %v1431
      %v1433 = vsub.f32 1.0, %v1432
      %v1434 = vmul.f32 %v1431, %v1433
      %v1435 = vadd.f32 %v1431, %v1434
      %vm1436 = vweird.f32 %v1217
      %vm1437 = vweird.f32 %v1431
      %vm1438 = vmor %vm1436, %vm1437
      %v1439 = vsel %vm1438, %v1431, %v1435
      %v1440 = vand.u32 2147483647, %v1217
      %vm1441 = vcmp.eq.f32.partialorder %v1440, 8.507059e+37
      %v1442 = vand.u32 %v1217, 2147483648
      %v1443 = vor.u32 1.1754944e-38, %v1442
      %v1444 = vsel %vm1441, %v1443, %v1439
      %v1445 = vmul.f32 %v1142, %v1444
      %v1446 = vrcp.pop %v1220
      %v1447 = vmul.f32 %v1220, %v1446
      %v1448 = vsub.f32 1.0, %v1447
      %v1449 = vmul.f32 %v1446, %v1448
      %v1450 = vadd.f32 %v1446, %v1449
      %vm1451 = vweird.f32 %v1220
      %vm1452 = vweird.f32 %v1446
      %vm1453 = vmor %vm1451, %vm1452
      %v1454 = vsel %vm1453, %v1446, %v1450
      %v1455 = vand.u32 2147483647, %v1220
      %vm1456 = vcmp.eq.f32.partialorder %v1455, 8.507059e+37
      %v1457 = vand.u32 %v1220, 2147483648
      %v1458 = vor.u32 1.1754944e-38, %v1457
      %v1459 = vsel %vm1456, %v1458, %v1454
      %v1460 = vmul.f32 %v1144, %v1459
      %v1461 = vrcp.pop %v1223
      %v1462 = vmul.f32 %v1223, %v1461
      %v1463 = vsub.f32 1.0, %v1462
      %v1464 = vmul.f32 %v1461, %v1463
      %v1465 = vadd.f32 %v1461, %v1464
      %vm1466 = vweird.f32 %v1223
      %vm1467 = vweird.f32 %v1461
      %vm1468 = vmor %vm1466, %vm1467
      %v1469 = vsel %vm1468, %v1461, %v1465
      %v1470 = vand.u32 2147483647, %v1223
      %vm1471 = vcmp.eq.f32.partialorder %v1470, 8.507059e+37
      %v1472 = vand.u32 %v1223, 2147483648
      %v1473 = vor.u32 1.1754944e-38, %v1472
      %v1474 = vsel %vm1471, %v1473, %v1469
      %v1475 = vmul.f32 %v1146, %v1474
      %v1476 = vrcp.pop %v1226
      %v1477 = vmul.f32 %v1226, %v1476
      %v1478 = vsub.f32 1.0, %v1477
      %v1479 = vmul.f32 %v1476, %v1478
      %v1480 = vadd.f32 %v1476, %v1479
      %vm1481 = vweird.f32 %v1226
      %vm1482 = vweird.f32 %v1476
      %vm1483 = vmor %vm1481, %vm1482
      %v1484 = vsel %vm1483, %v1476, %v1480
      %v1485 = vand.u32 2147483647, %v1226
      %vm1486 = vcmp.eq.f32.partialorder %v1485, 8.507059e+37
      %v1487 = vand.u32 %v1226, 2147483648
      %v1488 = vor.u32 1.1754944e-38, %v1487
      %v1489 = vsel %vm1486, %v1488, %v1484
      %v1490 = vmul.f32 %v1148, %v1489
      %v1491 = vrcp.pop %v1229
      %v1492 = vmul.f32 %v1229, %v1491
      %v1493 = vsub.f32 1.0, %v1492
      %v1494 = vmul.f32 %v1491, %v1493
      %v1495 = vadd.f32 %v1491, %v1494
      %vm1496 = vweird.f32 %v1229
      %vm1497 = vweird.f32 %v1491
      %vm1498 = vmor %vm1496, %vm1497
      %v1499 = vsel %vm1498, %v1491, %v1495
      %v1500 = vand.u32 2147483647, %v1229
      %vm1501 = vcmp.eq.f32.partialorder %v1500, 8.507059e+37
      %v1502 = vand.u32 %v1229, 2147483648
      %v1503 = vor.u32 1.1754944e-38, %v1502
      %v1504 = vsel %vm1501, %v1503, %v1499
      %v1505 = vmul.f32 %v1150, %v1504
      %v1506 = vrcp.pop %v1232
      %v1507 = vmul.f32 %v1232, %v1506
      %v1508 = vsub.f32 1.0, %v1507
      %v1509 = vmul.f32 %v1506, %v1508
      %v1510 = vadd.f32 %v1506, %v1509
      %vm1511 = vweird.f32 %v1232
      %vm1512 = vweird.f32 %v1506
      %vm1513 = vmor %vm1511, %vm1512
      %v1514 = vsel %vm1513, %v1506, %v1510
      %v1515 = vand.u32 2147483647, %v1232
      %vm1516 = vcmp.eq.f32.partialorder %v1515, 8.507059e+37
      %v1517 = vand.u32 %v1232, 2147483648
      %v1518 = vor.u32 1.1754944e-38, %v1517
      %v1519 = vsel %vm1516, %v1518, %v1514
      %v1520 = vmul.f32 %v1152, %v1519
      %v1521 = vrcp.pop %v1235
      %v1522 = vmul.f32 %v1235, %v1521
      %v1523 = vsub.f32 1.0, %v1522
      %v1524 = vmul.f32 %v1521, %v1523
      %v1525 = vadd.f32 %v1521, %v1524
      %vm1526 = vweird.f32 %v1235
      %vm1527 = vweird.f32 %v1521
      %vm1528 = vmor %vm1526, %vm1527
      %v1529 = vsel %vm1528, %v1521, %v1525
      %v1530 = vand.u32 2147483647, %v1235
      %vm1531 = vcmp.eq.f32.partialorder %v1530, 8.507059e+37
      %v1532 = vand.u32 %v1235, 2147483648
      %v1533 = vor.u32 1.1754944e-38, %v1532
      %v1534 = vsel %vm1531, %v1533, %v1529
      %v1535 = vmul.f32 %v1154, %v1534
      %v1536 = vrcp.pop %v1238
      %v1537 = vmul.f32 %v1238, %v1536
      %v1538 = vsub.f32 1.0, %v1537
      %v1539 = vmul.f32 %v1536, %v1538
      %v1540 = vadd.f32 %v1536, %v1539
      %vm1541 = vweird.f32 %v1238
      %vm1542 = vweird.f32 %v1536
      %vm1543 = vmor %vm1541, %vm1542
      %v1544 = vsel %vm1543, %v1536, %v1540
      %v1545 = vand.u32 2147483647, %v1238
      %vm1546 = vcmp.eq.f32.partialorder %v1545, 8.507059e+37
      %v1547 = vand.u32 %v1238, 2147483648
      %v1548 = vor.u32 1.1754944e-38, %v1547
      %v1549 = vsel %vm1546, %v1548, %v1544
      %v1550 = vmul.f32 %v1156, %v1549
      %v1551 = vrcp.pop %v1241
      %v1552 = vmul.f32 %v1241, %v1551
      %v1553 = vsub.f32 1.0, %v1552
      %v1554 = vmul.f32 %v1551, %v1553
      %v1555 = vadd.f32 %v1551, %v1554
      %vm1556 = vweird.f32 %v1241
      %vm1557 = vweird.f32 %v1551
      %vm1558 = vmor %vm1556, %vm1557
      %v1559 = vsel %vm1558, %v1551, %v1555
      %v1560 = vand.u32 2147483647, %v1241
      %vm1561 = vcmp.eq.f32.partialorder %v1560, 8.507059e+37
      %v1562 = vand.u32 %v1241, 2147483648
      %v1563 = vor.u32 1.1754944e-38, %v1562
      %v1564 = vsel %vm1561, %v1563, %v1559
      %v1565 = vmul.f32 %v1158, %v1564
      %v1566 = vrcp.pop %v1244
      %v1567 = vmul.f32 %v1244, %v1566
      %v1568 = vsub.f32 1.0, %v1567
      %v1569 = vmul.f32 %v1566, %v1568
      %v1570 = vadd.f32 %v1566, %v1569
      %vm1571 = vweird.f32 %v1244
      %vm1572 = vweird.f32 %v1566
      %vm1573 = vmor %vm1571, %vm1572
      %v1574 = vsel %vm1573, %v1566, %v1570
      %v1575 = vand.u32 2147483647, %v1244
      %vm1576 = vcmp.eq.f32.partialorder %v1575, 8.507059e+37
      %v1577 = vand.u32 %v1244, 2147483648
      %v1578 = vor.u32 1.1754944e-38, %v1577
      %v1579 = vsel %vm1576, %v1578, %v1574
      %v1580 = vmul.f32 %v1160, %v1579
      %v1581 = vrcp.pop %v1247
      %v1582 = vmul.f32 %v1247, %v1581
      %v1583 = vsub.f32 1.0, %v1582
      %v1584 = vmul.f32 %v1581, %v1583
      %v1585 = vadd.f32 %v1581, %v1584
      %vm1586 = vweird.f32 %v1247
      %vm1587 = vweird.f32 %v1581
      %vm1588 = vmor %vm1586, %vm1587
      %v1589 = vsel %vm1588, %v1581, %v1585
      %v1590 = vand.u32 2147483647, %v1247
      %vm1591 = vcmp.eq.f32.partialorder %v1590, 8.507059e+37
      %v1592 = vand.u32 %v1247, 2147483648
      %v1593 = vor.u32 1.1754944e-38, %v1592
      %v1594 = vsel %vm1591, %v1593, %v1589
      %v1595 = vmul.f32 %v1162, %v1594
      %v1596 = vrcp.pop %v1250
      %v1597 = vmul.f32 %v1250, %v1596
      %v1598 = vsub.f32 1.0, %v1597
      %v1599 = vmul.f32 %v1596, %v1598
      %v1600 = vadd.f32 %v1596, %v1599
      %vm1601 = vweird.f32 %v1250
      %vm1602 = vweird.f32 %v1596
      %vm1603 = vmor %vm1601, %vm1602
      %v1604 = vsel %vm1603, %v1596, %v1600
      %v1605 = vand.u32 2147483647, %v1250
      %vm1606 = vcmp.eq.f32.partialorder %v1605, 8.507059e+37
      %v1607 = vand.u32 %v1250, 2147483648
      %v1608 = vor.u32 1.1754944e-38, %v1607
      %v1609 = vsel %vm1606, %v1608, %v1604
      %v1610 = vmul.f32 %v1164, %v1609
      %v1611 = vrcp.pop %v1253
      %v1612 = vmul.f32 %v1253, %v1611
      %v1613 = vsub.f32 1.0, %v1612
      %v1614 = vmul.f32 %v1611, %v1613
      %v1615 = vadd.f32 %v1611, %v1614
      %vm1616 = vweird.f32 %v1253
      %vm1617 = vweird.f32 %v1611
      %vm1618 = vmor %vm1616, %vm1617
      %v1619 = vsel %vm1618, %v1611, %v1615
      %v1620 = vand.u32 2147483647, %v1253
      %vm1621 = vcmp.eq.f32.partialorder %v1620, 8.507059e+37
      %v1622 = vand.u32 %v1253, 2147483648
      %v1623 = vor.u32 1.1754944e-38, %v1622
      %v1624 = vsel %vm1621, %v1623, %v1619
      %v1625 = vmul.f32 %v1166, %v1624
      %v1626 = vrcp.pop %v1256
      %v1627 = vmul.f32 %v1256, %v1626
      %v1628 = vsub.f32 1.0, %v1627
      %v1629 = vmul.f32 %v1626, %v1628
      %v1630 = vadd.f32 %v1626, %v1629
      %vm1631 = vweird.f32 %v1256
      %vm1632 = vweird.f32 %v1626
      %vm1633 = vmor %vm1631, %vm1632
      %v1634 = vsel %vm1633, %v1626, %v1630
      %v1635 = vand.u32 2147483647, %v1256
      %vm1636 = vcmp.eq.f32.partialorder %v1635, 8.507059e+37
      %v1637 = vand.u32 %v1256, 2147483648
      %v1638 = vor.u32 1.1754944e-38, %v1637
      %v1639 = vsel %vm1636, %v1638, %v1634
      %v1640 = vmul.f32 %v1168, %v1639
      %v1641 = vrcp.pop %v1259
      %v1642 = vmul.f32 %v1259, %v1641
      %v1643 = vsub.f32 1.0, %v1642
      %v1644 = vmul.f32 %v1641, %v1643
      %v1645 = vadd.f32 %v1641, %v1644
      %vm1646 = vweird.f32 %v1259
      %vm1647 = vweird.f32 %v1641
      %vm1648 = vmor %vm1646, %vm1647
      %v1649 = vsel %vm1648, %v1641, %v1645
      %v1650 = vand.u32 2147483647, %v1259
      %vm1651 = vcmp.eq.f32.partialorder %v1650, 8.507059e+37
      %v1652 = vand.u32 %v1259, 2147483648
      %v1653 = vor.u32 1.1754944e-38, %v1652
      %v1654 = vsel %vm1651, %v1653, %v1649
      %v1655 = vmul.f32 %v1170, %v1654
      %v1656 = vrcp.pop %v1262
      %v1657 = vmul.f32 %v1262, %v1656
      %v1658 = vsub.f32 1.0, %v1657
      %v1659 = vmul.f32 %v1656, %v1658
      %v1660 = vadd.f32 %v1656, %v1659
      %vm1661 = vweird.f32 %v1262
      %vm1662 = vweird.f32 %v1656
      %vm1663 = vmor %vm1661, %vm1662
      %v1664 = vsel %vm1663, %v1656, %v1660
      %v1665 = vand.u32 2147483647, %v1262
      %vm1666 = vcmp.eq.f32.partialorder %v1665, 8.507059e+37
      %v1667 = vand.u32 %v1262, 2147483648
      %v1668 = vor.u32 1.1754944e-38, %v1667
      %v1669 = vsel %vm1666, %v1668, %v1664
      %v1670 = vmul.f32 %v1172, %v1669
      %v1671 = vrcp.pop %v1265
      %v1672 = vmul.f32 %v1265, %v1671
      %v1673 = vsub.f32 1.0, %v1672
      %v1674 = vmul.f32 %v1671, %v1673
      %v1675 = vadd.f32 %v1671, %v1674
      %vm1676 = vweird.f32 %v1265
      %vm1677 = vweird.f32 %v1671
      %vm1678 = vmor %vm1676, %vm1677
      %v1679 = vsel %vm1678, %v1671, %v1675
      %v1680 = vand.u32 2147483647, %v1265
      %vm1681 = vcmp.eq.f32.partialorder %v1680, 8.507059e+37
      %v1682 = vand.u32 %v1265, 2147483648
      %v1683 = vor.u32 1.1754944e-38, %v1682
      %v1684 = vsel %vm1681, %v1683, %v1679
      %v1685 = vmul.f32 %v1174, %v1684
      %v1686 = vrcp.pop %v1268
      %v1687 = vmul.f32 %v1268, %v1686
      %v1688 = vsub.f32 1.0, %v1687
      %v1689 = vmul.f32 %v1686, %v1688
      %v1690 = vadd.f32 %v1686, %v1689
      %vm1691 = vweird.f32 %v1268
      %vm1692 = vweird.f32 %v1686
      %vm1693 = vmor %vm1691, %vm1692
      %v1694 = vsel %vm1693, %v1686, %v1690
      %v1695 = vand.u32 2147483647, %v1268
      %vm1696 = vcmp.eq.f32.partialorder %v1695, 8.507059e+37
      %v1697 = vand.u32 %v1268, 2147483648
      %v1698 = vor.u32 1.1754944e-38, %v1697
      %v1699 = vsel %vm1696, %v1698, %v1694
      %v1700 = vmul.f32 %v1176, %v1699
      %v1701 = vrcp.pop %v1271
      %v1702 = vmul.f32 %v1271, %v1701
      %v1703 = vsub.f32 1.0, %v1702
      %v1704 = vmul.f32 %v1701, %v1703
      %v1705 = vadd.f32 %v1701, %v1704
      %vm1706 = vweird.f32 %v1271
      %vm1707 = vweird.f32 %v1701
      %vm1708 = vmor %vm1706, %vm1707
      %v1709 = vsel %vm1708, %v1701, %v1705
      %v1710 = vand.u32 2147483647, %v1271
      %vm1711 = vcmp.eq.f32.partialorder %v1710, 8.507059e+37
      %v1712 = vand.u32 %v1271, 2147483648
      %v1713 = vor.u32 1.1754944e-38, %v1712
      %v1714 = vsel %vm1711, %v1713, %v1709
      %v1715 = vmul.f32 %v1178, %v1714
      %v1716 = vrcp.pop %v1274
      %v1717 = vmul.f32 %v1274, %v1716
      %v1718 = vsub.f32 1.0, %v1717
      %v1719 = vmul.f32 %v1716, %v1718
      %v1720 = vadd.f32 %v1716, %v1719
      %vm1721 = vweird.f32 %v1274
      %vm1722 = vweird.f32 %v1716
      %vm1723 = vmor %vm1721, %vm1722
      %v1724 = vsel %vm1723, %v1716, %v1720
      %v1725 = vand.u32 2147483647, %v1274
      %vm1726 = vcmp.eq.f32.partialorder %v1725, 8.507059e+37
      %v1727 = vand.u32 %v1274, 2147483648
      %v1728 = vor.u32 1.1754944e-38, %v1727
      %v1729 = vsel %vm1726, %v1728, %v1724
      %v1730 = vmul.f32 %v1180, %v1729
      %v1731 = vrcp.pop %v1277
      %v1732 = vmul.f32 %v1277, %v1731
      %v1733 = vsub.f32 1.0, %v1732
      %v1734 = vmul.f32 %v1731, %v1733
      %v1735 = vadd.f32 %v1731, %v1734
      %vm1736 = vweird.f32 %v1277
      %vm1737 = vweird.f32 %v1731
      %vm1738 = vmor %vm1736, %vm1737
      %v1739 = vsel %vm1738, %v1731, %v1735
      %v1740 = vand.u32 2147483647, %v1277
      %vm1741 = vcmp.eq.f32.partialorder %v1740, 8.507059e+37
      %v1742 = vand.u32 %v1277, 2147483648
      %v1743 = vor.u32 1.1754944e-38, %v1742
      %v1744 = vsel %vm1741, %v1743, %v1739
      %v1745 = vmul.f32 %v1182, %v1744
      %v1746 = vrcp.pop %v1280
      %v1747 = vmul.f32 %v1280, %v1746
      %v1748 = vsub.f32 1.0, %v1747
      %v1749 = vmul.f32 %v1746, %v1748
      %v1750 = vadd.f32 %v1746, %v1749
      %vm1751 = vweird.f32 %v1280
      %vm1752 = vweird.f32 %v1746
      %vm1753 = vmor %vm1751, %vm1752
      %v1754 = vsel %vm1753, %v1746, %v1750
      %v1755 = vand.u32 2147483647, %v1280
      %vm1756 = vcmp.eq.f32.partialorder %v1755, 8.507059e+37
      %v1757 = vand.u32 %v1280, 2147483648
      %v1758 = vor.u32 1.1754944e-38, %v1757
      %v1759 = vsel %vm1756, %v1758, %v1754
      %v1760 = vmul.f32 %v1184, %v1759
      %v1761 = vpack.c.bf16 %v1295, %v1295
      %v1762 = vpack.c.bf16 %v1310, %v1310
      %v1763 = vpack.c.bf16 %v1325, %v1325
      %v1764 = vpack.c.bf16 %v1340, %v1340
      %v1765 = vpack.c.bf16 %v1355, %v1355
      %v1766 = vpack.c.bf16 %v1370, %v1370
      %v1767 = vpack.c.bf16 %v1385, %v1385
      %v1768 = vpack.c.bf16 %v1400, %v1400
      %v1769 = vpack.c.bf16 %v1415, %v1415
      %v1770 = vpack.c.bf16 %v1430, %v1430
      %v1771 = vpack.c.bf16 %v1445, %v1445
      %v1772 = vpack.c.bf16 %v1460, %v1460
      %v1773 = vpack.c.bf16 %v1475, %v1475
      %v1774 = vpack.c.bf16 %v1490, %v1490
      %v1775 = vpack.c.bf16 %v1505, %v1505
      %v1776 = vpack.c.bf16 %v1520, %v1520
      %v1777 = vpack.c.bf16 %v1535, %v1535
      %v1778 = vpack.c.bf16 %v1550, %v1550
      %v1779 = vpack.c.bf16 %v1565, %v1565
      %v1780 = vpack.c.bf16 %v1580, %v1580
      %v1781 = vpack.c.bf16 %v1595, %v1595
      %v1782 = vpack.c.bf16 %v1610, %v1610
      %v1783 = vpack.c.bf16 %v1625, %v1625
      %v1784 = vpack.c.bf16 %v1640, %v1640
      %v1785 = vpack.c.bf16 %v1655, %v1655
      %v1786 = vpack.c.bf16 %v1670, %v1670
      %v1787 = vpack.c.bf16 %v1685, %v1685
      %v1788 = vpack.c.bf16 %v1700, %v1700
      %v1789 = vpack.c.bf16 %v1715, %v1715
      %v1790 = vpack.c.bf16 %v1730, %v1730
      %v1791 = vpack.c.bf16 %v1745, %v1745
      %v1792 = vpack.c.bf16 %v1760, %v1760
      %v1795 = vunpack.c.l.b16 %v1761
      %v1796 = vunpack.c.l.b16 %v1762
      %v1797 = vpack.c.b16 %v1796, %v1795
      %1798 = vrot.lane.b32.xlu0 %v564, 64
      %v1799 = vpop.permute.xlu0 %1798
      %v1802 = vsel %vm567, %v1797, 0
      %1804 = vmatpush.bf16.msra.mxu0 0
      %1805 = vmatpush.bf16.msra.mxu0 0
      %1806 = vmatpush.bf16.msra.mxu0 0
      %1807 = vmatpush.bf16.msra.mxu0 0
      %1808 = vmatpush.bf16.msra.mxu0 0
      %1809 = vmatpush.bf16.msra.mxu0 0
      %1810 = vmatpush.bf16.msra.mxu0 0
      %1811 = vmatpush.bf16.msra.mxu0 %v1799
      %1812 = vmatmul.bf16.gmra.mxu0 %v1802
      %v1813 = vpop.f32.mrf.mxu0
      %v1814 = vadd.f32 0.0, %v1813
      %v1815 = vpop.f32.mrf.mxu0
      %v1816 = vadd.f32 0.0, %v1815
      %1817 = vdwg.mxu0
      %v1820 = vunpack.c.l.b16 %v1763
      %v1821 = vunpack.c.l.b16 %v1764
      %v1822 = vpack.c.b16 %v1821, %v1820
      %1823 = vrot.lane.b32.xlu0 %v592, 64
      %v1824 = vpop.permute.xlu0 %1823
      %v1827 = vsel %vm567, %v1822, 0
      %1829 = vmatpush.bf16.msra.mxu0 0
      %1830 = vmatpush.bf16.msra.mxu0 0
      %1831 = vmatpush.bf16.msra.mxu0 0
      %1832 = vmatpush.bf16.msra.mxu0 0
      %1833 = vmatpush.bf16.msra.mxu0 0
      %1834 = vmatpush.bf16.msra.mxu0 0
      %1835 = vmatpush.bf16.msra.mxu0 0
      %1836 = vmatpush.bf16.msra.mxu0 %v1824
      %1837 = vmatmul.bf16.gmra.mxu0 %v1827
      %v1838 = vpop.f32.mrf.mxu0
      %v1839 = vadd.f32 0.0, %v1838
      %v1840 = vpop.f32.mrf.mxu0
      %v1841 = vadd.f32 0.0, %v1840
      %1842 = vdwg.mxu0
      %v1845 = vunpack.c.l.b16 %v1765
      %v1846 = vunpack.c.l.b16 %v1766
      %v1847 = vpack.c.b16 %v1846, %v1845
      %1848 = vrot.lane.b32.xlu0 %v619, 64
      %v1849 = vpop.permute.xlu0 %1848
      %v1852 = vsel %vm567, %v1847, 0
      %1854 = vmatpush.bf16.msra.mxu0 0
      %1855 = vmatpush.bf16.msra.mxu0 0
      %1856 = vmatpush.bf16.msra.mxu0 0
      %1857 = vmatpush.bf16.msra.mxu0 0
      %1858 = vmatpush.bf16.msra.mxu0 0
      %1859 = vmatpush.bf16.msra.mxu0 0
      %1860 = vmatpush.bf16.msra.mxu0 0
      %1861 = vmatpush.bf16.msra.mxu0 %v1849
      %1862 = vmatmul.bf16.gmra.mxu0 %v1852
      %v1863 = vpop.f32.mrf.mxu0
      %v1864 = vadd.f32 0.0, %v1863
      %v1865 = vpop.f32.mrf.mxu0
      %v1866 = vadd.f32 0.0, %v1865
      %1867 = vdwg.mxu0
      %v1870 = vunpack.c.l.b16 %v1767
      %v1871 = vunpack.c.l.b16 %v1768
      %v1872 = vpack.c.b16 %v1871, %v1870
      %1873 = vrot.lane.b32.xlu0 %v646, 64
      %v1874 = vpop.permute.xlu0 %1873
      %v1877 = vsel %vm567, %v1872, 0
      %1879 = vmatpush.bf16.msra.mxu0 0
      %1880 = vmatpush.bf16.msra.mxu0 0
      %1881 = vmatpush.bf16.msra.mxu0 0
      %1882 = vmatpush.bf16.msra.mxu0 0
      %1883 = vmatpush.bf16.msra.mxu0 0
      %1884 = vmatpush.bf16.msra.mxu0 0
      %1885 = vmatpush.bf16.msra.mxu0 0
      %1886 = vmatpush.bf16.msra.mxu0 %v1874
      %1887 = vmatmul.bf16.gmra.mxu0 %v1877
      %v1888 = vpop.f32.mrf.mxu0
      %v1889 = vadd.f32 0.0, %v1888
      %v1890 = vpop.f32.mrf.mxu0
      %v1891 = vadd.f32 0.0, %v1890
      %1892 = vdwg.mxu0
      %v1895 = vunpack.c.l.b16 %v1769
      %v1896 = vunpack.c.l.b16 %v1770
      %v1897 = vpack.c.b16 %v1896, %v1895
      %1898 = vrot.lane.b32.xlu0 %v673, 64
      %v1899 = vpop.permute.xlu0 %1898
      %v1902 = vsel %vm567, %v1897, 0
      %1904 = vmatpush.bf16.msra.mxu0 0
      %1905 = vmatpush.bf16.msra.mxu0 0
      %1906 = vmatpush.bf16.msra.mxu0 0
      %1907 = vmatpush.bf16.msra.mxu0 0
      %1908 = vmatpush.bf16.msra.mxu0 0
      %1909 = vmatpush.bf16.msra.mxu0 0
      %1910 = vmatpush.bf16.msra.mxu0 0
      %1911 = vmatpush.bf16.msra.mxu0 %v1899
      %1912 = vmatmul.bf16.gmra.mxu0 %v1902
      %v1913 = vpop.f32.mrf.mxu0
      %v1914 = vadd.f32 0.0, %v1913
      %v1915 = vpop.f32.mrf.mxu0
      %v1916 = vadd.f32 0.0, %v1915
      %1917 = vdwg.mxu0
      %v1920 = vunpack.c.l.b16 %v1771
      %v1921 = vunpack.c.l.b16 %v1772
      %v1922 = vpack.c.b16 %v1921, %v1920
      %1923 = vrot.lane.b32.xlu0 %v700, 64
      %v1924 = vpop.permute.xlu0 %1923
      %v1927 = vsel %vm567, %v1922, 0
      %1929 = vmatpush.bf16.msra.mxu0 0
      %1930 = vmatpush.bf16.msra.mxu0 0
      %1931 = vmatpush.bf16.msra.mxu0 0
      %1932 = vmatpush.bf16.msra.mxu0 0
      %1933 = vmatpush.bf16.msra.mxu0 0
      %1934 = vmatpush.bf16.msra.mxu0 0
      %1935 = vmatpush.bf16.msra.mxu0 0
      %1936 = vmatpush.bf16.msra.mxu0 %v1924
      %1937 = vmatmul.bf16.gmra.mxu0 %v1927
      %v1938 = vpop.f32.mrf.mxu0
      %v1939 = vadd.f32 0.0, %v1938
      %v1940 = vpop.f32.mrf.mxu0
      %v1941 = vadd.f32 0.0, %v1940
      %1942 = vdwg.mxu0
      %v1945 = vunpack.c.l.b16 %v1773
      %v1946 = vunpack.c.l.b16 %v1774
      %v1947 = vpack.c.b16 %v1946, %v1945
      %1948 = vrot.lane.b32.xlu0 %v727, 64
      %v1949 = vpop.permute.xlu0 %1948
      %v1952 = vsel %vm567, %v1947, 0
      %1954 = vmatpush.bf16.msra.mxu0 0
      %1955 = vmatpush.bf16.msra.mxu0 0
      %1956 = vmatpush.bf16.msra.mxu0 0
      %1957 = vmatpush.bf16.msra.mxu0 0
      %1958 = vmatpush.bf16.msra.mxu0 0
      %1959 = vmatpush.bf16.msra.mxu0 0
      %1960 = vmatpush.bf16.msra.mxu0 0
      %1961 = vmatpush.bf16.msra.mxu0 %v1949
      %1962 = vmatmul.bf16.gmra.mxu0 %v1952
      %v1963 = vpop.f32.mrf.mxu0
      %v1964 = vadd.f32 0.0, %v1963
      %v1965 = vpop.f32.mrf.mxu0
      %v1966 = vadd.f32 0.0, %v1965
      %1967 = vdwg.mxu0
      %v1970 = vunpack.c.l.b16 %v1775
      %v1971 = vunpack.c.l.b16 %v1776
      %v1972 = vpack.c.b16 %v1971, %v1970
      %1973 = vrot.lane.b32.xlu0 %v754, 64
      %v1974 = vpop.permute.xlu0 %1973
      %v1977 = vsel %vm567, %v1972, 0
      %1979 = vmatpush.bf16.msra.mxu0 0
      %1980 = vmatpush.bf16.msra.mxu0 0
      %1981 = vmatpush.bf16.msra.mxu0 0
      %1982 = vmatpush.bf16.msra.mxu0 0
      %1983 = vmatpush.bf16.msra.mxu0 0
      %1984 = vmatpush.bf16.msra.mxu0 0
      %1985 = vmatpush.bf16.msra.mxu0 0
      %1986 = vmatpush.bf16.msra.mxu0 %v1974
      %1987 = vmatmul.bf16.gmra.mxu0 %v1977
      %v1988 = vpop.f32.mrf.mxu0
      %v1989 = vadd.f32 0.0, %v1988
      %v1990 = vpop.f32.mrf.mxu0
      %v1991 = vadd.f32 0.0, %v1990
      %1992 = vdwg.mxu0
      %v1995 = vunpack.c.l.b16 %v1777
      %v1996 = vunpack.c.l.b16 %v1778
      %v1997 = vpack.c.b16 %v1996, %v1995
      %1998 = vrot.lane.b32.xlu0 %v781, 64
      %v1999 = vpop.permute.xlu0 %1998
      %v2002 = vsel %vm567, %v1997, 0
      %2004 = vmatpush.bf16.msra.mxu0 0
      %2005 = vmatpush.bf16.msra.mxu0 0
      %2006 = vmatpush.bf16.msra.mxu0 0
      %2007 = vmatpush.bf16.msra.mxu0 0
      %2008 = vmatpush.bf16.msra.mxu0 0
      %2009 = vmatpush.bf16.msra.mxu0 0
      %2010 = vmatpush.bf16.msra.mxu0 0
      %2011 = vmatpush.bf16.msra.mxu0 %v1999
      %2012 = vmatmul.bf16.gmra.mxu0 %v2002
      %v2013 = vpop.f32.mrf.mxu0
      %v2014 = vadd.f32 0.0, %v2013
      %v2015 = vpop.f32.mrf.mxu0
      %v2016 = vadd.f32 0.0, %v2015
      %2017 = vdwg.mxu0
      %v2020 = vunpack.c.l.b16 %v1779
      %v2021 = vunpack.c.l.b16 %v1780
      %v2022 = vpack.c.b16 %v2021, %v2020
      %2023 = vrot.lane.b32.xlu0 %v808, 64
      %v2024 = vpop.permute.xlu0 %2023
      %v2027 = vsel %vm567, %v2022, 0
      %2029 = vmatpush.bf16.msra.mxu0 0
      %2030 = vmatpush.bf16.msra.mxu0 0
      %2031 = vmatpush.bf16.msra.mxu0 0
      %2032 = vmatpush.bf16.msra.mxu0 0
      %2033 = vmatpush.bf16.msra.mxu0 0
      %2034 = vmatpush.bf16.msra.mxu0 0
      %2035 = vmatpush.bf16.msra.mxu0 0
      %2036 = vmatpush.bf16.msra.mxu0 %v2024
      %2037 = vmatmul.bf16.gmra.mxu0 %v2027
      %v2038 = vpop.f32.mrf.mxu0
      %v2039 = vadd.f32 0.0, %v2038
      %v2040 = vpop.f32.mrf.mxu0
      %v2041 = vadd.f32 0.0, %v2040
      %2042 = vdwg.mxu0
      %v2045 = vunpack.c.l.b16 %v1781
      %v2046 = vunpack.c.l.b16 %v1782
      %v2047 = vpack.c.b16 %v2046, %v2045
      %2048 = vrot.lane.b32.xlu0 %v835, 64
      %v2049 = vpop.permute.xlu0 %2048
      %v2052 = vsel %vm567, %v2047, 0
      %2054 = vmatpush.bf16.msra.mxu0 0
      %2055 = vmatpush.bf16.msra.mxu0 0
      %2056 = vmatpush.bf16.msra.mxu0 0
      %2057 = vmatpush.bf16.msra.mxu0 0
      %2058 = vmatpush.bf16.msra.mxu0 0
      %2059 = vmatpush.bf16.msra.mxu0 0
      %2060 = vmatpush.bf16.msra.mxu0 0
      %2061 = vmatpush.bf16.msra.mxu0 %v2049
      %2062 = vmatmul.bf16.gmra.mxu0 %v2052
      %v2063 = vpop.f32.mrf.mxu0
      %v2064 = vadd.f32 0.0, %v2063
      %v2065 = vpop.f32.mrf.mxu0
      %v2066 = vadd.f32 0.0, %v2065
      %2067 = vdwg.mxu0
      %v2070 = vunpack.c.l.b16 %v1783
      %v2071 = vunpack.c.l.b16 %v1784
      %v2072 = vpack.c.b16 %v2071, %v2070
      %2073 = vrot.lane.b32.xlu0 %v862, 64
      %v2074 = vpop.permute.xlu0 %2073
      %v2077 = vsel %vm567, %v2072, 0
      %2079 = vmatpush.bf16.msra.mxu0 0
      %2080 = vmatpush.bf16.msra.mxu0 0
      %2081 = vmatpush.bf16.msra.mxu0 0
      %2082 = vmatpush.bf16.msra.mxu0 0
      %2083 = vmatpush.bf16.msra.mxu0 0
      %2084 = vmatpush.bf16.msra.mxu0 0
      %2085 = vmatpush.bf16.msra.mxu0 0
      %2086 = vmatpush.bf16.msra.mxu0 %v2074
      %2087 = vmatmul.bf16.gmra.mxu0 %v2077
      %v2088 = vpop.f32.mrf.mxu0
      %v2089 = vadd.f32 0.0, %v2088
      %v2090 = vpop.f32.mrf.mxu0
      %v2091 = vadd.f32 0.0, %v2090
      %2092 = vdwg.mxu0
      %v2095 = vunpack.c.l.b16 %v1785
      %v2096 = vunpack.c.l.b16 %v1786
      %v2097 = vpack.c.b16 %v2096, %v2095
      %2098 = vrot.lane.b32.xlu0 %v889, 64
      %v2099 = vpop.permute.xlu0 %2098
      %v2102 = vsel %vm567, %v2097, 0
      %2104 = vmatpush.bf16.msra.mxu0 0
      %2105 = vmatpush.bf16.msra.mxu0 0
      %2106 = vmatpush.bf16.msra.mxu0 0
      %2107 = vmatpush.bf16.msra.mxu0 0
      %2108 = vmatpush.bf16.msra.mxu0 0
      %2109 = vmatpush.bf16.msra.mxu0 0
      %2110 = vmatpush.bf16.msra.mxu0 0
      %2111 = vmatpush.bf16.msra.mxu0 %v2099
      %2112 = vmatmul.bf16.gmra.mxu0 %v2102
      %v2113 = vpop.f32.mrf.mxu0
      %v2114 = vadd.f32 0.0, %v2113
      %v2115 = vpop.f32.mrf.mxu0
      %v2116 = vadd.f32 0.0, %v2115
      %2117 = vdwg.mxu0
      %v2120 = vunpack.c.l.b16 %v1787
      %v2121 = vunpack.c.l.b16 %v1788
      %v2122 = vpack.c.b16 %v2121, %v2120
      %2123 = vrot.lane.b32.xlu0 %v916, 64
      %v2124 = vpop.permute.xlu0 %2123
      %v2127 = vsel %vm567, %v2122, 0
      %2129 = vmatpush.bf16.msra.mxu0 0
      %2130 = vmatpush.bf16.msra.mxu0 0
      %2131 = vmatpush.bf16.msra.mxu0 0
      %2132 = vmatpush.bf16.msra.mxu0 0
      %2133 = vmatpush.bf16.msra.mxu0 0
      %2134 = vmatpush.bf16.msra.mxu0 0
      %2135 = vmatpush.bf16.msra.mxu0 0
      %2136 = vmatpush.bf16.msra.mxu0 %v2124
      %2137 = vmatmul.bf16.gmra.mxu0 %v2127
      %v2138 = vpop.f32.mrf.mxu0
      %v2139 = vadd.f32 0.0, %v2138
      %v2140 = vpop.f32.mrf.mxu0
      %v2141 = vadd.f32 0.0, %v2140
      %2142 = vdwg.mxu0
      %v2145 = vunpack.c.l.b16 %v1789
      %v2146 = vunpack.c.l.b16 %v1790
      %v2147 = vpack.c.b16 %v2146, %v2145
      %2148 = vrot.lane.b32.xlu0 %v943, 64
      %v2149 = vpop.permute.xlu0 %2148
      %v2152 = vsel %vm567, %v2147, 0
      %2154 = vmatpush.bf16.msra.mxu0 0
      %2155 = vmatpush.bf16.msra.mxu0 0
      %2156 = vmatpush.bf16.msra.mxu0 0
      %2157 = vmatpush.bf16.msra.mxu0 0
      %2158 = vmatpush.bf16.msra.mxu0 0
      %2159 = vmatpush.bf16.msra.mxu0 0
      %2160 = vmatpush.bf16.msra.mxu0 0
      %2161 = vmatpush.bf16.msra.mxu0 %v2149
      %2162 = vmatmul.bf16.gmra.mxu0 %v2152
      %v2163 = vpop.f32.mrf.mxu0
      %v2164 = vadd.f32 0.0, %v2163
      %v2165 = vpop.f32.mrf.mxu0
      %v2166 = vadd.f32 0.0, %v2165
      %2167 = vdwg.mxu0
      %v2170 = vunpack.c.l.b16 %v1791
      %v2171 = vunpack.c.l.b16 %v1792
      %v2172 = vpack.c.b16 %v2171, %v2170
      %2173 = vrot.lane.b32.xlu0 %v970, 64
      %v2174 = vpop.permute.xlu0 %2173
      %v2177 = vsel %vm567, %v2172, 0
      %2179 = vmatpush.bf16.msra.mxu0 0
      %2180 = vmatpush.bf16.msra.mxu0 0
      %2181 = vmatpush.bf16.msra.mxu0 0
      %2182 = vmatpush.bf16.msra.mxu0 0
      %2183 = vmatpush.bf16.msra.mxu0 0
      %2184 = vmatpush.bf16.msra.mxu0 0
      %2185 = vmatpush.bf16.msra.mxu0 0
      %2186 = vmatpush.bf16.msra.mxu0 %v2174
      %2187 = vmatmul.bf16.gmra.mxu0 %v2177
      %v2188 = vpop.f32.mrf.mxu0
      %v2189 = vadd.f32 0.0, %v2188
      %v2190 = vpop.f32.mrf.mxu0
      %v2191 = vadd.f32 0.0, %v2190
      %2192 = vdwg.mxu0
      %v2193 = vpack.c.bf16 %v1816, %v1814
      %v2194 = vpack.c.bf16 %v1841, %v1839
      %v2195 = vpack.c.bf16 %v1866, %v1864
      %v2196 = vpack.c.bf16 %v1891, %v1889
      %v2197 = vpack.c.bf16 %v1916, %v1914
      %v2198 = vpack.c.bf16 %v1941, %v1939
      %v2199 = vpack.c.bf16 %v1966, %v1964
      %v2200 = vpack.c.bf16 %v1991, %v1989
      %v2201 = vpack.c.bf16 %v2016, %v2014
      %v2202 = vpack.c.bf16 %v2041, %v2039
      %v2203 = vpack.c.bf16 %v2066, %v2064
      %v2204 = vpack.c.bf16 %v2091, %v2089
      %v2205 = vpack.c.bf16 %v2116, %v2114
      %v2206 = vpack.c.bf16 %v2141, %v2139
      %v2207 = vpack.c.bf16 %v2166, %v2164
      %v2208 = vpack.c.bf16 %v2191, %v2189
      %v2209 = vld [vmem:[%s4] sm:$0xf]
      %v2210 = vld [vmem:[%s4 + $0x4] sm:$0xf]
      %s2211 = scalar_lea.vmem %s3, 16
      %v2212 = vld [vmem:[%s2211] sm:$0xff]
      %v2213 = vld [vmem:[%s2211 + $0x8] sm:$0xff]
      %2214 = vrot.lane.b32.xlu0 %v564, 112
      %v2215 = vpop.permute.xlu0 %2214
      %2216 = vrot.lane.b32.xlu0 %v564, 80
      %v2217 = vpop.permute.xlu0 %2216
      %v2219 = vsel %vm567, %v2215, 0
      %v2222 = vsel %vm567, %v2217, 0
      %2224 = vmatpush.bf16.xpose.msra.mxu0 0
      %2225 = vmatpush.bf16.xpose.msra.mxu0 0
      %2226 = vmatpush.bf16.xpose.msra.mxu0 0
      %2227 = vmatpush.bf16.xpose.msra.mxu0 0
      %2228 = vmatpush.bf16.xpose.msra.mxu0 0
      %2229 = vmatpush.bf16.xpose.msra.mxu0 0
      %2230 = vmatpush.bf16.xpose.msra.mxu0 0
      %2231 = vmatpush.bf16.xpose.msra.mxu0 %v2222
      %2232 = vmatmul.bf16.gmra.mxu0 %v2219
      %v2233 = vpop.f32.mrf.mxu0
      %v2234 = vadd.f32 %v2212, %v2233
      %v2235 = vpop.f32.mrf.mxu0
      %v2236 = vadd.f32 %v2213, %v2235
      %2237 = vdwg.mxu0
      %2238 = vrot.lane.b32.xlu0 %v592, 112
      %v2239 = vpop.permute.xlu0 %2238
      %2240 = vrot.lane.b32.xlu0 %v592, 80
      %v2241 = vpop.permute.xlu0 %2240
      %v2243 = vsel %vm567, %v2239, 0
      %v2246 = vsel %vm567, %v2241, 0
      %2248 = vmatpush.bf16.xpose.msra.mxu0 0
      %2249 = vmatpush.bf16.xpose.msra.mxu0 0
      %2250 = vmatpush.bf16.xpose.msra.mxu0 0
      %2251 = vmatpush.bf16.xpose.msra.mxu0 0
      %2252 = vmatpush.bf16.xpose.msra.mxu0 0
      %2253 = vmatpush.bf16.xpose.msra.mxu0 0
      %2254 = vmatpush.bf16.xpose.msra.mxu0 0
      %2255 = vmatpush.bf16.xpose.msra.mxu0 %v2246
      %2256 = vmatmul.bf16.gmra.mxu0 %v2243
      %v2257 = vpop.f32.mrf.mxu0
      %v2258 = vadd.f32 %v2212, %v2257
      %v2259 = vpop.f32.mrf.mxu0
      %v2260 = vadd.f32 %v2213, %v2259
      %2261 = vdwg.mxu0
      %2262 = vrot.lane.b32.xlu0 %v619, 112
      %v2263 = vpop.permute.xlu0 %2262
      %2264 = vrot.lane.b32.xlu0 %v619, 80
      %v2265 = vpop.permute.xlu0 %2264
      %v2267 = vsel %vm567, %v2263, 0
      %v2270 = vsel %vm567, %v2265, 0
      %2272 = vmatpush.bf16.xpose.msra.mxu0 0
      %2273 = vmatpush.bf16.xpose.msra.mxu0 0
      %2274 = vmatpush.bf16.xpose.msra.mxu0 0
      %2275 = vmatpush.bf16.xpose.msra.mxu0 0
      %2276 = vmatpush.bf16.xpose.msra.mxu0 0
      %2277 = vmatpush.bf16.xpose.msra.mxu0 0
      %2278 = vmatpush.bf16.xpose.msra.mxu0 0
      %2279 = vmatpush.bf16.xpose.msra.mxu0 %v2270
      %2280 = vmatmul.bf16.gmra.mxu0 %v2267
      %v2281 = vpop.f32.mrf.mxu0
      %v2282 = vadd.f32 %v2212, %v2281
      %v2283 = vpop.f32.mrf.mxu0
      %v2284 = vadd.f32 %v2213, %v2283
      %2285 = vdwg.mxu0
      %2286 = vrot.lane.b32.xlu0 %v646, 112
      %v2287 = vpop.permute.xlu0 %2286
      %2288 = vrot.lane.b32.xlu0 %v646, 80
      %v2289 = vpop.permute.xlu0 %2288
      %v2291 = vsel %vm567, %v2287, 0
      %v2294 = vsel %vm567, %v2289, 0
      %2296 = vmatpush.bf16.xpose.msra.mxu0 0
      %2297 = vmatpush.bf16.xpose.msra.mxu0 0
      %2298 = vmatpush.bf16.xpose.msra.mxu0 0
      %2299 = vmatpush.bf16.xpose.msra.mxu0 0
      %2300 = vmatpush.bf16.xpose.msra.mxu0 0
      %2301 = vmatpush.bf16.xpose.msra.mxu0 0
      %2302 = vmatpush.bf16.xpose.msra.mxu0 0
      %2303 = vmatpush.bf16.xpose.msra.mxu0 %v2294
      %2304 = vmatmul.bf16.gmra.mxu0 %v2291
      %v2305 = vpop.f32.mrf.mxu0
      %v2306 = vadd.f32 %v2212, %v2305
      %v2307 = vpop.f32.mrf.mxu0
      %v2308 = vadd.f32 %v2213, %v2307
      %2309 = vdwg.mxu0
      %2310 = vrot.lane.b32.xlu0 %v673, 112
      %v2311 = vpop.permute.xlu0 %2310
      %2312 = vrot.lane.b32.xlu0 %v673, 80
      %v2313 = vpop.permute.xlu0 %2312
      %v2315 = vsel %vm567, %v2311, 0
      %v2318 = vsel %vm567, %v2313, 0
      %2320 = vmatpush.bf16.xpose.msra.mxu0 0
      %2321 = vmatpush.bf16.xpose.msra.mxu0 0
      %2322 = vmatpush.bf16.xpose.msra.mxu0 0
      %2323 = vmatpush.bf16.xpose.msra.mxu0 0
      %2324 = vmatpush.bf16.xpose.msra.mxu0 0
      %2325 = vmatpush.bf16.xpose.msra.mxu0 0
      %2326 = vmatpush.bf16.xpose.msra.mxu0 0
      %2327 = vmatpush.bf16.xpose.msra.mxu0 %v2318
      %2328 = vmatmul.bf16.gmra.mxu0 %v2315
      %v2329 = vpop.f32.mrf.mxu0
      %v2330 = vadd.f32 %v2212, %v2329
      %v2331 = vpop.f32.mrf.mxu0
      %v2332 = vadd.f32 %v2213, %v2331
      %2333 = vdwg.mxu0
      %2334 = vrot.lane.b32.xlu0 %v700, 112
      %v2335 = vpop.permute.xlu0 %2334
      %2336 = vrot.lane.b32.xlu0 %v700, 80
      %v2337 = vpop.permute.xlu0 %2336
      %v2339 = vsel %vm567, %v2335, 0
      %v2342 = vsel %vm567, %v2337, 0
      %2344 = vmatpush.bf16.xpose.msra.mxu0 0
      %2345 = vmatpush.bf16.xpose.msra.mxu0 0
      %2346 = vmatpush.bf16.xpose.msra.mxu0 0
      %2347 = vmatpush.bf16.xpose.msra.mxu0 0
      %2348 = vmatpush.bf16.xpose.msra.mxu0 0
      %2349 = vmatpush.bf16.xpose.msra.mxu0 0
      %2350 = vmatpush.bf16.xpose.msra.mxu0 0
      %2351 = vmatpush.bf16.xpose.msra.mxu0 %v2342
      %2352 = vmatmul.bf16.gmra.mxu0 %v2339
      %v2353 = vpop.f32.mrf.mxu0
      %v2354 = vadd.f32 %v2212, %v2353
      %v2355 = vpop.f32.mrf.mxu0
      %v2356 = vadd.f32 %v2213, %v2355
      %2357 = vdwg.mxu0
      %2358 = vrot.lane.b32.xlu0 %v727, 112
      %v2359 = vpop.permute.xlu0 %2358
      %2360 = vrot.lane.b32.xlu0 %v727, 80
      %v2361 = vpop.permute.xlu0 %2360
      %v2363 = vsel %vm567, %v2359, 0
      %v2366 = vsel %vm567, %v2361, 0
      %2368 = vmatpush.bf16.xpose.msra.mxu0 0
      %2369 = vmatpush.bf16.xpose.msra.mxu0 0
      %2370 = vmatpush.bf16.xpose.msra.mxu0 0
      %2371 = vmatpush.bf16.xpose.msra.mxu0 0
      %2372 = vmatpush.bf16.xpose.msra.mxu0 0
      %2373 = vmatpush.bf16.xpose.msra.mxu0 0
      %2374 = vmatpush.bf16.xpose.msra.mxu0 0
      %2375 = vmatpush.bf16.xpose.msra.mxu0 %v2366
      %2376 = vmatmul.bf16.gmra.mxu0 %v2363
      %v2377 = vpop.f32.mrf.mxu0
      %v2378 = vadd.f32 %v2212, %v2377
      %v2379 = vpop.f32.mrf.mxu0
      %v2380 = vadd.f32 %v2213, %v2379
      %2381 = vdwg.mxu0
      %2382 = vrot.lane.b32.xlu0 %v754, 112
      %v2383 = vpop.permute.xlu0 %2382
      %2384 = vrot.lane.b32.xlu0 %v754, 80
      %v2385 = vpop.permute.xlu0 %2384
      %v2387 = vsel %vm567, %v2383, 0
      %v2390 = vsel %vm567, %v2385, 0
      %2392 = vmatpush.bf16.xpose.msra.mxu0 0
      %2393 = vmatpush.bf16.xpose.msra.mxu0 0
      %2394 = vmatpush.bf16.xpose.msra.mxu0 0
      %2395 = vmatpush.bf16.xpose.msra.mxu0 0
      %2396 = vmatpush.bf16.xpose.msra.mxu0 0
      %2397 = vmatpush.bf16.xpose.msra.mxu0 0
      %2398 = vmatpush.bf16.xpose.msra.mxu0 0
      %2399 = vmatpush.bf16.xpose.msra.mxu0 %v2390
      %2400 = vmatmul.bf16.gmra.mxu0 %v2387
      %v2401 = vpop.f32.mrf.mxu0
      %v2402 = vadd.f32 %v2212, %v2401
      %v2403 = vpop.f32.mrf.mxu0
      %v2404 = vadd.f32 %v2213, %v2403
      %2405 = vdwg.mxu0
      %2406 = vrot.lane.b32.xlu0 %v781, 112
      %v2407 = vpop.permute.xlu0 %2406
      %2408 = vrot.lane.b32.xlu0 %v781, 80
      %v2409 = vpop.permute.xlu0 %2408
      %v2411 = vsel %vm567, %v2407, 0
      %v2414 = vsel %vm567, %v2409, 0
      %2416 = vmatpush.bf16.xpose.msra.mxu0 0
      %2417 = vmatpush.bf16.xpose.msra.mxu0 0
      %2418 = vmatpush.bf16.xpose.msra.mxu0 0
      %2419 = vmatpush.bf16.xpose.msra.mxu0 0
      %2420 = vmatpush.bf16.xpose.msra.mxu0 0
      %2421 = vmatpush.bf16.xpose.msra.mxu0 0
      %2422 = vmatpush.bf16.xpose.msra.mxu0 0
      %2423 = vmatpush.bf16.xpose.msra.mxu0 %v2414
      %2424 = vmatmul.bf16.gmra.mxu0 %v2411
      %v2425 = vpop.f32.mrf.mxu0
      %v2426 = vadd.f32 %v2212, %v2425
      %v2427 = vpop.f32.mrf.mxu0
      %v2428 = vadd.f32 %v2213, %v2427
      %2429 = vdwg.mxu0
      %2430 = vrot.lane.b32.xlu0 %v808, 112
      %v2431 = vpop.permute.xlu0 %2430
      %2432 = vrot.lane.b32.xlu0 %v808, 80
      %v2433 = vpop.permute.xlu0 %2432
      %v2435 = vsel %vm567, %v2431, 0
      %v2438 = vsel %vm567, %v2433, 0
      %2440 = vmatpush.bf16.xpose.msra.mxu0 0
      %2441 = vmatpush.bf16.xpose.msra.mxu0 0
      %2442 = vmatpush.bf16.xpose.msra.mxu0 0
      %2443 = vmatpush.bf16.xpose.msra.mxu0 0
      %2444 = vmatpush.bf16.xpose.msra.mxu0 0
      %2445 = vmatpush.bf16.xpose.msra.mxu0 0
      %2446 = vmatpush.bf16.xpose.msra.mxu0 0
      %2447 = vmatpush.bf16.xpose.msra.mxu0 %v2438
      %2448 = vmatmul.bf16.gmra.mxu0 %v2435
      %v2449 = vpop.f32.mrf.mxu0
      %v2450 = vadd.f32 %v2212, %v2449
      %v2451 = vpop.f32.mrf.mxu0
      %v2452 = vadd.f32 %v2213, %v2451
      %2453 = vdwg.mxu0
      %2454 = vrot.lane.b32.xlu0 %v835, 112
      %v2455 = vpop.permute.xlu0 %2454
      %2456 = vrot.lane.b32.xlu0 %v835, 80
      %v2457 = vpop.permute.xlu0 %2456
      %v2459 = vsel %vm567, %v2455, 0
      %v2462 = vsel %vm567, %v2457, 0
      %2464 = vmatpush.bf16.xpose.msra.mxu0 0
      %2465 = vmatpush.bf16.xpose.msra.mxu0 0
      %2466 = vmatpush.bf16.xpose.msra.mxu0 0
      %2467 = vmatpush.bf16.xpose.msra.mxu0 0
      %2468 = vmatpush.bf16.xpose.msra.mxu0 0
      %2469 = vmatpush.bf16.xpose.msra.mxu0 0
      %2470 = vmatpush.bf16.xpose.msra.mxu0 0
      %2471 = vmatpush.bf16.xpose.msra.mxu0 %v2462
      %2472 = vmatmul.bf16.gmra.mxu0 %v2459
      %v2473 = vpop.f32.mrf.mxu0
      %v2474 = vadd.f32 %v2212, %v2473
      %v2475 = vpop.f32.mrf.mxu0
      %v2476 = vadd.f32 %v2213, %v2475
      %2477 = vdwg.mxu0
      %2478 = vrot.lane.b32.xlu0 %v862, 112
      %v2479 = vpop.permute.xlu0 %2478
      %2480 = vrot.lane.b32.xlu0 %v862, 80
      %v2481 = vpop.permute.xlu0 %2480
      %v2483 = vsel %vm567, %v2479, 0
      %v2486 = vsel %vm567, %v2481, 0
      %2488 = vmatpush.bf16.xpose.msra.mxu0 0
      %2489 = vmatpush.bf16.xpose.msra.mxu0 0
      %2490 = vmatpush.bf16.xpose.msra.mxu0 0
      %2491 = vmatpush.bf16.xpose.msra.mxu0 0
      %2492 = vmatpush.bf16.xpose.msra.mxu0 0
      %2493 = vmatpush.bf16.xpose.msra.mxu0 0
      %2494 = vmatpush.bf16.xpose.msra.mxu0 0
      %2495 = vmatpush.bf16.xpose.msra.mxu0 %v2486
      %2496 = vmatmul.bf16.gmra.mxu0 %v2483
      %v2497 = vpop.f32.mrf.mxu0
      %v2498 = vadd.f32 %v2212, %v2497
      %v2499 = vpop.f32.mrf.mxu0
      %v2500 = vadd.f32 %v2213, %v2499
      %2501 = vdwg.mxu0
      %2502 = vrot.lane.b32.xlu0 %v889, 112
      %v2503 = vpop.permute.xlu0 %2502
      %2504 = vrot.lane.b32.xlu0 %v889, 80
      %v2505 = vpop.permute.xlu0 %2504
      %v2507 = vsel %vm567, %v2503, 0
      %v2510 = vsel %vm567, %v2505, 0
      %2512 = vmatpush.bf16.xpose.msra.mxu0 0
      %2513 = vmatpush.bf16.xpose.msra.mxu0 0
      %2514 = vmatpush.bf16.xpose.msra.mxu0 0
      %2515 = vmatpush.bf16.xpose.msra.mxu0 0
      %2516 = vmatpush.bf16.xpose.msra.mxu0 0
      %2517 = vmatpush.bf16.xpose.msra.mxu0 0
      %2518 = vmatpush.bf16.xpose.msra.mxu0 0
      %2519 = vmatpush.bf16.xpose.msra.mxu0 %v2510
      %2520 = vmatmul.bf16.gmra.mxu0 %v2507
      %v2521 = vpop.f32.mrf.mxu0
      %v2522 = vadd.f32 %v2212, %v2521
      %v2523 = vpop.f32.mrf.mxu0
      %v2524 = vadd.f32 %v2213, %v2523
      %2525 = vdwg.mxu0
      %2526 = vrot.lane.b32.xlu0 %v916, 112
      %v2527 = vpop.permute.xlu0 %2526
      %2528 = vrot.lane.b32.xlu0 %v916, 80
      %v2529 = vpop.permute.xlu0 %2528
      %v2531 = vsel %vm567, %v2527, 0
      %v2534 = vsel %vm567, %v2529, 0
      %2536 = vmatpush.bf16.xpose.msra.mxu0 0
      %2537 = vmatpush.bf16.xpose.msra.mxu0 0
      %2538 = vmatpush.bf16.xpose.msra.mxu0 0
      %2539 = vmatpush.bf16.xpose.msra.mxu0 0
      %2540 = vmatpush.bf16.xpose.msra.mxu0 0
      %2541 = vmatpush.bf16.xpose.msra.mxu0 0
      %2542 = vmatpush.bf16.xpose.msra.mxu0 0
      %2543 = vmatpush.bf16.xpose.msra.mxu0 %v2534
      %2544 = vmatmul.bf16.gmra.mxu0 %v2531
      %v2545 = vpop.f32.mrf.mxu0
      %v2546 = vadd.f32 %v2212, %v2545
      %v2547 = vpop.f32.mrf.mxu0
      %v2548 = vadd.f32 %v2213, %v2547
      %2549 = vdwg.mxu0
      %2550 = vrot.lane.b32.xlu0 %v943, 112
      %v2551 = vpop.permute.xlu0 %2550
      %2552 = vrot.lane.b32.xlu0 %v943, 80
      %v2553 = vpop.permute.xlu0 %2552
      %v2555 = vsel %vm567, %v2551, 0
      %v2558 = vsel %vm567, %v2553, 0
      %2560 = vmatpush.bf16.xpose.msra.mxu0 0
      %2561 = vmatpush.bf16.xpose.msra.mxu0 0
      %2562 = vmatpush.bf16.xpose.msra.mxu0 0
      %2563 = vmatpush.bf16.xpose.msra.mxu0 0
      %2564 = vmatpush.bf16.xpose.msra.mxu0 0
      %2565 = vmatpush.bf16.xpose.msra.mxu0 0
      %2566 = vmatpush.bf16.xpose.msra.mxu0 0
      %2567 = vmatpush.bf16.xpose.msra.mxu0 %v2558
      %2568 = vmatmul.bf16.gmra.mxu0 %v2555
      %v2569 = vpop.f32.mrf.mxu0
      %v2570 = vadd.f32 %v2212, %v2569
      %v2571 = vpop.f32.mrf.mxu0
      %v2572 = vadd.f32 %v2213, %v2571
      %2573 = vdwg.mxu0
      %2574 = vrot.lane.b32.xlu0 %v970, 112
      %v2575 = vpop.permute.xlu0 %2574
      %2576 = vrot.lane.b32.xlu0 %v970, 80
      %v2577 = vpop.permute.xlu0 %2576
      %v2579 = vsel %vm567, %v2575, 0
      %v2582 = vsel %vm567, %v2577, 0
      %2584 = vmatpush.bf16.xpose.msra.mxu0 0
      %2585 = vmatpush.bf16.xpose.msra.mxu0 0
      %2586 = vmatpush.bf16.xpose.msra.mxu0 0
      %2587 = vmatpush.bf16.xpose.msra.mxu0 0
      %2588 = vmatpush.bf16.xpose.msra.mxu0 0
      %2589 = vmatpush.bf16.xpose.msra.mxu0 0
      %2590 = vmatpush.bf16.xpose.msra.mxu0 0
      %2591 = vmatpush.bf16.xpose.msra.mxu0 %v2582
      %2592 = vmatmul.bf16.gmra.mxu0 %v2579
      %v2593 = vpop.f32.mrf.mxu0
      %v2594 = vadd.f32 %v2212, %v2593
      %v2595 = vpop.f32.mrf.mxu0
      %v2596 = vadd.f32 %v2213, %v2595
      %2597 = vdwg.mxu0
      %v2598 = vsel %vm567, %v2234, -inf
      %2599 = vmax.xlane.f32.xlu0 %v2598
      %v2600 = vpop.xlane.xlu0 %2599
      %v2601 = vsel %vm567, %v2236, -inf
      %2602 = vmax.xlane.f32.xlu0 %v2601
      %v2603 = vpop.xlane.xlu0 %2602
      %v2604 = vsel %vm567, %v2258, -inf
      %2605 = vmax.xlane.f32.xlu0 %v2604
      %v2606 = vpop.xlane.xlu0 %2605
      %v2607 = vsel %vm567, %v2260, -inf
      %2608 = vmax.xlane.f32.xlu0 %v2607
      %v2609 = vpop.xlane.xlu0 %2608
      %v2610 = vsel %vm567, %v2282, -inf
      %2611 = vmax.xlane.f32.xlu0 %v2610
      %v2612 = vpop.xlane.xlu0 %2611
      %v2613 = vsel %vm567, %v2284, -inf
      %2614 = vmax.xlane.f32.xlu0 %v2613
      %v2615 = vpop.xlane.xlu0 %2614
      %v2616 = vsel %vm567, %v2306, -inf
      %2617 = vmax.xlane.f32.xlu0 %v2616
      %v2618 = vpop.xlane.xlu0 %2617
      %v2619 = vsel %vm567, %v2308, -inf
      %2620 = vmax.xlane.f32.xlu0 %v2619
      %v2621 = vpop.xlane.xlu0 %2620
      %v2622 = vsel %vm567, %v2330, -inf
      %2623 = vmax.xlane.f32.xlu0 %v2622
      %v2624 = vpop.xlane.xlu0 %2623
      %v2625 = vsel %vm567, %v2332, -inf
      %2626 = vmax.xlane.f32.xlu0 %v2625
      %v2627 = vpop.xlane.xlu0 %2626
      %v2628 = vsel %vm567, %v2354, -inf
      %2629 = vmax.xlane.f32.xlu0 %v2628
      %v2630 = vpop.xlane.xlu0 %2629
      %v2631 = vsel %vm567, %v2356, -inf
      %2632 = vmax.xlane.f32.xlu0 %v2631
      %v2633 = vpop.xlane.xlu0 %2632
      %v2634 = vsel %vm567, %v2378, -inf
      %2635 = vmax.xlane.f32.xlu0 %v2634
      %v2636 = vpop.xlane.xlu0 %2635
      %v2637 = vsel %vm567, %v2380, -inf
      %2638 = vmax.xlane.f32.xlu0 %v2637
      %v2639 = vpop.xlane.xlu0 %2638
      %v2640 = vsel %vm567, %v2402, -inf
      %2641 = vmax.xlane.f32.xlu0 %v2640
      %v2642 = vpop.xlane.xlu0 %2641
      %v2643 = vsel %vm567, %v2404, -inf
      %2644 = vmax.xlane.f32.xlu0 %v2643
      %v2645 = vpop.xlane.xlu0 %2644
      %v2646 = vsel %vm567, %v2426, -inf
      %2647 = vmax.xlane.f32.xlu0 %v2646
      %v2648 = vpop.xlane.xlu0 %2647
      %v2649 = vsel %vm567, %v2428, -inf
      %2650 = vmax.xlane.f32.xlu0 %v2649
      %v2651 = vpop.xlane.xlu0 %2650
      %v2652 = vsel %vm567, %v2450, -inf
      %2653 = vmax.xlane.f32.xlu0 %v2652
      %v2654 = vpop.xlane.xlu0 %2653
      %v2655 = vsel %vm567, %v2452, -inf
      %2656 = vmax.xlane.f32.xlu0 %v2655
      %v2657 = vpop.xlane.xlu0 %2656
      %v2658 = vsel %vm567, %v2474, -inf
      %2659 = vmax.xlane.f32.xlu0 %v2658
      %v2660 = vpop.xlane.xlu0 %2659
      %v2661 = vsel %vm567, %v2476, -inf
      %2662 = vmax.xlane.f32.xlu0 %v2661
      %v2663 = vpop.xlane.xlu0 %2662
      %v2664 = vsel %vm567, %v2498, -inf
      %2665 = vmax.xlane.f32.xlu0 %v2664
      %v2666 = vpop.xlane.xlu0 %2665
      %v2667 = vsel %vm567, %v2500, -inf
      %2668 = vmax.xlane.f32.xlu0 %v2667
      %v2669 = vpop.xlane.xlu0 %2668
      %v2670 = vsel %vm567, %v2522, -inf
      %2671 = vmax.xlane.f32.xlu0 %v2670
      %v2672 = vpop.xlane.xlu0 %2671
      %v2673 = vsel %vm567, %v2524, -inf
      %2674 = vmax.xlane.f32.xlu0 %v2673
      %v2675 = vpop.xlane.xlu0 %2674
      %v2676 = vsel %vm567, %v2546, -inf
      %2677 = vmax.xlane.f32.xlu0 %v2676
      %v2678 = vpop.xlane.xlu0 %2677
      %v2679 = vsel %vm567, %v2548, -inf
      %2680 = vmax.xlane.f32.xlu0 %v2679
      %v2681 = vpop.xlane.xlu0 %2680
      %v2682 = vsel %vm567, %v2570, -inf
      %2683 = vmax.xlane.f32.xlu0 %v2682
      %v2684 = vpop.xlane.xlu0 %2683
      %v2685 = vsel %vm567, %v2572, -inf
      %2686 = vmax.xlane.f32.xlu0 %v2685
      %v2687 = vpop.xlane.xlu0 %2686
      %v2688 = vsel %vm567, %v2594, -inf
      %2689 = vmax.xlane.f32.xlu0 %v2688
      %v2690 = vpop.xlane.xlu0 %2689
      %v2691 = vsel %vm567, %v2596, -inf
      %2692 = vmax.xlane.f32.xlu0 %v2691
      %v2693 = vpop.xlane.xlu0 %2692
      %v2694 = vsub.f32 %v2234, %v2600
      %v2695 = vsub.f32 %v2236, %v2603
      %v2696 = vsub.f32 %v2258, %v2606
      %v2697 = vsub.f32 %v2260, %v2609
      %v2698 = vsub.f32 %v2282, %v2612
      %v2699 = vsub.f32 %v2284, %v2615
      %v2700 = vsub.f32 %v2306, %v2618
      %v2701 = vsub.f32 %v2308, %v2621
      %v2702 = vsub.f32 %v2330, %v2624
      %v2703 = vsub.f32 %v2332, %v2627
      %v2704 = vsub.f32 %v2354, %v2630
      %v2705 = vsub.f32 %v2356, %v2633
      %v2706 = vsub.f32 %v2378, %v2636
      %v2707 = vsub.f32 %v2380, %v2639
      %v2708 = vsub.f32 %v2402, %v2642
      %v2709 = vsub.f32 %v2404, %v2645
      %v2710 = vsub.f32 %v2426, %v2648
      %v2711 = vsub.f32 %v2428, %v2651
      %v2712 = vsub.f32 %v2450, %v2654
      %v2713 = vsub.f32 %v2452, %v2657
      %v2714 = vsub.f32 %v2474, %v2660
      %v2715 = vsub.f32 %v2476, %v2663
      %v2716 = vsub.f32 %v2498, %v2666
      %v2717 = vsub.f32 %v2500, %v2669
      %v2718 = vsub.f32 %v2522, %v2672
      %v2719 = vsub.f32 %v2524, %v2675
      %v2720 = vsub.f32 %v2546, %v2678
      %v2721 = vsub.f32 %v2548, %v2681
      %v2722 = vsub.f32 %v2570, %v2684
      %v2723 = vsub.f32 %v2572, %v2687
      %v2724 = vsub.f32 %v2594, %v2690
      %v2725 = vsub.f32 %v2596, %v2693
      %v2726 = vmul.f32 %v2694, 1.442695
      %v2727 = vpow.pop %v2726
      %v2728 = vmul.f32 %v2695, 1.442695
      %v2729 = vpow.pop %v2728
      %v2730 = vmul.f32 %v2696, 1.442695
      %v2731 = vpow.pop %v2730
      %v2732 = vmul.f32 %v2697, 1.442695
      %v2733 = vpow.pop %v2732
      %v2734 = vmul.f32 %v2698, 1.442695
      %v2735 = vpow.pop %v2734
      %v2736 = vmul.f32 %v2699, 1.442695
      %v2737 = vpow.pop %v2736
      %v2738 = vmul.f32 %v2700, 1.442695
      %v2739 = vpow.pop %v2738
      %v2740 = vmul.f32 %v2701, 1.442695
      %v2741 = vpow.pop %v2740
      %v2742 = vmul.f32 %v2702, 1.442695
      %v2743 = vpow.pop %v2742
      %v2744 = vmul.f32 %v2703, 1.442695
      %v2745 = vpow.pop %v2744
      %v2746 = vmul.f32 %v2704, 1.442695
      %v2747 = vpow.pop %v2746
      %v2748 = vmul.f32 %v2705, 1.442695
      %v2749 = vpow.pop %v2748
      %v2750 = vmul.f32 %v2706, 1.442695
      %v2751 = vpow.pop %v2750
      %v2752 = vmul.f32 %v2707, 1.442695
      %v2753 = vpow.pop %v2752
      %v2754 = vmul.f32 %v2708, 1.442695
      %v2755 = vpow.pop %v2754
      %v2756 = vmul.f32 %v2709, 1.442695
      %v2757 = vpow.pop %v2756
      %v2758 = vmul.f32 %v2710, 1.442695
      %v2759 = vpow.pop %v2758
      %v2760 = vmul.f32 %v2711, 1.442695
      %v2761 = vpow.pop %v2760
      %v2762 = vmul.f32 %v2712, 1.442695
      %v2763 = vpow.pop %v2762
      %v2764 = vmul.f32 %v2713, 1.442695
      %v2765 = vpow.pop %v2764
      %v2766 = vmul.f32 %v2714, 1.442695
      %v2767 = vpow.pop %v2766
      %v2768 = vmul.f32 %v2715, 1.442695
      %v2769 = vpow.pop %v2768
      %v2770 = vmul.f32 %v2716, 1.442695
      %v2771 = vpow.pop %v2770
      %v2772 = vmul.f32 %v2717, 1.442695
      %v2773 = vpow.pop %v2772
      %v2774 = vmul.f32 %v2718, 1.442695
      %v2775 = vpow.pop %v2774
      %v2776 = vmul.f32 %v2719, 1.442695
      %v2777 = vpow.pop %v2776
      %v2778 = vmul.f32 %v2720, 1.442695
      %v2779 = vpow.pop %v2778
      %v2780 = vmul.f32 %v2721, 1.442695
      %v2781 = vpow.pop %v2780
      %v2782 = vmul.f32 %v2722, 1.442695
      %v2783 = vpow.pop %v2782
      %v2784 = vmul.f32 %v2723, 1.442695
      %v2785 = vpow.pop %v2784
      %v2786 = vmul.f32 %v2724, 1.442695
      %v2787 = vpow.pop %v2786
      %v2788 = vmul.f32 %v2725, 1.442695
      %v2789 = vpow.pop %v2788
      %v2790 = vsel %vm567, %v2727, 0.0
      %2791 = vadd.xlane.f32.xlu0 %v2790
      %v2792 = vpop.xlane.xlu0 %2791
      %v2793 = vsel %vm567, %v2729, 0.0
      %2794 = vadd.xlane.f32.xlu0 %v2793
      %v2795 = vpop.xlane.xlu0 %2794
      %v2796 = vsel %vm567, %v2731, 0.0
      %2797 = vadd.xlane.f32.xlu0 %v2796
      %v2798 = vpop.xlane.xlu0 %2797
      %v2799 = vsel %vm567, %v2733, 0.0
      %2800 = vadd.xlane.f32.xlu0 %v2799
      %v2801 = vpop.xlane.xlu0 %2800
      %v2802 = vsel %vm567, %v2735, 0.0
      %2803 = vadd.xlane.f32.xlu0 %v2802
      %v2804 = vpop.xlane.xlu0 %2803
      %v2805 = vsel %vm567, %v2737, 0.0
      %2806 = vadd.xlane.f32.xlu0 %v2805
      %v2807 = vpop.xlane.xlu0 %2806
      %v2808 = vsel %vm567, %v2739, 0.0
      %2809 = vadd.xlane.f32.xlu0 %v2808
      %v2810 = vpop.xlane.xlu0 %2809
      %v2811 = vsel %vm567, %v2741, 0.0
      %2812 = vadd.xlane.f32.xlu0 %v2811
      %v2813 = vpop.xlane.xlu0 %2812
      %v2814 = vsel %vm567, %v2743, 0.0
      %2815 = vadd.xlane.f32.xlu0 %v2814
      %v2816 = vpop.xlane.xlu0 %2815
      %v2817 = vsel %vm567, %v2745, 0.0
      %2818 = vadd.xlane.f32.xlu0 %v2817
      %v2819 = vpop.xlane.xlu0 %2818
      %v2820 = vsel %vm567, %v2747, 0.0
      %2821 = vadd.xlane.f32.xlu0 %v2820
      %v2822 = vpop.xlane.xlu0 %2821
      %v2823 = vsel %vm567, %v2749, 0.0
      %2824 = vadd.xlane.f32.xlu0 %v2823
      %v2825 = vpop.xlane.xlu0 %2824
      %v2826 = vsel %vm567, %v2751, 0.0
      %2827 = vadd.xlane.f32.xlu0 %v2826
      %v2828 = vpop.xlane.xlu0 %2827
      %v2829 = vsel %vm567, %v2753, 0.0
      %2830 = vadd.xlane.f32.xlu0 %v2829
      %v2831 = vpop.xlane.xlu0 %2830
      %v2832 = vsel %vm567, %v2755, 0.0
      %2833 = vadd.xlane.f32.xlu0 %v2832
      %v2834 = vpop.xlane.xlu0 %2833
      %v2835 = vsel %vm567, %v2757, 0.0
      %2836 = vadd.xlane.f32.xlu0 %v2835
      %v2837 = vpop.xlane.xlu0 %2836
      %v2838 = vsel %vm567, %v2759, 0.0
      %2839 = vadd.xlane.f32.xlu0 %v2838
      %v2840 = vpop.xlane.xlu0 %2839
      %v2841 = vsel %vm567, %v2761, 0.0
      %2842 = vadd.xlane.f32.xlu0 %v2841
      %v2843 = vpop.xlane.xlu0 %2842
      %v2844 = vsel %vm567, %v2763, 0.0
      %2845 = vadd.xlane.f32.xlu0 %v2844
      %v2846 = vpop.xlane.xlu0 %2845
      %v2847 = vsel %vm567, %v2765, 0.0
      %2848 = vadd.xlane.f32.xlu0 %v2847
      %v2849 = vpop.xlane.xlu0 %2848
      %v2850 = vsel %vm567, %v2767, 0.0
      %2851 = vadd.xlane.f32.xlu0 %v2850
      %v2852 = vpop.xlane.xlu0 %2851
      %v2853 = vsel %vm567, %v2769, 0.0
      %2854 = vadd.xlane.f32.xlu0 %v2853
      %v2855 = vpop.xlane.xlu0 %2854
      %v2856 = vsel %vm567, %v2771, 0.0
      %2857 = vadd.xlane.f32.xlu0 %v2856
      %v2858 = vpop.xlane.xlu0 %2857
      %v2859 = vsel %vm567, %v2773, 0.0
      %2860 = vadd.xlane.f32.xlu0 %v2859
      %v2861 = vpop.xlane.xlu0 %2860
      %v2862 = vsel %vm567, %v2775, 0.0
      %2863 = vadd.xlane.f32.xlu0 %v2862
      %v2864 = vpop.xlane.xlu0 %2863
      %v2865 = vsel %vm567, %v2777, 0.0
      %2866 = vadd.xlane.f32.xlu0 %v2865
      %v2867 = vpop.xlane.xlu0 %2866
      %v2868 = vsel %vm567, %v2779, 0.0
      %2869 = vadd.xlane.f32.xlu0 %v2868
      %v2870 = vpop.xlane.xlu0 %2869
      %v2871 = vsel %vm567, %v2781, 0.0
      %2872 = vadd.xlane.f32.xlu0 %v2871
      %v2873 = vpop.xlane.xlu0 %2872
      %v2874 = vsel %vm567, %v2783, 0.0
      %2875 = vadd.xlane.f32.xlu0 %v2874
      %v2876 = vpop.xlane.xlu0 %2875
      %v2877 = vsel %vm567, %v2785, 0.0
      %2878 = vadd.xlane.f32.xlu0 %v2877
      %v2879 = vpop.xlane.xlu0 %2878
      %v2880 = vsel %vm567, %v2787, 0.0
      %2881 = vadd.xlane.f32.xlu0 %v2880
      %v2882 = vpop.xlane.xlu0 %2881
      %v2883 = vsel %vm567, %v2789, 0.0
      %2884 = vadd.xlane.f32.xlu0 %v2883
      %v2885 = vpop.xlane.xlu0 %2884
      %v2886 = vrcp.pop %v2792
      %v2887 = vmul.f32 %v2792, %v2886
      %v2888 = vsub.f32 1.0, %v2887
      %v2889 = vmul.f32 %v2886, %v2888
      %v2890 = vadd.f32 %v2886, %v2889
      %vm2891 = vweird.f32 %v2792
      %vm2892 = vweird.f32 %v2886
      %vm2893 = vmor %vm2891, %vm2892
      %v2894 = vsel %vm2893, %v2886, %v2890
      %v2895 = vand.u32 2147483647, %v2792
      %vm2896 = vcmp.eq.f32.partialorder %v2895, 8.507059e+37
      %v2897 = vand.u32 %v2792, 2147483648
      %v2898 = vor.u32 1.1754944e-38, %v2897
      %v2899 = vsel %vm2896, %v2898, %v2894
      %v2900 = vmul.f32 %v2727, %v2899
      %v2901 = vrcp.pop %v2795
      %v2902 = vmul.f32 %v2795, %v2901
      %v2903 = vsub.f32 1.0, %v2902
      %v2904 = vmul.f32 %v2901, %v2903
      %v2905 = vadd.f32 %v2901, %v2904
      %vm2906 = vweird.f32 %v2795
      %vm2907 = vweird.f32 %v2901
      %vm2908 = vmor %vm2906, %vm2907
      %v2909 = vsel %vm2908, %v2901, %v2905
      %v2910 = vand.u32 2147483647, %v2795
      %vm2911 = vcmp.eq.f32.partialorder %v2910, 8.507059e+37
      %v2912 = vand.u32 %v2795, 2147483648
      %v2913 = vor.u32 1.1754944e-38, %v2912
      %v2914 = vsel %vm2911, %v2913, %v2909
      %v2915 = vmul.f32 %v2729, %v2914
      %v2916 = vrcp.pop %v2798
      %v2917 = vmul.f32 %v2798, %v2916
      %v2918 = vsub.f32 1.0, %v2917
      %v2919 = vmul.f32 %v2916, %v2918
      %v2920 = vadd.f32 %v2916, %v2919
      %vm2921 = vweird.f32 %v2798
      %vm2922 = vweird.f32 %v2916
      %vm2923 = vmor %vm2921, %vm2922
      %v2924 = vsel %vm2923, %v2916, %v2920
      %v2925 = vand.u32 2147483647, %v2798
      %vm2926 = vcmp.eq.f32.partialorder %v2925, 8.507059e+37
      %v2927 = vand.u32 %v2798, 2147483648
      %v2928 = vor.u32 1.1754944e-38, %v2927
      %v2929 = vsel %vm2926, %v2928, %v2924
      %v2930 = vmul.f32 %v2731, %v2929
      %v2931 = vrcp.pop %v2801
      %v2932 = vmul.f32 %v2801, %v2931
      %v2933 = vsub.f32 1.0, %v2932
      %v2934 = vmul.f32 %v2931, %v2933
      %v2935 = vadd.f32 %v2931, %v2934
      %vm2936 = vweird.f32 %v2801
      %vm2937 = vweird.f32 %v2931
      %vm2938 = vmor %vm2936, %vm2937
      %v2939 = vsel %vm2938, %v2931, %v2935
      %v2940 = vand.u32 2147483647, %v2801
      %vm2941 = vcmp.eq.f32.partialorder %v2940, 8.507059e+37
      %v2942 = vand.u32 %v2801, 2147483648
      %v2943 = vor.u32 1.1754944e-38, %v2942
      %v2944 = vsel %vm2941, %v2943, %v2939
      %v2945 = vmul.f32 %v2733, %v2944
      %v2946 = vrcp.pop %v2804
      %v2947 = vmul.f32 %v2804, %v2946
      %v2948 = vsub.f32 1.0, %v2947
      %v2949 = vmul.f32 %v2946, %v2948
      %v2950 = vadd.f32 %v2946, %v2949
      %vm2951 = vweird.f32 %v2804
      %vm2952 = vweird.f32 %v2946
      %vm2953 = vmor %vm2951, %vm2952
      %v2954 = vsel %vm2953, %v2946, %v2950
      %v2955 = vand.u32 2147483647, %v2804
      %vm2956 = vcmp.eq.f32.partialorder %v2955, 8.507059e+37
      %v2957 = vand.u32 %v2804, 2147483648
      %v2958 = vor.u32 1.1754944e-38, %v2957
      %v2959 = vsel %vm2956, %v2958, %v2954
      %v2960 = vmul.f32 %v2735, %v2959
      %v2961 = vrcp.pop %v2807
      %v2962 = vmul.f32 %v2807, %v2961
      %v2963 = vsub.f32 1.0, %v2962
      %v2964 = vmul.f32 %v2961, %v2963
      %v2965 = vadd.f32 %v2961, %v2964
      %vm2966 = vweird.f32 %v2807
      %vm2967 = vweird.f32 %v2961
      %vm2968 = vmor %vm2966, %vm2967
      %v2969 = vsel %vm2968, %v2961, %v2965
      %v2970 = vand.u32 2147483647, %v2807
      %vm2971 = vcmp.eq.f32.partialorder %v2970, 8.507059e+37
      %v2972 = vand.u32 %v2807, 2147483648
      %v2973 = vor.u32 1.1754944e-38, %v2972
      %v2974 = vsel %vm2971, %v2973, %v2969
      %v2975 = vmul.f32 %v2737, %v2974
      %v2976 = vrcp.pop %v2810
      %v2977 = vmul.f32 %v2810, %v2976
      %v2978 = vsub.f32 1.0, %v2977
      %v2979 = vmul.f32 %v2976, %v2978
      %v2980 = vadd.f32 %v2976, %v2979
      %vm2981 = vweird.f32 %v2810
      %vm2982 = vweird.f32 %v2976
      %vm2983 = vmor %vm2981, %vm2982
      %v2984 = vsel %vm2983, %v2976, %v2980
      %v2985 = vand.u32 2147483647, %v2810
      %vm2986 = vcmp.eq.f32.partialorder %v2985, 8.507059e+37
      %v2987 = vand.u32 %v2810, 2147483648
      %v2988 = vor.u32 1.1754944e-38, %v2987
      %v2989 = vsel %vm2986, %v2988, %v2984
      %v2990 = vmul.f32 %v2739, %v2989
      %v2991 = vrcp.pop %v2813
      %v2992 = vmul.f32 %v2813, %v2991
      %v2993 = vsub.f32 1.0, %v2992
      %v2994 = vmul.f32 %v2991, %v2993
      %v2995 = vadd.f32 %v2991, %v2994
      %vm2996 = vweird.f32 %v2813
      %vm2997 = vweird.f32 %v2991
      %vm2998 = vmor %vm2996, %vm2997
      %v2999 = vsel %vm2998, %v2991, %v2995
      %v3000 = vand.u32 2147483647, %v2813
      %vm3001 = vcmp.eq.f32.partialorder %v3000, 8.507059e+37
      %v3002 = vand.u32 %v2813, 2147483648
      %v3003 = vor.u32 1.1754944e-38, %v3002
      %v3004 = vsel %vm3001, %v3003, %v2999
      %v3005 = vmul.f32 %v2741, %v3004
      %v3006 = vrcp.pop %v2816
      %v3007 = vmul.f32 %v2816, %v3006
      %v3008 = vsub.f32 1.0, %v3007
      %v3009 = vmul.f32 %v3006, %v3008
      %v3010 = vadd.f32 %v3006, %v3009
      %vm3011 = vweird.f32 %v2816
      %vm3012 = vweird.f32 %v3006
      %vm3013 = vmor %vm3011, %vm3012
      %v3014 = vsel %vm3013, %v3006, %v3010
      %v3015 = vand.u32 2147483647, %v2816
      %vm3016 = vcmp.eq.f32.partialorder %v3015, 8.507059e+37
      %v3017 = vand.u32 %v2816, 2147483648
      %v3018 = vor.u32 1.1754944e-38, %v3017
      %v3019 = vsel %vm3016, %v3018, %v3014
      %v3020 = vmul.f32 %v2743, %v3019
      %v3021 = vrcp.pop %v2819
      %v3022 = vmul.f32 %v2819, %v3021
      %v3023 = vsub.f32 1.0, %v3022
      %v3024 = vmul.f32 %v3021, %v3023
      %v3025 = vadd.f32 %v3021, %v3024
      %vm3026 = vweird.f32 %v2819
      %vm3027 = vweird.f32 %v3021
      %vm3028 = vmor %vm3026, %vm3027
      %v3029 = vsel %vm3028, %v3021, %v3025
      %v3030 = vand.u32 2147483647, %v2819
      %vm3031 = vcmp.eq.f32.partialorder %v3030, 8.507059e+37
      %v3032 = vand.u32 %v2819, 2147483648
      %v3033 = vor.u32 1.1754944e-38, %v3032
      %v3034 = vsel %vm3031, %v3033, %v3029
      %v3035 = vmul.f32 %v2745, %v3034
      %v3036 = vrcp.pop %v2822
      %v3037 = vmul.f32 %v2822, %v3036
      %v3038 = vsub.f32 1.0, %v3037
      %v3039 = vmul.f32 %v3036, %v3038
      %v3040 = vadd.f32 %v3036, %v3039
      %vm3041 = vweird.f32 %v2822
      %vm3042 = vweird.f32 %v3036
      %vm3043 = vmor %vm3041, %vm3042
      %v3044 = vsel %vm3043, %v3036, %v3040
      %v3045 = vand.u32 2147483647, %v2822
      %vm3046 = vcmp.eq.f32.partialorder %v3045, 8.507059e+37
      %v3047 = vand.u32 %v2822, 2147483648
      %v3048 = vor.u32 1.1754944e-38, %v3047
      %v3049 = vsel %vm3046, %v3048, %v3044
      %v3050 = vmul.f32 %v2747, %v3049
      %v3051 = vrcp.pop %v2825
      %v3052 = vmul.f32 %v2825, %v3051
      %v3053 = vsub.f32 1.0, %v3052
      %v3054 = vmul.f32 %v3051, %v3053
      %v3055 = vadd.f32 %v3051, %v3054
      %vm3056 = vweird.f32 %v2825
      %vm3057 = vweird.f32 %v3051
      %vm3058 = vmor %vm3056, %vm3057
      %v3059 = vsel %vm3058, %v3051, %v3055
      %v3060 = vand.u32 2147483647, %v2825
      %vm3061 = vcmp.eq.f32.partialorder %v3060, 8.507059e+37
      %v3062 = vand.u32 %v2825, 2147483648
      %v3063 = vor.u32 1.1754944e-38, %v3062
      %v3064 = vsel %vm3061, %v3063, %v3059
      %v3065 = vmul.f32 %v2749, %v3064
      %v3066 = vrcp.pop %v2828
      %v3067 = vmul.f32 %v2828, %v3066
      %v3068 = vsub.f32 1.0, %v3067
      %v3069 = vmul.f32 %v3066, %v3068
      %v3070 = vadd.f32 %v3066, %v3069
      %vm3071 = vweird.f32 %v2828
      %vm3072 = vweird.f32 %v3066
      %vm3073 = vmor %vm3071, %vm3072
      %v3074 = vsel %vm3073, %v3066, %v3070
      %v3075 = vand.u32 2147483647, %v2828
      %vm3076 = vcmp.eq.f32.partialorder %v3075, 8.507059e+37
      %v3077 = vand.u32 %v2828, 2147483648
      %v3078 = vor.u32 1.1754944e-38, %v3077
      %v3079 = vsel %vm3076, %v3078, %v3074
      %v3080 = vmul.f32 %v2751, %v3079
      %v3081 = vrcp.pop %v2831
      %v3082 = vmul.f32 %v2831, %v3081
      %v3083 = vsub.f32 1.0, %v3082
      %v3084 = vmul.f32 %v3081, %v3083
      %v3085 = vadd.f32 %v3081, %v3084
      %vm3086 = vweird.f32 %v2831
      %vm3087 = vweird.f32 %v3081
      %vm3088 = vmor %vm3086, %vm3087
      %v3089 = vsel %vm3088, %v3081, %v3085
      %v3090 = vand.u32 2147483647, %v2831
      %vm3091 = vcmp.eq.f32.partialorder %v3090, 8.507059e+37
      %v3092 = vand.u32 %v2831, 2147483648
      %v3093 = vor.u32 1.1754944e-38, %v3092
      %v3094 = vsel %vm3091, %v3093, %v3089
      %v3095 = vmul.f32 %v2753, %v3094
      %v3096 = vrcp.pop %v2834
      %v3097 = vmul.f32 %v2834, %v3096
      %v3098 = vsub.f32 1.0, %v3097
      %v3099 = vmul.f32 %v3096, %v3098
      %v3100 = vadd.f32 %v3096, %v3099
      %vm3101 = vweird.f32 %v2834
      %vm3102 = vweird.f32 %v3096
      %vm3103 = vmor %vm3101, %vm3102
      %v3104 = vsel %vm3103, %v3096, %v3100
      %v3105 = vand.u32 2147483647, %v2834
      %vm3106 = vcmp.eq.f32.partialorder %v3105, 8.507059e+37
      %v3107 = vand.u32 %v2834, 2147483648
      %v3108 = vor.u32 1.1754944e-38, %v3107
      %v3109 = vsel %vm3106, %v3108, %v3104
      %v3110 = vmul.f32 %v2755, %v3109
      %v3111 = vrcp.pop %v2837
      %v3112 = vmul.f32 %v2837, %v3111
      %v3113 = vsub.f32 1.0, %v3112
      %v3114 = vmul.f32 %v3111, %v3113
      %v3115 = vadd.f32 %v3111, %v3114
      %vm3116 = vweird.f32 %v2837
      %vm3117 = vweird.f32 %v3111
      %vm3118 = vmor %vm3116, %vm3117
      %v3119 = vsel %vm3118, %v3111, %v3115
      %v3120 = vand.u32 2147483647, %v2837
      %vm3121 = vcmp.eq.f32.partialorder %v3120, 8.507059e+37
      %v3122 = vand.u32 %v2837, 2147483648
      %v3123 = vor.u32 1.1754944e-38, %v3122
      %v3124 = vsel %vm3121, %v3123, %v3119
      %v3125 = vmul.f32 %v2757, %v3124
      %v3126 = vrcp.pop %v2840
      %v3127 = vmul.f32 %v2840, %v3126
      %v3128 = vsub.f32 1.0, %v3127
      %v3129 = vmul.f32 %v3126, %v3128
      %v3130 = vadd.f32 %v3126, %v3129
      %vm3131 = vweird.f32 %v2840
      %vm3132 = vweird.f32 %v3126
      %vm3133 = vmor %vm3131, %vm3132
      %v3134 = vsel %vm3133, %v3126, %v3130
      %v3135 = vand.u32 2147483647, %v2840
      %vm3136 = vcmp.eq.f32.partialorder %v3135, 8.507059e+37
      %v3137 = vand.u32 %v2840, 2147483648
      %v3138 = vor.u32 1.1754944e-38, %v3137
      %v3139 = vsel %vm3136, %v3138, %v3134
      %v3140 = vmul.f32 %v2759, %v3139
      %v3141 = vrcp.pop %v2843
      %v3142 = vmul.f32 %v2843, %v3141
      %v3143 = vsub.f32 1.0, %v3142
      %v3144 = vmul.f32 %v3141, %v3143
      %v3145 = vadd.f32 %v3141, %v3144
      %vm3146 = vweird.f32 %v2843
      %vm3147 = vweird.f32 %v3141
      %vm3148 = vmor %vm3146, %vm3147
      %v3149 = vsel %vm3148, %v3141, %v3145
      %v3150 = vand.u32 2147483647, %v2843
      %vm3151 = vcmp.eq.f32.partialorder %v3150, 8.507059e+37
      %v3152 = vand.u32 %v2843, 2147483648
      %v3153 = vor.u32 1.1754944e-38, %v3152
      %v3154 = vsel %vm3151, %v3153, %v3149
      %v3155 = vmul.f32 %v2761, %v3154
      %v3156 = vrcp.pop %v2846
      %v3157 = vmul.f32 %v2846, %v3156
      %v3158 = vsub.f32 1.0, %v3157
      %v3159 = vmul.f32 %v3156, %v3158
      %v3160 = vadd.f32 %v3156, %v3159
      %vm3161 = vweird.f32 %v2846
      %vm3162 = vweird.f32 %v3156
      %vm3163 = vmor %vm3161, %vm3162
      %v3164 = vsel %vm3163, %v3156, %v3160
      %v3165 = vand.u32 2147483647, %v2846
      %vm3166 = vcmp.eq.f32.partialorder %v3165, 8.507059e+37
      %v3167 = vand.u32 %v2846, 2147483648
      %v3168 = vor.u32 1.1754944e-38, %v3167
      %v3169 = vsel %vm3166, %v3168, %v3164
      %v3170 = vmul.f32 %v2763, %v3169
      %v3171 = vrcp.pop %v2849
      %v3172 = vmul.f32 %v2849, %v3171
      %v3173 = vsub.f32 1.0, %v3172
      %v3174 = vmul.f32 %v3171, %v3173
      %v3175 = vadd.f32 %v3171, %v3174
      %vm3176 = vweird.f32 %v2849
      %vm3177 = vweird.f32 %v3171
      %vm3178 = vmor %vm3176, %vm3177
      %v3179 = vsel %vm3178, %v3171, %v3175
      %v3180 = vand.u32 2147483647, %v2849
      %vm3181 = vcmp.eq.f32.partialorder %v3180, 8.507059e+37
      %v3182 = vand.u32 %v2849, 2147483648
      %v3183 = vor.u32 1.1754944e-38, %v3182
      %v3184 = vsel %vm3181, %v3183, %v3179
      %v3185 = vmul.f32 %v2765, %v3184
      %v3186 = vrcp.pop %v2852
      %v3187 = vmul.f32 %v2852, %v3186
      %v3188 = vsub.f32 1.0, %v3187
      %v3189 = vmul.f32 %v3186, %v3188
      %v3190 = vadd.f32 %v3186, %v3189
      %vm3191 = vweird.f32 %v2852
      %vm3192 = vweird.f32 %v3186
      %vm3193 = vmor %vm3191, %vm3192
      %v3194 = vsel %vm3193, %v3186, %v3190
      %v3195 = vand.u32 2147483647, %v2852
      %vm3196 = vcmp.eq.f32.partialorder %v3195, 8.507059e+37
      %v3197 = vand.u32 %v2852, 2147483648
      %v3198 = vor.u32 1.1754944e-38, %v3197
      %v3199 = vsel %vm3196, %v3198, %v3194
      %v3200 = vmul.f32 %v2767, %v3199
      %v3201 = vrcp.pop %v2855
      %v3202 = vmul.f32 %v2855, %v3201
      %v3203 = vsub.f32 1.0, %v3202
      %v3204 = vmul.f32 %v3201, %v3203
      %v3205 = vadd.f32 %v3201, %v3204
      %vm3206 = vweird.f32 %v2855
      %vm3207 = vweird.f32 %v3201
      %vm3208 = vmor %vm3206, %vm3207
      %v3209 = vsel %vm3208, %v3201, %v3205
      %v3210 = vand.u32 2147483647, %v2855
      %vm3211 = vcmp.eq.f32.partialorder %v3210, 8.507059e+37
      %v3212 = vand.u32 %v2855, 2147483648
      %v3213 = vor.u32 1.1754944e-38, %v3212
      %v3214 = vsel %vm3211, %v3213, %v3209
      %v3215 = vmul.f32 %v2769, %v3214
      %v3216 = vrcp.pop %v2858
      %v3217 = vmul.f32 %v2858, %v3216
      %v3218 = vsub.f32 1.0, %v3217
      %v3219 = vmul.f32 %v3216, %v3218
      %v3220 = vadd.f32 %v3216, %v3219
      %vm3221 = vweird.f32 %v2858
      %vm3222 = vweird.f32 %v3216
      %vm3223 = vmor %vm3221, %vm3222
      %v3224 = vsel %vm3223, %v3216, %v3220
      %v3225 = vand.u32 2147483647, %v2858
      %vm3226 = vcmp.eq.f32.partialorder %v3225, 8.507059e+37
      %v3227 = vand.u32 %v2858, 2147483648
      %v3228 = vor.u32 1.1754944e-38, %v3227
      %v3229 = vsel %vm3226, %v3228, %v3224
      %v3230 = vmul.f32 %v2771, %v3229
      %v3231 = vrcp.pop %v2861
      %v3232 = vmul.f32 %v2861, %v3231
      %v3233 = vsub.f32 1.0, %v3232
      %v3234 = vmul.f32 %v3231, %v3233
      %v3235 = vadd.f32 %v3231, %v3234
      %vm3236 = vweird.f32 %v2861
      %vm3237 = vweird.f32 %v3231
      %vm3238 = vmor %vm3236, %vm3237
      %v3239 = vsel %vm3238, %v3231, %v3235
      %v3240 = vand.u32 2147483647, %v2861
      %vm3241 = vcmp.eq.f32.partialorder %v3240, 8.507059e+37
      %v3242 = vand.u32 %v2861, 2147483648
      %v3243 = vor.u32 1.1754944e-38, %v3242
      %v3244 = vsel %vm3241, %v3243, %v3239
      %v3245 = vmul.f32 %v2773, %v3244
      %v3246 = vrcp.pop %v2864
      %v3247 = vmul.f32 %v2864, %v3246
      %v3248 = vsub.f32 1.0, %v3247
      %v3249 = vmul.f32 %v3246, %v3248
      %v3250 = vadd.f32 %v3246, %v3249
      %vm3251 = vweird.f32 %v2864
      %vm3252 = vweird.f32 %v3246
      %vm3253 = vmor %vm3251, %vm3252
      %v3254 = vsel %vm3253, %v3246, %v3250
      %v3255 = vand.u32 2147483647, %v2864
      %vm3256 = vcmp.eq.f32.partialorder %v3255, 8.507059e+37
      %v3257 = vand.u32 %v2864, 2147483648
      %v3258 = vor.u32 1.1754944e-38, %v3257
      %v3259 = vsel %vm3256, %v3258, %v3254
      %v3260 = vmul.f32 %v2775, %v3259
      %v3261 = vrcp.pop %v2867
      %v3262 = vmul.f32 %v2867, %v3261
      %v3263 = vsub.f32 1.0, %v3262
      %v3264 = vmul.f32 %v3261, %v3263
      %v3265 = vadd.f32 %v3261, %v3264
      %vm3266 = vweird.f32 %v2867
      %vm3267 = vweird.f32 %v3261
      %vm3268 = vmor %vm3266, %vm3267
      %v3269 = vsel %vm3268, %v3261, %v3265
      %v3270 = vand.u32 2147483647, %v2867
      %vm3271 = vcmp.eq.f32.partialorder %v3270, 8.507059e+37
      %v3272 = vand.u32 %v2867, 2147483648
      %v3273 = vor.u32 1.1754944e-38, %v3272
      %v3274 = vsel %vm3271, %v3273, %v3269
      %v3275 = vmul.f32 %v2777, %v3274
      %v3276 = vrcp.pop %v2870
      %v3277 = vmul.f32 %v2870, %v3276
      %v3278 = vsub.f32 1.0, %v3277
      %v3279 = vmul.f32 %v3276, %v3278
      %v3280 = vadd.f32 %v3276, %v3279
      %vm3281 = vweird.f32 %v2870
      %vm3282 = vweird.f32 %v3276
      %vm3283 = vmor %vm3281, %vm3282
      %v3284 = vsel %vm3283, %v3276, %v3280
      %v3285 = vand.u32 2147483647, %v2870
      %vm3286 = vcmp.eq.f32.partialorder %v3285, 8.507059e+37
      %v3287 = vand.u32 %v2870, 2147483648
      %v3288 = vor.u32 1.1754944e-38, %v3287
      %v3289 = vsel %vm3286, %v3288, %v3284
      %v3290 = vmul.f32 %v2779, %v3289
      %v3291 = vrcp.pop %v2873
      %v3292 = vmul.f32 %v2873, %v3291
      %v3293 = vsub.f32 1.0, %v3292
      %v3294 = vmul.f32 %v3291, %v3293
      %v3295 = vadd.f32 %v3291, %v3294
      %vm3296 = vweird.f32 %v2873
      %vm3297 = vweird.f32 %v3291
      %vm3298 = vmor %vm3296, %vm3297
      %v3299 = vsel %vm3298, %v3291, %v3295
      %v3300 = vand.u32 2147483647, %v2873
      %vm3301 = vcmp.eq.f32.partialorder %v3300, 8.507059e+37
      %v3302 = vand.u32 %v2873, 2147483648
      %v3303 = vor.u32 1.1754944e-38, %v3302
      %v3304 = vsel %vm3301, %v3303, %v3299
      %v3305 = vmul.f32 %v2781, %v3304
      %v3306 = vrcp.pop %v2876
      %v3307 = vmul.f32 %v2876, %v3306
      %v3308 = vsub.f32 1.0, %v3307
      %v3309 = vmul.f32 %v3306, %v3308
      %v3310 = vadd.f32 %v3306, %v3309
      %vm3311 = vweird.f32 %v2876
      %vm3312 = vweird.f32 %v3306
      %vm3313 = vmor %vm3311, %vm3312
      %v3314 = vsel %vm3313, %v3306, %v3310
      %v3315 = vand.u32 2147483647, %v2876
      %vm3316 = vcmp.eq.f32.partialorder %v3315, 8.507059e+37
      %v3317 = vand.u32 %v2876, 2147483648
      %v3318 = vor.u32 1.1754944e-38, %v3317
      %v3319 = vsel %vm3316, %v3318, %v3314
      %v3320 = vmul.f32 %v2783, %v3319
      %v3321 = vrcp.pop %v2879
      %v3322 = vmul.f32 %v2879, %v3321
      %v3323 = vsub.f32 1.0, %v3322
      %v3324 = vmul.f32 %v3321, %v3323
      %v3325 = vadd.f32 %v3321, %v3324
      %vm3326 = vweird.f32 %v2879
      %vm3327 = vweird.f32 %v3321
      %vm3328 = vmor %vm3326, %vm3327
      %v3329 = vsel %vm3328, %v3321, %v3325
      %v3330 = vand.u32 2147483647, %v2879
      %vm3331 = vcmp.eq.f32.partialorder %v3330, 8.507059e+37
      %v3332 = vand.u32 %v2879, 2147483648
      %v3333 = vor.u32 1.1754944e-38, %v3332
      %v3334 = vsel %vm3331, %v3333, %v3329
      %v3335 = vmul.f32 %v2785, %v3334
      %v3336 = vrcp.pop %v2882
      %v3337 = vmul.f32 %v2882, %v3336
      %v3338 = vsub.f32 1.0, %v3337
      %v3339 = vmul.f32 %v3336, %v3338
      %v3340 = vadd.f32 %v3336, %v3339
      %vm3341 = vweird.f32 %v2882
      %vm3342 = vweird.f32 %v3336
      %vm3343 = vmor %vm3341, %vm3342
      %v3344 = vsel %vm3343, %v3336, %v3340
      %v3345 = vand.u32 2147483647, %v2882
      %vm3346 = vcmp.eq.f32.partialorder %v3345, 8.507059e+37
      %v3347 = vand.u32 %v2882, 2147483648
      %v3348 = vor.u32 1.1754944e-38, %v3347
      %v3349 = vsel %vm3346, %v3348, %v3344
      %v3350 = vmul.f32 %v2787, %v3349
      %v3351 = vrcp.pop %v2885
      %v3352 = vmul.f32 %v2885, %v3351
      %v3353 = vsub.f32 1.0, %v3352
      %v3354 = vmul.f32 %v3351, %v3353
      %v3355 = vadd.f32 %v3351, %v3354
      %vm3356 = vweird.f32 %v2885
      %vm3357 = vweird.f32 %v3351
      %vm3358 = vmor %vm3356, %vm3357
      %v3359 = vsel %vm3358, %v3351, %v3355
      %v3360 = vand.u32 2147483647, %v2885
      %vm3361 = vcmp.eq.f32.partialorder %v3360, 8.507059e+37
      %v3362 = vand.u32 %v2885, 2147483648
      %v3363 = vor.u32 1.1754944e-38, %v3362
      %v3364 = vsel %vm3361, %v3363, %v3359
      %v3365 = vmul.f32 %v2789, %v3364
      %v3366 = vpack.c.bf16 %v2900, %v2900
      %v3367 = vpack.c.bf16 %v2915, %v2915
      %v3368 = vpack.c.bf16 %v2930, %v2930
      %v3369 = vpack.c.bf16 %v2945, %v2945
      %v3370 = vpack.c.bf16 %v2960, %v2960
      %v3371 = vpack.c.bf16 %v2975, %v2975
      %v3372 = vpack.c.bf16 %v2990, %v2990
      %v3373 = vpack.c.bf16 %v3005, %v3005
      %v3374 = vpack.c.bf16 %v3020, %v3020
      %v3375 = vpack.c.bf16 %v3035, %v3035
      %v3376 = vpack.c.bf16 %v3050, %v3050
      %v3377 = vpack.c.bf16 %v3065, %v3065
      %v3378 = vpack.c.bf16 %v3080, %v3080
      %v3379 = vpack.c.bf16 %v3095, %v3095
      %v3380 = vpack.c.bf16 %v3110, %v3110
      %v3381 = vpack.c.bf16 %v3125, %v3125
      %v3382 = vpack.c.bf16 %v3140, %v3140
      %v3383 = vpack.c.bf16 %v3155, %v3155
      %v3384 = vpack.c.bf16 %v3170, %v3170
      %v3385 = vpack.c.bf16 %v3185, %v3185
      %v3386 = vpack.c.bf16 %v3200, %v3200
      %v3387 = vpack.c.bf16 %v3215, %v3215
      %v3388 = vpack.c.bf16 %v3230, %v3230
      %v3389 = vpack.c.bf16 %v3245, %v3245
      %v3390 = vpack.c.bf16 %v3260, %v3260
      %v3391 = vpack.c.bf16 %v3275, %v3275
      %v3392 = vpack.c.bf16 %v3290, %v3290
      %v3393 = vpack.c.bf16 %v3305, %v3305
      %v3394 = vpack.c.bf16 %v3320, %v3320
      %v3395 = vpack.c.bf16 %v3335, %v3335
      %v3396 = vpack.c.bf16 %v3350, %v3350
      %v3397 = vpack.c.bf16 %v3365, %v3365
      %v3400 = vunpack.c.l.b16 %v3366
      %v3401 = vunpack.c.l.b16 %v3367
      %v3402 = vpack.c.b16 %v3401, %v3400
      %3403 = vrot.lane.b32.xlu0 %v564, 48
      %v3404 = vpop.permute.xlu0 %3403
      %v3407 = vsel %vm567, %v3402, 0
      %3409 = vmatpush.bf16.msra.mxu0 0
      %3410 = vmatpush.bf16.msra.mxu0 0
      %3411 = vmatpush.bf16.msra.mxu0 0
      %3412 = vmatpush.bf16.msra.mxu0 0
      %3413 = vmatpush.bf16.msra.mxu0 0
      %3414 = vmatpush.bf16.msra.mxu0 0
      %3415 = vmatpush.bf16.msra.mxu0 0
      %3416 = vmatpush.bf16.msra.mxu0 %v3404
      %3417 = vmatmul.bf16.gmra.mxu0 %v3407
      %v3418 = vpop.f32.mrf.mxu0
      %v3419 = vadd.f32 0.0, %v3418
      %v3420 = vpop.f32.mrf.mxu0
      %v3421 = vadd.f32 0.0, %v3420
      %3422 = vdwg.mxu0
      %v3425 = vunpack.c.l.b16 %v3368
      %v3426 = vunpack.c.l.b16 %v3369
      %v3427 = vpack.c.b16 %v3426, %v3425
      %3428 = vrot.lane.b32.xlu0 %v592, 48
      %v3429 = vpop.permute.xlu0 %3428
      %v3432 = vsel %vm567, %v3427, 0
      %3434 = vmatpush.bf16.msra.mxu0 0
      %3435 = vmatpush.bf16.msra.mxu0 0
      %3436 = vmatpush.bf16.msra.mxu0 0
      %3437 = vmatpush.bf16.msra.mxu0 0
      %3438 = vmatpush.bf16.msra.mxu0 0
      %3439 = vmatpush.bf16.msra.mxu0 0
      %3440 = vmatpush.bf16.msra.mxu0 0
      %3441 = vmatpush.bf16.msra.mxu0 %v3429
      %3442 = vmatmul.bf16.gmra.mxu0 %v3432
      %v3443 = vpop.f32.mrf.mxu0
      %v3444 = vadd.f32 0.0, %v3443
      %v3445 = vpop.f32.mrf.mxu0
      %v3446 = vadd.f32 0.0, %v3445
      %3447 = vdwg.mxu0
      %v3450 = vunpack.c.l.b16 %v3370
      %v3451 = vunpack.c.l.b16 %v3371
      %v3452 = vpack.c.b16 %v3451, %v3450
      %3453 = vrot.lane.b32.xlu0 %v619, 48
      %v3454 = vpop.permute.xlu0 %3453
      %v3457 = vsel %vm567, %v3452, 0
      %3459 = vmatpush.bf16.msra.mxu0 0
      %3460 = vmatpush.bf16.msra.mxu0 0
      %3461 = vmatpush.bf16.msra.mxu0 0
      %3462 = vmatpush.bf16.msra.mxu0 0
      %3463 = vmatpush.bf16.msra.mxu0 0
      %3464 = vmatpush.bf16.msra.mxu0 0
      %3465 = vmatpush.bf16.msra.mxu0 0
      %3466 = vmatpush.bf16.msra.mxu0 %v3454
      %3467 = vmatmul.bf16.gmra.mxu0 %v3457
      %v3468 = vpop.f32.mrf.mxu0
      %v3469 = vadd.f32 0.0, %v3468
      %v3470 = vpop.f32.mrf.mxu0
      %v3471 = vadd.f32 0.0, %v3470
      %3472 = vdwg.mxu0
      %v3475 = vunpack.c.l.b16 %v3372
      %v3476 = vunpack.c.l.b16 %v3373
      %v3477 = vpack.c.b16 %v3476, %v3475
      %3478 = vrot.lane.b32.xlu0 %v646, 48
      %v3479 = vpop.permute.xlu0 %3478
      %v3482 = vsel %vm567, %v3477, 0
      %3484 = vmatpush.bf16.msra.mxu0 0
      %3485 = vmatpush.bf16.msra.mxu0 0
      %3486 = vmatpush.bf16.msra.mxu0 0
      %3487 = vmatpush.bf16.msra.mxu0 0
      %3488 = vmatpush.bf16.msra.mxu0 0
      %3489 = vmatpush.bf16.msra.mxu0 0
      %3490 = vmatpush.bf16.msra.mxu0 0
      %3491 = vmatpush.bf16.msra.mxu0 %v3479
      %3492 = vmatmul.bf16.gmra.mxu0 %v3482
      %v3493 = vpop.f32.mrf.mxu0
      %v3494 = vadd.f32 0.0, %v3493
      %v3495 = vpop.f32.mrf.mxu0
      %v3496 = vadd.f32 0.0, %v3495
      %3497 = vdwg.mxu0
      %v3500 = vunpack.c.l.b16 %v3374
      %v3501 = vunpack.c.l.b16 %v3375
      %v3502 = vpack.c.b16 %v3501, %v3500
      %3503 = vrot.lane.b32.xlu0 %v673, 48
      %v3504 = vpop.permute.xlu0 %3503
      %v3507 = vsel %vm567, %v3502, 0
      %3509 = vmatpush.bf16.msra.mxu0 0
      %3510 = vmatpush.bf16.msra.mxu0 0
      %3511 = vmatpush.bf16.msra.mxu0 0
      %3512 = vmatpush.bf16.msra.mxu0 0
      %3513 = vmatpush.bf16.msra.mxu0 0
      %3514 = vmatpush.bf16.msra.mxu0 0
      %3515 = vmatpush.bf16.msra.mxu0 0
      %3516 = vmatpush.bf16.msra.mxu0 %v3504
      %3517 = vmatmul.bf16.gmra.mxu0 %v3507
      %v3518 = vpop.f32.mrf.mxu0
      %v3519 = vadd.f32 0.0, %v3518
      %v3520 = vpop.f32.mrf.mxu0
      %v3521 = vadd.f32 0.0, %v3520
      %3522 = vdwg.mxu0
      %v3525 = vunpack.c.l.b16 %v3376
      %v3526 = vunpack.c.l.b16 %v3377
      %v3527 = vpack.c.b16 %v3526, %v3525
      %3528 = vrot.lane.b32.xlu0 %v700, 48
      %v3529 = vpop.permute.xlu0 %3528
      %v3532 = vsel %vm567, %v3527, 0
      %3534 = vmatpush.bf16.msra.mxu0 0
      %3535 = vmatpush.bf16.msra.mxu0 0
      %3536 = vmatpush.bf16.msra.mxu0 0
      %3537 = vmatpush.bf16.msra.mxu0 0
      %3538 = vmatpush.bf16.msra.mxu0 0
      %3539 = vmatpush.bf16.msra.mxu0 0
      %3540 = vmatpush.bf16.msra.mxu0 0
      %3541 = vmatpush.bf16.msra.mxu0 %v3529
      %3542 = vmatmul.bf16.gmra.mxu0 %v3532
      %v3543 = vpop.f32.mrf.mxu0
      %v3544 = vadd.f32 0.0, %v3543
      %v3545 = vpop.f32.mrf.mxu0
      %v3546 = vadd.f32 0.0, %v3545
      %3547 = vdwg.mxu0
      %v3550 = vunpack.c.l.b16 %v3378
      %v3551 = vunpack.c.l.b16 %v3379
      %v3552 = vpack.c.b16 %v3551, %v3550
      %3553 = vrot.lane.b32.xlu0 %v727, 48
      %v3554 = vpop.permute.xlu0 %3553
      %v3557 = vsel %vm567, %v3552, 0
      %3559 = vmatpush.bf16.msra.mxu0 0
      %3560 = vmatpush.bf16.msra.mxu0 0
      %3561 = vmatpush.bf16.msra.mxu0 0
      %3562 = vmatpush.bf16.msra.mxu0 0
      %3563 = vmatpush.bf16.msra.mxu0 0
      %3564 = vmatpush.bf16.msra.mxu0 0
      %3565 = vmatpush.bf16.msra.mxu0 0
      %3566 = vmatpush.bf16.msra.mxu0 %v3554
      %3567 = vmatmul.bf16.gmra.mxu0 %v3557
      %v3568 = vpop.f32.mrf.mxu0
      %v3569 = vadd.f32 0.0, %v3568
      %v3570 = vpop.f32.mrf.mxu0
      %v3571 = vadd.f32 0.0, %v3570
      %3572 = vdwg.mxu0
      %v3575 = vunpack.c.l.b16 %v3380
      %v3576 = vunpack.c.l.b16 %v3381
      %v3577 = vpack.c.b16 %v3576, %v3575
      %3578 = vrot.lane.b32.xlu0 %v754, 48
      %v3579 = vpop.permute.xlu0 %3578
      %v3582 = vsel %vm567, %v3577, 0
      %3584 = vmatpush.bf16.msra.mxu0 0
      %3585 = vmatpush.bf16.msra.mxu0 0
      %3586 = vmatpush.bf16.msra.mxu0 0
      %3587 = vmatpush.bf16.msra.mxu0 0
      %3588 = vmatpush.bf16.msra.mxu0 0
      %3589 = vmatpush.bf16.msra.mxu0 0
      %3590 = vmatpush.bf16.msra.mxu0 0
      %3591 = vmatpush.bf16.msra.mxu0 %v3579
      %3592 = vmatmul.bf16.gmra.mxu0 %v3582
      %v3593 = vpop.f32.mrf.mxu0
      %v3594 = vadd.f32 0.0, %v3593
      %v3595 = vpop.f32.mrf.mxu0
      %v3596 = vadd.f32 0.0, %v3595
      %3597 = vdwg.mxu0
      %v3600 = vunpack.c.l.b16 %v3382
      %v3601 = vunpack.c.l.b16 %v3383
      %v3602 = vpack.c.b16 %v3601, %v3600
      %3603 = vrot.lane.b32.xlu0 %v781, 48
      %v3604 = vpop.permute.xlu0 %3603
      %v3607 = vsel %vm567, %v3602, 0
      %3609 = vmatpush.bf16.msra.mxu0 0
      %3610 = vmatpush.bf16.msra.mxu0 0
      %3611 = vmatpush.bf16.msra.mxu0 0
      %3612 = vmatpush.bf16.msra.mxu0 0
      %3613 = vmatpush.bf16.msra.mxu0 0
      %3614 = vmatpush.bf16.msra.mxu0 0
      %3615 = vmatpush.bf16.msra.mxu0 0
      %3616 = vmatpush.bf16.msra.mxu0 %v3604
      %3617 = vmatmul.bf16.gmra.mxu0 %v3607
      %v3618 = vpop.f32.mrf.mxu0
      %v3619 = vadd.f32 0.0, %v3618
      %v3620 = vpop.f32.mrf.mxu0
      %v3621 = vadd.f32 0.0, %v3620
      %3622 = vdwg.mxu0
      %v3625 = vunpack.c.l.b16 %v3384
      %v3626 = vunpack.c.l.b16 %v3385
      %v3627 = vpack.c.b16 %v3626, %v3625
      %3628 = vrot.lane.b32.xlu0 %v808, 48
      %v3629 = vpop.permute.xlu0 %3628
      %v3632 = vsel %vm567, %v3627, 0
      %3634 = vmatpush.bf16.msra.mxu0 0
      %3635 = vmatpush.bf16.msra.mxu0 0
      %3636 = vmatpush.bf16.msra.mxu0 0
      %3637 = vmatpush.bf16.msra.mxu0 0
      %3638 = vmatpush.bf16.msra.mxu0 0
      %3639 = vmatpush.bf16.msra.mxu0 0
      %3640 = vmatpush.bf16.msra.mxu0 0
      %3641 = vmatpush.bf16.msra.mxu0 %v3629
      %3642 = vmatmul.bf16.gmra.mxu0 %v3632
      %v3643 = vpop.f32.mrf.mxu0
      %v3644 = vadd.f32 0.0, %v3643
      %v3645 = vpop.f32.mrf.mxu0
      %v3646 = vadd.f32 0.0, %v3645
      %3647 = vdwg.mxu0
      %v3650 = vunpack.c.l.b16 %v3386
      %v3651 = vunpack.c.l.b16 %v3387
      %v3652 = vpack.c.b16 %v3651, %v3650
      %3653 = vrot.lane.b32.xlu0 %v835, 48
      %v3654 = vpop.permute.xlu0 %3653
      %v3657 = vsel %vm567, %v3652, 0
      %3659 = vmatpush.bf16.msra.mxu0 0
      %3660 = vmatpush.bf16.msra.mxu0 0
      %3661 = vmatpush.bf16.msra.mxu0 0
      %3662 = vmatpush.bf16.msra.mxu0 0
      %3663 = vmatpush.bf16.msra.mxu0 0
      %3664 = vmatpush.bf16.msra.mxu0 0
      %3665 = vmatpush.bf16.msra.mxu0 0
      %3666 = vmatpush.bf16.msra.mxu0 %v3654
      %3667 = vmatmul.bf16.gmra.mxu0 %v3657
      %v3668 = vpop.f32.mrf.mxu0
      %v3669 = vadd.f32 0.0, %v3668
      %v3670 = vpop.f32.mrf.mxu0
      %v3671 = vadd.f32 0.0, %v3670
      %3672 = vdwg.mxu0
      %v3675 = vunpack.c.l.b16 %v3388
      %v3676 = vunpack.c.l.b16 %v3389
      %v3677 = vpack.c.b16 %v3676, %v3675
      %3678 = vrot.lane.b32.xlu0 %v862, 48
      %v3679 = vpop.permute.xlu0 %3678
      %v3682 = vsel %vm567, %v3677, 0
      %3684 = vmatpush.bf16.msra.mxu0 0
      %3685 = vmatpush.bf16.msra.mxu0 0
      %3686 = vmatpush.bf16.msra.mxu0 0
      %3687 = vmatpush.bf16.msra.mxu0 0
      %3688 = vmatpush.bf16.msra.mxu0 0
      %3689 = vmatpush.bf16.msra.mxu0 0
      %3690 = vmatpush.bf16.msra.mxu0 0
      %3691 = vmatpush.bf16.msra.mxu0 %v3679
      %3692 = vmatmul.bf16.gmra.mxu0 %v3682
      %v3693 = vpop.f32.mrf.mxu0
      %v3694 = vadd.f32 0.0, %v3693
      %v3695 = vpop.f32.mrf.mxu0
      %v3696 = vadd.f32 0.0, %v3695
      %3697 = vdwg.mxu0
      %v3700 = vunpack.c.l.b16 %v3390
      %v3701 = vunpack.c.l.b16 %v3391
      %v3702 = vpack.c.b16 %v3701, %v3700
      %3703 = vrot.lane.b32.xlu0 %v889, 48
      %v3704 = vpop.permute.xlu0 %3703
      %v3707 = vsel %vm567, %v3702, 0
      %3709 = vmatpush.bf16.msra.mxu0 0
      %3710 = vmatpush.bf16.msra.mxu0 0
      %3711 = vmatpush.bf16.msra.mxu0 0
      %3712 = vmatpush.bf16.msra.mxu0 0
      %3713 = vmatpush.bf16.msra.mxu0 0
      %3714 = vmatpush.bf16.msra.mxu0 0
      %3715 = vmatpush.bf16.msra.mxu0 0
      %3716 = vmatpush.bf16.msra.mxu0 %v3704
      %3717 = vmatmul.bf16.gmra.mxu0 %v3707
      %v3718 = vpop.f32.mrf.mxu0
      %v3719 = vadd.f32 0.0, %v3718
      %v3720 = vpop.f32.mrf.mxu0
      %v3721 = vadd.f32 0.0, %v3720
      %3722 = vdwg.mxu0
      %v3725 = vunpack.c.l.b16 %v3392
      %v3726 = vunpack.c.l.b16 %v3393
      %v3727 = vpack.c.b16 %v3726, %v3725
      %3728 = vrot.lane.b32.xlu0 %v916, 48
      %v3729 = vpop.permute.xlu0 %3728
      %v3732 = vsel %vm567, %v3727, 0
      %3734 = vmatpush.bf16.msra.mxu0 0
      %3735 = vmatpush.bf16.msra.mxu0 0
      %3736 = vmatpush.bf16.msra.mxu0 0
      %3737 = vmatpush.bf16.msra.mxu0 0
      %3738 = vmatpush.bf16.msra.mxu0 0
      %3739 = vmatpush.bf16.msra.mxu0 0
      %3740 = vmatpush.bf16.msra.mxu0 0
      %3741 = vmatpush.bf16.msra.mxu0 %v3729
      %3742 = vmatmul.bf16.gmra.mxu0 %v3732
      %v3743 = vpop.f32.mrf.mxu0
      %v3744 = vadd.f32 0.0, %v3743
      %v3745 = vpop.f32.mrf.mxu0
      %v3746 = vadd.f32 0.0, %v3745
      %3747 = vdwg.mxu0
      %v3750 = vunpack.c.l.b16 %v3394
      %v3751 = vunpack.c.l.b16 %v3395
      %v3752 = vpack.c.b16 %v3751, %v3750
      %3753 = vrot.lane.b32.xlu0 %v943, 48
      %v3754 = vpop.permute.xlu0 %3753
      %v3757 = vsel %vm567, %v3752, 0
      %3759 = vmatpush.bf16.msra.mxu0 0
      %3760 = vmatpush.bf16.msra.mxu0 0
      %3761 = vmatpush.bf16.msra.mxu0 0
      %3762 = vmatpush.bf16.msra.mxu0 0
      %3763 = vmatpush.bf16.msra.mxu0 0
      %3764 = vmatpush.bf16.msra.mxu0 0
      %3765 = vmatpush.bf16.msra.mxu0 0
      %3766 = vmatpush.bf16.msra.mxu0 %v3754
      %3767 = vmatmul.bf16.gmra.mxu0 %v3757
      %v3768 = vpop.f32.mrf.mxu0
      %v3769 = vadd.f32 0.0, %v3768
      %v3770 = vpop.f32.mrf.mxu0
      %v3771 = vadd.f32 0.0, %v3770
      %3772 = vdwg.mxu0
      %v3775 = vunpack.c.l.b16 %v3396
      %v3776 = vunpack.c.l.b16 %v3397
      %v3777 = vpack.c.b16 %v3776, %v3775
      %3778 = vrot.lane.b32.xlu0 %v970, 48
      %v3779 = vpop.permute.xlu0 %3778
      %v3782 = vsel %vm567, %v3777, 0
      %3784 = vmatpush.bf16.msra.mxu0 0
      %3785 = vmatpush.bf16.msra.mxu0 0
      %3786 = vmatpush.bf16.msra.mxu0 0
      %3787 = vmatpush.bf16.msra.mxu0 0
      %3788 = vmatpush.bf16.msra.mxu0 0
      %3789 = vmatpush.bf16.msra.mxu0 0
      %3790 = vmatpush.bf16.msra.mxu0 0
      %3791 = vmatpush.bf16.msra.mxu0 %v3779
      %3792 = vmatmul.bf16.gmra.mxu0 %v3782
      %v3793 = vpop.f32.mrf.mxu0
      %v3794 = vadd.f32 0.0, %v3793
      %v3795 = vpop.f32.mrf.mxu0
      %v3796 = vadd.f32 0.0, %v3795
      %3797 = vdwg.mxu0
      %v3798 = vpack.c.bf16 %v3421, %v3419
      %v3799 = vpack.c.bf16 %v3446, %v3444
      %v3800 = vpack.c.bf16 %v3471, %v3469
      %v3801 = vpack.c.bf16 %v3496, %v3494
      %v3802 = vpack.c.bf16 %v3521, %v3519
      %v3803 = vpack.c.bf16 %v3546, %v3544
      %v3804 = vpack.c.bf16 %v3571, %v3569
      %v3805 = vpack.c.bf16 %v3596, %v3594
      %v3806 = vpack.c.bf16 %v3621, %v3619
      %v3807 = vpack.c.bf16 %v3646, %v3644
      %v3808 = vpack.c.bf16 %v3671, %v3669
      %v3809 = vpack.c.bf16 %v3696, %v3694
      %v3810 = vpack.c.bf16 %v3721, %v3719
      %v3811 = vpack.c.bf16 %v3746, %v3744
      %v3812 = vpack.c.bf16 %v3771, %v3769
      %v3813 = vpack.c.bf16 %v3796, %v3794
      %v3814 = vld [vmem:[%s4 + $0x8] sm:$0xf]
      %v3815 = vld [vmem:[%s4 + $0xc] sm:$0xf]
      %v3818 = vunpack.c.l.b16 %v3814
      %v3819 = vunpack.c.l.b16 %v3815
      %v3820 = vpack.c.b16 %v3819, %v3818
      %v3823 = vsel %vm567, %v3798, 0
      %v3826 = vsel %vm567, %v3799, 0
      %v3829 = vsel %vm567, %v3800, 0
      %v3832 = vsel %vm567, %v3801, 0
      %v3835 = vsel %vm567, %v3802, 0
      %v3838 = vsel %vm567, %v3803, 0
      %v3841 = vsel %vm567, %v3804, 0
      %v3844 = vsel %vm567, %v3805, 0
      %v3847 = vsel %vm567, %v3806, 0
      %v3850 = vsel %vm567, %v3807, 0
      %v3853 = vsel %vm567, %v3808, 0
      %v3856 = vsel %vm567, %v3809, 0
      %v3859 = vsel %vm567, %v3810, 0
      %v3862 = vsel %vm567, %v3811, 0
      %v3865 = vsel %vm567, %v3812, 0
      %v3868 = vsel %vm567, %v3813, 0
      %3870 = vmatpush.bf16.msra.mxu0 0
      %3871 = vmatpush.bf16.msra.mxu0 0
      %3872 = vmatpush.bf16.msra.mxu0 0
      %3873 = vmatpush.bf16.msra.mxu0 0
      %3874 = vmatpush.bf16.msra.mxu0 0
      %3875 = vmatpush.bf16.msra.mxu0 0
      %3876 = vmatpush.bf16.msra.mxu0 0
      %3877 = vmatpush.bf16.msra.mxu0 %v3820
      %3878 = vmatmul.bf16.gmra.mxu0 %v3823
      %v3879 = vpop.f32.mrf.mxu0
      %v3880 = vadd.f32 0.0, %v3879
      %v3881 = vpop.f32.mrf.mxu0
      %v3882 = vadd.f32 0.0, %v3881
      %3883 = vmatmul.bf16.gmra.mxu0 %v3826
      %v3884 = vpop.f32.mrf.mxu0
      %v3885 = vadd.f32 0.0, %v3884
      %v3886 = vpop.f32.mrf.mxu0
      %v3887 = vadd.f32 0.0, %v3886
      %3888 = vmatmul.bf16.gmra.mxu0 %v3829
      %v3889 = vpop.f32.mrf.mxu0
      %v3890 = vadd.f32 0.0, %v3889
      %v3891 = vpop.f32.mrf.mxu0
      %v3892 = vadd.f32 0.0, %v3891
      %3893 = vmatmul.bf16.gmra.mxu0 %v3832
      %v3894 = vpop.f32.mrf.mxu0
      %v3895 = vadd.f32 0.0, %v3894
      %v3896 = vpop.f32.mrf.mxu0
      %v3897 = vadd.f32 0.0, %v3896
      %3898 = vmatmul.bf16.gmra.mxu0 %v3835
      %v3899 = vpop.f32.mrf.mxu0
      %v3900 = vadd.f32 0.0, %v3899
      %v3901 = vpop.f32.mrf.mxu0
      %v3902 = vadd.f32 0.0, %v3901
      %3903 = vmatmul.bf16.gmra.mxu0 %v3838
      %v3904 = vpop.f32.mrf.mxu0
      %v3905 = vadd.f32 0.0, %v3904
      %v3906 = vpop.f32.mrf.mxu0
      %v3907 = vadd.f32 0.0, %v3906
      %3908 = vmatmul.bf16.gmra.mxu0 %v3841
      %v3909 = vpop.f32.mrf.mxu0
      %v3910 = vadd.f32 0.0, %v3909
      %v3911 = vpop.f32.mrf.mxu0
      %v3912 = vadd.f32 0.0, %v3911
      %3913 = vmatmul.bf16.gmra.mxu0 %v3844
      %v3914 = vpop.f32.mrf.mxu0
      %v3915 = vadd.f32 0.0, %v3914
      %v3916 = vpop.f32.mrf.mxu0
      %v3917 = vadd.f32 0.0, %v3916
      %3918 = vmatmul.bf16.gmra.mxu0 %v3847
      %v3919 = vpop.f32.mrf.mxu0
      %v3920 = vadd.f32 0.0, %v3919
      %v3921 = vpop.f32.mrf.mxu0
      %v3922 = vadd.f32 0.0, %v3921
      %3923 = vmatmul.bf16.gmra.mxu0 %v3850
      %v3924 = vpop.f32.mrf.mxu0
      %v3925 = vadd.f32 0.0, %v3924
      %v3926 = vpop.f32.mrf.mxu0
      %v3927 = vadd.f32 0.0, %v3926
      %3928 = vmatmul.bf16.gmra.mxu0 %v3853
      %v3929 = vpop.f32.mrf.mxu0
      %v3930 = vadd.f32 0.0, %v3929
      %v3931 = vpop.f32.mrf.mxu0
      %v3932 = vadd.f32 0.0, %v3931
      %3933 = vmatmul.bf16.gmra.mxu0 %v3856
      %v3934 = vpop.f32.mrf.mxu0
      %v3935 = vadd.f32 0.0, %v3934
      %v3936 = vpop.f32.mrf.mxu0
      %v3937 = vadd.f32 0.0, %v3936
      %3938 = vmatmul.bf16.gmra.mxu0 %v3859
      %v3939 = vpop.f32.mrf.mxu0
      %v3940 = vadd.f32 0.0, %v3939
      %v3941 = vpop.f32.mrf.mxu0
      %v3942 = vadd.f32 0.0, %v3941
      %3943 = vmatmul.bf16.gmra.mxu0 %v3862
      %v3944 = vpop.f32.mrf.mxu0
      %v3945 = vadd.f32 0.0, %v3944
      %v3946 = vpop.f32.mrf.mxu0
      %v3947 = vadd.f32 0.0, %v3946
      %3948 = vmatmul.bf16.gmra.mxu0 %v3865
      %v3949 = vpop.f32.mrf.mxu0
      %v3950 = vadd.f32 0.0, %v3949
      %v3951 = vpop.f32.mrf.mxu0
      %v3952 = vadd.f32 0.0, %v3951
      %3953 = vmatmul.bf16.gmra.mxu0 %v3868
      %v3954 = vpop.f32.mrf.mxu0
      %v3955 = vadd.f32 0.0, %v3954
      %v3956 = vpop.f32.mrf.mxu0
      %v3957 = vadd.f32 0.0, %v3956
      %3958 = vdwg.mxu0
      %v3961 = vunpack.c.l.b16 %v2209
      %v3962 = vunpack.c.l.b16 %v2210
      %v3963 = vpack.c.b16 %v3962, %v3961
      %v3966 = vsel %vm567, %v2193, 0
      %v3969 = vsel %vm567, %v2194, 0
      %v3972 = vsel %vm567, %v2195, 0
      %v3975 = vsel %vm567, %v2196, 0
      %v3978 = vsel %vm567, %v2197, 0
      %v3981 = vsel %vm567, %v2198, 0
      %v3984 = vsel %vm567, %v2199, 0
      %v3987 = vsel %vm567, %v2200, 0
      %v3990 = vsel %vm567, %v2201, 0
      %v3993 = vsel %vm567, %v2202, 0
      %v3996 = vsel %vm567, %v2203, 0
      %v3999 = vsel %vm567, %v2204, 0
      %v4002 = vsel %vm567, %v2205, 0
      %v4005 = vsel %vm567, %v2206, 0
      %v4008 = vsel %vm567, %v2207, 0
      %v4011 = vsel %vm567, %v2208, 0
      %4013 = vmatpush.bf16.msra.mxu0 0
      %4014 = vmatpush.bf16.msra.mxu0 0
      %4015 = vmatpush.bf16.msra.mxu0 0
      %4016 = vmatpush.bf16.msra.mxu0 0
      %4017 = vmatpush.bf16.msra.mxu0 0
      %4018 = vmatpush.bf16.msra.mxu0 0
      %4019 = vmatpush.bf16.msra.mxu0 0
      %4020 = vmatpush.bf16.msra.mxu0 %v3963
      %4021 = vmatmul.bf16.gmra.mxu0 %v3966
      %v4022 = vpop.f32.mrf.mxu0
      %v4023 = vadd.f32 %v3880, %v4022
      %v4024 = vpop.f32.mrf.mxu0
      %v4025 = vadd.f32 %v3882, %v4024
      %4026 = vmatmul.bf16.gmra.mxu0 %v3969
      %v4027 = vpop.f32.mrf.mxu0
      %v4028 = vadd.f32 %v3885, %v4027
      %v4029 = vpop.f32.mrf.mxu0
      %v4030 = vadd.f32 %v3887, %v4029
      %4031 = vmatmul.bf16.gmra.mxu0 %v3972
      %v4032 = vpop.f32.mrf.mxu0
      %v4033 = vadd.f32 %v3890, %v4032
      %v4034 = vpop.f32.mrf.mxu0
      %v4035 = vadd.f32 %v3892, %v4034
      %4036 = vmatmul.bf16.gmra.mxu0 %v3975
      %v4037 = vpop.f32.mrf.mxu0
      %v4038 = vadd.f32 %v3895, %v4037
      %v4039 = vpop.f32.mrf.mxu0
      %v4040 = vadd.f32 %v3897, %v4039
      %4041 = vmatmul.bf16.gmra.mxu0 %v3978
      %v4042 = vpop.f32.mrf.mxu0
      %v4043 = vadd.f32 %v3900, %v4042
      %v4044 = vpop.f32.mrf.mxu0
      %v4045 = vadd.f32 %v3902, %v4044
      %4046 = vmatmul.bf16.gmra.mxu0 %v3981
      %v4047 = vpop.f32.mrf.mxu0
      %v4048 = vadd.f32 %v3905, %v4047
      %v4049 = vpop.f32.mrf.mxu0
      %v4050 = vadd.f32 %v3907, %v4049
      %4051 = vmatmul.bf16.gmra.mxu0 %v3984
      %v4052 = vpop.f32.mrf.mxu0
      %v4053 = vadd.f32 %v3910, %v4052
      %v4054 = vpop.f32.mrf.mxu0
      %v4055 = vadd.f32 %v3912, %v4054
      %4056 = vmatmul.bf16.gmra.mxu0 %v3987
      %v4057 = vpop.f32.mrf.mxu0
      %v4058 = vadd.f32 %v3915, %v4057
      %v4059 = vpop.f32.mrf.mxu0
      %v4060 = vadd.f32 %v3917, %v4059
      %4061 = vmatmul.bf16.gmra.mxu0 %v3990
      %v4062 = vpop.f32.mrf.mxu0
      %v4063 = vadd.f32 %v3920, %v4062
      %v4064 = vpop.f32.mrf.mxu0
      %v4065 = vadd.f32 %v3922, %v4064
      %4066 = vmatmul.bf16.gmra.mxu0 %v3993
      %v4067 = vpop.f32.mrf.mxu0
      %v4068 = vadd.f32 %v3925, %v4067
      %v4069 = vpop.f32.mrf.mxu0
      %v4070 = vadd.f32 %v3927, %v4069
      %4071 = vmatmul.bf16.gmra.mxu0 %v3996
      %v4072 = vpop.f32.mrf.mxu0
      %v4073 = vadd.f32 %v3930, %v4072
      %v4074 = vpop.f32.mrf.mxu0
      %v4075 = vadd.f32 %v3932, %v4074
      %4076 = vmatmul.bf16.gmra.mxu0 %v3999
      %v4077 = vpop.f32.mrf.mxu0
      %v4078 = vadd.f32 %v3935, %v4077
      %v4079 = vpop.f32.mrf.mxu0
      %v4080 = vadd.f32 %v3937, %v4079
      %4081 = vmatmul.bf16.gmra.mxu0 %v4002
      %v4082 = vpop.f32.mrf.mxu0
      %v4083 = vadd.f32 %v3940, %v4082
      %v4084 = vpop.f32.mrf.mxu0
      %v4085 = vadd.f32 %v3942, %v4084
      %4086 = vmatmul.bf16.gmra.mxu0 %v4005
      %v4087 = vpop.f32.mrf.mxu0
      %v4088 = vadd.f32 %v3945, %v4087
      %v4089 = vpop.f32.mrf.mxu0
      %v4090 = vadd.f32 %v3947, %v4089
      %4091 = vmatmul.bf16.gmra.mxu0 %v4008
      %v4092 = vpop.f32.mrf.mxu0
      %v4093 = vadd.f32 %v3950, %v4092
      %v4094 = vpop.f32.mrf.mxu0
      %v4095 = vadd.f32 %v3952, %v4094
      %4096 = vmatmul.bf16.gmra.mxu0 %v4011
      %v4097 = vpop.f32.mrf.mxu0
      %v4098 = vadd.f32 %v3955, %v4097
      %v4099 = vpop.f32.mrf.mxu0
      %v4100 = vadd.f32 %v3957, %v4099
      %4101 = vdwg.mxu0
      %v4102 = vld [vmem:[%s5] sm:$0x1]
      %v4104 = vperm.slane %v4102, 0
      %v4106 = vadd.f32 %v4023, %v4104
      %v4107 = vadd.f32 %v4025, %v4104
      %v4108 = vadd.f32 %v4028, %v4104
      %v4109 = vadd.f32 %v4030, %v4104
      %v4110 = vadd.f32 %v4033, %v4104
      %v4111 = vadd.f32 %v4035, %v4104
      %v4112 = vadd.f32 %v4038, %v4104
      %v4113 = vadd.f32 %v4040, %v4104
      %v4114 = vadd.f32 %v4043, %v4104
      %v4115 = vadd.f32 %v4045, %v4104
      %v4116 = vadd.f32 %v4048, %v4104
      %v4117 = vadd.f32 %v4050, %v4104
      %v4118 = vadd.f32 %v4053, %v4104
      %v4119 = vadd.f32 %v4055, %v4104
      %v4120 = vadd.f32 %v4058, %v4104
      %v4121 = vadd.f32 %v4060, %v4104
      %v4122 = vadd.f32 %v4063, %v4104
      %v4123 = vadd.f32 %v4065, %v4104
      %v4124 = vadd.f32 %v4068, %v4104
      %v4125 = vadd.f32 %v4070, %v4104
      %v4126 = vadd.f32 %v4073, %v4104
      %v4127 = vadd.f32 %v4075, %v4104
      %v4128 = vadd.f32 %v4078, %v4104
      %v4129 = vadd.f32 %v4080, %v4104
      %v4130 = vadd.f32 %v4083, %v4104
      %v4131 = vadd.f32 %v4085, %v4104
      %v4132 = vadd.f32 %v4088, %v4104
      %v4133 = vadd.f32 %v4090, %v4104
      %v4134 = vadd.f32 %v4093, %v4104
      %v4135 = vadd.f32 %v4095, %v4104
      %v4136 = vadd.f32 %v4098, %v4104
      %v4137 = vadd.f32 %v4100, %v4104
      %4138 = vst.msk [vmem:[%s253] sm:$0xff] %vm388, %v4106
      %4139 = vst.msk [vmem:[%s253 + $0x8] sm:$0xff] %vm388, %v4107
      %4140 = vst.msk [vmem:[%s253 + $0x10] sm:$0xff] %vm388, %v4108
      %4141 = vst.msk [vmem:[%s253 + $0x18] sm:$0xff] %vm388, %v4109
      %4142 = vst.msk [vmem:[%s253 + $0x20] sm:$0xff] %vm388, %v4110
      %4143 = vst.msk [vmem:[%s253 + $0x28] sm:$0xff] %vm388, %v4111
      %4144 = vst.msk [vmem:[%s253 + $0x30] sm:$0xff] %vm388, %v4112
      %4145 = vst.msk [vmem:[%s253 + $0x38] sm:$0xff] %vm388, %v4113
      %4146 = vst.msk [vmem:[%s253 + $0x40] sm:$0xff] %vm388, %v4114
      %4147 = vst.msk [vmem:[%s253 + $0x48] sm:$0xff] %vm388, %v4115
      %4148 = vst.msk [vmem:[%s253 + $0x50] sm:$0xff] %vm388, %v4116
      %4149 = vst.msk [vmem:[%s253 + $0x58] sm:$0xff] %vm388, %v4117
      %4150 = vst.msk [vmem:[%s253 + $0x60] sm:$0xff] %vm388, %v4118
      %4151 = vst.msk [vmem:[%s253 + $0x68] sm:$0xff] %vm388, %v4119
      %4152 = vst.msk [vmem:[%s253 + $0x70] sm:$0xff] %vm388, %v4120
      %4153 = vst.msk [vmem:[%s253 + $0x78] sm:$0xff] %vm388, %v4121
      %4154 = vst.msk [vmem:[%s253 + $0x80] sm:$0xff] %vm388, %v4122
      %4155 = vst.msk [vmem:[%s253 + $0x88] sm:$0xff] %vm388, %v4123
      %4156 = vst.msk [vmem:[%s253 + $0x90] sm:$0xff] %vm388, %v4124
      %4157 = vst.msk [vmem:[%s253 + $0x98] sm:$0xff] %vm388, %v4125
      %4158 = vst.msk [vmem:[%s253 + $0xa0] sm:$0xff] %vm388, %v4126
      %4159 = vst.msk [vmem:[%s253 + $0xa8] sm:$0xff] %vm388, %v4127
      %4160 = vst.msk [vmem:[%s253 + $0xb0] sm:$0xff] %vm388, %v4128
      %4161 = vst.msk [vmem:[%s253 + $0xb8] sm:$0xff] %vm388, %v4129
      %4162 = vst.msk [vmem:[%s253 + $0xc0] sm:$0xff] %vm388, %v4130
      %4163 = vst.msk [vmem:[%s253 + $0xc8] sm:$0xff] %vm388, %v4131
      %4164 = vst.msk [vmem:[%s253 + $0xd0] sm:$0xff] %vm388, %v4132
      %4165 = vst.msk [vmem:[%s253 + $0xd8] sm:$0xff] %vm388, %v4133
      %4166 = vst.msk [vmem:[%s253 + $0xe0] sm:$0xff] %vm388, %v4134
      %4167 = vst.msk [vmem:[%s253 + $0xe8] sm:$0xff] %vm388, %v4135
      %4168 = vst.msk [vmem:[%s253 + $0xf0] sm:$0xff] %vm388, %v4136
      %4169 = vst.msk [vmem:[%s253 + $0xf8] sm:$0xff] %vm388, %v4137
      %s4170 = smul.u32 32, %s17
      %p4171 = scmp.lt.s32.totalorder %s4170, 127
      %s4172 = scalar_select %p4171, %s4170, 127
      %s4173 = smul.addr %s4172, 8
      %s4174 = scalar_lea.vmem %s6, %s4173
      // Predicated region
      $region45: #{tpu_custom_call.1} parent=43 // pred_check
        %p4175 = pneg %p166
      $region46: #{tpu_custom_call.1} parent=43 // pred_check_branch
        %4177 = sbr.rel (%p4175) target = $region48
      $region47: #{tpu_custom_call.1} parent=43 // pred_region
        %s4178 = smul.u32 32, %s17
      $region48: #{tpu_custom_call.1} parent=43 // pred_fallthru
        _
    $region44: #{tpu_custom_call.1} parent=5 // pred_fallthru
      _
    %p4179 = scmp.le.s32.totalorder 2, %s12
    // Predicated region
    $region49: #{tpu_custom_call.1} parent=5 // pred_check
      %p4180 = pneg %p4179
    $region50: #{tpu_custom_call.1} parent=5 // pred_check_branch
      %4182 = sbr.rel (%p4180) target = $region52
    $region51: #{tpu_custom_call.1} parent=5 // pred_region
      %s4183 = ssub.s32 %s12, 2
      // Predicated region
      $region53: #{tpu_custom_call.1} parent=51 // pred_check
        %p4184 = pneg %p172
      $region54: #{tpu_custom_call.1} parent=51 // pred_check_branch
        %4186 = sbr.rel (%p4184) target = $region56
      $region55: #{tpu_custom_call.1} parent=51 // pred_region
        %s4187 = smul.u32 32, %s18
        %p4188 = scmp.lt.s32.totalorder %s4187, 127
        %s4189 = scalar_select %p4188, %s4187, 127
        %s4190 = smul.addr %s4189, 8
        %s4191 = scalar_lea.vmem %s6, %s4190
      $region56: #{tpu_custom_call.1} parent=51 // pred_fallthru
        _
    $region52: #{tpu_custom_call.1} parent=5 // pred_fallthru
      _
  $region6: #{tpu_custom_call.1} parent=0 // loop_footer
    %s16 = sadd.s32 1, %s12
  $region7: #{tpu_custom_call.1} parent=0 // loop_footer_branch
    %11 = sbr.rel target = $region3
  $region8: #{tpu_custom_call.1} parent=0 // loop_exit
    _

// kernel: tpu_custom_call.1
$region0: #{tpu_custom_call.1}
  #allocation0 [shape = 'u32[]', space=smem, size = 0x4, offset = 0x4, fixed_abs, tag = 'smem constant byte address 0x4 - core index']
  #allocation1 [shape = 'u32[72,128]{1,0:T(1,128)}', space=vmem, size = 0x9000, scoped, tag = 'internal scratch']
  %s0 = inlined_call_operand.vmem [shape: bf16[1024,32], index: 0, kind: input, shape index: {}]
  %s1 = inlined_call_operand.vmem [shape: bf16[32,96], index: 1, kind: input, shape index: {}]
  %s2 = inlined_call_operand.vmem [shape: f32[1,96], index: 2, kind: input, shape index: {}]
  %s3 = inlined_call_operand.vmem [shape: f32[2,16,16], index: 3, kind: input, shape index: {}]
  %s4 = inlined_call_operand.vmem [shape: bf16[32,32], index: 4, kind: input, shape index: {}]
  %s5 = inlined_call_operand.vmem [shape: f32[1,32], index: 5, kind: input, shape index: {}]
  %s6 = inlined_call_operand.vmem [shape: f32[1024,32], index: 6, kind: output, shape index: {}]
  %s7 = sld [smem:[#allocation0]]
  $region57: #{tpu_custom_call.1} parent=0
    _
  %s9 = ssub.s32 1, %s7
  %s10 = scalar_select 0, %s9, %s7
  loop: start=0, step=1, limit=6
  $region2: #{tpu_custom_call.1} parent=0 // loop_pre_header
    _
  $region3: #{tpu_custom_call.1} parent=0 // loop_header
    %s12 = sphi 0, %s16
    %p13 = scmp.ge.s32.totalorder %s12, 6
    %s22 = sphi 0, %s24
    %s25 = sphi 0, %s22
    %s26 = sphi 0, %s25
    %s42 = sphi 0, %s26
    %s46 = sphi 0, %s46
    %s48 = sphi 0, %s46
    %s49 = sphi 0, %s48
    %s63 = sphi 0, %s49
    %s67 = sphi 0, %s67
    %s69 = sphi 0, %s67
    %s70 = sphi 0, %s69
    %s84 = sphi 0, %s70
    %s88 = sphi 0, %s88
    %s90 = sphi 0, %s88
    %s91 = sphi 0, %s90
    %s105 = sphi 0, %s91
    %s109 = sphi 0, %s109
    %s111 = sphi 0, %s109
    %s112 = sphi 0, %s111
    %s126 = sphi 0, %s112
    %s130 = sphi 0, %s130
    %s132 = sphi 0, %s130
    %s133 = sphi 0, %s132
    %s147 = sphi 0, %s133
    %s153 = sphi 0, %s155
    %s156 = sphi 0, %s153
    %s157 = sphi 0, %s156
    %s173 = sphi 0, %s157
  $region4: #{tpu_custom_call.1} parent=0 // loop_header_branch
    %15 = sbr.rel (%p13) target = $region8
  $region5: #{tpu_custom_call.1} parent=0 // loop_body
    %s17 = ssub.s32 %s12, 1
    %s18 = ssub.s32 %s12, 2
    %s19 = sadd.s32 %s12, 1
    %s20 = ssub.s32 %s12, %s19
    %p21 = scmp.eq.s32.totalorder %s20, 0
    %s23 = sadd.s32 %s22, 1
    %s24 = scalar_select %p21, %s22, %s23
    %p27 = pneg %p21
    %p28 = scmp.eq.s32.totalorder %s12, 3
    %p29 = por %p27, %p28
    %p30 = scmp.ne.s32.totalorder %s22, %s25
    %p31 = scmp.eq.s32.totalorder %s12, 0
    %p32 = por %p30, %p31
    %p33 = scmp.ne.s32.totalorder %s22, %s25
    %p34 = scmp.eq.s32.totalorder %s17, 3
    %p35 = por %p33, %p34
    %p36 = scmp.ne.s32.totalorder %s25, %s26
    %p37 = scmp.eq.s32.totalorder %s17, 0
    %p38 = por %p36, %p37
    %p39 = scmp.ne.s32.totalorder %s25, %s26
    %p40 = scmp.eq.s32.totalorder %s18, 3
    %p41 = por %p39, %p40
    %p43 = scmp.ne.s32.totalorder %s26, %s42
    %p44 = scmp.eq.s32.totalorder %s18, 0
    %p45 = por %p43, %p44
    %s47 = sadd.s32 %s46, 1
    %p50 = scmp.eq.s32.totalorder %s12, 3
    %p51 = scmp.ne.s32.totalorder %s46, %s48
    %p52 = scmp.eq.s32.totalorder %s12, 0
    %p53 = por %p51, %p52
    %p54 = scmp.ne.s32.totalorder %s46, %s48
    %p55 = scmp.eq.s32.totalorder %s17, 3
    %p56 = por %p54, %p55
    %p57 = scmp.ne.s32.totalorder %s48, %s49
    %p58 = scmp.eq.s32.totalorder %s17, 0
    %p59 = por %p57, %p58
    %p60 = scmp.ne.s32.totalorder %s48, %s49
    %p61 = scmp.eq.s32.totalorder %s18, 3
    %p62 = por %p60, %p61
    %p64 = scmp.ne.s32.totalorder %s49, %s63
    %p65 = scmp.eq.s32.totalorder %s18, 0
    %p66 = por %p64, %p65
    %s68 = sadd.s32 %s67, 1
    %p71 = scmp.eq.s32.totalorder %s12, 3
    %p72 = scmp.ne.s32.totalorder %s67, %s69
    %p73 = scmp.eq.s32.totalorder %s12, 0
    %p74 = por %p72, %p73
    %p75 = scmp.ne.s32.totalorder %s67, %s69
    %p76 = scmp.eq.s32.totalorder %s17, 3
    %p77 = por %p75, %p76
    %p78 = scmp.ne.s32.totalorder %s69, %s70
    %p79 = scmp.eq.s32.totalorder %s17, 0
    %p80 = por %p78, %p79
    %p81 = scmp.ne.s32.totalorder %s69, %s70
    %p82 = scmp.eq.s32.totalorder %s18, 3
    %p83 = por %p81, %p82
    %p85 = scmp.ne.s32.totalorder %s70, %s84
    %p86 = scmp.eq.s32.totalorder %s18, 0
    %p87 = por %p85, %p86
    %s89 = sadd.s32 %s88, 1
    %p92 = scmp.eq.s32.totalorder %s12, 3
    %p93 = scmp.ne.s32.totalorder %s88, %s90
    %p94 = scmp.eq.s32.totalorder %s12, 0
    %p95 = por %p93, %p94
    %p96 = scmp.ne.s32.totalorder %s88, %s90
    %p97 = scmp.eq.s32.totalorder %s17, 3
    %p98 = por %p96, %p97
    %p99 = scmp.ne.s32.totalorder %s90, %s91
    %p100 = scmp.eq.s32.totalorder %s17, 0
    %p101 = por %p99, %p100
    %p102 = scmp.ne.s32.totalorder %s90, %s91
    %p103 = scmp.eq.s32.totalorder %s18, 3
    %p104 = por %p102, %p103
    %p106 = scmp.ne.s32.totalorder %s91, %s105
    %p107 = scmp.eq.s32.totalorder %s18, 0
    %p108 = por %p106, %p107
    %s110 = sadd.s32 %s109, 1
    %p113 = scmp.eq.s32.totalorder %s12, 3
    %p114 = scmp.ne.s32.totalorder %s109, %s111
    %p115 = scmp.eq.s32.totalorder %s12, 0
    %p116 = por %p114, %p115
    %p117 = scmp.ne.s32.totalorder %s109, %s111
    %p118 = scmp.eq.s32.totalorder %s17, 3
    %p119 = por %p117, %p118
    %p120 = scmp.ne.s32.totalorder %s111, %s112
    %p121 = scmp.eq.s32.totalorder %s17, 0
    %p122 = por %p120, %p121
    %p123 = scmp.ne.s32.totalorder %s111, %s112
    %p124 = scmp.eq.s32.totalorder %s18, 3
    %p125 = por %p123, %p124
    %p127 = scmp.ne.s32.totalorder %s112, %s126
    %p128 = scmp.eq.s32.totalorder %s18, 0
    %p129 = por %p127, %p128
    %s131 = sadd.s32 %s130, 1
    %p134 = scmp.eq.s32.totalorder %s12, 3
    %p135 = scmp.ne.s32.totalorder %s130, %s132
    %p136 = scmp.eq.s32.totalorder %s12, 0
    %p137 = por %p135, %p136
    %p138 = scmp.ne.s32.totalorder %s130, %s132
    %p139 = scmp.eq.s32.totalorder %s17, 3
    %p140 = por %p138, %p139
    %p141 = scmp.ne.s32.totalorder %s132, %s133
    %p142 = scmp.eq.s32.totalorder %s17, 0
    %p143 = por %p141, %p142
    %p144 = scmp.ne.s32.totalorder %s132, %s133
    %p145 = scmp.eq.s32.totalorder %s18, 3
    %p146 = por %p144, %p145
    %p148 = scmp.ne.s32.totalorder %s133, %s147
    %p149 = scmp.eq.s32.totalorder %s18, 0
    %p150 = por %p148, %p149
    %s151 = ssub.s32 %s12, %s19
    %p152 = scmp.eq.s32.totalorder %s151, 0
    %s154 = sadd.s32 %s153, 1
    %s155 = scalar_select %p152, %s153, %s154
    %p158 = pneg %p152
    %p159 = scmp.eq.s32.totalorder %s12, 3
    %p160 = por %p158, %p159
    %p161 = scmp.ne.s32.totalorder %s153, %s156
    %p162 = scmp.eq.s32.totalorder %s12, 0
    %p163 = por %p161, %p162
    %p164 = scmp.ne.s32.totalorder %s153, %s156
    %p165 = scmp.eq.s32.totalorder %s17, 3
    %p166 = por %p164, %p165
    %p167 = scmp.ne.s32.totalorder %s156, %s157
    %p168 = scmp.eq.s32.totalorder %s17, 0
    %p169 = por %p167, %p168
    %p170 = scmp.ne.s32.totalorder %s156, %s157
    %p171 = scmp.eq.s32.totalorder %s18, 3
    %p172 = por %p170, %p171
    %p174 = scmp.ne.s32.totalorder %s157, %s173
    %p175 = scmp.eq.s32.totalorder %s18, 0
    %p176 = por %p174, %p175
    %p177 = scmp.le.s32.totalorder 1, %s12
    %p178 = scmp.lt.s32.totalorder %s12, 5
    %p179 = pnand %p177, %p178
    %p180 = pneg %p179
    // Predicated region
    $region9: #{tpu_custom_call.1} parent=5 // pred_check
      _
    $region10: #{tpu_custom_call.1} parent=5 // pred_check_branch
      %182 = sbr.rel (%p179) target = $region12
    $region11: #{tpu_custom_call.1} parent=5 // pred_region
      %s183 = ssub.s32 %s12, 1
      // Predicated region
      $region13: #{tpu_custom_call.1} parent=11 // pred_check
        %p184 = pneg %p59
      $region14: #{tpu_custom_call.1} parent=11 // pred_check_branch
        %186 = sbr.rel (%p184) target = $region16
      $region15: #{tpu_custom_call.1} parent=11 // pred_region
        _
      $region16: #{tpu_custom_call.1} parent=11 // pred_fallthru
        _
      // Predicated region
      $region17: #{tpu_custom_call.1} parent=11 // pred_check
        %p187 = pneg %p80
      $region18: #{tpu_custom_call.1} parent=11 // pred_check_branch
        %189 = sbr.rel (%p187) target = $region20
      $region19: #{tpu_custom_call.1} parent=11 // pred_region
        _
      $region20: #{tpu_custom_call.1} parent=11 // pred_fallthru
        _
      // Predicated region
      $region21: #{tpu_custom_call.1} parent=11 // pred_check
        %p190 = pneg %p101
      $region22: #{tpu_custom_call.1} parent=11 // pred_check_branch
        %192 = sbr.rel (%p190) target = $region24
      $region23: #{tpu_custom_call.1} parent=11 // pred_region
        _
      $region24: #{tpu_custom_call.1} parent=11 // pred_fallthru
        _
      // Predicated region
      $region25: #{tpu_custom_call.1} parent=11 // pred_check
        %p193 = pneg %p122
      $region26: #{tpu_custom_call.1} parent=11 // pred_check_branch
        %195 = sbr.rel (%p193) target = $region28
      $region27: #{tpu_custom_call.1} parent=11 // pred_region
        _
      $region28: #{tpu_custom_call.1} parent=11 // pred_fallthru
        _
      // Predicated region
      $region29: #{tpu_custom_call.1} parent=11 // pred_check
        %p196 = pneg %p143
      $region30: #{tpu_custom_call.1} parent=11 // pred_check_branch
        %198 = sbr.rel (%p196) target = $region32
      $region31: #{tpu_custom_call.1} parent=11 // pred_region
        _
      $region32: #{tpu_custom_call.1} parent=11 // pred_fallthru
        _
    $region12: #{tpu_custom_call.1} parent=5 // pred_fallthru
      _
    %p199 = scmp.lt.s32.totalorder %s12, 4
    // Predicated region
    $region33: #{tpu_custom_call.1} parent=5 // pred_check
      %p200 = pneg %p199
    $region34: #{tpu_custom_call.1} parent=5 // pred_check_branch
      %202 = sbr.rel (%p200) target = $region36
    $region35: #{tpu_custom_call.1} parent=5 // pred_region
      // Predicated region
      $region37: #{tpu_custom_call.1} parent=35 // pred_check
        %p203 = pneg %p32
      $region38: #{tpu_custom_call.1} parent=35 // pred_check_branch
        %205 = sbr.rel (%p203) target = $region40
      $region39: #{tpu_custom_call.1} parent=35 // pred_region
        %s206 = smul.u32 32, %s12
        %p207 = scmp.lt.s32.totalorder %s206, 127
        %s208 = scalar_select %p207, %s206, 127
        %s209 = smul.addr %s208, 4
        %s210 = scalar_lea.vmem %s0, %s209
        %s211 = smul.u32 32, %s12
      $region40: #{tpu_custom_call.1} parent=35 // pred_fallthru
        _
    $region36: #{tpu_custom_call.1} parent=5 // pred_fallthru
      _
    %p212 = scmp.le.s32.totalorder 1, %s12
    %p213 = scmp.lt.s32.totalorder %s12, 5
    %p214 = pnand %p212, %p213
    %p215 = pneg %p214
    // Predicated region
    $region41: #{tpu_custom_call.1} parent=5 // pred_check
      _
    $region42: #{tpu_custom_call.1} parent=5 // pred_check_branch
      %217 = sbr.rel (%p214) target = $region44
    $region43: #{tpu_custom_call.1} parent=5 // pred_region
      %s218 = ssub.s32 %s12, 1
      %s219 = smul.u32 32, %s17
      %p220 = scmp.lt.s32.totalorder %s219, 127
      %s221 = scalar_select %p220, %s219, 127
      %s222 = smul.addr %s221, 4
      %s223 = scalar_lea.vmem %s0, %s222
      %p224 = pneg %p38
      %p225 = pneg %p35
      %p226 = pneg %p59
      %p227 = pneg %p56
      %p228 = pneg %p80
      %p229 = pneg %p77
      %p230 = pneg %p101
      %p231 = pneg %p98
      %p232 = pneg %p122
      %p233 = pneg %p119
      %p234 = pneg %p143
      %p235 = pneg %p140
      %p236 = pneg %p169
      %p237 = pneg %p166
      %s238 = smul.u32 32, %s17
      %p239 = scmp.lt.s32.totalorder %s238, 127
      %s240 = scalar_select %p239, %s238, 127
      %s241 = smul.addr %s240, 8
      %s242 = scalar_lea.vmem %s6, %s241
      %s243 = smul.u32 32, %s17
      %p244 = scmp.lt.s32.totalorder %s243, 127
      %s245 = scalar_select %p244, %s243, 127
      %s246 = smul.addr %s245, 4
      %s247 = scalar_lea.vmem %s0, %s246
      %s248 = smul.u32 32, %s17
      %s249 = smul.u32 32, %s17
      %p250 = scmp.lt.s32.totalorder %s249, 127
      %s251 = scalar_select %p250, %s249, 127
      %s252 = smul.addr %s251, 8
      %s253 = scalar_lea.vmem %s6, %s252
      %s254 = smul.u32 32, %s17
      %v256 = vld [vmem:[%s247] sm:$0xf]
      %v257 = vld [vmem:[%s247 + $0x4] sm:$0xf]
      %v258 = vld [vmem:[%s247 + $0x8] sm:$0xf]
      %v259 = vld [vmem:[%s247 + $0xc] sm:$0xf]
      %v260 = vld [vmem:[%s247 + $0x10] sm:$0xf]
      %v261 = vld [vmem:[%s247 + $0x14] sm:$0xf]
      %v262 = vld [vmem:[%s247 + $0x18] sm:$0xf]
      %v263 = vld [vmem:[%s247 + $0x1c] sm:$0xf]
      %v264 = vld [vmem:[%s247 + $0x20] sm:$0xf]
      %v265 = vld [vmem:[%s247 + $0x24] sm:$0xf]
      %v266 = vld [vmem:[%s247 + $0x28] sm:$0xf]
      %v267 = vld [vmem:[%s247 + $0x2c] sm:$0xf]
      %v268 = vld [vmem:[%s247 + $0x30] sm:$0xf]
      %v269 = vld [vmem:[%s247 + $0x34] sm:$0xf]
      %v270 = vld [vmem:[%s247 + $0x38] sm:$0xf]
      %v271 = vld [vmem:[%s247 + $0x3c] sm:$0xf]
      %v272 = vld [vmem:[%s247 + $0x40] sm:$0xf]
      %v273 = vld [vmem:[%s247 + $0x44] sm:$0xf]
      %v274 = vld [vmem:[%s247 + $0x48] sm:$0xf]
      %v275 = vld [vmem:[%s247 + $0x4c] sm:$0xf]
      %v276 = vld [vmem:[%s247 + $0x50] sm:$0xf]
      %v277 = vld [vmem:[%s247 + $0x54] sm:$0xf]
      %v278 = vld [vmem:[%s247 + $0x58] sm:$0xf]
      %v279 = vld [vmem:[%s247 + $0x5c] sm:$0xf]
      %v280 = vld [vmem:[%s247 + $0x60] sm:$0xf]
      %v281 = vld [vmem:[%s247 + $0x64] sm:$0xf]
      %v282 = vld [vmem:[%s247 + $0x68] sm:$0xf]
      %v283 = vld [vmem:[%s247 + $0x6c] sm:$0xf]
      %v284 = vld [vmem:[%s247 + $0x70] sm:$0xf]
      %v285 = vld [vmem:[%s247 + $0x74] sm:$0xf]
      %v286 = vld [vmem:[%s247 + $0x78] sm:$0xf]
      %v287 = vld [vmem:[%s247 + $0x7c] sm:$0xf]
      %v288 = vld [vmem:[%s1] sm:$0xf]
      %v289 = vld [vmem:[%s1 + $0x4] sm:$0xf]
      %v290 = vld [vmem:[%s1 + $0x8] sm:$0xf]
      %v291 = vld [vmem:[%s1 + $0xc] sm:$0xf]
      %v292 = vld [vmem:[%s2] sm:$0x1]
      %v294 = vperm.slane %v292, 0
      %v328 = vunpack.c.l.b16 %v256
      %v329 = vunpack.c.l.b16 %v257
      %v330 = vunpack.c.l.b16 %v258
      %v331 = vunpack.c.l.b16 %v259
      %v332 = vunpack.c.l.b16 %v260
      %v333 = vunpack.c.l.b16 %v261
      %v334 = vunpack.c.l.b16 %v262
      %v335 = vunpack.c.l.b16 %v263
      %v336 = vunpack.c.l.b16 %v264
      %v337 = vunpack.c.l.b16 %v265
      %v338 = vunpack.c.l.b16 %v266
      %v339 = vunpack.c.l.b16 %v267
      %v340 = vunpack.c.l.b16 %v268
      %v341 = vunpack.c.l.b16 %v269
      %v342 = vunpack.c.l.b16 %v270
      %v343 = vunpack.c.l.b16 %v271
      %v344 = vunpack.c.l.b16 %v272
      %v345 = vunpack.c.l.b16 %v273
      %v346 = vunpack.c.l.b16 %v274
      %v347 = vunpack.c.l.b16 %v275
      %v348 = vunpack.c.l.b16 %v276
      %v349 = vunpack.c.l.b16 %v277
      %v350 = vunpack.c.l.b16 %v278
      %v351 = vunpack.c.l.b16 %v279
      %v352 = vunpack.c.l.b16 %v280
      %v353 = vunpack.c.l.b16 %v281
      %v354 = vunpack.c.l.b16 %v282
      %v355 = vunpack.c.l.b16 %v283
      %v356 = vunpack.c.l.b16 %v284
      %v357 = vunpack.c.l.b16 %v285
      %v358 = vunpack.c.l.b16 %v286
      %v359 = vunpack.c.l.b16 %v287
      %v360 = vpack.c.b16 %v329, %v328
      %v361 = vpack.c.b16 %v331, %v330
      %v362 = vpack.c.b16 %v333, %v332
      %v363 = vpack.c.b16 %v335, %v334
      %v364 = vpack.c.b16 %v337, %v336
      %v365 = vpack.c.b16 %v339, %v338
      %v366 = vpack.c.b16 %v341, %v340
      %v367 = vpack.c.b16 %v343, %v342
      %v368 = vpack.c.b16 %v345, %v344
      %v369 = vpack.c.b16 %v347, %v346
      %v370 = vpack.c.b16 %v349, %v348
      %v371 = vpack.c.b16 %v351, %v350
      %v372 = vpack.c.b16 %v353, %v352
      %v373 = vpack.c.b16 %v355, %v354
      %v374 = vpack.c.b16 %v357, %v356
      %v375 = vpack.c.b16 %v359, %v358
      %v380 = vunpack.c.l.b16 %v288
      %v381 = vunpack.c.l.b16 %v289
      %v382 = vunpack.c.l.b16 %v290
      %v383 = vunpack.c.l.b16 %v291
      %v384 = vpack.c.b16 %v381, %v380
      %v385 = vpack.c.b16 %v383, %v382
      %vm388 = vcmask 261120
      %v390 = vsel %vm388, %v360, 0
      %v393 = vsel %vm388, %v361, 0
      %v396 = vsel %vm388, %v362, 0
      %v399 = vsel %vm388, %v363, 0
      %v402 = vsel %vm388, %v364, 0
      %v405 = vsel %vm388, %v365, 0
      %v408 = vsel %vm388, %v366, 0
      %v411 = vsel %vm388, %v367, 0
      %v414 = vsel %vm388, %v368, 0
      %v417 = vsel %vm388, %v369, 0
      %v420 = vsel %vm388, %v370, 0
      %v423 = vsel %vm388, %v371, 0
      %v426 = vsel %vm388, %v372, 0
      %v429 = vsel %vm388, %v373, 0
      %v432 = vsel %vm388, %v374, 0
      %v435 = vsel %vm388, %v375, 0
      %437 = vmatpush.bf16.msra.mxu0 0
      %438 = vmatpush.bf16.msra.mxu0 0
      %439 = vmatpush.bf16.msra.mxu0 0
      %440 = vmatpush.bf16.msra.mxu0 0
      %441 = vmatpush.bf16.msra.mxu0 0
      %442 = vmatpush.bf16.msra.mxu0 0
      %443 = vmatpush.bf16.msra.mxu0 %v385
      %444 = vmatpush.bf16.msra.mxu0 %v384
      %445 = vmatmul.bf16.gmra.mxu0 %v390
      %v446 = vpop.f32.mrf.mxu0
      %v447 = vadd.f32 %v294, %v446
      %v448 = vpop.f32.mrf.mxu0
      %v449 = vadd.f32 %v294, %v448
      %450 = vmatmul.bf16.gmra.mxu0 %v393
      %v451 = vpop.f32.mrf.mxu0
      %v452 = vadd.f32 %v294, %v451
      %v453 = vpop.f32.mrf.mxu0
      %v454 = vadd.f32 %v294, %v453
      %455 = vmatmul.bf16.gmra.mxu0 %v396
      %v456 = vpop.f32.mrf.mxu0
      %v457 = vadd.f32 %v294, %v456
      %v458 = vpop.f32.mrf.mxu0
      %v459 = vadd.f32 %v294, %v458
      %460 = vmatmul.bf16.gmra.mxu0 %v399
      %v461 = vpop.f32.mrf.mxu0
      %v462 = vadd.f32 %v294, %v461
      %v463 = vpop.f32.mrf.mxu0
      %v464 = vadd.f32 %v294, %v463
      %465 = vmatmul.bf16.gmra.mxu0 %v402
      %v466 = vpop.f32.mrf.mxu0
      %v467 = vadd.f32 %v294, %v466
      %v468 = vpop.f32.mrf.mxu0
      %v469 = vadd.f32 %v294, %v468
      %470 = vmatmul.bf16.gmra.mxu0 %v405
      %v471 = vpop.f32.mrf.mxu0
      %v472 = vadd.f32 %v294, %v471
      %v473 = vpop.f32.mrf.mxu0
      %v474 = vadd.f32 %v294, %v473
      %475 = vmatmul.bf16.gmra.mxu0 %v408
      %v476 = vpop.f32.mrf.mxu0
      %v477 = vadd.f32 %v294, %v476
      %v478 = vpop.f32.mrf.mxu0
      %v479 = vadd.f32 %v294, %v478
      %480 = vmatmul.bf16.gmra.mxu0 %v411
      %v481 = vpop.f32.mrf.mxu0
      %v482 = vadd.f32 %v294, %v481
      %v483 = vpop.f32.mrf.mxu0
      %v484 = vadd.f32 %v294, %v483
      %485 = vmatmul.bf16.gmra.mxu0 %v414
      %v486 = vpop.f32.mrf.mxu0
      %v487 = vadd.f32 %v294, %v486
      %v488 = vpop.f32.mrf.mxu0
      %v489 = vadd.f32 %v294, %v488
      %490 = vmatmul.bf16.gmra.mxu0 %v417
      %v491 = vpop.f32.mrf.mxu0
      %v492 = vadd.f32 %v294, %v491
      %v493 = vpop.f32.mrf.mxu0
      %v494 = vadd.f32 %v294, %v493
      %495 = vmatmul.bf16.gmra.mxu0 %v420
      %v496 = vpop.f32.mrf.mxu0
      %v497 = vadd.f32 %v294, %v496
      %v498 = vpop.f32.mrf.mxu0
      %v499 = vadd.f32 %v294, %v498
      %500 = vmatmul.bf16.gmra.mxu0 %v423
      %v501 = vpop.f32.mrf.mxu0
      %v502 = vadd.f32 %v294, %v501
      %v503 = vpop.f32.mrf.mxu0
      %v504 = vadd.f32 %v294, %v503
      %505 = vmatmul.bf16.gmra.mxu0 %v426
      %v506 = vpop.f32.mrf.mxu0
      %v507 = vadd.f32 %v294, %v506
      %v508 = vpop.f32.mrf.mxu0
      %v509 = vadd.f32 %v294, %v508
      %510 = vmatmul.bf16.gmra.mxu0 %v429
      %v511 = vpop.f32.mrf.mxu0
      %v512 = vadd.f32 %v294, %v511
      %v513 = vpop.f32.mrf.mxu0
      %v514 = vadd.f32 %v294, %v513
      %515 = vmatmul.bf16.gmra.mxu0 %v432
      %v516 = vpop.f32.mrf.mxu0
      %v517 = vadd.f32 %v294, %v516
      %v518 = vpop.f32.mrf.mxu0
      %v519 = vadd.f32 %v294, %v518
      %520 = vmatmul.bf16.gmra.mxu0 %v435
      %v521 = vpop.f32.mrf.mxu0
      %v522 = vadd.f32 %v294, %v521
      %v523 = vpop.f32.mrf.mxu0
      %v524 = vadd.f32 %v294, %v523
      %525 = vdwg.mxu0
      %v526 = vpack.c.bf16 %v447, %v447
      %v527 = vpack.c.bf16 %v449, %v449
      %v528 = vpack.c.bf16 %v452, %v452
      %v529 = vpack.c.bf16 %v454, %v454
      %v530 = vpack.c.bf16 %v457, %v457
      %v531 = vpack.c.bf16 %v459, %v459
      %v532 = vpack.c.bf16 %v462, %v462
      %v533 = vpack.c.bf16 %v464, %v464
      %v534 = vpack.c.bf16 %v467, %v467
      %v535 = vpack.c.bf16 %v469, %v469
      %v536 = vpack.c.bf16 %v472, %v472
      %v537 = vpack.c.bf16 %v474, %v474
      %v538 = vpack.c.bf16 %v477, %v477
      %v539 = vpack.c.bf16 %v479, %v479
      %v540 = vpack.c.bf16 %v482, %v482
      %v541 = vpack.c.bf16 %v484, %v484
      %v542 = vpack.c.bf16 %v487, %v487
      %v543 = vpack.c.bf16 %v489, %v489
      %v544 = vpack.c.bf16 %v492, %v492
      %v545 = vpack.c.bf16 %v494, %v494
      %v546 = vpack.c.bf16 %v497, %v497
      %v547 = vpack.c.bf16 %v499, %v499
      %v548 = vpack.c.bf16 %v502, %v502
      %v549 = vpack.c.bf16 %v504, %v504
      %v550 = vpack.c.bf16 %v507, %v507
      %v551 = vpack.c.bf16 %v509, %v509
      %v552 = vpack.c.bf16 %v512, %v512
      %v553 = vpack.c.bf16 %v514, %v514
      %v554 = vpack.c.bf16 %v517, %v517
      %v555 = vpack.c.bf16 %v519, %v519
      %v556 = vpack.c.bf16 %v522, %v522
      %v557 = vpack.c.bf16 %v524, %v524
      %v558 = vld [vmem:[%s3] sm:$0xff]
      %v559 = vld [vmem:[%s3 + $0x8] sm:$0xff]
      %v562 = vunpack.c.l.b16 %v526
      %v563 = vunpack.c.l.b16 %v527
      %v564 = vpack.c.b16 %v563, %v562
      %565 = vrot.lane.b32.xlu0 %v564, 96
      %v566 = vpop.permute.xlu0 %565
      %vm567 = vcmask 130048
      %v569 = vsel %vm567, %v564, 0
      %v572 = vsel %vm567, %v566, 0
      %574 = vmatpush.bf16.xpose.msra.mxu0 0
      %575 = vmatpush.bf16.xpose.msra.mxu0 0
      %576 = vmatpush.bf16.xpose.msra.mxu0 0
      %577 = vmatpush.bf16.xpose.msra.mxu0 0
      %578 = vmatpush.bf16.xpose.msra.mxu0 0
      %579 = vmatpush.bf16.xpose.msra.mxu0 0
      %580 = vmatpush.bf16.xpose.msra.mxu0 0
      %581 = vmatpush.bf16.xpose.msra.mxu0 %v572
      %582 = vmatmul.bf16.gmra.mxu0 %v569
      %v583 = vpop.f32.mrf.mxu0
      %v584 = vadd.f32 %v558, %v583
      %v585 = vpop.f32.mrf.mxu0
      %v586 = vadd.f32 %v559, %v585
      %587 = vdwg.mxu0
      %v590 = vunpack.c.l.b16 %v528
      %v591 = vunpack.c.l.b16 %v529
      %v592 = vpack.c.b16 %v591, %v590
      %593 = vrot.lane.b32.xlu0 %v592, 96
      %v594 = vpop.permute.xlu0 %593
      %v596 = vsel %vm567, %v592, 0
      %v599 = vsel %vm567, %v594, 0
      %601 = vmatpush.bf16.xpose.msra.mxu0 0
      %602 = vmatpush.bf16.xpose.msra.mxu0 0
      %603 = vmatpush.bf16.xpose.msra.mxu0 0
      %604 = vmatpush.bf16.xpose.msra.mxu0 0
      %605 = vmatpush.bf16.xpose.msra.mxu0 0
      %606 = vmatpush.bf16.xpose.msra.mxu0 0
      %607 = vmatpush.bf16.xpose.msra.mxu0 0
      %608 = vmatpush.bf16.xpose.msra.mxu0 %v599
      %609 = vmatmul.bf16.gmra.mxu0 %v596
      %v610 = vpop.f32.mrf.mxu0
      %v611 = vadd.f32 %v558, %v610
      %v612 = vpop.f32.mrf.mxu0
      %v613 = vadd.f32 %v559, %v612
      %614 = vdwg.mxu0
      %v617 = vunpack.c.l.b16 %v530
      %v618 = vunpack.c.l.b16 %v531
      %v619 = vpack.c.b16 %v618, %v617
      %620 = vrot.lane.b32.xlu0 %v619, 96
      %v621 = vpop.permute.xlu0 %620
      %v623 = vsel %vm567, %v619, 0
      %v626 = vsel %vm567, %v621, 0
      %628 = vmatpush.bf16.xpose.msra.mxu0 0
      %629 = vmatpush.bf16.xpose.msra.mxu0 0
      %630 = vmatpush.bf16.xpose.msra.mxu0 0
      %631 = vmatpush.bf16.xpose.msra.mxu0 0
      %632 = vmatpush.bf16.xpose.msra.mxu0 0
      %633 = vmatpush.bf16.xpose.msra.mxu0 0
      %634 = vmatpush.bf16.xpose.msra.mxu0 0
      %635 = vmatpush.bf16.xpose.msra.mxu0 %v626
      %636 = vmatmul.bf16.gmra.mxu0 %v623
      %v637 = vpop.f32.mrf.mxu0
      %v638 = vadd.f32 %v558, %v637
      %v639 = vpop.f32.mrf.mxu0
      %v640 = vadd.f32 %v559, %v639
      %641 = vdwg.mxu0
      %v644 = vunpack.c.l.b16 %v532
      %v645 = vunpack.c.l.b16 %v533
      %v646 = vpack.c.b16 %v645, %v644
      %647 = vrot.lane.b32.xlu0 %v646, 96
      %v648 = vpop.permute.xlu0 %647
      %v650 = vsel %vm567, %v646, 0
      %v653 = vsel %vm567, %v648, 0
      %655 = vmatpush.bf16.xpose.msra.mxu0 0
      %656 = vmatpush.bf16.xpose.msra.mxu0 0
      %657 = vmatpush.bf16.xpose.msra.mxu0 0
      %658 = vmatpush.bf16.xpose.msra.mxu0 0
      %659 = vmatpush.bf16.xpose.msra.mxu0 0
      %660 = vmatpush.bf16.xpose.msra.mxu0 0
      %661 = vmatpush.bf16.xpose.msra.mxu0 0
      %662 = vmatpush.bf16.xpose.msra.mxu0 %v653
      %663 = vmatmul.bf16.gmra.mxu0 %v650
      %v664 = vpop.f32.mrf.mxu0
      %v665 = vadd.f32 %v558, %v664
      %v666 = vpop.f32.mrf.mxu0
      %v667 = vadd.f32 %v559, %v666
      %668 = vdwg.mxu0
      %v671 = vunpack.c.l.b16 %v534
      %v672 = vunpack.c.l.b16 %v535
      %v673 = vpack.c.b16 %v672, %v671
      %674 = vrot.lane.b32.xlu0 %v673, 96
      %v675 = vpop.permute.xlu0 %674
      %v677 = vsel %vm567, %v673, 0
      %v680 = vsel %vm567, %v675, 0
      %682 = vmatpush.bf16.xpose.msra.mxu0 0
      %683 = vmatpush.bf16.xpose.msra.mxu0 0
      %684 = vmatpush.bf16.xpose.msra.mxu0 0
      %685 = vmatpush.bf16.xpose.msra.mxu0 0
      %686 = vmatpush.bf16.xpose.msra.mxu0 0
      %687 = vmatpush.bf16.xpose.msra.mxu0 0
      %688 = vmatpush.bf16.xpose.msra.mxu0 0
      %689 = vmatpush.bf16.xpose.msra.mxu0 %v680
      %690 = vmatmul.bf16.gmra.mxu0 %v677
      %v691 = vpop.f32.mrf.mxu0
      %v692 = vadd.f32 %v558, %v691
      %v693 = vpop.f32.mrf.mxu0
      %v694 = vadd.f32 %v559, %v693
      %695 = vdwg.mxu0
      %v698 = vunpack.c.l.b16 %v536
      %v699 = vunpack.c.l.b16 %v537
      %v700 = vpack.c.b16 %v699, %v698
      %701 = vrot.lane.b32.xlu0 %v700, 96
      %v702 = vpop.permute.xlu0 %701
      %v704 = vsel %vm567, %v700, 0
      %v707 = vsel %vm567, %v702, 0
      %709 = vmatpush.bf16.xpose.msra.mxu0 0
      %710 = vmatpush.bf16.xpose.msra.mxu0 0
      %711 = vmatpush.bf16.xpose.msra.mxu0 0
      %712 = vmatpush.bf16.xpose.msra.mxu0 0
      %713 = vmatpush.bf16.xpose.msra.mxu0 0
      %714 = vmatpush.bf16.xpose.msra.mxu0 0
      %715 = vmatpush.bf16.xpose.msra.mxu0 0
      %716 = vmatpush.bf16.xpose.msra.mxu0 %v707
      %717 = vmatmul.bf16.gmra.mxu0 %v704
      %v718 = vpop.f32.mrf.mxu0
      %v719 = vadd.f32 %v558, %v718
      %v720 = vpop.f32.mrf.mxu0
      %v721 = vadd.f32 %v559, %v720
      %722 = vdwg.mxu0
      %v725 = vunpack.c.l.b16 %v538
      %v726 = vunpack.c.l.b16 %v539
      %v727 = vpack.c.b16 %v726, %v725
      %728 = vrot.lane.b32.xlu0 %v727, 96
      %v729 = vpop.permute.xlu0 %728
      %v731 = vsel %vm567, %v727, 0
      %v734 = vsel %vm567, %v729, 0
      %736 = vmatpush.bf16.xpose.msra.mxu0 0
      %737 = vmatpush.bf16.xpose.msra.mxu0 0
      %738 = vmatpush.bf16.xpose.msra.mxu0 0
      %739 = vmatpush.bf16.xpose.msra.mxu0 0
      %740 = vmatpush.bf16.xpose.msra.mxu0 0
      %741 = vmatpush.bf16.xpose.msra.mxu0 0
      %742 = vmatpush.bf16.xpose.msra.mxu0 0
      %743 = vmatpush.bf16.xpose.msra.mxu0 %v734
      %744 = vmatmul.bf16.gmra.mxu0 %v731
      %v745 = vpop.f32.mrf.mxu0
      %v746 = vadd.f32 %v558, %v745
      %v747 = vpop.f32.mrf.mxu0
      %v748 = vadd.f32 %v559, %v747
      %749 = vdwg.mxu0
      %v752 = vunpack.c.l.b16 %v540
      %v753 = vunpack.c.l.b16 %v541
      %v754 = vpack.c.b16 %v753, %v752
      %755 = vrot.lane.b32.xlu0 %v754, 96
      %v756 = vpop.permute.xlu0 %755
      %v758 = vsel %vm567, %v754, 0
      %v761 = vsel %vm567, %v756, 0
      %763 = vmatpush.bf16.xpose.msra.mxu0 0
      %764 = vmatpush.bf16.xpose.msra.mxu0 0
      %765 = vmatpush.bf16.xpose.msra.mxu0 0
      %766 = vmatpush.bf16.xpose.msra.mxu0 0
      %767 = vmatpush.bf16.xpose.msra.mxu0 0
      %768 = vmatpush.bf16.xpose.msra.mxu0 0
      %769 = vmatpush.bf16.xpose.msra.mxu0 0
      %770 = vmatpush.bf16.xpose.msra.mxu0 %v761
      %771 = vmatmul.bf16.gmra.mxu0 %v758
      %v772 = vpop.f32.mrf.mxu0
      %v773 = vadd.f32 %v558, %v772
      %v774 = vpop.f32.mrf.mxu0
      %v775 = vadd.f32 %v559, %v774
      %776 = vdwg.mxu0
      %v779 = vunpack.c.l.b16 %v542
      %v780 = vunpack.c.l.b16 %v543
      %v781 = vpack.c.b16 %v780, %v779
      %782 = vrot.lane.b32.xlu0 %v781, 96
      %v783 = vpop.permute.xlu0 %782
      %v785 = vsel %vm567, %v781, 0
      %v788 = vsel %vm567, %v783, 0
      %790 = vmatpush.bf16.xpose.msra.mxu0 0
      %791 = vmatpush.bf16.xpose.msra.mxu0 0
      %792 = vmatpush.bf16.xpose.msra.mxu0 0
      %793 = vmatpush.bf16.xpose.msra.mxu0 0
      %794 = vmatpush.bf16.xpose.msra.mxu0 0
      %795 = vmatpush.bf16.xpose.msra.mxu0 0
      %796 = vmatpush.bf16.xpose.msra.mxu0 0
      %797 = vmatpush.bf16.xpose.msra.mxu0 %v788
      %798 = vmatmul.bf16.gmra.mxu0 %v785
      %v799 = vpop.f32.mrf.mxu0
      %v800 = vadd.f32 %v558, %v799
      %v801 = vpop.f32.mrf.mxu0
      %v802 = vadd.f32 %v559, %v801
      %803 = vdwg.mxu0
      %v806 = vunpack.c.l.b16 %v544
      %v807 = vunpack.c.l.b16 %v545
      %v808 = vpack.c.b16 %v807, %v806
      %809 = vrot.lane.b32.xlu0 %v808, 96
      %v810 = vpop.permute.xlu0 %809
      %v812 = vsel %vm567, %v808, 0
      %v815 = vsel %vm567, %v810, 0
      %817 = vmatpush.bf16.xpose.msra.mxu0 0
      %818 = vmatpush.bf16.xpose.msra.mxu0 0
      %819 = vmatpush.bf16.xpose.msra.mxu0 0
      %820 = vmatpush.bf16.xpose.msra.mxu0 0
      %821 = vmatpush.bf16.xpose.msra.mxu0 0
      %822 = vmatpush.bf16.xpose.msra.mxu0 0
      %823 = vmatpush.bf16.xpose.msra.mxu0 0
      %824 = vmatpush.bf16.xpose.msra.mxu0 %v815
      %825 = vmatmul.bf16.gmra.mxu0 %v812
      %v826 = vpop.f32.mrf.mxu0
      %v827 = vadd.f32 %v558, %v826
      %v828 = vpop.f32.mrf.mxu0
      %v829 = vadd.f32 %v559, %v828
      %830 = vdwg.mxu0
      %v833 = vunpack.c.l.b16 %v546
      %v834 = vunpack.c.l.b16 %v547
      %v835 = vpack.c.b16 %v834, %v833
      %836 = vrot.lane.b32.xlu0 %v835, 96
      %v837 = vpop.permute.xlu0 %836
      %v839 = vsel %vm567, %v835, 0
      %v842 = vsel %vm567, %v837, 0
      %844 = vmatpush.bf16.xpose.msra.mxu0 0
      %845 = vmatpush.bf16.xpose.msra.mxu0 0
      %846 = vmatpush.bf16.xpose.msra.mxu0 0
      %847 = vmatpush.bf16.xpose.msra.mxu0 0
      %848 = vmatpush.bf16.xpose.msra.mxu0 0
      %849 = vmatpush.bf16.xpose.msra.mxu0 0
      %850 = vmatpush.bf16.xpose.msra.mxu0 0
      %851 = vmatpush.bf16.xpose.msra.mxu0 %v842
      %852 = vmatmul.bf16.gmra.mxu0 %v839
      %v853 = vpop.f32.mrf.mxu0
      %v854 = vadd.f32 %v558, %v853
      %v855 = vpop.f32.mrf.mxu0
      %v856 = vadd.f32 %v559, %v855
      %857 = vdwg.mxu0
      %v860 = vunpack.c.l.b16 %v548
      %v861 = vunpack.c.l.b16 %v549
      %v862 = vpack.c.b16 %v861, %v860
      %863 = vrot.lane.b32.xlu0 %v862, 96
      %v864 = vpop.permute.xlu0 %863
      %v866 = vsel %vm567, %v862, 0
      %v869 = vsel %vm567, %v864, 0
      %871 = vmatpush.bf16.xpose.msra.mxu0 0
      %872 = vmatpush.bf16.xpose.msra.mxu0 0
      %873 = vmatpush.bf16.xpose.msra.mxu0 0
      %874 = vmatpush.bf16.xpose.msra.mxu0 0
      %875 = vmatpush.bf16.xpose.msra.mxu0 0
      %876 = vmatpush.bf16.xpose.msra.mxu0 0
      %877 = vmatpush.bf16.xpose.msra.mxu0 0
      %878 = vmatpush.bf16.xpose.msra.mxu0 %v869
      %879 = vmatmul.bf16.gmra.mxu0 %v866
      %v880 = vpop.f32.mrf.mxu0
      %v881 = vadd.f32 %v558, %v880
      %v882 = vpop.f32.mrf.mxu0
      %v883 = vadd.f32 %v559, %v882
      %884 = vdwg.mxu0
      %v887 = vunpack.c.l.b16 %v550
      %v888 = vunpack.c.l.b16 %v551
      %v889 = vpack.c.b16 %v888, %v887
      %890 = vrot.lane.b32.xlu0 %v889, 96
      %v891 = vpop.permute.xlu0 %890
      %v893 = vsel %vm567, %v889, 0
      %v896 = vsel %vm567, %v891, 0
      %898 = vmatpush.bf16.xpose.msra.mxu0 0
      %899 = vmatpush.bf16.xpose.msra.mxu0 0
      %900 = vmatpush.bf16.xpose.msra.mxu0 0
      %901 = vmatpush.bf16.xpose.msra.mxu0 0
      %902 = vmatpush.bf16.xpose.msra.mxu0 0
      %903 = vmatpush.bf16.xpose.msra.mxu0 0
      %904 = vmatpush.bf16.xpose.msra.mxu0 0
      %905 = vmatpush.bf16.xpose.msra.mxu0 %v896
      %906 = vmatmul.bf16.gmra.mxu0 %v893
      %v907 = vpop.f32.mrf.mxu0
      %v908 = vadd.f32 %v558, %v907
      %v909 = vpop.f32.mrf.mxu0
      %v910 = vadd.f32 %v559, %v909
      %911 = vdwg.mxu0
      %v914 = vunpack.c.l.b16 %v552
      %v915 = vunpack.c.l.b16 %v553
      %v916 = vpack.c.b16 %v915, %v914
      %917 = vrot.lane.b32.xlu0 %v916, 96
      %v918 = vpop.permute.xlu0 %917
      %v920 = vsel %vm567, %v916, 0
      %v923 = vsel %vm567, %v918, 0
      %925 = vmatpush.bf16.xpose.msra.mxu0 0
      %926 = vmatpush.bf16.xpose.msra.mxu0 0
      %927 = vmatpush.bf16.xpose.msra.mxu0 0
      %928 = vmatpush.bf16.xpose.msra.mxu0 0
      %929 = vmatpush.bf16.xpose.msra.mxu0 0
      %930 = vmatpush.bf16.xpose.msra.mxu0 0
      %931 = vmatpush.bf16.xpose.msra.mxu0 0
      %932 = vmatpush.bf16.xpose.msra.mxu0 %v923
      %933 = vmatmul.bf16.gmra.mxu0 %v920
      %v934 = vpop.f32.mrf.mxu0
      %v935 = vadd.f32 %v558, %v934
      %v936 = vpop.f32.mrf.mxu0
      %v937 = vadd.f32 %v559, %v936
      %938 = vdwg.mxu0
      %v941 = vunpack.c.l.b16 %v554
      %v942 = vunpack.c.l.b16 %v555
      %v943 = vpack.c.b16 %v942, %v941
      %944 = vrot.lane.b32.xlu0 %v943, 96
      %v945 = vpop.permute.xlu0 %944
      %v947 = vsel %vm567, %v943, 0
      %v950 = vsel %vm567, %v945, 0
      %952 = vmatpush.bf16.xpose.msra.mxu0 0
      %953 = vmatpush.bf16.xpose.msra.mxu0 0
      %954 = vmatpush.bf16.xpose.msra.mxu0 0
      %955 = vmatpush.bf16.xpose.msra.mxu0 0
      %956 = vmatpush.bf16.xpose.msra.mxu0 0
      %957 = vmatpush.bf16.xpose.msra.mxu0 0
      %958 = vmatpush.bf16.xpose.msra.mxu0 0
      %959 = vmatpush.bf16.xpose.msra.mxu0 %v950
      %960 = vmatmul.bf16.gmra.mxu0 %v947
      %v961 = vpop.f32.mrf.mxu0
      %v962 = vadd.f32 %v558, %v961
      %v963 = vpop.f32.mrf.mxu0
      %v964 = vadd.f32 %v559, %v963
      %965 = vdwg.mxu0
      %v968 = vunpack.c.l.b16 %v556
      %v969 = vunpack.c.l.b16 %v557
      %v970 = vpack.c.b16 %v969, %v968
      %971 = vrot.lane.b32.xlu0 %v970, 96
      %v972 = vpop.permute.xlu0 %971
      %v974 = vsel %vm567, %v970, 0
      %v977 = vsel %vm567, %v972, 0
      %979 = vmatpush.bf16.xpose.msra.mxu0 0
      %980 = vmatpush.bf16.xpose.msra.mxu0 0
      %981 = vmatpush.bf16.xpose.msra.mxu0 0
      %982 = vmatpush.bf16.xpose.msra.mxu0 0
      %983 = vmatpush.bf16.xpose.msra.mxu0 0
      %984 = vmatpush.bf16.xpose.msra.mxu0 0
      %985 = vmatpush.bf16.xpose.msra.mxu0 0
      %986 = vmatpush.bf16.xpose.msra.mxu0 %v977
      %987 = vmatmul.bf16.gmra.mxu0 %v974
      %v988 = vpop.f32.mrf.mxu0
      %v989 = vadd.f32 %v558, %v988
      %v990 = vpop.f32.mrf.mxu0
      %v991 = vadd.f32 %v559, %v990
      %992 = vdwg.mxu0
      %v993 = vsel %vm567, %v584, -inf
      %994 = vmax.xlane.f32.xlu0 %v993
      %v995 = vpop.xlane.xlu0 %994
      %v996 = vsel %vm567, %v586, -inf
      %997 = vmax.xlane.f32.xlu0 %v996
      %v998 = vpop.xlane.xlu0 %997
      %v999 = vsel %vm567, %v611, -inf
      %1000 = vmax.xlane.f32.xlu0 %v999
      %v1001 = vpop.xlane.xlu0 %1000
      %v1002 = vsel %vm567, %v613, -inf
      %1003 = vmax.xlane.f32.xlu0 %v1002
      %v1004 = vpop.xlane.xlu0 %1003
      %v1005 = vsel %vm567, %v638, -inf
      %1006 = vmax.xlane.f32.xlu0 %v1005
      %v1007 = vpop.xlane.xlu0 %1006
      %v1008 = vsel %vm567, %v640, -inf
      %1009 = vmax.xlane.f32.xlu0 %v1008
      %v1010 = vpop.xlane.xlu0 %1009
      %v1011 = vsel %vm567, %v665, -inf
      %1012 = vmax.xlane.f32.xlu0 %v1011
      %v1013 = vpop.xlane.xlu0 %1012
      %v1014 = vsel %vm567, %v667, -inf
      %1015 = vmax.xlane.f32.xlu0 %v1014
      %v1016 = vpop.xlane.xlu0 %1015
      %v1017 = vsel %vm567, %v692, -inf
      %1018 = vmax.xlane.f32.xlu0 %v1017
      %v1019 = vpop.xlane.xlu0 %1018
      %v1020 = vsel %vm567, %v694, -inf
      %1021 = vmax.xlane.f32.xlu0 %v1020
      %v1022 = vpop.xlane.xlu0 %1021
      %v1023 = vsel %vm567, %v719, -inf
      %1024 = vmax.xlane.f32.xlu0 %v1023
      %v1025 = vpop.xlane.xlu0 %1024
      %v1026 = vsel %vm567, %v721, -inf
      %1027 = vmax.xlane.f32.xlu0 %v1026
      %v1028 = vpop.xlane.xlu0 %1027
      %v1029 = vsel %vm567, %v746, -inf
      %1030 = vmax.xlane.f32.xlu0 %v1029
      %v1031 = vpop.xlane.xlu0 %1030
      %v1032 = vsel %vm567, %v748, -inf
      %1033 = vmax.xlane.f32.xlu0 %v1032
      %v1034 = vpop.xlane.xlu0 %1033
      %v1035 = vsel %vm567, %v773, -inf
      %1036 = vmax.xlane.f32.xlu0 %v1035
      %v1037 = vpop.xlane.xlu0 %1036
      %v1038 = vsel %vm567, %v775, -inf
      %1039 = vmax.xlane.f32.xlu0 %v1038
      %v1040 = vpop.xlane.xlu0 %1039
      %v1041 = vsel %vm567, %v800, -inf
      %1042 = vmax.xlane.f32.xlu0 %v1041
      %v1043 = vpop.xlane.xlu0 %1042
      %v1044 = vsel %vm567, %v802, -inf
      %1045 = vmax.xlane.f32.xlu0 %v1044
      %v1046 = vpop.xlane.xlu0 %1045
      %v1047 = vsel %vm567, %v827, -inf
      %1048 = vmax.xlane.f32.xlu0 %v1047
      %v1049 = vpop.xlane.xlu0 %1048
      %v1050 = vsel %vm567, %v829, -inf
      %1051 = vmax.xlane.f32.xlu0 %v1050
      %v1052 = vpop.xlane.xlu0 %1051
      %v1053 = vsel %vm567, %v854, -inf
      %1054 = vmax.xlane.f32.xlu0 %v1053
      %v1055 = vpop.xlane.xlu0 %1054
      %v1056 = vsel %vm567, %v856, -inf
      %1057 = vmax.xlane.f32.xlu0 %v1056
      %v1058 = vpop.xlane.xlu0 %1057
      %v1059 = vsel %vm567, %v881, -inf
      %1060 = vmax.xlane.f32.xlu0 %v1059
      %v1061 = vpop.xlane.xlu0 %1060
      %v1062 = vsel %vm567, %v883, -inf
      %1063 = vmax.xlane.f32.xlu0 %v1062
      %v1064 = vpop.xlane.xlu0 %1063
      %v1065 = vsel %vm567, %v908, -inf
      %1066 = vmax.xlane.f32.xlu0 %v1065
      %v1067 = vpop.xlane.xlu0 %1066
      %v1068 = vsel %vm567, %v910, -inf
      %1069 = vmax.xlane.f32.xlu0 %v1068
      %v1070 = vpop.xlane.xlu0 %1069
      %v1071 = vsel %vm567, %v935, -inf
      %1072 = vmax.xlane.f32.xlu0 %v1071
      %v1073 = vpop.xlane.xlu0 %1072
      %v1074 = vsel %vm567, %v937, -inf
      %1075 = vmax.xlane.f32.xlu0 %v1074
      %v1076 = vpop.xlane.xlu0 %1075
      %v1077 = vsel %vm567, %v962, -inf
      %1078 = vmax.xlane.f32.xlu0 %v1077
      %v1079 = vpop.xlane.xlu0 %1078
      %v1080 = vsel %vm567, %v964, -inf
      %1081 = vmax.xlane.f32.xlu0 %v1080
      %v1082 = vpop.xlane.xlu0 %1081
      %v1083 = vsel %vm567, %v989, -inf
      %1084 = vmax.xlane.f32.xlu0 %v1083
      %v1085 = vpop.xlane.xlu0 %1084
      %v1086 = vsel %vm567, %v991, -inf
      %1087 = vmax.xlane.f32.xlu0 %v1086
      %v1088 = vpop.xlane.xlu0 %1087
      %v1089 = vsub.f32 %v584, %v995
      %v1090 = vsub.f32 %v586, %v998
      %v1091 = vsub.f32 %v611, %v1001
      %v1092 = vsub.f32 %v613, %v1004
      %v1093 = vsub.f32 %v638, %v1007
      %v1094 = vsub.f32 %v640, %v1010
      %v1095 = vsub.f32 %v665, %v1013
      %v1096 = vsub.f32 %v667, %v1016
      %v1097 = vsub.f32 %v692, %v1019
      %v1098 = vsub.f32 %v694, %v1022
      %v1099 = vsub.f32 %v719, %v1025
      %v1100 = vsub.f32 %v721, %v1028
      %v1101 = vsub.f32 %v746, %v1031
      %v1102 = vsub.f32 %v748, %v1034
      %v1103 = vsub.f32 %v773, %v1037
      %v1104 = vsub.f32 %v775, %v1040
      %v1105 = vsub.f32 %v800, %v1043
      %v1106 = vsub.f32 %v802, %v1046
      %v1107 = vsub.f32 %v827, %v1049
      %v1108 = vsub.f32 %v829, %v1052
      %v1109 = vsub.f32 %v854, %v1055
      %v1110 = vsub.f32 %v856, %v1058
      %v1111 = vsub.f32 %v881, %v1061
      %v1112 = vsub.f32 %v883, %v1064
      %v1113 = vsub.f32 %v908, %v1067
      %v1114 = vsub.f32 %v910, %v1070
      %v1115 = vsub.f32 %v935, %v1073
      %v1116 = vsub.f32 %v937, %v1076
      %v1117 = vsub.f32 %v962, %v1079
      %v1118 = vsub.f32 %v964, %v1082
      %v1119 = vsub.f32 %v989, %v1085
      %v1120 = vsub.f32 %v991, %v1088
      %v1121 = vmul.f32 %v1089, 1.442695
      %v1122 = vpow.pop %v1121
      %v1123 = vmul.f32 %v1090, 1.442695
      %v1124 = vpow.pop %v1123
      %v1125 = vmul.f32 %v1091, 1.442695
      %v1126 = vpow.pop %v1125
      %v1127 = vmul.f32 %v1092, 1.442695
      %v1128 = vpow.pop %v1127
      %v1129 = vmul.f32 %v1093, 1.442695
      %v1130 = vpow.pop %v1129
      %v1131 = vmul.f32 %v1094, 1.442695
      %v1132 = vpow.pop %v1131
      %v1133 = vmul.f32 %v1095, 1.442695
      %v1134 = vpow.pop %v1133
      %v1135 = vmul.f32 %v1096, 1.442695
      %v1136 = vpow.pop %v1135
      %v1137 = vmul.f32 %v1097, 1.442695
      %v1138 = vpow.pop %v1137
      %v1139 = vmul.f32 %v1098, 1.442695
      %v1140 = vpow.pop %v1139
      %v1141 = vmul.f32 %v1099, 1.442695
      %v1142 = vpow.pop %v1141
      %v1143 = vmul.f32 %v1100, 1.442695
      %v1144 = vpow.pop %v1143
      %v1145 = vmul.f32 %v1101, 1.442695
      %v1146 = vpow.pop %v1145
      %v1147 = vmul.f32 %v1102, 1.442695
      %v1148 = vpow.pop %v1147
      %v1149 = vmul.f32 %v1103, 1.442695
      %v1150 = vpow.pop %v1149
      %v1151 = vmul.f32 %v1104, 1.442695
      %v1152 = vpow.pop %v1151
      %v1153 = vmul.f32 %v1105, 1.442695
      %v1154 = vpow.pop %v1153
      %v1155 = vmul.f32 %v1106, 1.442695
      %v1156 = vpow.pop %v1155
      %v1157 = vmul.f32 %v1107, 1.442695
      %v1158 = vpow.pop %v1157
      %v1159 = vmul.f32 %v1108, 1.442695
      %v1160 = vpow.pop %v1159
      %v1161 = vmul.f32 %v1109, 1.442695
      %v1162 = vpow.pop %v1161
      %v1163 = vmul.f32 %v1110, 1.442695
      %v1164 = vpow.pop %v1163
      %v1165 = vmul.f32 %v1111, 1.442695
      %v1166 = vpow.pop %v1165
      %v1167 = vmul.f32 %v1112, 1.442695
      %v1168 = vpow.pop %v1167
      %v1169 = vmul.f32 %v1113, 1.442695
      %v1170 = vpow.pop %v1169
      %v1171 = vmul.f32 %v1114, 1.442695
      %v1172 = vpow.pop %v1171
      %v1173 = vmul.f32 %v1115, 1.442695
      %v1174 = vpow.pop %v1173
      %v1175 = vmul.f32 %v1116, 1.442695
      %v1176 = vpow.pop %v1175
      %v1177 = vmul.f32 %v1117, 1.442695
      %v1178 = vpow.pop %v1177
      %v1179 = vmul.f32 %v1118, 1.442695
      %v1180 = vpow.pop %v1179
      %v1181 = vmul.f32 %v1119, 1.442695
      %v1182 = vpow.pop %v1181
      %v1183 = vmul.f32 %v1120, 1.442695
      %v1184 = vpow.pop %v1183
      %v1185 = vsel %vm567, %v1122, 0.0
      %1186 = vadd.xlane.f32.xlu0 %v1185
      %v1187 = vpop.xlane.xlu0 %1186
      %v1188 = vsel %vm567, %v1124, 0.0
      %1189 = vadd.xlane.f32.xlu0 %v1188
      %v1190 = vpop.xlane.xlu0 %1189
      %v1191 = vsel %vm567, %v1126, 0.0
      %1192 = vadd.xlane.f32.xlu0 %v1191
      %v1193 = vpop.xlane.xlu0 %1192
      %v1194 = vsel %vm567, %v1128, 0.0
      %1195 = vadd.xlane.f32.xlu0 %v1194
      %v1196 = vpop.xlane.xlu0 %1195
      %v1197 = vsel %vm567, %v1130, 0.0
      %1198 = vadd.xlane.f32.xlu0 %v1197
      %v1199 = vpop.xlane.xlu0 %1198
      %v1200 = vsel %vm567, %v1132, 0.0
      %1201 = vadd.xlane.f32.xlu0 %v1200
      %v1202 = vpop.xlane.xlu0 %1201
      %v1203 = vsel %vm567, %v1134, 0.0
      %1204 = vadd.xlane.f32.xlu0 %v1203
      %v1205 = vpop.xlane.xlu0 %1204
      %v1206 = vsel %vm567, %v1136, 0.0
      %1207 = vadd.xlane.f32.xlu0 %v1206
      %v1208 = vpop.xlane.xlu0 %1207
      %v1209 = vsel %vm567, %v1138, 0.0
      %1210 = vadd.xlane.f32.xlu0 %v1209
      %v1211 = vpop.xlane.xlu0 %1210
      %v1212 = vsel %vm567, %v1140, 0.0
      %1213 = vadd.xlane.f32.xlu0 %v1212
      %v1214 = vpop.xlane.xlu0 %1213
      %v1215 = vsel %vm567, %v1142, 0.0
      %1216 = vadd.xlane.f32.xlu0 %v1215
      %v1217 = vpop.xlane.xlu0 %1216
      %v1218 = vsel %vm567, %v1144, 0.0
      %1219 = vadd.xlane.f32.xlu0 %v1218
      %v1220 = vpop.xlane.xlu0 %1219
      %v1221 = vsel %vm567, %v1146, 0.0
      %1222 = vadd.xlane.f32.xlu0 %v1221
      %v1223 = vpop.xlane.xlu0 %1222
      %v1224 = vsel %vm567, %v1148, 0.0
      %1225 = vadd.xlane.f32.xlu0 %v1224
      %v1226 = vpop.xlane.xlu0 %1225
      %v1227 = vsel %vm567, %v1150, 0.0
      %1228 = vadd.xlane.f32.xlu0 %v1227
      %v1229 = vpop.xlane.xlu0 %1228
      %v1230 = vsel %vm567, %v1152, 0.0
      %1231 = vadd.xlane.f32.xlu0 %v1230
      %v1232 = vpop.xlane.xlu0 %1231
      %v1233 = vsel %vm567, %v1154, 0.0
      %1234 = vadd.xlane.f32.xlu0 %v1233
      %v1235 = vpop.xlane.xlu0 %1234
      %v1236 = vsel %vm567, %v1156, 0.0
      %1237 = vadd.xlane.f32.xlu0 %v1236
      %v1238 = vpop.xlane.xlu0 %1237
      %v1239 = vsel %vm567, %v1158, 0.0
      %1240 = vadd.xlane.f32.xlu0 %v1239
      %v1241 = vpop.xlane.xlu0 %1240
      %v1242 = vsel %vm567, %v1160, 0.0
      %1243 = vadd.xlane.f32.xlu0 %v1242
      %v1244 = vpop.xlane.xlu0 %1243
      %v1245 = vsel %vm567, %v1162, 0.0
      %1246 = vadd.xlane.f32.xlu0 %v1245
      %v1247 = vpop.xlane.xlu0 %1246
      %v1248 = vsel %vm567, %v1164, 0.0
      %1249 = vadd.xlane.f32.xlu0 %v1248
      %v1250 = vpop.xlane.xlu0 %1249
      %v1251 = vsel %vm567, %v1166, 0.0
      %1252 = vadd.xlane.f32.xlu0 %v1251
      %v1253 = vpop.xlane.xlu0 %1252
      %v1254 = vsel %vm567, %v1168, 0.0
      %1255 = vadd.xlane.f32.xlu0 %v1254
      %v1256 = vpop.xlane.xlu0 %1255
      %v1257 = vsel %vm567, %v1170, 0.0
      %1258 = vadd.xlane.f32.xlu0 %v1257
      %v1259 = vpop.xlane.xlu0 %1258
      %v1260 = vsel %vm567, %v1172, 0.0
      %1261 = vadd.xlane.f32.xlu0 %v1260
      %v1262 = vpop.xlane.xlu0 %1261
      %v1263 = vsel %vm567, %v1174, 0.0
      %1264 = vadd.xlane.f32.xlu0 %v1263
      %v1265 = vpop.xlane.xlu0 %1264
      %v1266 = vsel %vm567, %v1176, 0.0
      %1267 = vadd.xlane.f32.xlu0 %v1266
      %v1268 = vpop.xlane.xlu0 %1267
      %v1269 = vsel %vm567, %v1178, 0.0
      %1270 = vadd.xlane.f32.xlu0 %v1269
      %v1271 = vpop.xlane.xlu0 %1270
      %v1272 = vsel %vm567, %v1180, 0.0
      %1273 = vadd.xlane.f32.xlu0 %v1272
      %v1274 = vpop.xlane.xlu0 %1273
      %v1275 = vsel %vm567, %v1182, 0.0
      %1276 = vadd.xlane.f32.xlu0 %v1275
      %v1277 = vpop.xlane.xlu0 %1276
      %v1278 = vsel %vm567, %v1184, 0.0
      %1279 = vadd.xlane.f32.xlu0 %v1278
      %v1280 = vpop.xlane.xlu0 %1279
      %v1281 = vrcp.pop %v1187
      %v1282 = vmul.f32 %v1187, %v1281
      %v1283 = vsub.f32 1.0, %v1282
      %v1284 = vmul.f32 %v1281, %v1283
      %v1285 = vadd.f32 %v1281, %v1284
      %vm1286 = vweird.f32 %v1187
      %vm1287 = vweird.f32 %v1281
      %vm1288 = vmor %vm1286, %vm1287
      %v1289 = vsel %vm1288, %v1281, %v1285
      %v1290 = vand.u32 2147483647, %v1187
      %vm1291 = vcmp.eq.f32.partialorder %v1290, 8.507059e+37
      %v1292 = vand.u32 %v1187, 2147483648
      %v1293 = vor.u32 1.1754944e-38, %v1292
      %v1294 = vsel %vm1291, %v1293, %v1289
      %v1295 = vmul.f32 %v1122, %v1294
      %v1296 = vrcp.pop %v1190
      %v1297 = vmul.f32 %v1190, %v1296
      %v1298 = vsub.f32 1.0, %v1297
      %v1299 = vmul.f32 %v1296, %v1298
      %v1300 = vadd.f32 %v1296, %v1299
      %vm1301 = vweird.f32 %v1190
      %vm1302 = vweird.f32 %v1296
      %vm1303 = vmor %vm1301, %vm1302
      %v1304 = vsel %vm1303, %v1296, %v1300
      %v1305 = vand.u32 2147483647, %v1190
      %vm1306 = vcmp.eq.f32.partialorder %v1305, 8.507059e+37
      %v1307 = vand.u32 %v1190, 2147483648
      %v1308 = vor.u32 1.1754944e-38, %v1307
      %v1309 = vsel %vm1306, %v1308, %v1304
      %v1310 = vmul.f32 %v1124, %v1309
      %v1311 = vrcp.pop %v1193
      %v1312 = vmul.f32 %v1193, %v1311
      %v1313 = vsub.f32 1.0, %v1312
      %v1314 = vmul.f32 %v1311, %v1313
      %v1315 = vadd.f32 %v1311, %v1314
      %vm1316 = vweird.f32 %v1193
      %vm1317 = vweird.f32 %v1311
      %vm1318 = vmor %vm1316, %vm1317
      %v1319 = vsel %vm1318, %v1311, %v1315
      %v1320 = vand.u32 2147483647, %v1193
      %vm1321 = vcmp.eq.f32.partialorder %v1320, 8.507059e+37
      %v1322 = vand.u32 %v1193, 2147483648
      %v1323 = vor.u32 1.1754944e-38, %v1322
      %v1324 = vsel %vm1321, %v1323, %v1319
      %v1325 = vmul.f32 %v1126, %v1324
      %v1326 = vrcp.pop %v1196
      %v1327 = vmul.f32 %v1196, %v1326
      %v1328 = vsub.f32 1.0, %v1327
      %v1329 = vmul.f32 %v1326, %v1328
      %v1330 = vadd.f32 %v1326, %v1329
      %vm1331 = vweird.f32 %v1196
      %vm1332 = vweird.f32 %v1326
      %vm1333 = vmor %vm1331, %vm1332
      %v1334 = vsel %vm1333, %v1326, %v1330
      %v1335 = vand.u32 2147483647, %v1196
      %vm1336 = vcmp.eq.f32.partialorder %v1335, 8.507059e+37
      %v1337 = vand.u32 %v1196, 2147483648
      %v1338 = vor.u32 1.1754944e-38, %v1337
      %v1339 = vsel %vm1336, %v1338, %v1334
      %v1340 = vmul.f32 %v1128, %v1339
      %v1341 = vrcp.pop %v1199
      %v1342 = vmul.f32 %v1199, %v1341
      %v1343 = vsub.f32 1.0, %v1342
      %v1344 = vmul.f32 %v1341, %v1343
      %v1345 = vadd.f32 %v1341, %v1344
      %vm1346 = vweird.f32 %v1199
      %vm1347 = vweird.f32 %v1341
      %vm1348 = vmor %vm1346, %vm1347
      %v1349 = vsel %vm1348, %v1341, %v1345
      %v1350 = vand.u32 2147483647, %v1199
      %vm1351 = vcmp.eq.f32.partialorder %v1350, 8.507059e+37
      %v1352 = vand.u32 %v1199, 2147483648
      %v1353 = vor.u32 1.1754944e-38, %v1352
      %v1354 = vsel %vm1351, %v1353, %v1349
      %v1355 = vmul.f32 %v1130, %v1354
      %v1356 = vrcp.pop %v1202
      %v1357 = vmul.f32 %v1202, %v1356
      %v1358 = vsub.f32 1.0, %v1357
      %v1359 = vmul.f32 %v1356, %v1358
      %v1360 = vadd.f32 %v1356, %v1359
      %vm1361 = vweird.f32 %v1202
      %vm1362 = vweird.f32 %v1356
      %vm1363 = vmor %vm1361, %vm1362
      %v1364 = vsel %vm1363, %v1356, %v1360
      %v1365 = vand.u32 2147483647, %v1202
      %vm1366 = vcmp.eq.f32.partialorder %v1365, 8.507059e+37
      %v1367 = vand.u32 %v1202, 2147483648
      %v1368 = vor.u32 1.1754944e-38, %v1367
      %v1369 = vsel %vm1366, %v1368, %v1364
      %v1370 = vmul.f32 %v1132, %v1369
      %v1371 = vrcp.pop %v1205
      %v1372 = vmul.f32 %v1205, %v1371
      %v1373 = vsub.f32 1.0, %v1372
      %v1374 = vmul.f32 %v1371, %v1373
      %v1375 = vadd.f32 %v1371, %v1374
      %vm1376 = vweird.f32 %v1205
      %vm1377 = vweird.f32 %v1371
      %vm1378 = vmor %vm1376, %vm1377
      %v1379 = vsel %vm1378, %v1371, %v1375
      %v1380 = vand.u32 2147483647, %v1205
      %vm1381 = vcmp.eq.f32.partialorder %v1380, 8.507059e+37
      %v1382 = vand.u32 %v1205, 2147483648
      %v1383 = vor.u32 1.1754944e-38, %v1382
      %v1384 = vsel %vm1381, %v1383, %v1379
      %v1385 = vmul.f32 %v1134, %v1384
      %v1386 = vrcp.pop %v1208
      %v1387 = vmul.f32 %v1208, %v1386
      %v1388 = vsub.f32 1.0, %v1387
      %v1389 = vmul.f32 %v1386, %v1388
      %v1390 = vadd.f32 %v1386, %v1389
      %vm1391 = vweird.f32 %v1208
      %vm1392 = vweird.f32 %v1386
      %vm1393 = vmor %vm1391, %vm1392
      %v1394 = vsel %vm1393, %v1386, %v1390
      %v1395 = vand.u32 2147483647, %v1208
      %vm1396 = vcmp.eq.f32.partialorder %v1395, 8.507059e+37
      %v1397 = vand.u32 %v1208, 2147483648
      %v1398 = vor.u32 1.1754944e-38, %v1397
      %v1399 = vsel %vm1396, %v1398, %v1394
      %v1400 = vmul.f32 %v1136, %v1399
      %v1401 = vrcp.pop %v1211
      %v1402 = vmul.f32 %v1211, %v1401
      %v1403 = vsub.f32 1.0, %v1402
      %v1404 = vmul.f32 %v1401, %v1403
      %v1405 = vadd.f32 %v1401, %v1404
      %vm1406 = vweird.f32 %v1211
      %vm1407 = vweird.f32 %v1401
      %vm1408 = vmor %vm1406, %vm1407
      %v1409 = vsel %vm1408, %v1401, %v1405
      %v1410 = vand.u32 2147483647, %v1211
      %vm1411 = vcmp.eq.f32.partialorder %v1410, 8.507059e+37
      %v1412 = vand.u32 %v1211, 2147483648
      %v1413 = vor.u32 1.1754944e-38, %v1412
      %v1414 = vsel %vm1411, %v1413, %v1409
      %v1415 = vmul.f32 %v1138, %v1414
      %v1416 = vrcp.pop %v1214
      %v1417 = vmul.f32 %v1214, %v1416
      %v1418 = vsub.f32 1.0, %v1417
      %v1419 = vmul.f32 %v1416, %v1418
      %v1420 = vadd.f32 %v1416, %v1419
      %vm1421 = vweird.f32 %v1214
      %vm1422 = vweird.f32 %v1416
      %vm1423 = vmor %vm1421, %vm1422
      %v1424 = vsel %vm1423, %v1416, %v1420
      %v1425 = vand.u32 2147483647, %v1214
      %vm1426 = vcmp.eq.f32.partialorder %v1425, 8.507059e+37
      %v1427 = vand.u32 %v1214, 2147483648
      %v1428 = vor.u32 1.1754944e-38, %v1427
      %v1429 = vsel %vm1426, %v1428, %v1424
      %v1430 = vmul.f32 %v1140, %v1429
      %v1431 = vrcp.pop %v1217
      %v1432 = vmul.f32 %v1217, %v1431
      %v1433 = vsub.f32 1.0, %v1432
      %v1434 = vmul.f32 %v1431, %v1433
      %v1435 = vadd.f32 %v1431, %v1434
      %vm1436 = vweird.f32 %v1217
      %vm1437 = vweird.f32 %v1431
      %vm1438 = vmor %vm1436, %vm1437
      %v1439 = vsel %vm1438, %v1431, %v1435
      %v1440 = vand.u32 2147483647, %v1217
      %vm1441 = vcmp.eq.f32.partialorder %v1440, 8.507059e+37
      %v1442 = vand.u32 %v1217, 2147483648
      %v1443 = vor.u32 1.1754944e-38, %v1442
      %v1444 = vsel %vm1441, %v1443, %v1439
      %v1445 = vmul.f32 %v1142, %v1444
      %v1446 = vrcp.pop %v1220
      %v1447 = vmul.f32 %v1220, %v1446
      %v1448 = vsub.f32 1.0, %v1447
      %v1449 = vmul.f32 %v1446, %v1448
      %v1450 = vadd.f32 %v1446, %v1449
      %vm1451 = vweird.f32 %v1220
      %vm1452 = vweird.f32 %v1446
      %vm1453 = vmor %vm1451, %vm1452
      %v1454 = vsel %vm1453, %v1446, %v1450
      %v1455 = vand.u32 2147483647, %v1220
      %vm1456 = vcmp.eq.f32.partialorder %v1455, 8.507059e+37
      %v1457 = vand.u32 %v1220, 2147483648
      %v1458 = vor.u32 1.1754944e-38, %v1457
      %v1459 = vsel %vm1456, %v1458, %v1454
      %v1460 = vmul.f32 %v1144, %v1459
      %v1461 = vrcp.pop %v1223
      %v1462 = vmul.f32 %v1223, %v1461
      %v1463 = vsub.f32 1.0, %v1462
      %v1464 = vmul.f32 %v1461, %v1463
      %v1465 = vadd.f32 %v1461, %v1464
      %vm1466 = vweird.f32 %v1223
      %vm1467 = vweird.f32 %v1461
      %vm1468 = vmor %vm1466, %vm1467
      %v1469 = vsel %vm1468, %v1461, %v1465
      %v1470 = vand.u32 2147483647, %v1223
      %vm1471 = vcmp.eq.f32.partialorder %v1470, 8.507059e+37
      %v1472 = vand.u32 %v1223, 2147483648
      %v1473 = vor.u32 1.1754944e-38, %v1472
      %v1474 = vsel %vm1471, %v1473, %v1469
      %v1475 = vmul.f32 %v1146, %v1474
      %v1476 = vrcp.pop %v1226
      %v1477 = vmul.f32 %v1226, %v1476
      %v1478 = vsub.f32 1.0, %v1477
      %v1479 = vmul.f32 %v1476, %v1478
      %v1480 = vadd.f32 %v1476, %v1479
      %vm1481 = vweird.f32 %v1226
      %vm1482 = vweird.f32 %v1476
      %vm1483 = vmor %vm1481, %vm1482
      %v1484 = vsel %vm1483, %v1476, %v1480
      %v1485 = vand.u32 2147483647, %v1226
      %vm1486 = vcmp.eq.f32.partialorder %v1485, 8.507059e+37
      %v1487 = vand.u32 %v1226, 2147483648
      %v1488 = vor.u32 1.1754944e-38, %v1487
      %v1489 = vsel %vm1486, %v1488, %v1484
      %v1490 = vmul.f32 %v1148, %v1489
      %v1491 = vrcp.pop %v1229
      %v1492 = vmul.f32 %v1229, %v1491
      %v1493 = vsub.f32 1.0, %v1492
      %v1494 = vmul.f32 %v1491, %v1493
      %v1495 = vadd.f32 %v1491, %v1494
      %vm1496 = vweird.f32 %v1229
      %vm1497 = vweird.f32 %v1491
      %vm1498 = vmor %vm1496, %vm1497
      %v1499 = vsel %vm1498, %v1491, %v1495
      %v1500 = vand.u32 2147483647, %v1229
      %vm1501 = vcmp.eq.f32.partialorder %v1500, 8.507059e+37
      %v1502 = vand.u32 %v1229, 2147483648
      %v1503 = vor.u32 1.1754944e-38, %v1502
      %v1504 = vsel %vm1501, %v1503, %v1499
      %v1505 = vmul.f32 %v1150, %v1504
      %v1506 = vrcp.pop %v1232
      %v1507 = vmul.f32 %v1232, %v1506
      %v1508 = vsub.f32 1.0, %v1507
      %v1509 = vmul.f32 %v1506, %v1508
      %v1510 = vadd.f32 %v1506, %v1509
      %vm1511 = vweird.f32 %v1232
      %vm1512 = vweird.f32 %v1506
      %vm1513 = vmor %vm1511, %vm1512
      %v1514 = vsel %vm1513, %v1506, %v1510
      %v1515 = vand.u32 2147483647, %v1232
      %vm1516 = vcmp.eq.f32.partialorder %v1515, 8.507059e+37
      %v1517 = vand.u32 %v1232, 2147483648
      %v1518 = vor.u32 1.1754944e-38, %v1517
      %v1519 = vsel %vm1516, %v1518, %v1514
      %v1520 = vmul.f32 %v1152, %v1519
      %v1521 = vrcp.pop %v1235
      %v1522 = vmul.f32 %v1235, %v1521
      %v1523 = vsub.f32 1.0, %v1522
      %v1524 = vmul.f32 %v1521, %v1523
      %v1525 = vadd.f32 %v1521, %v1524
      %vm1526 = vweird.f32 %v1235
      %vm1527 = vweird.f32 %v1521
      %vm1528 = vmor %vm1526, %vm1527
      %v1529 = vsel %vm1528, %v1521, %v1525
      %v1530 = vand.u32 2147483647, %v1235
      %vm1531 = vcmp.eq.f32.partialorder %v1530, 8.507059e+37
      %v1532 = vand.u32 %v1235, 2147483648
      %v1533 = vor.u32 1.1754944e-38, %v1532
      %v1534 = vsel %vm1531, %v1533, %v1529
      %v1535 = vmul.f32 %v1154, %v1534
      %v1536 = vrcp.pop %v1238
      %v1537 = vmul.f32 %v1238, %v1536
      %v1538 = vsub.f32 1.0, %v1537
      %v1539 = vmul.f32 %v1536, %v1538
      %v1540 = vadd.f32 %v1536, %v1539
      %vm1541 = vweird.f32 %v1238
      %vm1542 = vweird.f32 %v1536
      %vm1543 = vmor %vm1541, %vm1542
      %v1544 = vsel %vm1543, %v1536, %v1540
      %v1545 = vand.u32 2147483647, %v1238
      %vm1546 = vcmp.eq.f32.partialorder %v1545, 8.507059e+37
      %v1547 = vand.u32 %v1238, 2147483648
      %v1548 = vor.u32 1.1754944e-38, %v1547
      %v1549 = vsel %vm1546, %v1548, %v1544
      %v1550 = vmul.f32 %v1156, %v1549
      %v1551 = vrcp.pop %v1241
      %v1552 = vmul.f32 %v1241, %v1551
      %v1553 = vsub.f32 1.0, %v1552
      %v1554 = vmul.f32 %v1551, %v1553
      %v1555 = vadd.f32 %v1551, %v1554
      %vm1556 = vweird.f32 %v1241
      %vm1557 = vweird.f32 %v1551
      %vm1558 = vmor %vm1556, %vm1557
      %v1559 = vsel %vm1558, %v1551, %v1555
      %v1560 = vand.u32 2147483647, %v1241
      %vm1561 = vcmp.eq.f32.partialorder %v1560, 8.507059e+37
      %v1562 = vand.u32 %v1241, 2147483648
      %v1563 = vor.u32 1.1754944e-38, %v1562
      %v1564 = vsel %vm1561, %v1563, %v1559
      %v1565 = vmul.f32 %v1158, %v1564
      %v1566 = vrcp.pop %v1244
      %v1567 = vmul.f32 %v1244, %v1566
      %v1568 = vsub.f32 1.0, %v1567
      %v1569 = vmul.f32 %v1566, %v1568
      %v1570 = vadd.f32 %v1566, %v1569
      %vm1571 = vweird.f32 %v1244
      %vm1572 = vweird.f32 %v1566
      %vm1573 = vmor %vm1571, %vm1572
      %v1574 = vsel %vm1573, %v1566, %v1570
      %v1575 = vand.u32 2147483647, %v1244
      %vm1576 = vcmp.eq.f32.partialorder %v1575, 8.507059e+37
      %v1577 = vand.u32 %v1244, 2147483648
      %v1578 = vor.u32 1.1754944e-38, %v1577
      %v1579 = vsel %vm1576, %v1578, %v1574
      %v1580 = vmul.f32 %v1160, %v1579
      %v1581 = vrcp.pop %v1247
      %v1582 = vmul.f32 %v1247, %v1581
      %v1583 = vsub.f32 1.0, %v1582
      %v1584 = vmul.f32 %v1581, %v1583
      %v1585 = vadd.f32 %v1581, %v1584
      %vm1586 = vweird.f32 %v1247
      %vm1587 = vweird.f32 %v1581
      %vm1588 = vmor %vm1586, %vm1587
      %v1589 = vsel %vm1588, %v1581, %v1585
      %v1590 = vand.u32 2147483647, %v1247
      %vm1591 = vcmp.eq.f32.partialorder %v1590, 8.507059e+37
      %v1592 = vand.u32 %v1247, 2147483648
      %v1593 = vor.u32 1.1754944e-38, %v1592
      %v1594 = vsel %vm1591, %v1593, %v1589
      %v1595 = vmul.f32 %v1162, %v1594
      %v1596 = vrcp.pop %v1250
      %v1597 = vmul.f32 %v1250, %v1596
      %v1598 = vsub.f32 1.0, %v1597
      %v1599 = vmul.f32 %v1596, %v1598
      %v1600 = vadd.f32 %v1596, %v1599
      %vm1601 = vweird.f32 %v1250
      %vm1602 = vweird.f32 %v1596
      %vm1603 = vmor %vm1601, %vm1602
      %v1604 = vsel %vm1603, %v1596, %v1600
      %v1605 = vand.u32 2147483647, %v1250
      %vm1606 = vcmp.eq.f32.partialorder %v1605, 8.507059e+37
      %v1607 = vand.u32 %v1250, 2147483648
      %v1608 = vor.u32 1.1754944e-38, %v1607
      %v1609 = vsel %vm1606, %v1608, %v1604
      %v1610 = vmul.f32 %v1164, %v1609
      %v1611 = vrcp.pop %v1253
      %v1612 = vmul.f32 %v1253, %v1611
      %v1613 = vsub.f32 1.0, %v1612
      %v1614 = vmul.f32 %v1611, %v1613
      %v1615 = vadd.f32 %v1611, %v1614
      %vm1616 = vweird.f32 %v1253
      %vm1617 = vweird.f32 %v1611
      %vm1618 = vmor %vm1616, %vm1617
      %v1619 = vsel %vm1618, %v1611, %v1615
      %v1620 = vand.u32 2147483647, %v1253
      %vm1621 = vcmp.eq.f32.partialorder %v1620, 8.507059e+37
      %v1622 = vand.u32 %v1253, 2147483648
      %v1623 = vor.u32 1.1754944e-38, %v1622
      %v1624 = vsel %vm1621, %v1623, %v1619
      %v1625 = vmul.f32 %v1166, %v1624
      %v1626 = vrcp.pop %v1256
      %v1627 = vmul.f32 %v1256, %v1626
      %v1628 = vsub.f32 1.0, %v1627
      %v1629 = vmul.f32 %v1626, %v1628
      %v1630 = vadd.f32 %v1626, %v1629
      %vm1631 = vweird.f32 %v1256
      %vm1632 = vweird.f32 %v1626
      %vm1633 = vmor %vm1631, %vm1632
      %v1634 = vsel %vm1633, %v1626, %v1630
      %v1635 = vand.u32 2147483647, %v1256
      %vm1636 = vcmp.eq.f32.partialorder %v1635, 8.507059e+37
      %v1637 = vand.u32 %v1256, 2147483648
      %v1638 = vor.u32 1.1754944e-38, %v1637
      %v1639 = vsel %vm1636, %v1638, %v1634
      %v1640 = vmul.f32 %v1168, %v1639
      %v1641 = vrcp.pop %v1259
      %v1642 = vmul.f32 %v1259, %v1641
      %v1643 = vsub.f32 1.0, %v1642
      %v1644 = vmul.f32 %v1641, %v1643
      %v1645 = vadd.f32 %v1641, %v1644
      %vm1646 = vweird.f32 %v1259
      %vm1647 = vweird.f32 %v1641
      %vm1648 = vmor %vm1646, %vm1647
      %v1649 = vsel %vm1648, %v1641, %v1645
      %v1650 = vand.u32 2147483647, %v1259
      %vm1651 = vcmp.eq.f32.partialorder %v1650, 8.507059e+37
      %v1652 = vand.u32 %v1259, 2147483648
      %v1653 = vor.u32 1.1754944e-38, %v1652
      %v1654 = vsel %vm1651, %v1653, %v1649
      %v1655 = vmul.f32 %v1170, %v1654
      %v1656 = vrcp.pop %v1262
      %v1657 = vmul.f32 %v1262, %v1656
      %v1658 = vsub.f32 1.0, %v1657
      %v1659 = vmul.f32 %v1656, %v1658
      %v1660 = vadd.f32 %v1656, %v1659
      %vm1661 = vweird.f32 %v1262
      %vm1662 = vweird.f32 %v1656
      %vm1663 = vmor %vm1661, %vm1662
      %v1664 = vsel %vm1663, %v1656, %v1660
      %v1665 = vand.u32 2147483647, %v1262
      %vm1666 = vcmp.eq.f32.partialorder %v1665, 8.507059e+37
      %v1667 = vand.u32 %v1262, 2147483648
      %v1668 = vor.u32 1.1754944e-38, %v1667
      %v1669 = vsel %vm1666, %v1668, %v1664
      %v1670 = vmul.f32 %v1172, %v1669
      %v1671 = vrcp.pop %v1265
      %v1672 = vmul.f32 %v1265, %v1671
      %v1673 = vsub.f32 1.0, %v1672
      %v1674 = vmul.f32 %v1671, %v1673
      %v1675 = vadd.f32 %v1671, %v1674
      %vm1676 = vweird.f32 %v1265
      %vm1677 = vweird.f32 %v1671
      %vm1678 = vmor %vm1676, %vm1677
      %v1679 = vsel %vm1678, %v1671, %v1675
      %v1680 = vand.u32 2147483647, %v1265
      %vm1681 = vcmp.eq.f32.partialorder %v1680, 8.507059e+37
      %v1682 = vand.u32 %v1265, 2147483648
      %v1683 = vor.u32 1.1754944e-38, %v1682
      %v1684 = vsel %vm1681, %v1683, %v1679
      %v1685 = vmul.f32 %v1174, %v1684
      %v1686 = vrcp.pop %v1268
      %v1687 = vmul.f32 %v1268, %v1686
      %v1688 = vsub.f32 1.0, %v1687
      %v1689 = vmul.f32 %v1686, %v1688
      %v1690 = vadd.f32 %v1686, %v1689
      %vm1691 = vweird.f32 %v1268
      %vm1692 = vweird.f32 %v1686
      %vm1693 = vmor %vm1691, %vm1692
      %v1694 = vsel %vm1693, %v1686, %v1690
      %v1695 = vand.u32 2147483647, %v1268
      %vm1696 = vcmp.eq.f32.partialorder %v1695, 8.507059e+37
      %v1697 = vand.u32 %v1268, 2147483648
      %v1698 = vor.u32 1.1754944e-38, %v1697
      %v1699 = vsel %vm1696, %v1698, %v1694
      %v1700 = vmul.f32 %v1176, %v1699
      %v1701 = vrcp.pop %v1271
      %v1702 = vmul.f32 %v1271, %v1701
      %v1703 = vsub.f32 1.0, %v1702
      %v1704 = vmul.f32 %v1701, %v1703
      %v1705 = vadd.f32 %v1701, %v1704
      %vm1706 = vweird.f32 %v1271
      %vm1707 = vweird.f32 %v1701
      %vm1708 = vmor %vm1706, %vm1707
      %v1709 = vsel %vm1708, %v1701, %v1705
      %v1710 = vand.u32 2147483647, %v1271
      %vm1711 = vcmp.eq.f32.partialorder %v1710, 8.507059e+37
      %v1712 = vand.u32 %v1271, 2147483648
      %v1713 = vor.u32 1.1754944e-38, %v1712
      %v1714 = vsel %vm1711, %v1713, %v1709
      %v1715 = vmul.f32 %v1178, %v1714
      %v1716 = vrcp.pop %v1274
      %v1717 = vmul.f32 %v1274, %v1716
      %v1718 = vsub.f32 1.0, %v1717
      %v1719 = vmul.f32 %v1716, %v1718
      %v1720 = vadd.f32 %v1716, %v1719
      %vm1721 = vweird.f32 %v1274
      %vm1722 = vweird.f32 %v1716
      %vm1723 = vmor %vm1721, %vm1722
      %v1724 = vsel %vm1723, %v1716, %v1720
      %v1725 = vand.u32 2147483647, %v1274
      %vm1726 = vcmp.eq.f32.partialorder %v1725, 8.507059e+37
      %v1727 = vand.u32 %v1274, 2147483648
      %v1728 = vor.u32 1.1754944e-38, %v1727
      %v1729 = vsel %vm1726, %v1728, %v1724
      %v1730 = vmul.f32 %v1180, %v1729
      %v1731 = vrcp.pop %v1277
      %v1732 = vmul.f32 %v1277, %v1731
      %v1733 = vsub.f32 1.0, %v1732
      %v1734 = vmul.f32 %v1731, %v1733
      %v1735 = vadd.f32 %v1731, %v1734
      %vm1736 = vweird.f32 %v1277
      %vm1737 = vweird.f32 %v1731
      %vm1738 = vmor %vm1736, %vm1737
      %v1739 = vsel %vm1738, %v1731, %v1735
      %v1740 = vand.u32 2147483647, %v1277
      %vm1741 = vcmp.eq.f32.partialorder %v1740, 8.507059e+37
      %v1742 = vand.u32 %v1277, 2147483648
      %v1743 = vor.u32 1.1754944e-38, %v1742
      %v1744 = vsel %vm1741, %v1743, %v1739
      %v1745 = vmul.f32 %v1182, %v1744
      %v1746 = vrcp.pop %v1280
      %v1747 = vmul.f32 %v1280, %v1746
      %v1748 = vsub.f32 1.0, %v1747
      %v1749 = vmul.f32 %v1746, %v1748
      %v1750 = vadd.f32 %v1746, %v1749
      %vm1751 = vweird.f32 %v1280
      %vm1752 = vweird.f32 %v1746
      %vm1753 = vmor %vm1751, %vm1752
      %v1754 = vsel %vm1753, %v1746, %v1750
      %v1755 = vand.u32 2147483647, %v1280
      %vm1756 = vcmp.eq.f32.partialorder %v1755, 8.507059e+37
      %v1757 = vand.u32 %v1280, 2147483648
      %v1758 = vor.u32 1.1754944e-38, %v1757
      %v1759 = vsel %vm1756, %v1758, %v1754
      %v1760 = vmul.f32 %v1184, %v1759
      %v1761 = vpack.c.bf16 %v1295, %v1295
      %v1762 = vpack.c.bf16 %v1310, %v1310
      %v1763 = vpack.c.bf16 %v1325, %v1325
      %v1764 = vpack.c.bf16 %v1340, %v1340
      %v1765 = vpack.c.bf16 %v1355, %v1355
      %v1766 = vpack.c.bf16 %v1370, %v1370
      %v1767 = vpack.c.bf16 %v1385, %v1385
      %v1768 = vpack.c.bf16 %v1400, %v1400
      %v1769 = vpack.c.bf16 %v1415, %v1415
      %v1770 = vpack.c.bf16 %v1430, %v1430
      %v1771 = vpack.c.bf16 %v1445, %v1445
      %v1772 = vpack.c.bf16 %v1460, %v1460
      %v1773 = vpack.c.bf16 %v1475, %v1475
      %v1774 = vpack.c.bf16 %v1490, %v1490
      %v1775 = vpack.c.bf16 %v1505, %v1505
      %v1776 = vpack.c.bf16 %v1520, %v1520
      %v1777 = vpack.c.bf16 %v1535, %v1535
      %v1778 = vpack.c.bf16 %v1550, %v1550
      %v1779 = vpack.c.bf16 %v1565, %v1565
      %v1780 = vpack.c.bf16 %v1580, %v1580
      %v1781 = vpack.c.bf16 %v1595, %v1595
      %v1782 = vpack.c.bf16 %v1610, %v1610
      %v1783 = vpack.c.bf16 %v1625, %v1625
      %v1784 = vpack.c.bf16 %v1640, %v1640
      %v1785 = vpack.c.bf16 %v1655, %v1655
      %v1786 = vpack.c.bf16 %v1670, %v1670
      %v1787 = vpack.c.bf16 %v1685, %v1685
      %v1788 = vpack.c.bf16 %v1700, %v1700
      %v1789 = vpack.c.bf16 %v1715, %v1715
      %v1790 = vpack.c.bf16 %v1730, %v1730
      %v1791 = vpack.c.bf16 %v1745, %v1745
      %v1792 = vpack.c.bf16 %v1760, %v1760
      %v1795 = vunpack.c.l.b16 %v1761
      %v1796 = vunpack.c.l.b16 %v1762
      %v1797 = vpack.c.b16 %v1796, %v1795
      %1798 = vrot.lane.b32.xlu0 %v564, 64
      %v1799 = vpop.permute.xlu0 %1798
      %v1802 = vsel %vm567, %v1797, 0
      %1804 = vmatpush.bf16.msra.mxu0 0
      %1805 = vmatpush.bf16.msra.mxu0 0
      %1806 = vmatpush.bf16.msra.mxu0 0
      %1807 = vmatpush.bf16.msra.mxu0 0
      %1808 = vmatpush.bf16.msra.mxu0 0
      %1809 = vmatpush.bf16.msra.mxu0 0
      %1810 = vmatpush.bf16.msra.mxu0 0
      %1811 = vmatpush.bf16.msra.mxu0 %v1799
      %1812 = vmatmul.bf16.gmra.mxu0 %v1802
      %v1813 = vpop.f32.mrf.mxu0
      %v1814 = vadd.f32 0.0, %v1813
      %v1815 = vpop.f32.mrf.mxu0
      %v1816 = vadd.f32 0.0, %v1815
      %1817 = vdwg.mxu0
      %v1820 = vunpack.c.l.b16 %v1763
      %v1821 = vunpack.c.l.b16 %v1764
      %v1822 = vpack.c.b16 %v1821, %v1820
      %1823 = vrot.lane.b32.xlu0 %v592, 64
      %v1824 = vpop.permute.xlu0 %1823
      %v1827 = vsel %vm567, %v1822, 0
      %1829 = vmatpush.bf16.msra.mxu0 0
      %1830 = vmatpush.bf16.msra.mxu0 0
      %1831 = vmatpush.bf16.msra.mxu0 0
      %1832 = vmatpush.bf16.msra.mxu0 0
      %1833 = vmatpush.bf16.msra.mxu0 0
      %1834 = vmatpush.bf16.msra.mxu0 0
      %1835 = vmatpush.bf16.msra.mxu0 0
      %1836 = vmatpush.bf16.msra.mxu0 %v1824
      %1837 = vmatmul.bf16.gmra.mxu0 %v1827
      %v1838 = vpop.f32.mrf.mxu0
      %v1839 = vadd.f32 0.0, %v1838
      %v1840 = vpop.f32.mrf.mxu0
      %v1841 = vadd.f32 0.0, %v1840
      %1842 = vdwg.mxu0
      %v1845 = vunpack.c.l.b16 %v1765
      %v1846 = vunpack.c.l.b16 %v1766
      %v1847 = vpack.c.b16 %v1846, %v1845
      %1848 = vrot.lane.b32.xlu0 %v619, 64
      %v1849 = vpop.permute.xlu0 %1848
      %v1852 = vsel %vm567, %v1847, 0
      %1854 = vmatpush.bf16.msra.mxu0 0
      %1855 = vmatpush.bf16.msra.mxu0 0
      %1856 = vmatpush.bf16.msra.mxu0 0
      %1857 = vmatpush.bf16.msra.mxu0 0
      %1858 = vmatpush.bf16.msra.mxu0 0
      %1859 = vmatpush.bf16.msra.mxu0 0
      %1860 = vmatpush.bf16.msra.mxu0 0
      %1861 = vmatpush.bf16.msra.mxu0 %v1849
      %1862 = vmatmul.bf16.gmra.mxu0 %v1852
      %v1863 = vpop.f32.mrf.mxu0
      %v1864 = vadd.f32 0.0, %v1863
      %v1865 = vpop.f32.mrf.mxu0
      %v1866 = vadd.f32 0.0, %v1865
      %1867 = vdwg.mxu0
      %v1870 = vunpack.c.l.b16 %v1767
      %v1871 = vunpack.c.l.b16 %v1768
      %v1872 = vpack.c.b16 %v1871, %v1870
      %1873 = vrot.lane.b32.xlu0 %v646, 64
      %v1874 = vpop.permute.xlu0 %1873
      %v1877 = vsel %vm567, %v1872, 0
      %1879 = vmatpush.bf16.msra.mxu0 0
      %1880 = vmatpush.bf16.msra.mxu0 0
      %1881 = vmatpush.bf16.msra.mxu0 0
      %1882 = vmatpush.bf16.msra.mxu0 0
      %1883 = vmatpush.bf16.msra.mxu0 0
      %1884 = vmatpush.bf16.msra.mxu0 0
      %1885 = vmatpush.bf16.msra.mxu0 0
      %1886 = vmatpush.bf16.msra.mxu0 %v1874
      %1887 = vmatmul.bf16.gmra.mxu0 %v1877
      %v1888 = vpop.f32.mrf.mxu0
      %v1889 = vadd.f32 0.0, %v1888
      %v1890 = vpop.f32.mrf.mxu0
      %v1891 = vadd.f32 0.0, %v1890
      %1892 = vdwg.mxu0
      %v1895 = vunpack.c.l.b16 %v1769
      %v1896 = vunpack.c.l.b16 %v1770
      %v1897 = vpack.c.b16 %v1896, %v1895
      %1898 = vrot.lane.b32.xlu0 %v673, 64
      %v1899 = vpop.permute.xlu0 %1898
      %v1902 = vsel %vm567, %v1897, 0
      %1904 = vmatpush.bf16.msra.mxu0 0
      %1905 = vmatpush.bf16.msra.mxu0 0
      %1906 = vmatpush.bf16.msra.mxu0 0
      %1907 = vmatpush.bf16.msra.mxu0 0
      %1908 = vmatpush.bf16.msra.mxu0 0
      %1909 = vmatpush.bf16.msra.mxu0 0
      %1910 = vmatpush.bf16.msra.mxu0 0
      %1911 = vmatpush.bf16.msra.mxu0 %v1899
      %1912 = vmatmul.bf16.gmra.mxu0 %v1902
      %v1913 = vpop.f32.mrf.mxu0
      %v1914 = vadd.f32 0.0, %v1913
      %v1915 = vpop.f32.mrf.mxu0
      %v1916 = vadd.f32 0.0, %v1915
      %1917 = vdwg.mxu0
      %v1920 = vunpack.c.l.b16 %v1771
      %v1921 = vunpack.c.l.b16 %v1772
      %v1922 = vpack.c.b16 %v1921, %v1920
      %1923 = vrot.lane.b32.xlu0 %v700, 64
      %v1924 = vpop.permute.xlu0 %1923
      %v1927 = vsel %vm567, %v1922, 0
      %1929 = vmatpush.bf16.msra.mxu0 0
      %1930 = vmatpush.bf16.msra.mxu0 0
      %1931 = vmatpush.bf16.msra.mxu0 0
      %1932 = vmatpush.bf16.msra.mxu0 0
      %1933 = vmatpush.bf16.msra.mxu0 0
      %1934 = vmatpush.bf16.msra.mxu0 0
      %1935 = vmatpush.bf16.msra.mxu0 0
      %1936 = vmatpush.bf16.msra.mxu0 %v1924
      %1937 = vmatmul.bf16.gmra.mxu0 %v1927
      %v1938 = vpop.f32.mrf.mxu0
      %v1939 = vadd.f32 0.0, %v1938
      %v1940 = vpop.f32.mrf.mxu0
      %v1941 = vadd.f32 0.0, %v1940
      %1942 = vdwg.mxu0
      %v1945 = vunpack.c.l.b16 %v1773
      %v1946 = vunpack.c.l.b16 %v1774
      %v1947 = vpack.c.b16 %v1946, %v1945
      %1948 = vrot.lane.b32.xlu0 %v727, 64
      %v1949 = vpop.permute.xlu0 %1948
      %v1952 = vsel %vm567, %v1947, 0
      %1954 = vmatpush.bf16.msra.mxu0 0
      %1955 = vmatpush.bf16.msra.mxu0 0
      %1956 = vmatpush.bf16.msra.mxu0 0
      %1957 = vmatpush.bf16.msra.mxu0 0
      %1958 = vmatpush.bf16.msra.mxu0 0
      %1959 = vmatpush.bf16.msra.mxu0 0
      %1960 = vmatpush.bf16.msra.mxu0 0
      %1961 = vmatpush.bf16.msra.mxu0 %v1949
      %1962 = vmatmul.bf16.gmra.mxu0 %v1952
      %v1963 = vpop.f32.mrf.mxu0
      %v1964 = vadd.f32 0.0, %v1963
      %v1965 = vpop.f32.mrf.mxu0
      %v1966 = vadd.f32 0.0, %v1965
      %1967 = vdwg.mxu0
      %v1970 = vunpack.c.l.b16 %v1775
      %v1971 = vunpack.c.l.b16 %v1776
      %v1972 = vpack.c.b16 %v1971, %v1970
      %1973 = vrot.lane.b32.xlu0 %v754, 64
      %v1974 = vpop.permute.xlu0 %1973
      %v1977 = vsel %vm567, %v1972, 0
      %1979 = vmatpush.bf16.msra.mxu0 0
      %1980 = vmatpush.bf16.msra.mxu0 0
      %1981 = vmatpush.bf16.msra.mxu0 0
      %1982 = vmatpush.bf16.msra.mxu0 0
      %1983 = vmatpush.bf16.msra.mxu0 0
      %1984 = vmatpush.bf16.msra.mxu0 0
      %1985 = vmatpush.bf16.msra.mxu0 0
      %1986 = vmatpush.bf16.msra.mxu0 %v1974
      %1987 = vmatmul.bf16.gmra.mxu0 %v1977
      %v1988 = vpop.f32.mrf.mxu0
      %v1989 = vadd.f32 0.0, %v1988
      %v1990 = vpop.f32.mrf.mxu0
      %v1991 = vadd.f32 0.0, %v1990
      %1992 = vdwg.mxu0
      %v1995 = vunpack.c.l.b16 %v1777
      %v1996 = vunpack.c.l.b16 %v1778
      %v1997 = vpack.c.b16 %v1996, %v1995
      %1998 = vrot.lane.b32.xlu0 %v781, 64
      %v1999 = vpop.permute.xlu0 %1998
      %v2002 = vsel %vm567, %v1997, 0
      %2004 = vmatpush.bf16.msra.mxu0 0
      %2005 = vmatpush.bf16.msra.mxu0 0
      %2006 = vmatpush.bf16.msra.mxu0 0
      %2007 = vmatpush.bf16.msra.mxu0 0
      %2008 = vmatpush.bf16.msra.mxu0 0
      %2009 = vmatpush.bf16.msra.mxu0 0
      %2010 = vmatpush.bf16.msra.mxu0 0
      %2011 = vmatpush.bf16.msra.mxu0 %v1999
      %2012 = vmatmul.bf16.gmra.mxu0 %v2002
      %v2013 = vpop.f32.mrf.mxu0
      %v2014 = vadd.f32 0.0, %v2013
      %v2015 = vpop.f32.mrf.mxu0
      %v2016 = vadd.f32 0.0, %v2015
      %2017 = vdwg.mxu0
      %v2020 = vunpack.c.l.b16 %v1779
      %v2021 = vunpack.c.l.b16 %v1780
      %v2022 = vpack.c.b16 %v2021, %v2020
      %2023 = vrot.lane.b32.xlu0 %v808, 64
      %v2024 = vpop.permute.xlu0 %2023
      %v2027 = vsel %vm567, %v2022, 0
      %2029 = vmatpush.bf16.msra.mxu0 0
      %2030 = vmatpush.bf16.msra.mxu0 0
      %2031 = vmatpush.bf16.msra.mxu0 0
      %2032 = vmatpush.bf16.msra.mxu0 0
      %2033 = vmatpush.bf16.msra.mxu0 0
      %2034 = vmatpush.bf16.msra.mxu0 0
      %2035 = vmatpush.bf16.msra.mxu0 0
      %2036 = vmatpush.bf16.msra.mxu0 %v2024
      %2037 = vmatmul.bf16.gmra.mxu0 %v2027
      %v2038 = vpop.f32.mrf.mxu0
      %v2039 = vadd.f32 0.0, %v2038
      %v2040 = vpop.f32.mrf.mxu0
      %v2041 = vadd.f32 0.0, %v2040
      %2042 = vdwg.mxu0
      %v2045 = vunpack.c.l.b16 %v1781
      %v2046 = vunpack.c.l.b16 %v1782
      %v2047 = vpack.c.b16 %v2046, %v2045
      %2048 = vrot.lane.b32.xlu0 %v835, 64
      %v2049 = vpop.permute.xlu0 %2048
      %v2052 = vsel %vm567, %v2047, 0
      %2054 = vmatpush.bf16.msra.mxu0 0
      %2055 = vmatpush.bf16.msra.mxu0 0
      %2056 = vmatpush.bf16.msra.mxu0 0
      %2057 = vmatpush.bf16.msra.mxu0 0
      %2058 = vmatpush.bf16.msra.mxu0 0
      %2059 = vmatpush.bf16.msra.mxu0 0
      %2060 = vmatpush.bf16.msra.mxu0 0
      %2061 = vmatpush.bf16.msra.mxu0 %v2049
      %2062 = vmatmul.bf16.gmra.mxu0 %v2052
      %v2063 = vpop.f32.mrf.mxu0
      %v2064 = vadd.f32 0.0, %v2063
      %v2065 = vpop.f32.mrf.mxu0
      %v2066 = vadd.f32 0.0, %v2065
      %2067 = vdwg.mxu0
      %v2070 = vunpack.c.l.b16 %v1783
      %v2071 = vunpack.c.l.b16 %v1784
      %v2072 = vpack.c.b16 %v2071, %v2070
      %2073 = vrot.lane.b32.xlu0 %v862, 64
      %v2074 = vpop.permute.xlu0 %2073
      %v2077 = vsel %vm567, %v2072, 0
      %2079 = vmatpush.bf16.msra.mxu0 0
      %2080 = vmatpush.bf16.msra.mxu0 0
      %2081 = vmatpush.bf16.msra.mxu0 0
      %2082 = vmatpush.bf16.msra.mxu0 0
      %2083 = vmatpush.bf16.msra.mxu0 0
      %2084 = vmatpush.bf16.msra.mxu0 0
      %2085 = vmatpush.bf16.msra.mxu0 0
      %2086 = vmatpush.bf16.msra.mxu0 %v2074
      %2087 = vmatmul.bf16.gmra.mxu0 %v2077
      %v2088 = vpop.f32.mrf.mxu0
      %v2089 = vadd.f32 0.0, %v2088
      %v2090 = vpop.f32.mrf.mxu0
      %v2091 = vadd.f32 0.0, %v2090
      %2092 = vdwg.mxu0
      %v2095 = vunpack.c.l.b16 %v1785
      %v2096 = vunpack.c.l.b16 %v1786
      %v2097 = vpack.c.b16 %v2096, %v2095
      %2098 = vrot.lane.b32.xlu0 %v889, 64
      %v2099 = vpop.permute.xlu0 %2098
      %v2102 = vsel %vm567, %v2097, 0
      %2104 = vmatpush.bf16.msra.mxu0 0
      %2105 = vmatpush.bf16.msra.mxu0 0
      %2106 = vmatpush.bf16.msra.mxu0 0
      %2107 = vmatpush.bf16.msra.mxu0 0
      %2108 = vmatpush.bf16.msra.mxu0 0
      %2109 = vmatpush.bf16.msra.mxu0 0
      %2110 = vmatpush.bf16.msra.mxu0 0
      %2111 = vmatpush.bf16.msra.mxu0 %v2099
      %2112 = vmatmul.bf16.gmra.mxu0 %v2102
      %v2113 = vpop.f32.mrf.mxu0
      %v2114 = vadd.f32 0.0, %v2113
      %v2115 = vpop.f32.mrf.mxu0
      %v2116 = vadd.f32 0.0, %v2115
      %2117 = vdwg.mxu0
      %v2120 = vunpack.c.l.b16 %v1787
      %v2121 = vunpack.c.l.b16 %v1788
      %v2122 = vpack.c.b16 %v2121, %v2120
      %2123 = vrot.lane.b32.xlu0 %v916, 64
      %v2124 = vpop.permute.xlu0 %2123
      %v2127 = vsel %vm567, %v2122, 0
      %2129 = vmatpush.bf16.msra.mxu0 0
      %2130 = vmatpush.bf16.msra.mxu0 0
      %2131 = vmatpush.bf16.msra.mxu0 0
      %2132 = vmatpush.bf16.msra.mxu0 0
      %2133 = vmatpush.bf16.msra.mxu0 0
      %2134 = vmatpush.bf16.msra.mxu0 0
      %2135 = vmatpush.bf16.msra.mxu0 0
      %2136 = vmatpush.bf16.msra.mxu0 %v2124
      %2137 = vmatmul.bf16.gmra.mxu0 %v2127
      %v2138 = vpop.f32.mrf.mxu0
      %v2139 = vadd.f32 0.0, %v2138
      %v2140 = vpop.f32.mrf.mxu0
      %v2141 = vadd.f32 0.0, %v2140
      %2142 = vdwg.mxu0
      %v2145 = vunpack.c.l.b16 %v1789
      %v2146 = vunpack.c.l.b16 %v1790
      %v2147 = vpack.c.b16 %v2146, %v2145
      %2148 = vrot.lane.b32.xlu0 %v943, 64
      %v2149 = vpop.permute.xlu0 %2148
      %v2152 = vsel %vm567, %v2147, 0
      %2154 = vmatpush.bf16.msra.mxu0 0
      %2155 = vmatpush.bf16.msra.mxu0 0
      %2156 = vmatpush.bf16.msra.mxu0 0
      %2157 = vmatpush.bf16.msra.mxu0 0
      %2158 = vmatpush.bf16.msra.mxu0 0
      %2159 = vmatpush.bf16.msra.mxu0 0
      %2160 = vmatpush.bf16.msra.mxu0 0
      %2161 = vmatpush.bf16.msra.mxu0 %v2149
      %2162 = vmatmul.bf16.gmra.mxu0 %v2152
      %v2163 = vpop.f32.mrf.mxu0
      %v2164 = vadd.f32 0.0, %v2163
      %v2165 = vpop.f32.mrf.mxu0
      %v2166 = vadd.f32 0.0, %v2165
      %2167 = vdwg.mxu0
      %v2170 = vunpack.c.l.b16 %v1791
      %v2171 = vunpack.c.l.b16 %v1792
      %v2172 = vpack.c.b16 %v2171, %v2170
      %2173 = vrot.lane.b32.xlu0 %v970, 64
      %v2174 = vpop.permute.xlu0 %2173
      %v2177 = vsel %vm567, %v2172, 0
      %2179 = vmatpush.bf16.msra.mxu0 0
      %2180 = vmatpush.bf16.msra.mxu0 0
      %2181 = vmatpush.bf16.msra.mxu0 0
      %2182 = vmatpush.bf16.msra.mxu0 0
      %2183 = vmatpush.bf16.msra.mxu0 0
      %2184 = vmatpush.bf16.msra.mxu0 0
      %2185 = vmatpush.bf16.msra.mxu0 0
      %2186 = vmatpush.bf16.msra.mxu0 %v2174
      %2187 = vmatmul.bf16.gmra.mxu0 %v2177
      %v2188 = vpop.f32.mrf.mxu0
      %v2189 = vadd.f32 0.0, %v2188
      %v2190 = vpop.f32.mrf.mxu0
      %v2191 = vadd.f32 0.0, %v2190
      %2192 = vdwg.mxu0
      %v2193 = vpack.c.bf16 %v1816, %v1814
      %v2194 = vpack.c.bf16 %v1841, %v1839
      %v2195 = vpack.c.bf16 %v1866, %v1864
      %v2196 = vpack.c.bf16 %v1891, %v1889
      %v2197 = vpack.c.bf16 %v1916, %v1914
      %v2198 = vpack.c.bf16 %v1941, %v1939
      %v2199 = vpack.c.bf16 %v1966, %v1964
      %v2200 = vpack.c.bf16 %v1991, %v1989
      %v2201 = vpack.c.bf16 %v2016, %v2014
      %v2202 = vpack.c.bf16 %v2041, %v2039
      %v2203 = vpack.c.bf16 %v2066, %v2064
      %v2204 = vpack.c.bf16 %v2091, %v2089
      %v2205 = vpack.c.bf16 %v2116, %v2114
      %v2206 = vpack.c.bf16 %v2141, %v2139
      %v2207 = vpack.c.bf16 %v2166, %v2164
      %v2208 = vpack.c.bf16 %v2191, %v2189
      %v2209 = vld [vmem:[%s4] sm:$0xf]
      %v2210 = vld [vmem:[%s4 + $0x4] sm:$0xf]
      %s2211 = scalar_lea.vmem %s3, 16
      %v2212 = vld [vmem:[%s2211] sm:$0xff]
      %v2213 = vld [vmem:[%s2211 + $0x8] sm:$0xff]
      %2214 = vrot.lane.b32.xlu0 %v564, 112
      %v2215 = vpop.permute.xlu0 %2214
      %2216 = vrot.lane.b32.xlu0 %v564, 80
      %v2217 = vpop.permute.xlu0 %2216
      %v2219 = vsel %vm567, %v2215, 0
      %v2222 = vsel %vm567, %v2217, 0
      %2224 = vmatpush.bf16.xpose.msra.mxu0 0
      %2225 = vmatpush.bf16.xpose.msra.mxu0 0
      %2226 = vmatpush.bf16.xpose.msra.mxu0 0
      %2227 = vmatpush.bf16.xpose.msra.mxu0 0
      %2228 = vmatpush.bf16.xpose.msra.mxu0 0
      %2229 = vmatpush.bf16.xpose.msra.mxu0 0
      %2230 = vmatpush.bf16.xpose.msra.mxu0 0
      %2231 = vmatpush.bf16.xpose.msra.mxu0 %v2222
      %2232 = vmatmul.bf16.gmra.mxu0 %v2219
      %v2233 = vpop.f32.mrf.mxu0
      %v2234 = vadd.f32 %v2212, %v2233
      %v2235 = vpop.f32.mrf.mxu0
      %v2236 = vadd.f32 %v2213, %v2235
      %2237 = vdwg.mxu0
      %2238 = vrot.lane.b32.xlu0 %v592, 112
      %v2239 = vpop.permute.xlu0 %2238
      %2240 = vrot.lane.b32.xlu0 %v592, 80
      %v2241 = vpop.permute.xlu0 %2240
      %v2243 = vsel %vm567, %v2239, 0
      %v2246 = vsel %vm567, %v2241, 0
      %2248 = vmatpush.bf16.xpose.msra.mxu0 0
      %2249 = vmatpush.bf16.xpose.msra.mxu0 0
      %2250 = vmatpush.bf16.xpose.msra.mxu0 0
      %2251 = vmatpush.bf16.xpose.msra.mxu0 0
      %2252 = vmatpush.bf16.xpose.msra.mxu0 0
      %2253 = vmatpush.bf16.xpose.msra.mxu0 0
      %2254 = vmatpush.bf16.xpose.msra.mxu0 0
      %2255 = vmatpush.bf16.xpose.msra.mxu0 %v2246
      %2256 = vmatmul.bf16.gmra.mxu0 %v2243
      %v2257 = vpop.f32.mrf.mxu0
      %v2258 = vadd.f32 %v2212, %v2257
      %v2259 = vpop.f32.mrf.mxu0
      %v2260 = vadd.f32 %v2213, %v2259
      %2261 = vdwg.mxu0
      %2262 = vrot.lane.b32.xlu0 %v619, 112
      %v2263 = vpop.permute.xlu0 %2262
      %2264 = vrot.lane.b32.xlu0 %v619, 80
      %v2265 = vpop.permute.xlu0 %2264
      %v2267 = vsel %vm567, %v2263, 0
      %v2270 = vsel %vm567, %v2265, 0
      %2272 = vmatpush.bf16.xpose.msra.mxu0 0
      %2273 = vmatpush.bf16.xpose.msra.mxu0 0
      %2274 = vmatpush.bf16.xpose.msra.mxu0 0
      %2275 = vmatpush.bf16.xpose.msra.mxu0 0
      %2276 = vmatpush.bf16.xpose.msra.mxu0 0
      %2277 = vmatpush.bf16.xpose.msra.mxu0 0
      %2278 = vmatpush.bf16.xpose.msra.mxu0 0
      %2279 = vmatpush.bf16.xpose.msra.mxu0 %v2270
      %2280 = vmatmul.bf16.gmra.mxu0 %v2267
      %v2281 = vpop.f32.mrf.mxu0
      %v2282 = vadd.f32 %v2212, %v2281
      %v2283 = vpop.f32.mrf.mxu0
      %v2284 = vadd.f32 %v2213, %v2283
      %2285 = vdwg.mxu0
      %2286 = vrot.lane.b32.xlu0 %v646, 112
      %v2287 = vpop.permute.xlu0 %2286
      %2288 = vrot.lane.b32.xlu0 %v646, 80
      %v2289 = vpop.permute.xlu0 %2288
      %v2291 = vsel %vm567, %v2287, 0
      %v2294 = vsel %vm567, %v2289, 0
      %2296 = vmatpush.bf16.xpose.msra.mxu0 0
      %2297 = vmatpush.bf16.xpose.msra.mxu0 0
      %2298 = vmatpush.bf16.xpose.msra.mxu0 0
      %2299 = vmatpush.bf16.xpose.msra.mxu0 0
      %2300 = vmatpush.bf16.xpose.msra.mxu0 0
      %2301 = vmatpush.bf16.xpose.msra.mxu0 0
      %2302 = vmatpush.bf16.xpose.msra.mxu0 0
      %2303 = vmatpush.bf16.xpose.msra.mxu0 %v2294
      %2304 = vmatmul.bf16.gmra.mxu0 %v2291
      %v2305 = vpop.f32.mrf.mxu0
      %v2306 = vadd.f32 %v2212, %v2305
      %v2307 = vpop.f32.mrf.mxu0
      %v2308 = vadd.f32 %v2213, %v2307
      %2309 = vdwg.mxu0
      %2310 = vrot.lane.b32.xlu0 %v673, 112
      %v2311 = vpop.permute.xlu0 %2310
      %2312 = vrot.lane.b32.xlu0 %v673, 80
      %v2313 = vpop.permute.xlu0 %2312
      %v2315 = vsel %vm567, %v2311, 0
      %v2318 = vsel %vm567, %v2313, 0
      %2320 = vmatpush.bf16.xpose.msra.mxu0 0
      %2321 = vmatpush.bf16.xpose.msra.mxu0 0
      %2322 = vmatpush.bf16.xpose.msra.mxu0 0
      %2323 = vmatpush.bf16.xpose.msra.mxu0 0
      %2324 = vmatpush.bf16.xpose.msra.mxu0 0
      %2325 = vmatpush.bf16.xpose.msra.mxu0 0
      %2326 = vmatpush.bf16.xpose.msra.mxu0 0
      %2327 = vmatpush.bf16.xpose.msra.mxu0 %v2318
      %2328 = vmatmul.bf16.gmra.mxu0 %v2315
      %v2329 = vpop.f32.mrf.mxu0
      %v2330 = vadd.f32 %v2212, %v2329
      %v2331 = vpop.f32.mrf.mxu0
      %v2332 = vadd.f32 %v2213, %v2331
      %2333 = vdwg.mxu0
      %2334 = vrot.lane.b32.xlu0 %v700, 112
      %v2335 = vpop.permute.xlu0 %2334
      %2336 = vrot.lane.b32.xlu0 %v700, 80
      %v2337 = vpop.permute.xlu0 %2336
      %v2339 = vsel %vm567, %v2335, 0
      %v2342 = vsel %vm567, %v2337, 0
      %2344 = vmatpush.bf16.xpose.msra.mxu0 0
      %2345 = vmatpush.bf16.xpose.msra.mxu0 0
      %2346 = vmatpush.bf16.xpose.msra.mxu0 0
      %2347 = vmatpush.bf16.xpose.msra.mxu0 0
      %2348 = vmatpush.bf16.xpose.msra.mxu0 0
      %2349 = vmatpush.bf16.xpose.msra.mxu0 0
      %2350 = vmatpush.bf16.xpose.msra.mxu0 0
      %2351 = vmatpush.bf16.xpose.msra.mxu0 %v2342
      %2352 = vmatmul.bf16.gmra.mxu0 %v2339
      %v2353 = vpop.f32.mrf.mxu0
      %v2354 = vadd.f32 %v2212, %v2353
      %v2355 = vpop.f32.mrf.mxu0
      %v2356 = vadd.f32 %v2213, %v2355
      %2357 = vdwg.mxu0
      %2358 = vrot.lane.b32.xlu0 %v727, 112
      %v2359 = vpop.permute.xlu0 %2358
      %2360 = vrot.lane.b32.xlu0 %v727, 80
      %v2361 = vpop.permute.xlu0 %2360
      %v2363 = vsel %vm567, %v2359, 0
      %v2366 = vsel %vm567, %v2361, 0
      %2368 = vmatpush.bf16.xpose.msra.mxu0 0
      %2369 = vmatpush.bf16.xpose.msra.mxu0 0
      %2370 = vmatpush.bf16.xpose.msra.mxu0 0
      %2371 = vmatpush.bf16.xpose.msra.mxu0 0
      %2372 = vmatpush.bf16.xpose.msra.mxu0 0
      %2373 = vmatpush.bf16.xpose.msra.mxu0 0
      %2374 = vmatpush.bf16.xpose.msra.mxu0 0
      %2375 = vmatpush.bf16.xpose.msra.mxu0 %v2366
      %2376 = vmatmul.bf16.gmra.mxu0 %v2363
      %v2377 = vpop.f32.mrf.mxu0
      %v2378 = vadd.f32 %v2212, %v2377
      %v2379 = vpop.f32.mrf.mxu0
      %v2380 = vadd.f32 %v2213, %v2379
      %2381 = vdwg.mxu0
      %2382 = vrot.lane.b32.xlu0 %v754, 112
      %v2383 = vpop.permute.xlu0 %2382
      %2384 = vrot.lane.b32.xlu0 %v754, 80
      %v2385 = vpop.permute.xlu0 %2384
      %v2387 = vsel %vm567, %v2383, 0
      %v2390 = vsel %vm567, %v2385, 0
      %2392 = vmatpush.bf16.xpose.msra.mxu0 0
      %2393 = vmatpush.bf16.xpose.msra.mxu0 0
      %2394 = vmatpush.bf16.xpose.msra.mxu0 0
      %2395 = vmatpush.bf16.xpose.msra.mxu0 0
      %2396 = vmatpush.bf16.xpose.msra.mxu0 0
      %2397 = vmatpush.bf16.xpose.msra.mxu0 0
      %2398 = vmatpush.bf16.xpose.msra.mxu0 0
      %2399 = vmatpush.bf16.xpose.msra.mxu0 %v2390
      %2400 = vmatmul.bf16.gmra.mxu0 %v2387
      %v2401 = vpop.f32.mrf.mxu0
      %v2402 = vadd.f32 %v2212, %v2401
      %v2403 = vpop.f32.mrf.mxu0
      %v2404 = vadd.f32 %v2213, %v2403
      %2405 = vdwg.mxu0
      %2406 = vrot.lane.b32.xlu0 %v781, 112
      %v2407 = vpop.permute.xlu0 %2406
      %2408 = vrot.lane.b32.xlu0 %v781, 80
      %v2409 = vpop.permute.xlu0 %2408
      %v2411 = vsel %vm567, %v2407, 0
      %v2414 = vsel %vm567, %v2409, 0
      %2416 = vmatpush.bf16.xpose.msra.mxu0 0
      %2417 = vmatpush.bf16.xpose.msra.mxu0 0
      %2418 = vmatpush.bf16.xpose.msra.mxu0 0
      %2419 = vmatpush.bf16.xpose.msra.mxu0 0
      %2420 = vmatpush.bf16.xpose.msra.mxu0 0
      %2421 = vmatpush.bf16.xpose.msra.mxu0 0
      %2422 = vmatpush.bf16.xpose.msra.mxu0 0
      %2423 = vmatpush.bf16.xpose.msra.mxu0 %v2414
      %2424 = vmatmul.bf16.gmra.mxu0 %v2411
      %v2425 = vpop.f32.mrf.mxu0
      %v2426 = vadd.f32 %v2212, %v2425
      %v2427 = vpop.f32.mrf.mxu0
      %v2428 = vadd.f32 %v2213, %v2427
      %2429 = vdwg.mxu0
      %2430 = vrot.lane.b32.xlu0 %v808, 112
      %v2431 = vpop.permute.xlu0 %2430
      %2432 = vrot.lane.b32.xlu0 %v808, 80
      %v2433 = vpop.permute.xlu0 %2432
      %v2435 = vsel %vm567, %v2431, 0
      %v2438 = vsel %vm567, %v2433, 0
      %2440 = vmatpush.bf16.xpose.msra.mxu0 0
      %2441 = vmatpush.bf16.xpose.msra.mxu0 0
      %2442 = vmatpush.bf16.xpose.msra.mxu0 0
      %2443 = vmatpush.bf16.xpose.msra.mxu0 0
      %2444 = vmatpush.bf16.xpose.msra.mxu0 0
      %2445 = vmatpush.bf16.xpose.msra.mxu0 0
      %2446 = vmatpush.bf16.xpose.msra.mxu0 0
      %2447 = vmatpush.bf16.xpose.msra.mxu0 %v2438
      %2448 = vmatmul.bf16.gmra.mxu0 %v2435
      %v2449 = vpop.f32.mrf.mxu0
      %v2450 = vadd.f32 %v2212, %v2449
      %v2451 = vpop.f32.mrf.mxu0
      %v2452 = vadd.f32 %v2213, %v2451
      %2453 = vdwg.mxu0
      %2454 = vrot.lane.b32.xlu0 %v835, 112
      %v2455 = vpop.permute.xlu0 %2454
      %2456 = vrot.lane.b32.xlu0 %v835, 80
      %v2457 = vpop.permute.xlu0 %2456
      %v2459 = vsel %vm567, %v2455, 0
      %v2462 = vsel %vm567, %v2457, 0
      %2464 = vmatpush.bf16.xpose.msra.mxu0 0
      %2465 = vmatpush.bf16.xpose.msra.mxu0 0
      %2466 = vmatpush.bf16.xpose.msra.mxu0 0
      %2467 = vmatpush.bf16.xpose.msra.mxu0 0
      %2468 = vmatpush.bf16.xpose.msra.mxu0 0
      %2469 = vmatpush.bf16.xpose.msra.mxu0 0
      %2470 = vmatpush.bf16.xpose.msra.mxu0 0
      %2471 = vmatpush.bf16.xpose.msra.mxu0 %v2462
      %2472 = vmatmul.bf16.gmra.mxu0 %v2459
      %v2473 = vpop.f32.mrf.mxu0
      %v2474 = vadd.f32 %v2212, %v2473
      %v2475 = vpop.f32.mrf.mxu0
      %v2476 = vadd.f32 %v2213, %v2475
      %2477 = vdwg.mxu0
      %2478 = vrot.lane.b32.xlu0 %v862, 112
      %v2479 = vpop.permute.xlu0 %2478
      %2480 = vrot.lane.b32.xlu0 %v862, 80
      %v2481 = vpop.permute.xlu0 %2480
      %v2483 = vsel %vm567, %v2479, 0
      %v2486 = vsel %vm567, %v2481, 0
      %2488 = vmatpush.bf16.xpose.msra.mxu0 0
      %2489 = vmatpush.bf16.xpose.msra.mxu0 0
      %2490 = vmatpush.bf16.xpose.msra.mxu0 0
      %2491 = vmatpush.bf16.xpose.msra.mxu0 0
      %2492 = vmatpush.bf16.xpose.msra.mxu0 0
      %2493 = vmatpush.bf16.xpose.msra.mxu0 0
      %2494 = vmatpush.bf16.xpose.msra.mxu0 0
      %2495 = vmatpush.bf16.xpose.msra.mxu0 %v2486
      %2496 = vmatmul.bf16.gmra.mxu0 %v2483
      %v2497 = vpop.f32.mrf.mxu0
      %v2498 = vadd.f32 %v2212, %v2497
      %v2499 = vpop.f32.mrf.mxu0
      %v2500 = vadd.f32 %v2213, %v2499
      %2501 = vdwg.mxu0
      %2502 = vrot.lane.b32.xlu0 %v889, 112
      %v2503 = vpop.permute.xlu0 %2502
      %2504 = vrot.lane.b32.xlu0 %v889, 80
      %v2505 = vpop.permute.xlu0 %2504
      %v2507 = vsel %vm567, %v2503, 0
      %v2510 = vsel %vm567, %v2505, 0
      %2512 = vmatpush.bf16.xpose.msra.mxu0 0
      %2513 = vmatpush.bf16.xpose.msra.mxu0 0
      %2514 = vmatpush.bf16.xpose.msra.mxu0 0
      %2515 = vmatpush.bf16.xpose.msra.mxu0 0
      %2516 = vmatpush.bf16.xpose.msra.mxu0 0
      %2517 = vmatpush.bf16.xpose.msra.mxu0 0
      %2518 = vmatpush.bf16.xpose.msra.mxu0 0
      %2519 = vmatpush.bf16.xpose.msra.mxu0 %v2510
      %2520 = vmatmul.bf16.gmra.mxu0 %v2507
      %v2521 = vpop.f32.mrf.mxu0
      %v2522 = vadd.f32 %v2212, %v2521
      %v2523 = vpop.f32.mrf.mxu0
      %v2524 = vadd.f32 %v2213, %v2523
      %2525 = vdwg.mxu0
      %2526 = vrot.lane.b32.xlu0 %v916, 112
      %v2527 = vpop.permute.xlu0 %2526
      %2528 = vrot.lane.b32.xlu0 %v916, 80
      %v2529 = vpop.permute.xlu0 %2528
      %v2531 = vsel %vm567, %v2527, 0
      %v2534 = vsel %vm567, %v2529, 0
      %2536 = vmatpush.bf16.xpose.msra.mxu0 0
      %2537 = vmatpush.bf16.xpose.msra.mxu0 0
      %2538 = vmatpush.bf16.xpose.msra.mxu0 0
      %2539 = vmatpush.bf16.xpose.msra.mxu0 0
      %2540 = vmatpush.bf16.xpose.msra.mxu0 0
      %2541 = vmatpush.bf16.xpose.msra.mxu0 0
      %2542 = vmatpush.bf16.xpose.msra.mxu0 0
      %2543 = vmatpush.bf16.xpose.msra.mxu0 %v2534
      %2544 = vmatmul.bf16.gmra.mxu0 %v2531
      %v2545 = vpop.f32.mrf.mxu0
      %v2546 = vadd.f32 %v2212, %v2545
      %v2547 = vpop.f32.mrf.mxu0
      %v2548 = vadd.f32 %v2213, %v2547
      %2549 = vdwg.mxu0
      %2550 = vrot.lane.b32.xlu0 %v943, 112
      %v2551 = vpop.permute.xlu0 %2550
      %2552 = vrot.lane.b32.xlu0 %v943, 80
      %v2553 = vpop.permute.xlu0 %2552
      %v2555 = vsel %vm567, %v2551, 0
      %v2558 = vsel %vm567, %v2553, 0
      %2560 = vmatpush.bf16.xpose.msra.mxu0 0
      %2561 = vmatpush.bf16.xpose.msra.mxu0 0
      %2562 = vmatpush.bf16.xpose.msra.mxu0 0
      %2563 = vmatpush.bf16.xpose.msra.mxu0 0
      %2564 = vmatpush.bf16.xpose.msra.mxu0 0
      %2565 = vmatpush.bf16.xpose.msra.mxu0 0
      %2566 = vmatpush.bf16.xpose.msra.mxu0 0
      %2567 = vmatpush.bf16.xpose.msra.mxu0 %v2558
      %2568 = vmatmul.bf16.gmra.mxu0 %v2555
      %v2569 = vpop.f32.mrf.mxu0
      %v2570 = vadd.f32 %v2212, %v2569
      %v2571 = vpop.f32.mrf.mxu0
      %v2572 = vadd.f32 %v2213, %v2571
      %2573 = vdwg.mxu0
      %2574 = vrot.lane.b32.xlu0 %v970, 112
      %v2575 = vpop.permute.xlu0 %2574
      %2576 = vrot.lane.b32.xlu0 %v970, 80
      %v2577 = vpop.permute.xlu0 %2576
      %v2579 = vsel %vm567, %v2575, 0
      %v2582 = vsel %vm567, %v2577, 0
      %2584 = vmatpush.bf16.xpose.msra.mxu0 0
      %2585 = vmatpush.bf16.xpose.msra.mxu0 0
      %2586 = vmatpush.bf16.xpose.msra.mxu0 0
      %2587 = vmatpush.bf16.xpose.msra.mxu0 0
      %2588 = vmatpush.bf16.xpose.msra.mxu0 0
      %2589 = vmatpush.bf16.xpose.msra.mxu0 0
      %2590 = vmatpush.bf16.xpose.msra.mxu0 0
      %2591 = vmatpush.bf16.xpose.msra.mxu0 %v2582
      %2592 = vmatmul.bf16.gmra.mxu0 %v2579
      %v2593 = vpop.f32.mrf.mxu0
      %v2594 = vadd.f32 %v2212, %v2593
      %v2595 = vpop.f32.mrf.mxu0
      %v2596 = vadd.f32 %v2213, %v2595
      %2597 = vdwg.mxu0
      %v2598 = vsel %vm567, %v2234, -inf
      %2599 = vmax.xlane.f32.xlu0 %v2598
      %v2600 = vpop.xlane.xlu0 %2599
      %v2601 = vsel %vm567, %v2236, -inf
      %2602 = vmax.xlane.f32.xlu0 %v2601
      %v2603 = vpop.xlane.xlu0 %2602
      %v2604 = vsel %vm567, %v2258, -inf
      %2605 = vmax.xlane.f32.xlu0 %v2604
      %v2606 = vpop.xlane.xlu0 %2605
      %v2607 = vsel %vm567, %v2260, -inf
      %2608 = vmax.xlane.f32.xlu0 %v2607
      %v2609 = vpop.xlane.xlu0 %2608
      %v2610 = vsel %vm567, %v2282, -inf
      %2611 = vmax.xlane.f32.xlu0 %v2610
      %v2612 = vpop.xlane.xlu0 %2611
      %v2613 = vsel %vm567, %v2284, -inf
      %2614 = vmax.xlane.f32.xlu0 %v2613
      %v2615 = vpop.xlane.xlu0 %2614
      %v2616 = vsel %vm567, %v2306, -inf
      %2617 = vmax.xlane.f32.xlu0 %v2616
      %v2618 = vpop.xlane.xlu0 %2617
      %v2619 = vsel %vm567, %v2308, -inf
      %2620 = vmax.xlane.f32.xlu0 %v2619
      %v2621 = vpop.xlane.xlu0 %2620
      %v2622 = vsel %vm567, %v2330, -inf
      %2623 = vmax.xlane.f32.xlu0 %v2622
      %v2624 = vpop.xlane.xlu0 %2623
      %v2625 = vsel %vm567, %v2332, -inf
      %2626 = vmax.xlane.f32.xlu0 %v2625
      %v2627 = vpop.xlane.xlu0 %2626
      %v2628 = vsel %vm567, %v2354, -inf
      %2629 = vmax.xlane.f32.xlu0 %v2628
      %v2630 = vpop.xlane.xlu0 %2629
      %v2631 = vsel %vm567, %v2356, -inf
      %2632 = vmax.xlane.f32.xlu0 %v2631
      %v2633 = vpop.xlane.xlu0 %2632
      %v2634 = vsel %vm567, %v2378, -inf
      %2635 = vmax.xlane.f32.xlu0 %v2634
      %v2636 = vpop.xlane.xlu0 %2635
      %v2637 = vsel %vm567, %v2380, -inf
      %2638 = vmax.xlane.f32.xlu0 %v2637
      %v2639 = vpop.xlane.xlu0 %2638
      %v2640 = vsel %vm567, %v2402, -inf
      %2641 = vmax.xlane.f32.xlu0 %v2640
      %v2642 = vpop.xlane.xlu0 %2641
      %v2643 = vsel %vm567, %v2404, -inf
      %2644 = vmax.xlane.f32.xlu0 %v2643
      %v2645 = vpop.xlane.xlu0 %2644
      %v2646 = vsel %vm567, %v2426, -inf
      %2647 = vmax.xlane.f32.xlu0 %v2646
      %v2648 = vpop.xlane.xlu0 %2647
      %v2649 = vsel %vm567, %v2428, -inf
      %2650 = vmax.xlane.f32.xlu0 %v2649
      %v2651 = vpop.xlane.xlu0 %2650
      %v2652 = vsel %vm567, %v2450, -inf
      %2653 = vmax.xlane.f32.xlu0 %v2652
      %v2654 = vpop.xlane.xlu0 %2653
      %v2655 = vsel %vm567, %v2452, -inf
      %2656 = vmax.xlane.f32.xlu0 %v2655
      %v2657 = vpop.xlane.xlu0 %2656
      %v2658 = vsel %vm567, %v2474, -inf
      %2659 = vmax.xlane.f32.xlu0 %v2658
      %v2660 = vpop.xlane.xlu0 %2659
      %v2661 = vsel %vm567, %v2476, -inf
      %2662 = vmax.xlane.f32.xlu0 %v2661
      %v2663 = vpop.xlane.xlu0 %2662
      %v2664 = vsel %vm567, %v2498, -inf
      %2665 = vmax.xlane.f32.xlu0 %v2664
      %v2666 = vpop.xlane.xlu0 %2665
      %v2667 = vsel %vm567, %v2500, -inf
      %2668 = vmax.xlane.f32.xlu0 %v2667
      %v2669 = vpop.xlane.xlu0 %2668
      %v2670 = vsel %vm567, %v2522, -inf
      %2671 = vmax.xlane.f32.xlu0 %v2670
      %v2672 = vpop.xlane.xlu0 %2671
      %v2673 = vsel %vm567, %v2524, -inf
      %2674 = vmax.xlane.f32.xlu0 %v2673
      %v2675 = vpop.xlane.xlu0 %2674
      %v2676 = vsel %vm567, %v2546, -inf
      %2677 = vmax.xlane.f32.xlu0 %v2676
      %v2678 = vpop.xlane.xlu0 %2677
      %v2679 = vsel %vm567, %v2548, -inf
      %2680 = vmax.xlane.f32.xlu0 %v2679
      %v2681 = vpop.xlane.xlu0 %2680
      %v2682 = vsel %vm567, %v2570, -inf
      %2683 = vmax.xlane.f32.xlu0 %v2682
      %v2684 = vpop.xlane.xlu0 %2683
      %v2685 = vsel %vm567, %v2572, -inf
      %2686 = vmax.xlane.f32.xlu0 %v2685
      %v2687 = vpop.xlane.xlu0 %2686
      %v2688 = vsel %vm567, %v2594, -inf
      %2689 = vmax.xlane.f32.xlu0 %v2688
      %v2690 = vpop.xlane.xlu0 %2689
      %v2691 = vsel %vm567, %v2596, -inf
      %2692 = vmax.xlane.f32.xlu0 %v2691
      %v2693 = vpop.xlane.xlu0 %2692
      %v2694 = vsub.f32 %v2234, %v2600
      %v2695 = vsub.f32 %v2236, %v2603
      %v2696 = vsub.f32 %v2258, %v2606
      %v2697 = vsub.f32 %v2260, %v2609
      %v2698 = vsub.f32 %v2282, %v2612
      %v2699 = vsub.f32 %v2284, %v2615
      %v2700 = vsub.f32 %v2306, %v2618
      %v2701 = vsub.f32 %v2308, %v2621
      %v2702 = vsub.f32 %v2330, %v2624
      %v2703 = vsub.f32 %v2332, %v2627
      %v2704 = vsub.f32 %v2354, %v2630
      %v2705 = vsub.f32 %v2356, %v2633
      %v2706 = vsub.f32 %v2378, %v2636
      %v2707 = vsub.f32 %v2380, %v2639
      %v2708 = vsub.f32 %v2402, %v2642
      %v2709 = vsub.f32 %v2404, %v2645
      %v2710 = vsub.f32 %v2426, %v2648
      %v2711 = vsub.f32 %v2428, %v2651
      %v2712 = vsub.f32 %v2450, %v2654
      %v2713 = vsub.f32 %v2452, %v2657
      %v2714 = vsub.f32 %v2474, %v2660
      %v2715 = vsub.f32 %v2476, %v2663
      %v2716 = vsub.f32 %v2498, %v2666
      %v2717 = vsub.f32 %v2500, %v2669
      %v2718 = vsub.f32 %v2522, %v2672
      %v2719 = vsub.f32 %v2524, %v2675
      %v2720 = vsub.f32 %v2546, %v2678
      %v2721 = vsub.f32 %v2548, %v2681
      %v2722 = vsub.f32 %v2570, %v2684
      %v2723 = vsub.f32 %v2572, %v2687
      %v2724 = vsub.f32 %v2594, %v2690
      %v2725 = vsub.f32 %v2596, %v2693
      %v2726 = vmul.f32 %v2694, 1.442695
      %v2727 = vpow.pop %v2726
      %v2728 = vmul.f32 %v2695, 1.442695
      %v2729 = vpow.pop %v2728
      %v2730 = vmul.f32 %v2696, 1.442695
      %v2731 = vpow.pop %v2730
      %v2732 = vmul.f32 %v2697, 1.442695
      %v2733 = vpow.pop %v2732
      %v2734 = vmul.f32 %v2698, 1.442695
      %v2735 = vpow.pop %v2734
      %v2736 = vmul.f32 %v2699, 1.442695
      %v2737 = vpow.pop %v2736
      %v2738 = vmul.f32 %v2700, 1.442695
      %v2739 = vpow.pop %v2738
      %v2740 = vmul.f32 %v2701, 1.442695
      %v2741 = vpow.pop %v2740
      %v2742 = vmul.f32 %v2702, 1.442695
      %v2743 = vpow.pop %v2742
      %v2744 = vmul.f32 %v2703, 1.442695
      %v2745 = vpow.pop %v2744
      %v2746 = vmul.f32 %v2704, 1.442695
      %v2747 = vpow.pop %v2746
      %v2748 = vmul.f32 %v2705, 1.442695
      %v2749 = vpow.pop %v2748
      %v2750 = vmul.f32 %v2706, 1.442695
      %v2751 = vpow.pop %v2750
      %v2752 = vmul.f32 %v2707, 1.442695
      %v2753 = vpow.pop %v2752
      %v2754 = vmul.f32 %v2708, 1.442695
      %v2755 = vpow.pop %v2754
      %v2756 = vmul.f32 %v2709, 1.442695
      %v2757 = vpow.pop %v2756
      %v2758 = vmul.f32 %v2710, 1.442695
      %v2759 = vpow.pop %v2758
      %v2760 = vmul.f32 %v2711, 1.442695
      %v2761 = vpow.pop %v2760
      %v2762 = vmul.f32 %v2712, 1.442695
      %v2763 = vpow.pop %v2762
      %v2764 = vmul.f32 %v2713, 1.442695
      %v2765 = vpow.pop %v2764
      %v2766 = vmul.f32 %v2714, 1.442695
      %v2767 = vpow.pop %v2766
      %v2768 = vmul.f32 %v2715, 1.442695
      %v2769 = vpow.pop %v2768
      %v2770 = vmul.f32 %v2716, 1.442695
      %v2771 = vpow.pop %v2770
      %v2772 = vmul.f32 %v2717, 1.442695
      %v2773 = vpow.pop %v2772
      %v2774 = vmul.f32 %v2718, 1.442695
      %v2775 = vpow.pop %v2774
      %v2776 = vmul.f32 %v2719, 1.442695
      %v2777 = vpow.pop %v2776
      %v2778 = vmul.f32 %v2720, 1.442695
      %v2779 = vpow.pop %v2778
      %v2780 = vmul.f32 %v2721, 1.442695
      %v2781 = vpow.pop %v2780
      %v2782 = vmul.f32 %v2722, 1.442695
      %v2783 = vpow.pop %v2782
      %v2784 = vmul.f32 %v2723, 1.442695
      %v2785 = vpow.pop %v2784
      %v2786 = vmul.f32 %v2724, 1.442695
      %v2787 = vpow.pop %v2786
      %v2788 = vmul.f32 %v2725, 1.442695
      %v2789 = vpow.pop %v2788
      %v2790 = vsel %vm567, %v2727, 0.0
      %2791 = vadd.xlane.f32.xlu0 %v2790
      %v2792 = vpop.xlane.xlu0 %2791
      %v2793 = vsel %vm567, %v2729, 0.0
      %2794 = vadd.xlane.f32.xlu0 %v2793
      %v2795 = vpop.xlane.xlu0 %2794
      %v2796 = vsel %vm567, %v2731, 0.0
      %2797 = vadd.xlane.f32.xlu0 %v2796
      %v2798 = vpop.xlane.xlu0 %2797
      %v2799 = vsel %vm567, %v2733, 0.0
      %2800 = vadd.xlane.f32.xlu0 %v2799
      %v2801 = vpop.xlane.xlu0 %2800
      %v2802 = vsel %vm567, %v2735, 0.0
      %2803 = vadd.xlane.f32.xlu0 %v2802
      %v2804 = vpop.xlane.xlu0 %2803
      %v2805 = vsel %vm567, %v2737, 0.0
      %2806 = vadd.xlane.f32.xlu0 %v2805
      %v2807 = vpop.xlane.xlu0 %2806
      %v2808 = vsel %vm567, %v2739, 0.0
      %2809 = vadd.xlane.f32.xlu0 %v2808
      %v2810 = vpop.xlane.xlu0 %2809
      %v2811 = vsel %vm567, %v2741, 0.0
      %2812 = vadd.xlane.f32.xlu0 %v2811
      %v2813 = vpop.xlane.xlu0 %2812
      %v2814 = vsel %vm567, %v2743, 0.0
      %2815 = vadd.xlane.f32.xlu0 %v2814
      %v2816 = vpop.xlane.xlu0 %2815
      %v2817 = vsel %vm567, %v2745, 0.0
      %2818 = vadd.xlane.f32.xlu0 %v2817
      %v2819 = vpop.xlane.xlu0 %2818
      %v2820 = vsel %vm567, %v2747, 0.0
      %2821 = vadd.xlane.f32.xlu0 %v2820
      %v2822 = vpop.xlane.xlu0 %2821
      %v2823 = vsel %vm567, %v2749, 0.0
      %2824 = vadd.xlane.f32.xlu0 %v2823
      %v2825 = vpop.xlane.xlu0 %2824
      %v2826 = vsel %vm567, %v2751, 0.0
      %2827 = vadd.xlane.f32.xlu0 %v2826
      %v2828 = vpop.xlane.xlu0 %2827
      %v2829 = vsel %vm567, %v2753, 0.0
      %2830 = vadd.xlane.f32.xlu0 %v2829
      %v2831 = vpop.xlane.xlu0 %2830
      %v2832 = vsel %vm567, %v2755, 0.0
      %2833 = vadd.xlane.f32.xlu0 %v2832
      %v2834 = vpop.xlane.xlu0 %2833
      %v2835 = vsel %vm567, %v2757, 0.0
      %2836 = vadd.xlane.f32.xlu0 %v2835
      %v2837 = vpop.xlane.xlu0 %2836
      %v2838 = vsel %vm567, %v2759, 0.0
      %2839 = vadd.xlane.f32.xlu0 %v2838
      %v2840 = vpop.xlane.xlu0 %2839
      %v2841 = vsel %vm567, %v2761, 0.0
      %2842 = vadd.xlane.f32.xlu0 %v2841
      %v2843 = vpop.xlane.xlu0 %2842
      %v2844 = vsel %vm567, %v2763, 0.0
      %2845 = vadd.xlane.f32.xlu0 %v2844
      %v2846 = vpop.xlane.xlu0 %2845
      %v2847 = vsel %vm567, %v2765, 0.0
      %2848 = vadd.xlane.f32.xlu0 %v2847
      %v2849 = vpop.xlane.xlu0 %2848
      %v2850 = vsel %vm567, %v2767, 0.0
      %2851 = vadd.xlane.f32.xlu0 %v2850
      %v2852 = vpop.xlane.xlu0 %2851
      %v2853 = vsel %vm567, %v2769, 0.0
      %2854 = vadd.xlane.f32.xlu0 %v2853
      %v2855 = vpop.xlane.xlu0 %2854
      %v2856 = vsel %vm567, %v2771, 0.0
      %2857 = vadd.xlane.f32.xlu0 %v2856
      %v2858 = vpop.xlane.xlu0 %2857
      %v2859 = vsel %vm567, %v2773, 0.0
      %2860 = vadd.xlane.f32.xlu0 %v2859
      %v2861 = vpop.xlane.xlu0 %2860
      %v2862 = vsel %vm567, %v2775, 0.0
      %2863 = vadd.xlane.f32.xlu0 %v2862
      %v2864 = vpop.xlane.xlu0 %2863
      %v2865 = vsel %vm567, %v2777, 0.0
      %2866 = vadd.xlane.f32.xlu0 %v2865
      %v2867 = vpop.xlane.xlu0 %2866
      %v2868 = vsel %vm567, %v2779, 0.0
      %2869 = vadd.xlane.f32.xlu0 %v2868
      %v2870 = vpop.xlane.xlu0 %2869
      %v2871 = vsel %vm567, %v2781, 0.0
      %2872 = vadd.xlane.f32.xlu0 %v2871
      %v2873 = vpop.xlane.xlu0 %2872
      %v2874 = vsel %vm567, %v2783, 0.0
      %2875 = vadd.xlane.f32.xlu0 %v2874
      %v2876 = vpop.xlane.xlu0 %2875
      %v2877 = vsel %vm567, %v2785, 0.0
      %2878 = vadd.xlane.f32.xlu0 %v2877
      %v2879 = vpop.xlane.xlu0 %2878
      %v2880 = vsel %vm567, %v2787, 0.0
      %2881 = vadd.xlane.f32.xlu0 %v2880
      %v2882 = vpop.xlane.xlu0 %2881
      %v2883 = vsel %vm567, %v2789, 0.0
      %2884 = vadd.xlane.f32.xlu0 %v2883
      %v2885 = vpop.xlane.xlu0 %2884
      %v2886 = vrcp.pop %v2792
      %v2887 = vmul.f32 %v2792, %v2886
      %v2888 = vsub.f32 1.0, %v2887
      %v2889 = vmul.f32 %v2886, %v2888
      %v2890 = vadd.f32 %v2886, %v2889
      %vm2891 = vweird.f32 %v2792
      %vm2892 = vweird.f32 %v2886
      %vm2893 = vmor %vm2891, %vm2892
      %v2894 = vsel %vm2893, %v2886, %v2890
      %v2895 = vand.u32 2147483647, %v2792
      %vm2896 = vcmp.eq.f32.partialorder %v2895, 8.507059e+37
      %v2897 = vand.u32 %v2792, 2147483648
      %v2898 = vor.u32 1.1754944e-38, %v2897
      %v2899 = vsel %vm2896, %v2898, %v2894
      %v2900 = vmul.f32 %v2727, %v2899
      %v2901 = vrcp.pop %v2795
      %v2902 = vmul.f32 %v2795, %v2901
      %v2903 = vsub.f32 1.0, %v2902
      %v2904 = vmul.f32 %v2901, %v2903
      %v2905 = vadd.f32 %v2901, %v2904
      %vm2906 = vweird.f32 %v2795
      %vm2907 = vweird.f32 %v2901
      %vm2908 = vmor %vm2906, %vm2907
      %v2909 = vsel %vm2908, %v2901, %v2905
      %v2910 = vand.u32 2147483647, %v2795
      %vm2911 = vcmp.eq.f32.partialorder %v2910, 8.507059e+37
      %v2912 = vand.u32 %v2795, 2147483648
      %v2913 = vor.u32 1.1754944e-38, %v2912
      %v2914 = vsel %vm2911, %v2913, %v2909
      %v2915 = vmul.f32 %v2729, %v2914
      %v2916 = vrcp.pop %v2798
      %v2917 = vmul.f32 %v2798, %v2916
      %v2918 = vsub.f32 1.0, %v2917
      %v2919 = vmul.f32 %v2916, %v2918
      %v2920 = vadd.f32 %v2916, %v2919
      %vm2921 = vweird.f32 %v2798
      %vm2922 = vweird.f32 %v2916
      %vm2923 = vmor %vm2921, %vm2922
      %v2924 = vsel %vm2923, %v2916, %v2920
      %v2925 = vand.u32 2147483647, %v2798
      %vm2926 = vcmp.eq.f32.partialorder %v2925, 8.507059e+37
      %v2927 = vand.u32 %v2798, 2147483648
      %v2928 = vor.u32 1.1754944e-38, %v2927
      %v2929 = vsel %vm2926, %v2928, %v2924
      %v2930 = vmul.f32 %v2731, %v2929
      %v2931 = vrcp.pop %v2801
      %v2932 = vmul.f32 %v2801, %v2931
      %v2933 = vsub.f32 1.0, %v2932
      %v2934 = vmul.f32 %v2931, %v2933
      %v2935 = vadd.f32 %v2931, %v2934
      %vm2936 = vweird.f32 %v2801
      %vm2937 = vweird.f32 %v2931
      %vm2938 = vmor %vm2936, %vm2937
      %v2939 = vsel %vm2938, %v2931, %v2935
      %v2940 = vand.u32 2147483647, %v2801
      %vm2941 = vcmp.eq.f32.partialorder %v2940, 8.507059e+37
      %v2942 = vand.u32 %v2801, 2147483648
      %v2943 = vor.u32 1.1754944e-38, %v2942
      %v2944 = vsel %vm2941, %v2943, %v2939
      %v2945 = vmul.f32 %v2733, %v2944
      %v2946 = vrcp.pop %v2804
      %v2947 = vmul.f32 %v2804, %v2946
      %v2948 = vsub.f32 1.0, %v2947
      %v2949 = vmul.f32 %v2946, %v2948
      %v2950 = vadd.f32 %v2946, %v2949
      %vm2951 = vweird.f32 %v2804
      %vm2952 = vweird.f32 %v2946
      %vm2953 = vmor %vm2951, %vm2952
      %v2954 = vsel %vm2953, %v2946, %v2950
      %v2955 = vand.u32 2147483647, %v2804
      %vm2956 = vcmp.eq.f32.partialorder %v2955, 8.507059e+37
      %v2957 = vand.u32 %v2804, 2147483648
      %v2958 = vor.u32 1.1754944e-38, %v2957
      %v2959 = vsel %vm2956, %v2958, %v2954
      %v2960 = vmul.f32 %v2735, %v2959
      %v2961 = vrcp.pop %v2807
      %v2962 = vmul.f32 %v2807, %v2961
      %v2963 = vsub.f32 1.0, %v2962
      %v2964 = vmul.f32 %v2961, %v2963
      %v2965 = vadd.f32 %v2961, %v2964
      %vm2966 = vweird.f32 %v2807
      %vm2967 = vweird.f32 %v2961
      %vm2968 = vmor %vm2966, %vm2967
      %v2969 = vsel %vm2968, %v2961, %v2965
      %v2970 = vand.u32 2147483647, %v2807
      %vm2971 = vcmp.eq.f32.partialorder %v2970, 8.507059e+37
      %v2972 = vand.u32 %v2807, 2147483648
      %v2973 = vor.u32 1.1754944e-38, %v2972
      %v2974 = vsel %vm2971, %v2973, %v2969
      %v2975 = vmul.f32 %v2737, %v2974
      %v2976 = vrcp.pop %v2810
      %v2977 = vmul.f32 %v2810, %v2976
      %v2978 = vsub.f32 1.0, %v2977
      %v2979 = vmul.f32 %v2976, %v2978
      %v2980 = vadd.f32 %v2976, %v2979
      %vm2981 = vweird.f32 %v2810
      %vm2982 = vweird.f32 %v2976
      %vm2983 = vmor %vm2981, %vm2982
      %v2984 = vsel %vm2983, %v2976, %v2980
      %v2985 = vand.u32 2147483647, %v2810
      %vm2986 = vcmp.eq.f32.partialorder %v2985, 8.507059e+37
      %v2987 = vand.u32 %v2810, 2147483648
      %v2988 = vor.u32 1.1754944e-38, %v2987
      %v2989 = vsel %vm2986, %v2988, %v2984
      %v2990 = vmul.f32 %v2739, %v2989
      %v2991 = vrcp.pop %v2813
      %v2992 = vmul.f32 %v2813, %v2991
      %v2993 = vsub.f32 1.0, %v2992
      %v2994 = vmul.f32 %v2991, %v2993
      %v2995 = vadd.f32 %v2991, %v2994
      %vm2996 = vweird.f32 %v2813
      %vm2997 = vweird.f32 %v2991
      %vm2998 = vmor %vm2996, %vm2997
      %v2999 = vsel %vm2998, %v2991, %v2995
      %v3000 = vand.u32 2147483647, %v2813
      %vm3001 = vcmp.eq.f32.partialorder %v3000, 8.507059e+37
      %v3002 = vand.u32 %v2813, 2147483648
      %v3003 = vor.u32 1.1754944e-38, %v3002
      %v3004 = vsel %vm3001, %v3003, %v2999
      %v3005 = vmul.f32 %v2741, %v3004
      %v3006 = vrcp.pop %v2816
      %v3007 = vmul.f32 %v2816, %v3006
      %v3008 = vsub.f32 1.0, %v3007
      %v3009 = vmul.f32 %v3006, %v3008
      %v3010 = vadd.f32 %v3006, %v3009
      %vm3011 = vweird.f32 %v2816
      %vm3012 = vweird.f32 %v3006
      %vm3013 = vmor %vm3011, %vm3012
      %v3014 = vsel %vm3013, %v3006, %v3010
      %v3015 = vand.u32 2147483647, %v2816
      %vm3016 = vcmp.eq.f32.partialorder %v3015, 8.507059e+37
      %v3017 = vand.u32 %v2816, 2147483648
      %v3018 = vor.u32 1.1754944e-38, %v3017
      %v3019 = vsel %vm3016, %v3018, %v3014
      %v3020 = vmul.f32 %v2743, %v3019
      %v3021 = vrcp.pop %v2819
      %v3022 = vmul.f32 %v2819, %v3021
      %v3023 = vsub.f32 1.0, %v3022
      %v3024 = vmul.f32 %v3021, %v3023
      %v3025 = vadd.f32 %v3021, %v3024
      %vm3026 = vweird.f32 %v2819
      %vm3027 = vweird.f32 %v3021
      %vm3028 = vmor %vm3026, %vm3027
      %v3029 = vsel %vm3028, %v3021, %v3025
      %v3030 = vand.u32 2147483647, %v2819
      %vm3031 = vcmp.eq.f32.partialorder %v3030, 8.507059e+37
      %v3032 = vand.u32 %v2819, 2147483648
      %v3033 = vor.u32 1.1754944e-38, %v3032
      %v3034 = vsel %vm3031, %v3033, %v3029
      %v3035 = vmul.f32 %v2745, %v3034
      %v3036 = vrcp.pop %v2822
      %v3037 = vmul.f32 %v2822, %v3036
      %v3038 = vsub.f32 1.0, %v3037
      %v3039 = vmul.f32 %v3036, %v3038
      %v3040 = vadd.f32 %v3036, %v3039
      %vm3041 = vweird.f32 %v2822
      %vm3042 = vweird.f32 %v3036
      %vm3043 = vmor %vm3041, %vm3042
      %v3044 = vsel %vm3043, %v3036, %v3040
      %v3045 = vand.u32 2147483647, %v2822
      %vm3046 = vcmp.eq.f32.partialorder %v3045, 8.507059e+37
      %v3047 = vand.u32 %v2822, 2147483648
      %v3048 = vor.u32 1.1754944e-38, %v3047
      %v3049 = vsel %vm3046, %v3048, %v3044
      %v3050 = vmul.f32 %v2747, %v3049
      %v3051 = vrcp.pop %v2825
      %v3052 = vmul.f32 %v2825, %v3051
      %v3053 = vsub.f32 1.0, %v3052
      %v3054 = vmul.f32 %v3051, %v3053
      %v3055 = vadd.f32 %v3051, %v3054
      %vm3056 = vweird.f32 %v2825
      %vm3057 = vweird.f32 %v3051
      %vm3058 = vmor %vm3056, %vm3057
      %v3059 = vsel %vm3058, %v3051, %v3055
      %v3060 = vand.u32 2147483647, %v2825
      %vm3061 = vcmp.eq.f32.partialorder %v3060, 8.507059e+37
      %v3062 = vand.u32 %v2825, 2147483648
      %v3063 = vor.u32 1.1754944e-38, %v3062
      %v3064 = vsel %vm3061, %v3063, %v3059
      %v3065 = vmul.f32 %v2749, %v3064
      %v3066 = vrcp.pop %v2828
      %v3067 = vmul.f32 %v2828, %v3066
      %v3068 = vsub.f32 1.0, %v3067
      %v3069 = vmul.f32 %v3066, %v3068
      %v3070 = vadd.f32 %v3066, %v3069
      %vm3071 = vweird.f32 %v2828
      %vm3072 = vweird.f32 %v3066
      %vm3073 = vmor %vm3071, %vm3072
      %v3074 = vsel %vm3073, %v3066, %v3070
      %v3075 = vand.u32 2147483647, %v2828
      %vm3076 = vcmp.eq.f32.partialorder %v3075, 8.507059e+37
      %v3077 = vand.u32 %v2828, 2147483648
      %v3078 = vor.u32 1.1754944e-38, %v3077
      %v3079 = vsel %vm3076, %v3078, %v3074
      %v3080 = vmul.f32 %v2751, %v3079
      %v3081 = vrcp.pop %v2831
      %v3082 = vmul.f32 %v2831, %v3081
      %v3083 = vsub.f32 1.0, %v3082
      %v3084 = vmul.f32 %v3081, %v3083
      %v3085 = vadd.f32 %v3081, %v3084
      %vm3086 = vweird.f32 %v2831
      %vm3087 = vweird.f32 %v3081
      %vm3088 = vmor %vm3086, %vm3087
      %v3089 = vsel %vm3088, %v3081, %v3085
      %v3090 = vand.u32 2147483647, %v2831
      %vm3091 = vcmp.eq.f32.partialorder %v3090, 8.507059e+37
      %v3092 = vand.u32 %v2831, 2147483648
      %v3093 = vor.u32 1.1754944e-38, %v3092
      %v3094 = vsel %vm3091, %v3093, %v3089
      %v3095 = vmul.f32 %v2753, %v3094
      %v3096 = vrcp.pop %v2834
      %v3097 = vmul.f32 %v2834, %v3096
      %v3098 = vsub.f32 1.0, %v3097
      %v3099 = vmul.f32 %v3096, %v3098
      %v3100 = vadd.f32 %v3096, %v3099
      %vm3101 = vweird.f32 %v2834
      %vm3102 = vweird.f32 %v3096
      %vm3103 = vmor %vm3101, %vm3102
      %v3104 = vsel %vm3103, %v3096, %v3100
      %v3105 = vand.u32 2147483647, %v2834
      %vm3106 = vcmp.eq.f32.partialorder %v3105, 8.507059e+37
      %v3107 = vand.u32 %v2834, 2147483648
      %v3108 = vor.u32 1.1754944e-38, %v3107
      %v3109 = vsel %vm3106, %v3108, %v3104
      %v3110 = vmul.f32 %v2755, %v3109
      %v3111 = vrcp.pop %v2837
      %v3112 = vmul.f32 %v2837, %v3111
      %v3113 = vsub.f32 1.0, %v3112
      %v3114 = vmul.f32 %v3111, %v3113
      %v3115 = vadd.f32 %v3111, %v3114
      %vm3116 = vweird.f32 %v2837
      %vm3117 = vweird.f32 %v3111
      %vm3118 = vmor %vm3116, %vm3117
      %v3119 = vsel %vm3118, %v3111, %v3115
      %v3120 = vand.u32 2147483647, %v2837
      %vm3121 = vcmp.eq.f32.partialorder %v3120, 8.507059e+37
      %v3122 = vand.u32 %v2837, 2147483648
      %v3123 = vor.u32 1.1754944e-38, %v3122
      %v3124 = vsel %vm3121, %v3123, %v3119
      %v3125 = vmul.f32 %v2757, %v3124
      %v3126 = vrcp.pop %v2840
      %v3127 = vmul.f32 %v2840, %v3126
      %v3128 = vsub.f32 1.0, %v3127
      %v3129 = vmul.f32 %v3126, %v3128
      %v3130 = vadd.f32 %v3126, %v3129
      %vm3131 = vweird.f32 %v2840
      %vm3132 = vweird.f32 %v3126
      %vm3133 = vmor %vm3131, %vm3132
      %v3134 = vsel %vm3133, %v3126, %v3130
      %v3135 = vand.u32 2147483647, %v2840
      %vm3136 = vcmp.eq.f32.partialorder %v3135, 8.507059e+37
      %v3137 = vand.u32 %v2840, 2147483648
      %v3138 = vor.u32 1.1754944e-38, %v3137
      %v3139 = vsel %vm3136, %v3138, %v3134
      %v3140 = vmul.f32 %v2759, %v3139
      %v3141 = vrcp.pop %v2843
      %v3142 = vmul.f32 %v2843, %v3141
      %v3143 = vsub.f32 1.0, %v3142
      %v3144 = vmul.f32 %v3141, %v3143
      %v3145 = vadd.f32 %v3141, %v3144
      %vm3146 = vweird.f32 %v2843
      %vm3147 = vweird.f32 %v3141
      %vm3148 = vmor %vm3146, %vm3147
      %v3149 = vsel %vm3148, %v3141, %v3145
      %v3150 = vand.u32 2147483647, %v2843
      %vm3151 = vcmp.eq.f32.partialorder %v3150, 8.507059e+37
      %v3152 = vand.u32 %v2843, 2147483648
      %v3153 = vor.u32 1.1754944e-38, %v3152
      %v3154 = vsel %vm3151, %v3153, %v3149
      %v3155 = vmul.f32 %v2761, %v3154
      %v3156 = vrcp.pop %v2846
      %v3157 = vmul.f32 %v2846, %v3156
      %v3158 = vsub.f32 1.0, %v3157
      %v3159 = vmul.f32 %v3156, %v3158
      %v3160 = vadd.f32 %v3156, %v3159
      %vm3161 = vweird.f32 %v2846
      %vm3162 = vweird.f32 %v3156
      %vm3163 = vmor %vm3161, %vm3162
      %v3164 = vsel %vm3163, %v3156, %v3160
      %v3165 = vand.u32 2147483647, %v2846
      %vm3166 = vcmp.eq.f32.partialorder %v3165, 8.507059e+37
      %v3167 = vand.u32 %v2846, 2147483648
      %v3168 = vor.u32 1.1754944e-38, %v3167
      %v3169 = vsel %vm3166, %v3168, %v3164
      %v3170 = vmul.f32 %v2763, %v3169
      %v3171 = vrcp.pop %v2849
      %v3172 = vmul.f32 %v2849, %v3171
      %v3173 = vsub.f32 1.0, %v3172
      %v3174 = vmul.f32 %v3171, %v3173
      %v3175 = vadd.f32 %v3171, %v3174
      %vm3176 = vweird.f32 %v2849
      %vm3177 = vweird.f32 %v3171
      %vm3178 = vmor %vm3176, %vm3177
      %v3179 = vsel %vm3178, %v3171, %v3175
      %v3180 = vand.u32 2147483647, %v2849
      %vm3181 = vcmp.eq.f32.partialorder %v3180, 8.507059e+37
      %v3182 = vand.u32 %v2849, 2147483648
      %v3183 = vor.u32 1.1754944e-38, %v3182
      %v3184 = vsel %vm3181, %v3183, %v3179
      %v3185 = vmul.f32 %v2765, %v3184
      %v3186 = vrcp.pop %v2852
      %v3187 = vmul.f32 %v2852, %v3186
      %v3188 = vsub.f32 1.0, %v3187
      %v3189 = vmul.f32 %v3186, %v3188
      %v3190 = vadd.f32 %v3186, %v3189
      %vm3191 = vweird.f32 %v2852
      %vm3192 = vweird.f32 %v3186
      %vm3193 = vmor %vm3191, %vm3192
      %v3194 = vsel %vm3193, %v3186, %v3190
      %v3195 = vand.u32 2147483647, %v2852
      %vm3196 = vcmp.eq.f32.partialorder %v3195, 8.507059e+37
      %v3197 = vand.u32 %v2852, 2147483648
      %v3198 = vor.u32 1.1754944e-38, %v3197
      %v3199 = vsel %vm3196, %v3198, %v3194
      %v3200 = vmul.f32 %v2767, %v3199
      %v3201 = vrcp.pop %v2855
      %v3202 = vmul.f32 %v2855, %v3201
      %v3203 = vsub.f32 1.0, %v3202
      %v3204 = vmul.f32 %v3201, %v3203
      %v3205 = vadd.f32 %v3201, %v3204
      %vm3206 = vweird.f32 %v2855
      %vm3207 = vweird.f32 %v3201
      %vm3208 = vmor %vm3206, %vm3207
      %v3209 = vsel %vm3208, %v3201, %v3205
      %v3210 = vand.u32 2147483647, %v2855
      %vm3211 = vcmp.eq.f32.partialorder %v3210, 8.507059e+37
      %v3212 = vand.u32 %v2855, 2147483648
      %v3213 = vor.u32 1.1754944e-38, %v3212
      %v3214 = vsel %vm3211, %v3213, %v3209
      %v3215 = vmul.f32 %v2769, %v3214
      %v3216 = vrcp.pop %v2858
      %v3217 = vmul.f32 %v2858, %v3216
      %v3218 = vsub.f32 1.0, %v3217
      %v3219 = vmul.f32 %v3216, %v3218
      %v3220 = vadd.f32 %v3216, %v3219
      %vm3221 = vweird.f32 %v2858
      %vm3222 = vweird.f32 %v3216
      %vm3223 = vmor %vm3221, %vm3222
      %v3224 = vsel %vm3223, %v3216, %v3220
      %v3225 = vand.u32 2147483647, %v2858
      %vm3226 = vcmp.eq.f32.partialorder %v3225, 8.507059e+37
      %v3227 = vand.u32 %v2858, 2147483648
      %v3228 = vor.u32 1.1754944e-38, %v3227
      %v3229 = vsel %vm3226, %v3228, %v3224
      %v3230 = vmul.f32 %v2771, %v3229
      %v3231 = vrcp.pop %v2861
      %v3232 = vmul.f32 %v2861, %v3231
      %v3233 = vsub.f32 1.0, %v3232
      %v3234 = vmul.f32 %v3231, %v3233
      %v3235 = vadd.f32 %v3231, %v3234
      %vm3236 = vweird.f32 %v2861
      %vm3237 = vweird.f32 %v3231
      %vm3238 = vmor %vm3236, %vm3237
      %v3239 = vsel %vm3238, %v3231, %v3235
      %v3240 = vand.u32 2147483647, %v2861
      %vm3241 = vcmp.eq.f32.partialorder %v3240, 8.507059e+37
      %v3242 = vand.u32 %v2861, 2147483648
      %v3243 = vor.u32 1.1754944e-38, %v3242
      %v3244 = vsel %vm3241, %v3243, %v3239
      %v3245 = vmul.f32 %v2773, %v3244
      %v3246 = vrcp.pop %v2864
      %v3247 = vmul.f32 %v2864, %v3246
      %v3248 = vsub.f32 1.0, %v3247
      %v3249 = vmul.f32 %v3246, %v3248
      %v3250 = vadd.f32 %v3246, %v3249
      %vm3251 = vweird.f32 %v2864
      %vm3252 = vweird.f32 %v3246
      %vm3253 = vmor %vm3251, %vm3252
      %v3254 = vsel %vm3253, %v3246, %v3250
      %v3255 = vand.u32 2147483647, %v2864
      %vm3256 = vcmp.eq.f32.partialorder %v3255, 8.507059e+37
      %v3257 = vand.u32 %v2864, 2147483648
      %v3258 = vor.u32 1.1754944e-38, %v3257
      %v3259 = vsel %vm3256, %v3258, %v3254
      %v3260 = vmul.f32 %v2775, %v3259
      %v3261 = vrcp.pop %v2867
      %v3262 = vmul.f32 %v2867, %v3261
      %v3263 = vsub.f32 1.0, %v3262
      %v3264 = vmul.f32 %v3261, %v3263
      %v3265 = vadd.f32 %v3261, %v3264
      %vm3266 = vweird.f32 %v2867
      %vm3267 = vweird.f32 %v3261
      %vm3268 = vmor %vm3266, %vm3267
      %v3269 = vsel %vm3268, %v3261, %v3265
      %v3270 = vand.u32 2147483647, %v2867
      %vm3271 = vcmp.eq.f32.partialorder %v3270, 8.507059e+37
      %v3272 = vand.u32 %v2867, 2147483648
      %v3273 = vor.u32 1.1754944e-38, %v3272
      %v3274 = vsel %vm3271, %v3273, %v3269
      %v3275 = vmul.f32 %v2777, %v3274
      %v3276 = vrcp.pop %v2870
      %v3277 = vmul.f32 %v2870, %v3276
      %v3278 = vsub.f32 1.0, %v3277
      %v3279 = vmul.f32 %v3276, %v3278
      %v3280 = vadd.f32 %v3276, %v3279
      %vm3281 = vweird.f32 %v2870
      %vm3282 = vweird.f32 %v3276
      %vm3283 = vmor %vm3281, %vm3282
      %v3284 = vsel %vm3283, %v3276, %v3280
      %v3285 = vand.u32 2147483647, %v2870
      %vm3286 = vcmp.eq.f32.partialorder %v3285, 8.507059e+37
      %v3287 = vand.u32 %v2870, 2147483648
      %v3288 = vor.u32 1.1754944e-38, %v3287
      %v3289 = vsel %vm3286, %v3288, %v3284
      %v3290 = vmul.f32 %v2779, %v3289
      %v3291 = vrcp.pop %v2873
      %v3292 = vmul.f32 %v2873, %v3291
      %v3293 = vsub.f32 1.0, %v3292
      %v3294 = vmul.f32 %v3291, %v3293
      %v3295 = vadd.f32 %v3291, %v3294
      %vm3296 = vweird.f32 %v2873
      %vm3297 = vweird.f32 %v3291
      %vm3298 = vmor %vm3296, %vm3297
      %v3299 = vsel %vm3298, %v3291, %v3295
      %v3300 = vand.u32 2147483647, %v2873
      %vm3301 = vcmp.eq.f32.partialorder %v3300, 8.507059e+37
      %v3302 = vand.u32 %v2873, 2147483648
      %v3303 = vor.u32 1.1754944e-38, %v3302
      %v3304 = vsel %vm3301, %v3303, %v3299
      %v3305 = vmul.f32 %v2781, %v3304
      %v3306 = vrcp.pop %v2876
      %v3307 = vmul.f32 %v2876, %v3306
      %v3308 = vsub.f32 1.0, %v3307
      %v3309 = vmul.f32 %v3306, %v3308
      %v3310 = vadd.f32 %v3306, %v3309
      %vm3311 = vweird.f32 %v2876
      %vm3312 = vweird.f32 %v3306
      %vm3313 = vmor %vm3311, %vm3312
      %v3314 = vsel %vm3313, %v3306, %v3310
      %v3315 = vand.u32 2147483647, %v2876
      %vm3316 = vcmp.eq.f32.partialorder %v3315, 8.507059e+37
      %v3317 = vand.u32 %v2876, 2147483648
      %v3318 = vor.u32 1.1754944e-38, %v3317
      %v3319 = vsel %vm3316, %v3318, %v3314
      %v3320 = vmul.f32 %v2783, %v3319
      %v3321 = vrcp.pop %v2879
      %v3322 = vmul.f32 %v2879, %v3321
      %v3323 = vsub.f32 1.0, %v3322
      %v3324 = vmul.f32 %v3321, %v3323
      %v3325 = vadd.f32 %v3321, %v3324
      %vm3326 = vweird.f32 %v2879
      %vm3327 = vweird.f32 %v3321
      %vm3328 = vmor %vm3326, %vm3327
      %v3329 = vsel %vm3328, %v3321, %v3325
      %v3330 = vand.u32 2147483647, %v2879
      %vm3331 = vcmp.eq.f32.partialorder %v3330, 8.507059e+37
      %v3332 = vand.u32 %v2879, 2147483648
      %v3333 = vor.u32 1.1754944e-38, %v3332
      %v3334 = vsel %vm3331, %v3333, %v3329
      %v3335 = vmul.f32 %v2785, %v3334
      %v3336 = vrcp.pop %v2882
      %v3337 = vmul.f32 %v2882, %v3336
      %v3338 = vsub.f32 1.0, %v3337
      %v3339 = vmul.f32 %v3336, %v3338
      %v3340 = vadd.f32 %v3336, %v3339
      %vm3341 = vweird.f32 %v2882
      %vm3342 = vweird.f32 %v3336
      %vm3343 = vmor %vm3341, %vm3342
      %v3344 = vsel %vm3343, %v3336, %v3340
      %v3345 = vand.u32 2147483647, %v2882
      %vm3346 = vcmp.eq.f32.partialorder %v3345, 8.507059e+37
      %v3347 = vand.u32 %v2882, 2147483648
      %v3348 = vor.u32 1.1754944e-38, %v3347
      %v3349 = vsel %vm3346, %v3348, %v3344
      %v3350 = vmul.f32 %v2787, %v3349
      %v3351 = vrcp.pop %v2885
      %v3352 = vmul.f32 %v2885, %v3351
      %v3353 = vsub.f32 1.0, %v3352
      %v3354 = vmul.f32 %v3351, %v3353
      %v3355 = vadd.f32 %v3351, %v3354
      %vm3356 = vweird.f32 %v2885
      %vm3357 = vweird.f32 %v3351
      %vm3358 = vmor %vm3356, %vm3357
      %v3359 = vsel %vm3358, %v3351, %v3355
      %v3360 = vand.u32 2147483647, %v2885
      %vm3361 = vcmp.eq.f32.partialorder %v3360, 8.507059e+37
      %v3362 = vand.u32 %v2885, 2147483648
      %v3363 = vor.u32 1.1754944e-38, %v3362
      %v3364 = vsel %vm3361, %v3363, %v3359
      %v3365 = vmul.f32 %v2789, %v3364
      %v3366 = vpack.c.bf16 %v2900, %v2900
      %v3367 = vpack.c.bf16 %v2915, %v2915
      %v3368 = vpack.c.bf16 %v2930, %v2930
      %v3369 = vpack.c.bf16 %v2945, %v2945
      %v3370 = vpack.c.bf16 %v2960, %v2960
      %v3371 = vpack.c.bf16 %v2975, %v2975
      %v3372 = vpack.c.bf16 %v2990, %v2990
      %v3373 = vpack.c.bf16 %v3005, %v3005
      %v3374 = vpack.c.bf16 %v3020, %v3020
      %v3375 = vpack.c.bf16 %v3035, %v3035
      %v3376 = vpack.c.bf16 %v3050, %v3050
      %v3377 = vpack.c.bf16 %v3065, %v3065
      %v3378 = vpack.c.bf16 %v3080, %v3080
      %v3379 = vpack.c.bf16 %v3095, %v3095
      %v3380 = vpack.c.bf16 %v3110, %v3110
      %v3381 = vpack.c.bf16 %v3125, %v3125
      %v3382 = vpack.c.bf16 %v3140, %v3140
      %v3383 = vpack.c.bf16 %v3155, %v3155
      %v3384 = vpack.c.bf16 %v3170, %v3170
      %v3385 = vpack.c.bf16 %v3185, %v3185
      %v3386 = vpack.c.bf16 %v3200, %v3200
      %v3387 = vpack.c.bf16 %v3215, %v3215
      %v3388 = vpack.c.bf16 %v3230, %v3230
      %v3389 = vpack.c.bf16 %v3245, %v3245
      %v3390 = vpack.c.bf16 %v3260, %v3260
      %v3391 = vpack.c.bf16 %v3275, %v3275
      %v3392 = vpack.c.bf16 %v3290, %v3290
      %v3393 = vpack.c.bf16 %v3305, %v3305
      %v3394 = vpack.c.bf16 %v3320, %v3320
      %v3395 = vpack.c.bf16 %v3335, %v3335
      %v3396 = vpack.c.bf16 %v3350, %v3350
      %v3397 = vpack.c.bf16 %v3365, %v3365
      %v3400 = vunpack.c.l.b16 %v3366
      %v3401 = vunpack.c.l.b16 %v3367
      %v3402 = vpack.c.b16 %v3401, %v3400
      %3403 = vrot.lane.b32.xlu0 %v564, 48
      %v3404 = vpop.permute.xlu0 %3403
      %v3407 = vsel %vm567, %v3402, 0
      %3409 = vmatpush.bf16.msra.mxu0 0
      %3410 = vmatpush.bf16.msra.mxu0 0
      %3411 = vmatpush.bf16.msra.mxu0 0
      %3412 = vmatpush.bf16.msra.mxu0 0
      %3413 = vmatpush.bf16.msra.mxu0 0
      %3414 = vmatpush.bf16.msra.mxu0 0
      %3415 = vmatpush.bf16.msra.mxu0 0
      %3416 = vmatpush.bf16.msra.mxu0 %v3404
      %3417 = vmatmul.bf16.gmra.mxu0 %v3407
      %v3418 = vpop.f32.mrf.mxu0
      %v3419 = vadd.f32 0.0, %v3418
      %v3420 = vpop.f32.mrf.mxu0
      %v3421 = vadd.f32 0.0, %v3420
      %3422 = vdwg.mxu0
      %v3425 = vunpack.c.l.b16 %v3368
      %v3426 = vunpack.c.l.b16 %v3369
      %v3427 = vpack.c.b16 %v3426, %v3425
      %3428 = vrot.lane.b32.xlu0 %v592, 48
      %v3429 = vpop.permute.xlu0 %3428
      %v3432 = vsel %vm567, %v3427, 0
      %3434 = vmatpush.bf16.msra.mxu0 0
      %3435 = vmatpush.bf16.msra.mxu0 0
      %3436 = vmatpush.bf16.msra.mxu0 0
      %3437 = vmatpush.bf16.msra.mxu0 0
      %3438 = vmatpush.bf16.msra.mxu0 0
      %3439 = vmatpush.bf16.msra.mxu0 0
      %3440 = vmatpush.bf16.msra.mxu0 0
      %3441 = vmatpush.bf16.msra.mxu0 %v3429
      %3442 = vmatmul.bf16.gmra.mxu0 %v3432
      %v3443 = vpop.f32.mrf.mxu0
      %v3444 = vadd.f32 0.0, %v3443
      %v3445 = vpop.f32.mrf.mxu0
      %v3446 = vadd.f32 0.0, %v3445
      %3447 = vdwg.mxu0
      %v3450 = vunpack.c.l.b16 %v3370
      %v3451 = vunpack.c.l.b16 %v3371
      %v3452 = vpack.c.b16 %v3451, %v3450
      %3453 = vrot.lane.b32.xlu0 %v619, 48
      %v3454 = vpop.permute.xlu0 %3453
      %v3457 = vsel %vm567, %v3452, 0
      %3459 = vmatpush.bf16.msra.mxu0 0
      %3460 = vmatpush.bf16.msra.mxu0 0
      %3461 = vmatpush.bf16.msra.mxu0 0
      %3462 = vmatpush.bf16.msra.mxu0 0
      %3463 = vmatpush.bf16.msra.mxu0 0
      %3464 = vmatpush.bf16.msra.mxu0 0
      %3465 = vmatpush.bf16.msra.mxu0 0
      %3466 = vmatpush.bf16.msra.mxu0 %v3454
      %3467 = vmatmul.bf16.gmra.mxu0 %v3457
      %v3468 = vpop.f32.mrf.mxu0
      %v3469 = vadd.f32 0.0, %v3468
      %v3470 = vpop.f32.mrf.mxu0
      %v3471 = vadd.f32 0.0, %v3470
      %3472 = vdwg.mxu0
      %v3475 = vunpack.c.l.b16 %v3372
      %v3476 = vunpack.c.l.b16 %v3373
      %v3477 = vpack.c.b16 %v3476, %v3475
      %3478 = vrot.lane.b32.xlu0 %v646, 48
      %v3479 = vpop.permute.xlu0 %3478
      %v3482 = vsel %vm567, %v3477, 0
      %3484 = vmatpush.bf16.msra.mxu0 0
      %3485 = vmatpush.bf16.msra.mxu0 0
      %3486 = vmatpush.bf16.msra.mxu0 0
      %3487 = vmatpush.bf16.msra.mxu0 0
      %3488 = vmatpush.bf16.msra.mxu0 0
      %3489 = vmatpush.bf16.msra.mxu0 0
      %3490 = vmatpush.bf16.msra.mxu0 0
      %3491 = vmatpush.bf16.msra.mxu0 %v3479
      %3492 = vmatmul.bf16.gmra.mxu0 %v3482
      %v3493 = vpop.f32.mrf.mxu0
      %v3494 = vadd.f32 0.0, %v3493
      %v3495 = vpop.f32.mrf.mxu0
      %v3496 = vadd.f32 0.0, %v3495
      %3497 = vdwg.mxu0
      %v3500 = vunpack.c.l.b16 %v3374
      %v3501 = vunpack.c.l.b16 %v3375
      %v3502 = vpack.c.b16 %v3501, %v3500
      %3503 = vrot.lane.b32.xlu0 %v673, 48
      %v3504 = vpop.permute.xlu0 %3503
      %v3507 = vsel %vm567, %v3502, 0
      %3509 = vmatpush.bf16.msra.mxu0 0
      %3510 = vmatpush.bf16.msra.mxu0 0
      %3511 = vmatpush.bf16.msra.mxu0 0
      %3512 = vmatpush.bf16.msra.mxu0 0
      %3513 = vmatpush.bf16.msra.mxu0 0
      %3514 = vmatpush.bf16.msra.mxu0 0
      %3515 = vmatpush.bf16.msra.mxu0 0
      %3516 = vmatpush.bf16.msra.mxu0 %v3504
      %3517 = vmatmul.bf16.gmra.mxu0 %v3507
      %v3518 = vpop.f32.mrf.mxu0
      %v3519 = vadd.f32 0.0, %v3518
      %v3520 = vpop.f32.mrf.mxu0
      %v3521 = vadd.f32 0.0, %v3520
      %3522 = vdwg.mxu0
      %v3525 = vunpack.c.l.b16 %v3376
      %v3526 = vunpack.c.l.b16 %v3377
      %v3527 = vpack.c.b16 %v3526, %v3525
      %3528 = vrot.lane.b32.xlu0 %v700, 48
      %v3529 = vpop.permute.xlu0 %3528
      %v3532 = vsel %vm567, %v3527, 0
      %3534 = vmatpush.bf16.msra.mxu0 0
      %3535 = vmatpush.bf16.msra.mxu0 0
      %3536 = vmatpush.bf16.msra.mxu0 0
      %3537 = vmatpush.bf16.msra.mxu0 0
      %3538 = vmatpush.bf16.msra.mxu0 0
      %3539 = vmatpush.bf16.msra.mxu0 0
      %3540 = vmatpush.bf16.msra.mxu0 0
      %3541 = vmatpush.bf16.msra.mxu0 %v3529
      %3542 = vmatmul.bf16.gmra.mxu0 %v3532
      %v3543 = vpop.f32.mrf.mxu0
      %v3544 = vadd.f32 0.0, %v3543
      %v3545 = vpop.f32.mrf.mxu0
      %v3546 = vadd.f32 0.0, %v3545
      %3547 = vdwg.mxu0
      %v3550 = vunpack.c.l.b16 %v3378
      %v3551 = vunpack.c.l.b16 %v3379
      %v3552 = vpack.c.b16 %v3551, %v3550
      %3553 = vrot.lane.b32.xlu0 %v727, 48
      %v3554 = vpop.permute.xlu0 %3553
      %v3557 = vsel %vm567, %v3552, 0
      %3559 = vmatpush.bf16.msra.mxu0 0
      %3560 = vmatpush.bf16.msra.mxu0 0
      %3561 = vmatpush.bf16.msra.mxu0 0
      %3562 = vmatpush.bf16.msra.mxu0 0
      %3563 = vmatpush.bf16.msra.mxu0 0
      %3564 = vmatpush.bf16.msra.mxu0 0
      %3565 = vmatpush.bf16.msra.mxu0 0
      %3566 = vmatpush.bf16.msra.mxu0 %v3554
      %3567 = vmatmul.bf16.gmra.mxu0 %v3557
      %v3568 = vpop.f32.mrf.mxu0
      %v3569 = vadd.f32 0.0, %v3568
      %v3570 = vpop.f32.mrf.mxu0
      %v3571 = vadd.f32 0.0, %v3570
      %3572 = vdwg.mxu0
      %v3575 = vunpack.c.l.b16 %v3380
      %v3576 = vunpack.c.l.b16 %v3381
      %v3577 = vpack.c.b16 %v3576, %v3575
      %3578 = vrot.lane.b32.xlu0 %v754, 48
      %v3579 = vpop.permute.xlu0 %3578
      %v3582 = vsel %vm567, %v3577, 0
      %3584 = vmatpush.bf16.msra.mxu0 0
      %3585 = vmatpush.bf16.msra.mxu0 0
      %3586 = vmatpush.bf16.msra.mxu0 0
      %3587 = vmatpush.bf16.msra.mxu0 0
      %3588 = vmatpush.bf16.msra.mxu0 0
      %3589 = vmatpush.bf16.msra.mxu0 0
      %3590 = vmatpush.bf16.msra.mxu0 0
      %3591 = vmatpush.bf16.msra.mxu0 %v3579
      %3592 = vmatmul.bf16.gmra.mxu0 %v3582
      %v3593 = vpop.f32.mrf.mxu0
      %v3594 = vadd.f32 0.0, %v3593
      %v3595 = vpop.f32.mrf.mxu0
      %v3596 = vadd.f32 0.0, %v3595
      %3597 = vdwg.mxu0
      %v3600 = vunpack.c.l.b16 %v3382
      %v3601 = vunpack.c.l.b16 %v3383
      %v3602 = vpack.c.b16 %v3601, %v3600
      %3603 = vrot.lane.b32.xlu0 %v781, 48
      %v3604 = vpop.permute.xlu0 %3603
      %v3607 = vsel %vm567, %v3602, 0
      %3609 = vmatpush.bf16.msra.mxu0 0
      %3610 = vmatpush.bf16.msra.mxu0 0
      %3611 = vmatpush.bf16.msra.mxu0 0
      %3612 = vmatpush.bf16.msra.mxu0 0
      %3613 = vmatpush.bf16.msra.mxu0 0
      %3614 = vmatpush.bf16.msra.mxu0 0
      %3615 = vmatpush.bf16.msra.mxu0 0
      %3616 = vmatpush.bf16.msra.mxu0 %v3604
      %3617 = vmatmul.bf16.gmra.mxu0 %v3607
      %v3618 = vpop.f32.mrf.mxu0
      %v3619 = vadd.f32 0.0, %v3618
      %v3620 = vpop.f32.mrf.mxu0
      %v3621 = vadd.f32 0.0, %v3620
      %3622 = vdwg.mxu0
      %v3625 = vunpack.c.l.b16 %v3384
      %v3626 = vunpack.c.l.b16 %v3385
      %v3627 = vpack.c.b16 %v3626, %v3625
      %3628 = vrot.lane.b32.xlu0 %v808, 48
      %v3629 = vpop.permute.xlu0 %3628
      %v3632 = vsel %vm567, %v3627, 0
      %3634 = vmatpush.bf16.msra.mxu0 0
      %3635 = vmatpush.bf16.msra.mxu0 0
      %3636 = vmatpush.bf16.msra.mxu0 0
      %3637 = vmatpush.bf16.msra.mxu0 0
      %3638 = vmatpush.bf16.msra.mxu0 0
      %3639 = vmatpush.bf16.msra.mxu0 0
      %3640 = vmatpush.bf16.msra.mxu0 0
      %3641 = vmatpush.bf16.msra.mxu0 %v3629
      %3642 = vmatmul.bf16.gmra.mxu0 %v3632
      %v3643 = vpop.f32.mrf.mxu0
      %v3644 = vadd.f32 0.0, %v3643
      %v3645 = vpop.f32.mrf.mxu0
      %v3646 = vadd.f32 0.0, %v3645
      %3647 = vdwg.mxu0
      %v3650 = vunpack.c.l.b16 %v3386
      %v3651 = vunpack.c.l.b16 %v3387
      %v3652 = vpack.c.b16 %v3651, %v3650
      %3653 = vrot.lane.b32.xlu0 %v835, 48
      %v3654 = vpop.permute.xlu0 %3653
      %v3657 = vsel %vm567, %v3652, 0
      %3659 = vmatpush.bf16.msra.mxu0 0
      %3660 = vmatpush.bf16.msra.mxu0 0
      %3661 = vmatpush.bf16.msra.mxu0 0
      %3662 = vmatpush.bf16.msra.mxu0 0
      %3663 = vmatpush.bf16.msra.mxu0 0
      %3664 = vmatpush.bf16.msra.mxu0 0
      %3665 = vmatpush.bf16.msra.mxu0 0
      %3666 = vmatpush.bf16.msra.mxu0 %v3654
      %3667 = vmatmul.bf16.gmra.mxu0 %v3657
      %v3668 = vpop.f32.mrf.mxu0
      %v3669 = vadd.f32 0.0, %v3668
      %v3670 = vpop.f32.mrf.mxu0
      %v3671 = vadd.f32 0.0, %v3670
      %3672 = vdwg.mxu0
      %v3675 = vunpack.c.l.b16 %v3388
      %v3676 = vunpack.c.l.b16 %v3389
      %v3677 = vpack.c.b16 %v3676, %v3675
      %3678 = vrot.lane.b32.xlu0 %v862, 48
      %v3679 = vpop.permute.xlu0 %3678
      %v3682 = vsel %vm567, %v3677, 0
      %3684 = vmatpush.bf16.msra.mxu0 0
      %3685 = vmatpush.bf16.msra.mxu0 0
      %3686 = vmatpush.bf16.msra.mxu0 0
      %3687 = vmatpush.bf16.msra.mxu0 0
      %3688 = vmatpush.bf16.msra.mxu0 0
      %3689 = vmatpush.bf16.msra.mxu0 0
      %3690 = vmatpush.bf16.msra.mxu0 0
      %3691 = vmatpush.bf16.msra.mxu0 %v3679
      %3692 = vmatmul.bf16.gmra.mxu0 %v3682
      %v3693 = vpop.f32.mrf.mxu0
      %v3694 = vadd.f32 0.0, %v3693
      %v3695 = vpop.f32.mrf.mxu0
      %v3696 = vadd.f32 0.0, %v3695
      %3697 = vdwg.mxu0
      %v3700 = vunpack.c.l.b16 %v3390
      %v3701 = vunpack.c.l.b16 %v3391
      %v3702 = vpack.c.b16 %v3701, %v3700
      %3703 = vrot.lane.b32.xlu0 %v889, 48
      %v3704 = vpop.permute.xlu0 %3703
      %v3707 = vsel %vm567, %v3702, 0
      %3709 = vmatpush.bf16.msra.mxu0 0
      %3710 = vmatpush.bf16.msra.mxu0 0
      %3711 = vmatpush.bf16.msra.mxu0 0
      %3712 = vmatpush.bf16.msra.mxu0 0
      %3713 = vmatpush.bf16.msra.mxu0 0
      %3714 = vmatpush.bf16.msra.mxu0 0
      %3715 = vmatpush.bf16.msra.mxu0 0
      %3716 = vmatpush.bf16.msra.mxu0 %v3704
      %3717 = vmatmul.bf16.gmra.mxu0 %v3707
      %v3718 = vpop.f32.mrf.mxu0
      %v3719 = vadd.f32 0.0, %v3718
      %v3720 = vpop.f32.mrf.mxu0
      %v3721 = vadd.f32 0.0, %v3720
      %3722 = vdwg.mxu0
      %v3725 = vunpack.c.l.b16 %v3392
      %v3726 = vunpack.c.l.b16 %v3393
      %v3727 = vpack.c.b16 %v3726, %v3725
      %3728 = vrot.lane.b32.xlu0 %v916, 48
      %v3729 = vpop.permute.xlu0 %3728
      %v3732 = vsel %vm567, %v3727, 0
      %3734 = vmatpush.bf16.msra.mxu0 0
      %3735 = vmatpush.bf16.msra.mxu0 0
      %3736 = vmatpush.bf16.msra.mxu0 0
      %3737 = vmatpush.bf16.msra.mxu0 0
      %3738 = vmatpush.bf16.msra.mxu0 0
      %3739 = vmatpush.bf16.msra.mxu0 0
      %3740 = vmatpush.bf16.msra.mxu0 0
      %3741 = vmatpush.bf16.msra.mxu0 %v3729
      %3742 = vmatmul.bf16.gmra.mxu0 %v3732
      %v3743 = vpop.f32.mrf.mxu0
      %v3744 = vadd.f32 0.0, %v3743
      %v3745 = vpop.f32.mrf.mxu0
      %v3746 = vadd.f32 0.0, %v3745
      %3747 = vdwg.mxu0
      %v3750 = vunpack.c.l.b16 %v3394
      %v3751 = vunpack.c.l.b16 %v3395
      %v3752 = vpack.c.b16 %v3751, %v3750
      %3753 = vrot.lane.b32.xlu0 %v943, 48
      %v3754 = vpop.permute.xlu0 %3753
      %v3757 = vsel %vm567, %v3752, 0
      %3759 = vmatpush.bf16.msra.mxu0 0
      %3760 = vmatpush.bf16.msra.mxu0 0
      %3761 = vmatpush.bf16.msra.mxu0 0
      %3762 = vmatpush.bf16.msra.mxu0 0
      %3763 = vmatpush.bf16.msra.mxu0 0
      %3764 = vmatpush.bf16.msra.mxu0 0
      %3765 = vmatpush.bf16.msra.mxu0 0
      %3766 = vmatpush.bf16.msra.mxu0 %v3754
      %3767 = vmatmul.bf16.gmra.mxu0 %v3757
      %v3768 = vpop.f32.mrf.mxu0
      %v3769 = vadd.f32 0.0, %v3768
      %v3770 = vpop.f32.mrf.mxu0
      %v3771 = vadd.f32 0.0, %v3770
      %3772 = vdwg.mxu0
      %v3775 = vunpack.c.l.b16 %v3396
      %v3776 = vunpack.c.l.b16 %v3397
      %v3777 = vpack.c.b16 %v3776, %v3775
      %3778 = vrot.lane.b32.xlu0 %v970, 48
      %v3779 = vpop.permute.xlu0 %3778
      %v3782 = vsel %vm567, %v3777, 0
      %3784 = vmatpush.bf16.msra.mxu0 0
      %3785 = vmatpush.bf16.msra.mxu0 0
      %3786 = vmatpush.bf16.msra.mxu0 0
      %3787 = vmatpush.bf16.msra.mxu0 0
      %3788 = vmatpush.bf16.msra.mxu0 0
      %3789 = vmatpush.bf16.msra.mxu0 0
      %3790 = vmatpush.bf16.msra.mxu0 0
      %3791 = vmatpush.bf16.msra.mxu0 %v3779
      %3792 = vmatmul.bf16.gmra.mxu0 %v3782
      %v3793 = vpop.f32.mrf.mxu0
      %v3794 = vadd.f32 0.0, %v3793
      %v3795 = vpop.f32.mrf.mxu0
      %v3796 = vadd.f32 0.0, %v3795
      %3797 = vdwg.mxu0
      %v3798 = vpack.c.bf16 %v3421, %v3419
      %v3799 = vpack.c.bf16 %v3446, %v3444
      %v3800 = vpack.c.bf16 %v3471, %v3469
      %v3801 = vpack.c.bf16 %v3496, %v3494
      %v3802 = vpack.c.bf16 %v3521, %v3519
      %v3803 = vpack.c.bf16 %v3546, %v3544
      %v3804 = vpack.c.bf16 %v3571, %v3569
      %v3805 = vpack.c.bf16 %v3596, %v3594
      %v3806 = vpack.c.bf16 %v3621, %v3619
      %v3807 = vpack.c.bf16 %v3646, %v3644
      %v3808 = vpack.c.bf16 %v3671, %v3669
      %v3809 = vpack.c.bf16 %v3696, %v3694
      %v3810 = vpack.c.bf16 %v3721, %v3719
      %v3811 = vpack.c.bf16 %v3746, %v3744
      %v3812 = vpack.c.bf16 %v3771, %v3769
      %v3813 = vpack.c.bf16 %v3796, %v3794
      %v3814 = vld [vmem:[%s4 + $0x8] sm:$0xf]
      %v3815 = vld [vmem:[%s4 + $0xc] sm:$0xf]
      %v3818 = vunpack.c.l.b16 %v3814
      %v3819 = vunpack.c.l.b16 %v3815
      %v3820 = vpack.c.b16 %v3819, %v3818
      %v3823 = vsel %vm567, %v3798, 0
      %v3826 = vsel %vm567, %v3799, 0
      %v3829 = vsel %vm567, %v3800, 0
      %v3832 = vsel %vm567, %v3801, 0
      %v3835 = vsel %vm567, %v3802, 0
      %v3838 = vsel %vm567, %v3803, 0
      %v3841 = vsel %vm567, %v3804, 0
      %v3844 = vsel %vm567, %v3805, 0
      %v3847 = vsel %vm567, %v3806, 0
      %v3850 = vsel %vm567, %v3807, 0
      %v3853 = vsel %vm567, %v3808, 0
      %v3856 = vsel %vm567, %v3809, 0
      %v3859 = vsel %vm567, %v3810, 0
      %v3862 = vsel %vm567, %v3811, 0
      %v3865 = vsel %vm567, %v3812, 0
      %v3868 = vsel %vm567, %v3813, 0
      %3870 = vmatpush.bf16.msra.mxu0 0
      %3871 = vmatpush.bf16.msra.mxu0 0
      %3872 = vmatpush.bf16.msra.mxu0 0
      %3873 = vmatpush.bf16.msra.mxu0 0
      %3874 = vmatpush.bf16.msra.mxu0 0
      %3875 = vmatpush.bf16.msra.mxu0 0
      %3876 = vmatpush.bf16.msra.mxu0 0
      %3877 = vmatpush.bf16.msra.mxu0 %v3820
      %3878 = vmatmul.bf16.gmra.mxu0 %v3823
      %v3879 = vpop.f32.mrf.mxu0
      %v3880 = vadd.f32 0.0, %v3879
      %v3881 = vpop.f32.mrf.mxu0
      %v3882 = vadd.f32 0.0, %v3881
      %3883 = vmatmul.bf16.gmra.mxu0 %v3826
      %v3884 = vpop.f32.mrf.mxu0
      %v3885 = vadd.f32 0.0, %v3884
      %v3886 = vpop.f32.mrf.mxu0
      %v3887 = vadd.f32 0.0, %v3886
      %3888 = vmatmul.bf16.gmra.mxu0 %v3829
      %v3889 = vpop.f32.mrf.mxu0
      %v3890 = vadd.f32 0.0, %v3889
      %v3891 = vpop.f32.mrf.mxu0
      %v3892 = vadd.f32 0.0, %v3891
      %3893 = vmatmul.bf16.gmra.mxu0 %v3832
      %v3894 = vpop.f32.mrf.mxu0
      %v3895 = vadd.f32 0.0, %v3894
      %v3896 = vpop.f32.mrf.mxu0
      %v3897 = vadd.f32 0.0, %v3896
      %3898 = vmatmul.bf16.gmra.mxu0 %v3835
      %v3899 = vpop.f32.mrf.mxu0
      %v3900 = vadd.f32 0.0, %v3899
      %v3901 = vpop.f32.mrf.mxu0
      %v3902 = vadd.f32 0.0, %v3901
      %3903 = vmatmul.bf16.gmra.mxu0 %v3838
      %v3904 = vpop.f32.mrf.mxu0
      %v3905 = vadd.f32 0.0, %v3904
      %v3906 = vpop.f32.mrf.mxu0
      %v3907 = vadd.f32 0.0, %v3906
      %3908 = vmatmul.bf16.gmra.mxu0 %v3841
      %v3909 = vpop.f32.mrf.mxu0
      %v3910 = vadd.f32 0.0, %v3909
      %v3911 = vpop.f32.mrf.mxu0
      %v3912 = vadd.f32 0.0, %v3911
      %3913 = vmatmul.bf16.gmra.mxu0 %v3844
      %v3914 = vpop.f32.mrf.mxu0
      %v3915 = vadd.f32 0.0, %v3914
      %v3916 = vpop.f32.mrf.mxu0
      %v3917 = vadd.f32 0.0, %v3916
      %3918 = vmatmul.bf16.gmra.mxu0 %v3847
      %v3919 = vpop.f32.mrf.mxu0
      %v3920 = vadd.f32 0.0, %v3919
      %v3921 = vpop.f32.mrf.mxu0
      %v3922 = vadd.f32 0.0, %v3921
      %3923 = vmatmul.bf16.gmra.mxu0 %v3850
      %v3924 = vpop.f32.mrf.mxu0
      %v3925 = vadd.f32 0.0, %v3924
      %v3926 = vpop.f32.mrf.mxu0
      %v3927 = vadd.f32 0.0, %v3926
      %3928 = vmatmul.bf16.gmra.mxu0 %v3853
      %v3929 = vpop.f32.mrf.mxu0
      %v3930 = vadd.f32 0.0, %v3929
      %v3931 = vpop.f32.mrf.mxu0
      %v3932 = vadd.f32 0.0, %v3931
      %3933 = vmatmul.bf16.gmra.mxu0 %v3856
      %v3934 = vpop.f32.mrf.mxu0
      %v3935 = vadd.f32 0.0, %v3934
      %v3936 = vpop.f32.mrf.mxu0
      %v3937 = vadd.f32 0.0, %v3936
      %3938 = vmatmul.bf16.gmra.mxu0 %v3859
      %v3939 = vpop.f32.mrf.mxu0
      %v3940 = vadd.f32 0.0, %v3939
      %v3941 = vpop.f32.mrf.mxu0
      %v3942 = vadd.f32 0.0, %v3941
      %3943 = vmatmul.bf16.gmra.mxu0 %v3862
      %v3944 = vpop.f32.mrf.mxu0
      %v3945 = vadd.f32 0.0, %v3944
      %v3946 = vpop.f32.mrf.mxu0
      %v3947 = vadd.f32 0.0, %v3946
      %3948 = vmatmul.bf16.gmra.mxu0 %v3865
      %v3949 = vpop.f32.mrf.mxu0
      %v3950 = vadd.f32 0.0, %v3949
      %v3951 = vpop.f32.mrf.mxu0
      %v3952 = vadd.f32 0.0, %v3951
      %3953 = vmatmul.bf16.gmra.mxu0 %v3868
      %v3954 = vpop.f32.mrf.mxu0
      %v3955 = vadd.f32 0.0, %v3954
      %v3956 = vpop.f32.mrf.mxu0
      %v3957 = vadd.f32 0.0, %v3956
      %3958 = vdwg.mxu0
      %v3961 = vunpack.c.l.b16 %v2209
      %v3962 = vunpack.c.l.b16 %v2210
      %v3963 = vpack.c.b16 %v3962, %v3961
      %v3966 = vsel %vm567, %v2193, 0
      %v3969 = vsel %vm567, %v2194, 0
      %v3972 = vsel %vm567, %v2195, 0
      %v3975 = vsel %vm567, %v2196, 0
      %v3978 = vsel %vm567, %v2197, 0
      %v3981 = vsel %vm567, %v2198, 0
      %v3984 = vsel %vm567, %v2199, 0
      %v3987 = vsel %vm567, %v2200, 0
      %v3990 = vsel %vm567, %v2201, 0
      %v3993 = vsel %vm567, %v2202, 0
      %v3996 = vsel %vm567, %v2203, 0
      %v3999 = vsel %vm567, %v2204, 0
      %v4002 = vsel %vm567, %v2205, 0
      %v4005 = vsel %vm567, %v2206, 0
      %v4008 = vsel %vm567, %v2207, 0
      %v4011 = vsel %vm567, %v2208, 0
      %4013 = vmatpush.bf16.msra.mxu0 0
      %4014 = vmatpush.bf16.msra.mxu0 0
      %4015 = vmatpush.bf16.msra.mxu0 0
      %4016 = vmatpush.bf16.msra.mxu0 0
      %4017 = vmatpush.bf16.msra.mxu0 0
      %4018 = vmatpush.bf16.msra.mxu0 0
      %4019 = vmatpush.bf16.msra.mxu0 0
      %4020 = vmatpush.bf16.msra.mxu0 %v3963
      %4021 = vmatmul.bf16.gmra.mxu0 %v3966
      %v4022 = vpop.f32.mrf.mxu0
      %v4023 = vadd.f32 %v3880, %v4022
      %v4024 = vpop.f32.mrf.mxu0
      %v4025 = vadd.f32 %v3882, %v4024
      %4026 = vmatmul.bf16.gmra.mxu0 %v3969
      %v4027 = vpop.f32.mrf.mxu0
      %v4028 = vadd.f32 %v3885, %v4027
      %v4029 = vpop.f32.mrf.mxu0
      %v4030 = vadd.f32 %v3887, %v4029
      %4031 = vmatmul.bf16.gmra.mxu0 %v3972
      %v4032 = vpop.f32.mrf.mxu0
      %v4033 = vadd.f32 %v3890, %v4032
      %v4034 = vpop.f32.mrf.mxu0
      %v4035 = vadd.f32 %v3892, %v4034
      %4036 = vmatmul.bf16.gmra.mxu0 %v3975
      %v4037 = vpop.f32.mrf.mxu0
      %v4038 = vadd.f32 %v3895, %v4037
      %v4039 = vpop.f32.mrf.mxu0
      %v4040 = vadd.f32 %v3897, %v4039
      %4041 = vmatmul.bf16.gmra.mxu0 %v3978
      %v4042 = vpop.f32.mrf.mxu0
      %v4043 = vadd.f32 %v3900, %v4042
      %v4044 = vpop.f32.mrf.mxu0
      %v4045 = vadd.f32 %v3902, %v4044
      %4046 = vmatmul.bf16.gmra.mxu0 %v3981
      %v4047 = vpop.f32.mrf.mxu0
      %v4048 = vadd.f32 %v3905, %v4047
      %v4049 = vpop.f32.mrf.mxu0
      %v4050 = vadd.f32 %v3907, %v4049
      %4051 = vmatmul.bf16.gmra.mxu0 %v3984
      %v4052 = vpop.f32.mrf.mxu0
      %v4053 = vadd.f32 %v3910, %v4052
      %v4054 = vpop.f32.mrf.mxu0
      %v4055 = vadd.f32 %v3912, %v4054
      %4056 = vmatmul.bf16.gmra.mxu0 %v3987
      %v4057 = vpop.f32.mrf.mxu0
      %v4058 = vadd.f32 %v3915, %v4057
      %v4059 = vpop.f32.mrf.mxu0
      %v4060 = vadd.f32 %v3917, %v4059
      %4061 = vmatmul.bf16.gmra.mxu0 %v3990
      %v4062 = vpop.f32.mrf.mxu0
      %v4063 = vadd.f32 %v3920, %v4062
      %v4064 = vpop.f32.mrf.mxu0
      %v4065 = vadd.f32 %v3922, %v4064
      %4066 = vmatmul.bf16.gmra.mxu0 %v3993
      %v4067 = vpop.f32.mrf.mxu0
      %v4068 = vadd.f32 %v3925, %v4067
      %v4069 = vpop.f32.mrf.mxu0
      %v4070 = vadd.f32 %v3927, %v4069
      %4071 = vmatmul.bf16.gmra.mxu0 %v3996
      %v4072 = vpop.f32.mrf.mxu0
      %v4073 = vadd.f32 %v3930, %v4072
      %v4074 = vpop.f32.mrf.mxu0
      %v4075 = vadd.f32 %v3932, %v4074
      %4076 = vmatmul.bf16.gmra.mxu0 %v3999
      %v4077 = vpop.f32.mrf.mxu0
      %v4078 = vadd.f32 %v3935, %v4077
      %v4079 = vpop.f32.mrf.mxu0
      %v4080 = vadd.f32 %v3937, %v4079
      %4081 = vmatmul.bf16.gmra.mxu0 %v4002
      %v4082 = vpop.f32.mrf.mxu0
      %v4083 = vadd.f32 %v3940, %v4082
      %v4084 = vpop.f32.mrf.mxu0
      %v4085 = vadd.f32 %v3942, %v4084
      %4086 = vmatmul.bf16.gmra.mxu0 %v4005
      %v4087 = vpop.f32.mrf.mxu0
      %v4088 = vadd.f32 %v3945, %v4087
      %v4089 = vpop.f32.mrf.mxu0
      %v4090 = vadd.f32 %v3947, %v4089
      %4091 = vmatmul.bf16.gmra.mxu0 %v4008
      %v4092 = vpop.f32.mrf.mxu0
      %v4093 = vadd.f32 %v3950, %v4092
      %v4094 = vpop.f32.mrf.mxu0
      %v4095 = vadd.f32 %v3952, %v4094
      %4096 = vmatmul.bf16.gmra.mxu0 %v4011
      %v4097 = vpop.f32.mrf.mxu0
      %v4098 = vadd.f32 %v3955, %v4097
      %v4099 = vpop.f32.mrf.mxu0
      %v4100 = vadd.f32 %v3957, %v4099
      %4101 = vdwg.mxu0
      %v4102 = vld [vmem:[%s5] sm:$0x1]
      %v4104 = vperm.slane %v4102, 0
      %v4106 = vadd.f32 %v4023, %v4104
      %v4107 = vadd.f32 %v4025, %v4104
      %v4108 = vadd.f32 %v4028, %v4104
      %v4109 = vadd.f32 %v4030, %v4104
      %v4110 = vadd.f32 %v4033, %v4104
      %v4111 = vadd.f32 %v4035, %v4104
      %v4112 = vadd.f32 %v4038, %v4104
      %v4113 = vadd.f32 %v4040, %v4104
      %v4114 = vadd.f32 %v4043, %v4104
      %v4115 = vadd.f32 %v4045, %v4104
      %v4116 = vadd.f32 %v4048, %v4104
      %v4117 = vadd.f32 %v4050, %v4104
      %v4118 = vadd.f32 %v4053, %v4104
      %v4119 = vadd.f32 %v4055, %v4104
      %v4120 = vadd.f32 %v4058, %v4104
      %v4121 = vadd.f32 %v4060, %v4104
      %v4122 = vadd.f32 %v4063, %v4104
      %v4123 = vadd.f32 %v4065, %v4104
      %v4124 = vadd.f32 %v4068, %v4104
      %v4125 = vadd.f32 %v4070, %v4104
      %v4126 = vadd.f32 %v4073, %v4104
      %v4127 = vadd.f32 %v4075, %v4104
      %v4128 = vadd.f32 %v4078, %v4104
      %v4129 = vadd.f32 %v4080, %v4104
      %v4130 = vadd.f32 %v4083, %v4104
      %v4131 = vadd.f32 %v4085, %v4104
      %v4132 = vadd.f32 %v4088, %v4104
      %v4133 = vadd.f32 %v4090, %v4104
      %v4134 = vadd.f32 %v4093, %v4104
      %v4135 = vadd.f32 %v4095, %v4104
      %v4136 = vadd.f32 %v4098, %v4104
      %v4137 = vadd.f32 %v4100, %v4104
      %4138 = vst.msk [vmem:[%s253] sm:$0xff] %vm388, %v4106
      %4139 = vst.msk [vmem:[%s253 + $0x8] sm:$0xff] %vm388, %v4107
      %4140 = vst.msk [vmem:[%s253 + $0x10] sm:$0xff] %vm388, %v4108
      %4141 = vst.msk [vmem:[%s253 + $0x18] sm:$0xff] %vm388, %v4109
      %4142 = vst.msk [vmem:[%s253 + $0x20] sm:$0xff] %vm388, %v4110
      %4143 = vst.msk [vmem:[%s253 + $0x28] sm:$0xff] %vm388, %v4111
      %4144 = vst.msk [vmem:[%s253 + $0x30] sm:$0xff] %vm388, %v4112
      %4145 = vst.msk [vmem:[%s253 + $0x38] sm:$0xff] %vm388, %v4113
      %4146 = vst.msk [vmem:[%s253 + $0x40] sm:$0xff] %vm388, %v4114
      %4147 = vst.msk [vmem:[%s253 + $0x48] sm:$0xff] %vm388, %v4115
      %4148 = vst.msk [vmem:[%s253 + $0x50] sm:$0xff] %vm388, %v4116
      %4149 = vst.msk [vmem:[%s253 + $0x58] sm:$0xff] %vm388, %v4117
      %4150 = vst.msk [vmem:[%s253 + $0x60] sm:$0xff] %vm388, %v4118
      %4151 = vst.msk [vmem:[%s253 + $0x68] sm:$0xff] %vm388, %v4119
      %4152 = vst.msk [vmem:[%s253 + $0x70] sm:$0xff] %vm388, %v4120
      %4153 = vst.msk [vmem:[%s253 + $0x78] sm:$0xff] %vm388, %v4121
      %4154 = vst.msk [vmem:[%s253 + $0x80] sm:$0xff] %vm388, %v4122
      %4155 = vst.msk [vmem:[%s253 + $0x88] sm:$0xff] %vm388, %v4123
      %4156 = vst.msk [vmem:[%s253 + $0x90] sm:$0xff] %vm388, %v4124
      %4157 = vst.msk [vmem:[%s253 + $0x98] sm:$0xff] %vm388, %v4125
      %4158 = vst.msk [vmem:[%s253 + $0xa0] sm:$0xff] %vm388, %v4126
      %4159 = vst.msk [vmem:[%s253 + $0xa8] sm:$0xff] %vm388, %v4127
      %4160 = vst.msk [vmem:[%s253 + $0xb0] sm:$0xff] %vm388, %v4128
      %4161 = vst.msk [vmem:[%s253 + $0xb8] sm:$0xff] %vm388, %v4129
      %4162 = vst.msk [vmem:[%s253 + $0xc0] sm:$0xff] %vm388, %v4130
      %4163 = vst.msk [vmem:[%s253 + $0xc8] sm:$0xff] %vm388, %v4131
      %4164 = vst.msk [vmem:[%s253 + $0xd0] sm:$0xff] %vm388, %v4132
      %4165 = vst.msk [vmem:[%s253 + $0xd8] sm:$0xff] %vm388, %v4133
      %4166 = vst.msk [vmem:[%s253 + $0xe0] sm:$0xff] %vm388, %v4134
      %4167 = vst.msk [vmem:[%s253 + $0xe8] sm:$0xff] %vm388, %v4135
      %4168 = vst.msk [vmem:[%s253 + $0xf0] sm:$0xff] %vm388, %v4136
      %4169 = vst.msk [vmem:[%s253 + $0xf8] sm:$0xff] %vm388, %v4137
      %s4170 = smul.u32 32, %s17
      %p4171 = scmp.lt.s32.totalorder %s4170, 127
      %s4172 = scalar_select %p4171, %s4170, 127
      %s4173 = smul.addr %s4172, 8
      %s4174 = scalar_lea.vmem %s6, %s4173
      // Predicated region
      $region45: #{tpu_custom_call.1} parent=43 // pred_check
        %p4175 = pneg %p166
      $region46: #{tpu_custom_call.1} parent=43 // pred_check_branch
        %4177 = sbr.rel (%p4175) target = $region48
      $region47: #{tpu_custom_call.1} parent=43 // pred_region
        %s4178 = smul.u32 32, %s17
      $region48: #{tpu_custom_call.1} parent=43 // pred_fallthru
        _
    $region44: #{tpu_custom_call.1} parent=5 // pred_fallthru
      _
    %p4179 = scmp.le.s32.totalorder 2, %s12
    // Predicated region
    $region49: #{tpu_custom_call.1} parent=5 // pred_check
      %p4180 = pneg %p4179
    $region50: #{tpu_custom_call.1} parent=5 // pred_check_branch
      %4182 = sbr.rel (%p4180) target = $region52
    $region51: #{tpu_custom_call.1} parent=5 // pred_region
      %s4183 = ssub.s32 %s12, 2
      // Predicated region
      $region53: #{tpu_custom_call.1} parent=51 // pred_check
        %p4184 = pneg %p172
      $region54: #{tpu_custom_call.1} parent=51 // pred_check_branch
        %4186 = sbr.rel (%p4184) target = $region56
      $region55: #{tpu_custom_call.1} parent=51 // pred_region
        %s4187 = smul.u32 32, %s18
        %p4188 = scmp.lt.s32.totalorder %s4187, 127
        %s4189 = scalar_select %p4188, %s4187, 127
        %s4190 = smul.addr %s4189, 8
        %s4191 = scalar_lea.vmem %s6, %s4190
      $region56: #{tpu_custom_call.1} parent=51 // pred_fallthru
        _
    $region52: #{tpu_custom_call.1} parent=5 // pred_fallthru
      _
  $region6: #{tpu_custom_call.1} parent=0 // loop_footer
    %s16 = sadd.s32 1, %s12
  $region7: #{tpu_custom_call.1} parent=0 // loop_footer_branch
    %11 = sbr.rel target = $region3
  $region8: #{tpu_custom_call.1} parent=0 // loop_exit
    _

</llo_original>
